<compile_context>
chip_gen: v7x
topology: tpu7x:2x2x1
jax: 0.10.0
libtpu: 0.0.40
codegen_flags: <defaults>
</compile_context>

<pallas_src>
import jax
import jax.numpy as jnp
from jax import lax
from jax.experimental import pallas as pl
from jax.experimental.pallas import tpu as pltpu


C_PAD = 128  # lane padding for every layer's output channels (C_out = 80)

# Layer specs (C_out, kernel_size, stride) of
# Conv1d(in,80,100,5) -> Conv1d(80,80,50,5) -> Conv1d(80,80,25,2)
_LAYERS = ((80, 100, 5), (80, 50, 5), (80, 25, 2))


def _round_up(x, m):
    return (x + m - 1) // m * m


def _l_out(l_in, k, s):
    return (l_in - k) // s + 1


# ----------------------------- kernel ------------------------------------- #

def _make_kernel(L2, L3, M1, k2, s2, k3, s3):
    """Builds the fused 3-layer kernel for one batch element per grid step."""

    def kernel(p1_ref, w1_ref, b1_ref, w2_ref, b2_ref, w3_ref, b3_ref, o_ref):
        # ---------------- layer 1: single folded MXU dot -------------------
        # p1_ref: (1, s2*M1, KC_pad) bf16 im2col patch, rows in phase-major
        # order (row j = M1*r + m  <->  conv1 output position t1 = s2*m + r).
        p1 = p1_ref[...][0]                                    # (s2*M1, KC_pad)
        h1 = jnp.dot(p1, w1_ref[...], preferred_element_type=jnp.float32)
        h1 = jnp.maximum(h1 + b1_ref[...], 0.0).astype(jnp.bfloat16)

        # ---------------- layer 2: in-VMEM im2col + one dot ----------------
        # tap k = s2*q + r needs conv1 rows s2*(t+q)+r  ->  contiguous phased
        # rows [M1*r + q : M1*r + q + L2].
        cols2 = []
        for k in range(k2):
            q, r = k // s2, k % s2
            st = M1 * r + q
            cols2.append(h1[st:st + L2, :])                    # (L2, 128)
        patch2 = jnp.concatenate(cols2, axis=1)                # (L2, k2*128)
        h2 = jnp.dot(patch2, w2_ref[...], preferred_element_type=jnp.float32)
        h2 = jnp.maximum(h2 + b2_ref[...], 0.0).astype(jnp.bfloat16)

        # ---------------- layer 3: extended-row fold + one dot -------------
        # Compute (L3-1)*s3+1 contiguous rows per tap, keep every s3-th row,
        # so the stride never appears as a strided slice.
        ext = (L3 - 1) * s3 + 1
        cols3 = [h2[k:k + ext, :] for k in range(k3)]          # (ext, 128) each
        patch3 = jnp.concatenate(cols3, axis=1)                # (ext, k3*128)
        acc3 = jnp.dot(patch3, w3_ref[...], preferred_element_type=jnp.float32)
        acc3 = acc3 + b3_ref[...]
        rows = [acc3[t * s3:t * s3 + 1, :] for t in range(L3)]
        out = jnp.maximum(jnp.concatenate(rows, axis=0), 0.0)  # (L3, 128)

        o_ref[...] = out[None]                                 # single store

    return kernel


# ----------------------------- wrapper ------------------------------------ #

def nopool_cnn_forward(x, kp):
    """x: (N, C_in, L) f32, kp: prepacked kernel params. Returns (N, 80, L3)."""
    N, C_in, L0 = x.shape
    (c1, k1, s1), (c2, k2, s2), (c3, k3, s3) = _LAYERS
    L1 = _l_out(L0, k1, s1)
    L2 = _l_out(L1, k2, s2)
    L3 = _l_out(L2, k3, s3)
    assert L1 >= 1 and L2 >= 1 and L3 >= 1, "input too short for the three conv layers"

    # Phase-major ordering of conv1 output rows w.r.t. conv2's stride s2.
    M1 = (k2 - 1) // s2 + L2          # rows per phase actually consumed by conv2
    p1_rows = s2 * M1
    j = jnp.arange(p1_rows)
    r = j // M1
    m = j % M1
    t1 = jnp.minimum(s2 * m + r, L1 - 1)   # overhang rows are never consumed

    kc = k1 * C_in
    kc_pad = _round_up(kc, 128)

    # Layer-1 im2col (tiny, done once in XLA): column layout is k-major, c-minor
    # to match the prepacked w1.
    pos = s1 * t1[:, None] + jnp.arange(k1)[None, :]           # (p1_rows, k1)
    patch = x[:, :, pos]                                       # (N, C_in, p1_rows, k1)
    patch = jnp.transpose(patch, (0, 2, 3, 1)).reshape(N, p1_rows, kc)
    patch = jnp.pad(patch, ((0, 0), (0, 0), (0, kc_pad - kc))).astype(jnp.bfloat16)

    def _full(shape):
        return pl.BlockSpec(shape, lambda n: (0,) * len(shape))

    kernel = _make_kernel(L2, L3, M1, k2, s2, k3, s3)

    out = pl.pallas_call(
        kernel,
        out_shape=jax.ShapeDtypeStruct((N, L3, C_PAD), jnp.float32),
        grid=(N,),
        in_specs=[
            pl.BlockSpec((1, p1_rows, kc_pad), lambda n: (n, 0, 0)),
            _full(kp["w1"].shape), _full(kp["b1"].shape),
            _full(kp["w2"].shape), _full(kp["b2"].shape),
            _full(kp["w3"].shape), _full(kp["b3"].shape),
        ],
        out_specs=pl.BlockSpec((1, L3, C_PAD), lambda n: (n, 0, 0)),
        compiler_params=pltpu.CompilerParams(
            dimension_semantics=("parallel",),
            vmem_limit_bytes=32 * 1024 * 1024,
        ),
    )(patch, kp["w1"], kp["b1"], kp["w2"], kp["b2"], kp["w3"], kp["b3"])

    # Single boundary slice + transpose back to NCL.
    return jnp.transpose(out[:, :, :c3], (0, 2, 1))


# ----------------------------- params -------------------------------------- #

def init_nopool_cnn_params(key, in_channels):
    """Deterministic PyTorch-like (uniform +-1/sqrt(fan_in)) init, torch layout."""
    params = {}
    c_in = in_channels
    for i, (c_out, k, _s) in enumerate(_LAYERS, start=1):
        key, kw, kb = jax.random.split(key, 3)
        bound = 1.0 / float(c_in * k) ** 0.5
        params[f"w{i}"] = jax.random.uniform(
            kw, (c_out, c_in, k), jnp.float32, -bound, bound)
        params[f"b{i}"] = jax.random.uniform(
            kb, (c_out,), jnp.float32, -bound, bound)
        c_in = c_out
    return params


def prepare_kernel_params(params):
    """One-time (hoisted) relayout into the kernel's folded, lane-dense layout.

    w1 -> (round_up(K1*C_in,128), 128) bf16, w1p[k*C_in + c, co] = torch_w1[co, c, k]
    w2 -> (K2*128, 128) bf16,            w2p[128*k + c, co]     = torch_w2[co, c, k]
    w3 -> (K3*128, 128) bf16,            w3p[128*k + c, co]     = torch_w3[co, c, k]
    b* -> (1, 128) f32.  All padding is zero, so padded channels stay zero.
    """
    kp = {}
    c1, k1, _ = _LAYERS[0]
    w1 = params["w1"]                                  # (c1, c_in, k1)
    c_in = w1.shape[1]
    kc = k1 * c_in
    kc_pad = _round_up(kc, 128)
    w1p = jnp.transpose(w1, (2, 1, 0)).reshape(kc, c1)  # [k*c_in + c, co]
    kp["w1"] = jnp.pad(w1p, ((0, kc_pad - kc), (0, C_PAD - c1))).astype(jnp.bfloat16)
    kp["b1"] = jnp.pad(params["b1"], (0, C_PAD - c1)).reshape(1, C_PAD)

    for i in (2, 3):
        c_out, k, _s = _LAYERS[i - 1]
        w = params[f"w{i}"]                            # (c_out, c_in, k)
        c_in_i = w.shape[1]
        wt = jnp.transpose(w, (2, 1, 0))               # (k, c_in, c_out)
        wt = jnp.pad(wt, ((0, 0), (0, C_PAD - c_in_i), (0, C_PAD - c_out)))
        kp[f"w{i}"] = wt.reshape(k * C_PAD, C_PAD).astype(jnp.bfloat16)
        kp[f"b{i}"] = jnp.pad(params[f"b{i}"], (0, C_PAD - c_out)).reshape(1, C_PAD)
    return kp


def reference_forward(x, params):
    """Plain-XLA reference using the same bf16-operand / f32-accumulate math."""
    dn = lax.conv_dimension_numbers(x.shape, params["w1"].shape,
                                    ("NCH", "OIH", "NCH"))
    h = x
    for i, (_c, _k, s) in enumerate(_LAYERS, start=1):
        h = lax.conv_general_dilated(
            h.astype(jnp.bfloat16), params[f"w{i}"].astype(jnp.bfloat16),
            window_strides=(s,), padding="VALID", dimension_numbers=dn,
            preferred_element_type=jnp.float32)
        h = jnp.maximum(h + params[f"b{i}"][None, :, None], 0.0)
    return h


if __name__ == "__main__":
    key = jax.random.PRNGKey(0)
    k_param, k_x = jax.random.split(key)

    in_channels = 2
    batch = 2
    length = 1000  # L: 1000 -> 181 -> 27 -> 2 (min feasible length is 945)

    params = init_nopool_cnn_params(k_param, in_channels)
    kparams = prepare_kernel_params(params)   # padding/relayout hoisted to init
    x = jax.random.normal(k_x, (batch, in_channels, length), jnp.float32)

    out = jax.block_until_ready(jax.jit(nopool_cnn_forward)(x, kparams))

    assert out.shape == (batch, 80, 2), out.shape
    assert bool(jnp.all(out >= 0.0)), "ReLU output must be non-negative"

    ref = jax.block_until_ready(jax.jit(reference_forward)(x, params))
    assert bool(jnp.allclose(out, ref, rtol=1e-2, atol=1e-2)), (
        "mismatch vs reference, max abs err = "
        + str(float(jnp.max(jnp.abs(out - ref)))))

    print("KERNEL_OK")
</pallas_src>

<mosaic_0001>
module attributes {stable_mosaic.version = 11 : i64} {
  func.func @kernel(%arg0: i32, %arg1: memref<1x180x256xbf16, #tpu.memory_space<vmem>>, %arg2: memref<256x128xbf16, #tpu.memory_space<vmem>>, %arg3: memref<1x128xf32, #tpu.memory_space<vmem>>, %arg4: memref<6400x128xbf16, #tpu.memory_space<vmem>>, %arg5: memref<1x128xf32, #tpu.memory_space<vmem>>, %arg6: memref<3200x128xbf16, #tpu.memory_space<vmem>>, %arg7: memref<1x128xf32, #tpu.memory_space<vmem>>, %arg8: memref<1x2x128xf32, #tpu.memory_space<vmem>>) attributes {dimension_semantics = [#tpu.dimension_semantics<parallel>], iteration_bounds = array<i64: 2>, scalar_prefetch = 0 : i64, scratch_operands = 0 : i64, tpu.core_type = #tpu.core_type<tc>, window_params = [{transform_indices = @transform_0, window_bounds = array<i64: 1, 180, 256>}, {pipeline_mode = #tpu.pipeline_mode<synchronous>, transform_indices = @transform_1, window_bounds = array<i64: 256, 128>}, {pipeline_mode = #tpu.pipeline_mode<synchronous>, transform_indices = @transform_2, window_bounds = array<i64: 1, 128>}, {pipeline_mode = #tpu.pipeline_mode<synchronous>, transform_indices = @transform_3, window_bounds = array<i64: 6400, 128>}, {pipeline_mode = #tpu.pipeline_mode<synchronous>, transform_indices = @transform_4, window_bounds = array<i64: 1, 128>}, {pipeline_mode = #tpu.pipeline_mode<synchronous>, transform_indices = @transform_5, window_bounds = array<i64: 3200, 128>}, {pipeline_mode = #tpu.pipeline_mode<synchronous>, transform_indices = @transform_6, window_bounds = array<i64: 1, 128>}, {transform_indices = @transform_7, window_bounds = array<i64: 1, 2, 128>}]} {
    %c0 = arith.constant 0 : index
    %c0_0 = arith.constant 0 : index
    %c0_1 = arith.constant 0 : index
    %0 = vector.load %arg1[%c0, %c0_0, %c0_1] : memref<1x180x256xbf16, #tpu.memory_space<vmem>>, vector<1x180x256xbf16>
    %1 = vector.shape_cast %0 : vector<1x180x256xbf16> to vector<180x256xbf16>
    %c0_2 = arith.constant 0 : index
    %c0_3 = arith.constant 0 : index
    %2 = vector.load %arg2[%c0_2, %c0_3] : memref<256x128xbf16, #tpu.memory_space<vmem>>, vector<256x128xbf16>
    %cst = arith.constant dense<0.000000e+00> : vector<180x128xf32>
    %3 = tpu.matmul %1, %2, %cst {dimension_numbers = #tpu.dot_dimension_numbers<[1], [0], [0], [1], [0, 0, 1, 1], [], []>} : vector<180x256xbf16>, vector<256x128xbf16>, vector<180x128xf32> -> vector<180x128xf32>
    %c0_4 = arith.constant 0 : index
    %c0_5 = arith.constant 0 : index
    %4 = vector.load %arg3[%c0_4, %c0_5] : memref<1x128xf32, #tpu.memory_space<vmem>>, vector<1x128xf32>
    %5 = vector.broadcast %4 : vector<1x128xf32> to vector<180x128xf32>
    %6 = arith.addf %3, %5 : vector<180x128xf32>
    %cst_6 = arith.constant 0.000000e+00 : f32
    %7 = vector.broadcast %cst_6 : f32 to vector<180x128xf32>
    %8 = arith.maximumf %6, %7 : vector<180x128xf32>
    %9 = arith.truncf %8 : vector<180x128xf32> to vector<180x128xbf16>
    %10 = vector.extract_strided_slice %9 {offsets = [0, 0], sizes = [27, 128], strides = [1, 1]} : vector<180x128xbf16> to vector<27x128xbf16>
    %11 = vector.extract_strided_slice %9 {offsets = [36, 0], sizes = [27, 128], strides = [1, 1]} : vector<180x128xbf16> to vector<27x128xbf16>
    %12 = vector.extract_strided_slice %9 {offsets = [72, 0], sizes = [27, 128], strides = [1, 1]} : vector<180x128xbf16> to vector<27x128xbf16>
    %13 = vector.extract_strided_slice %9 {offsets = [108, 0], sizes = [27, 128], strides = [1, 1]} : vector<180x128xbf16> to vector<27x128xbf16>
    %14 = vector.extract_strided_slice %9 {offsets = [144, 0], sizes = [27, 128], strides = [1, 1]} : vector<180x128xbf16> to vector<27x128xbf16>
    %15 = vector.extract_strided_slice %9 {offsets = [1, 0], sizes = [27, 128], strides = [1, 1]} : vector<180x128xbf16> to vector<27x128xbf16>
    %16 = vector.extract_strided_slice %9 {offsets = [37, 0], sizes = [27, 128], strides = [1, 1]} : vector<180x128xbf16> to vector<27x128xbf16>
    %17 = vector.extract_strided_slice %9 {offsets = [73, 0], sizes = [27, 128], strides = [1, 1]} : vector<180x128xbf16> to vector<27x128xbf16>
    %18 = vector.extract_strided_slice %9 {offsets = [109, 0], sizes = [27, 128], strides = [1, 1]} : vector<180x128xbf16> to vector<27x128xbf16>
    %19 = vector.extract_strided_slice %9 {offsets = [145, 0], sizes = [27, 128], strides = [1, 1]} : vector<180x128xbf16> to vector<27x128xbf16>
    %20 = vector.extract_strided_slice %9 {offsets = [2, 0], sizes = [27, 128], strides = [1, 1]} : vector<180x128xbf16> to vector<27x128xbf16>
    %21 = vector.extract_strided_slice %9 {offsets = [38, 0], sizes = [27, 128], strides = [1, 1]} : vector<180x128xbf16> to vector<27x128xbf16>
    %22 = vector.extract_strided_slice %9 {offsets = [74, 0], sizes = [27, 128], strides = [1, 1]} : vector<180x128xbf16> to vector<27x128xbf16>
    %23 = vector.extract_strided_slice %9 {offsets = [110, 0], sizes = [27, 128], strides = [1, 1]} : vector<180x128xbf16> to vector<27x128xbf16>
    %24 = vector.extract_strided_slice %9 {offsets = [146, 0], sizes = [27, 128], strides = [1, 1]} : vector<180x128xbf16> to vector<27x128xbf16>
    %25 = vector.extract_strided_slice %9 {offsets = [3, 0], sizes = [27, 128], strides = [1, 1]} : vector<180x128xbf16> to vector<27x128xbf16>
    %26 = vector.extract_strided_slice %9 {offsets = [39, 0], sizes = [27, 128], strides = [1, 1]} : vector<180x128xbf16> to vector<27x128xbf16>
    %27 = vector.extract_strided_slice %9 {offsets = [75, 0], sizes = [27, 128], strides = [1, 1]} : vector<180x128xbf16> to vector<27x128xbf16>
    %28 = vector.extract_strided_slice %9 {offsets = [111, 0], sizes = [27, 128], strides = [1, 1]} : vector<180x128xbf16> to vector<27x128xbf16>
    %29 = vector.extract_strided_slice %9 {offsets = [147, 0], sizes = [27, 128], strides = [1, 1]} : vector<180x128xbf16> to vector<27x128xbf16>
    %30 = vector.extract_strided_slice %9 {offsets = [4, 0], sizes = [27, 128], strides = [1, 1]} : vector<180x128xbf16> to vector<27x128xbf16>
    %31 = vector.extract_strided_slice %9 {offsets = [40, 0], sizes = [27, 128], strides = [1, 1]} : vector<180x128xbf16> to vector<27x128xbf16>
    %32 = vector.extract_strided_slice %9 {offsets = [76, 0], sizes = [27, 128], strides = [1, 1]} : vector<180x128xbf16> to vector<27x128xbf16>
    %33 = vector.extract_strided_slice %9 {offsets = [112, 0], sizes = [27, 128], strides = [1, 1]} : vector<180x128xbf16> to vector<27x128xbf16>
    %34 = vector.extract_strided_slice %9 {offsets = [148, 0], sizes = [27, 128], strides = [1, 1]} : vector<180x128xbf16> to vector<27x128xbf16>
    %35 = vector.extract_strided_slice %9 {offsets = [5, 0], sizes = [27, 128], strides = [1, 1]} : vector<180x128xbf16> to vector<27x128xbf16>
    %36 = vector.extract_strided_slice %9 {offsets = [41, 0], sizes = [27, 128], strides = [1, 1]} : vector<180x128xbf16> to vector<27x128xbf16>
    %37 = vector.extract_strided_slice %9 {offsets = [77, 0], sizes = [27, 128], strides = [1, 1]} : vector<180x128xbf16> to vector<27x128xbf16>
    %38 = vector.extract_strided_slice %9 {offsets = [113, 0], sizes = [27, 128], strides = [1, 1]} : vector<180x128xbf16> to vector<27x128xbf16>
    %39 = vector.extract_strided_slice %9 {offsets = [149, 0], sizes = [27, 128], strides = [1, 1]} : vector<180x128xbf16> to vector<27x128xbf16>
    %40 = vector.extract_strided_slice %9 {offsets = [6, 0], sizes = [27, 128], strides = [1, 1]} : vector<180x128xbf16> to vector<27x128xbf16>
    %41 = vector.extract_strided_slice %9 {offsets = [42, 0], sizes = [27, 128], strides = [1, 1]} : vector<180x128xbf16> to vector<27x128xbf16>
    %42 = vector.extract_strided_slice %9 {offsets = [78, 0], sizes = [27, 128], strides = [1, 1]} : vector<180x128xbf16> to vector<27x128xbf16>
    %43 = vector.extract_strided_slice %9 {offsets = [114, 0], sizes = [27, 128], strides = [1, 1]} : vector<180x128xbf16> to vector<27x128xbf16>
    %44 = vector.extract_strided_slice %9 {offsets = [150, 0], sizes = [27, 128], strides = [1, 1]} : vector<180x128xbf16> to vector<27x128xbf16>
    %45 = vector.extract_strided_slice %9 {offsets = [7, 0], sizes = [27, 128], strides = [1, 1]} : vector<180x128xbf16> to vector<27x128xbf16>
    %46 = vector.extract_strided_slice %9 {offsets = [43, 0], sizes = [27, 128], strides = [1, 1]} : vector<180x128xbf16> to vector<27x128xbf16>
    %47 = vector.extract_strided_slice %9 {offsets = [79, 0], sizes = [27, 128], strides = [1, 1]} : vector<180x128xbf16> to vector<27x128xbf16>
    %48 = vector.extract_strided_slice %9 {offsets = [115, 0], sizes = [27, 128], strides = [1, 1]} : vector<180x128xbf16> to vector<27x128xbf16>
    %49 = vector.extract_strided_slice %9 {offsets = [151, 0], sizes = [27, 128], strides = [1, 1]} : vector<180x128xbf16> to vector<27x128xbf16>
    %50 = vector.extract_strided_slice %9 {offsets = [8, 0], sizes = [27, 128], strides = [1, 1]} : vector<180x128xbf16> to vector<27x128xbf16>
    %51 = vector.extract_strided_slice %9 {offsets = [44, 0], sizes = [27, 128], strides = [1, 1]} : vector<180x128xbf16> to vector<27x128xbf16>
    %52 = vector.extract_strided_slice %9 {offsets = [80, 0], sizes = [27, 128], strides = [1, 1]} : vector<180x128xbf16> to vector<27x128xbf16>
    %53 = vector.extract_strided_slice %9 {offsets = [116, 0], sizes = [27, 128], strides = [1, 1]} : vector<180x128xbf16> to vector<27x128xbf16>
    %54 = vector.extract_strided_slice %9 {offsets = [152, 0], sizes = [27, 128], strides = [1, 1]} : vector<180x128xbf16> to vector<27x128xbf16>
    %55 = vector.extract_strided_slice %9 {offsets = [9, 0], sizes = [27, 128], strides = [1, 1]} : vector<180x128xbf16> to vector<27x128xbf16>
    %56 = vector.extract_strided_slice %9 {offsets = [45, 0], sizes = [27, 128], strides = [1, 1]} : vector<180x128xbf16> to vector<27x128xbf16>
    %57 = vector.extract_strided_slice %9 {offsets = [81, 0], sizes = [27, 128], strides = [1, 1]} : vector<180x128xbf16> to vector<27x128xbf16>
    %58 = vector.extract_strided_slice %9 {offsets = [117, 0], sizes = [27, 128], strides = [1, 1]} : vector<180x128xbf16> to vector<27x128xbf16>
    %59 = vector.extract_strided_slice %9 {offsets = [153, 0], sizes = [27, 128], strides = [1, 1]} : vector<180x128xbf16> to vector<27x128xbf16>
    %60 = tpu.concatenate %10, %11, %12, %13, %14, %15, %16, %17, %18, %19, %20, %21, %22, %23, %24, %25 in 1 : vector<27x128xbf16>, vector<27x128xbf16>, vector<27x128xbf16>, vector<27x128xbf16>, vector<27x128xbf16>, vector<27x128xbf16>, vector<27x128xbf16>, vector<27x128xbf16>, vector<27x128xbf16>, vector<27x128xbf16>, vector<27x128xbf16>, vector<27x128xbf16>, vector<27x128xbf16>, vector<27x128xbf16>, vector<27x128xbf16>, vector<27x128xbf16> -> vector<27x2048xbf16>
    %61 = tpu.concatenate %26, %27, %28, %29, %30, %31, %32, %33, %34, %35, %36, %37, %38, %39, %40, %41 in 1 : vector<27x128xbf16>, vector<27x128xbf16>, vector<27x128xbf16>, vector<27x128xbf16>, vector<27x128xbf16>, vector<27x128xbf16>, vector<27x128xbf16>, vector<27x128xbf16>, vector<27x128xbf16>, vector<27x128xbf16>, vector<27x128xbf16>, vector<27x128xbf16>, vector<27x128xbf16>, vector<27x128xbf16>, vector<27x128xbf16>, vector<27x128xbf16> -> vector<27x2048xbf16>
    %62 = tpu.concatenate %42, %43, %44, %45, %46, %47, %48, %49, %50, %51, %52, %53, %54, %55, %56, %57 in 1 : vector<27x128xbf16>, vector<27x128xbf16>, vector<27x128xbf16>, vector<27x128xbf16>, vector<27x128xbf16>, vector<27x128xbf16>, vector<27x128xbf16>, vector<27x128xbf16>, vector<27x128xbf16>, vector<27x128xbf16>, vector<27x128xbf16>, vector<27x128xbf16>, vector<27x128xbf16>, vector<27x128xbf16>, vector<27x128xbf16>, vector<27x128xbf16> -> vector<27x2048xbf16>
    %63 = tpu.concatenate %58, %59 in 1 : vector<27x128xbf16>, vector<27x128xbf16> -> vector<27x256xbf16>
    %64 = tpu.concatenate %60, %61, %62, %63 in 1 : vector<27x2048xbf16>, vector<27x2048xbf16>, vector<27x2048xbf16>, vector<27x256xbf16> -> vector<27x6400xbf16>
    %c0_7 = arith.constant 0 : index
    %c0_8 = arith.constant 0 : index
    %65 = vector.load %arg4[%c0_7, %c0_8] : memref<6400x128xbf16, #tpu.memory_space<vmem>>, vector<6400x128xbf16>
    %cst_9 = arith.constant dense<0.000000e+00> : vector<27x128xf32>
    %66 = tpu.matmul %64, %65, %cst_9 {dimension_numbers = #tpu.dot_dimension_numbers<[1], [0], [0], [1], [0, 0, 1, 1], [], []>} : vector<27x6400xbf16>, vector<6400x128xbf16>, vector<27x128xf32> -> vector<27x128xf32>
    %c0_10 = arith.constant 0 : index
    %c0_11 = arith.constant 0 : index
    %67 = vector.load %arg5[%c0_10, %c0_11] : memref<1x128xf32, #tpu.memory_space<vmem>>, vector<1x128xf32>
    %68 = vector.broadcast %67 : vector<1x128xf32> to vector<27x128xf32>
    %69 = arith.addf %66, %68 : vector<27x128xf32>
    %cst_12 = arith.constant 0.000000e+00 : f32
    %70 = vector.broadcast %cst_12 : f32 to vector<27x128xf32>
    %71 = arith.maximumf %69, %70 : vector<27x128xf32>
    %72 = arith.truncf %71 : vector<27x128xf32> to vector<27x128xbf16>
    %73 = vector.extract_strided_slice %72 {offsets = [0, 0], sizes = [3, 128], strides = [1, 1]} : vector<27x128xbf16> to vector<3x128xbf16>
    %74 = vector.extract_strided_slice %72 {offsets = [1, 0], sizes = [3, 128], strides = [1, 1]} : vector<27x128xbf16> to vector<3x128xbf16>
    %75 = vector.extract_strided_slice %72 {offsets = [2, 0], sizes = [3, 128], strides = [1, 1]} : vector<27x128xbf16> to vector<3x128xbf16>
    %76 = vector.extract_strided_slice %72 {offsets = [3, 0], sizes = [3, 128], strides = [1, 1]} : vector<27x128xbf16> to vector<3x128xbf16>
    %77 = vector.extract_strided_slice %72 {offsets = [4, 0], sizes = [3, 128], strides = [1, 1]} : vector<27x128xbf16> to vector<3x128xbf16>
    %78 = vector.extract_strided_slice %72 {offsets = [5, 0], sizes = [3, 128], strides = [1, 1]} : vector<27x128xbf16> to vector<3x128xbf16>
    %79 = vector.extract_strided_slice %72 {offsets = [6, 0], sizes = [3, 128], strides = [1, 1]} : vector<27x128xbf16> to vector<3x128xbf16>
    %80 = vector.extract_strided_slice %72 {offsets = [7, 0], sizes = [3, 128], strides = [1, 1]} : vector<27x128xbf16> to vector<3x128xbf16>
    %81 = vector.extract_strided_slice %72 {offsets = [8, 0], sizes = [3, 128], strides = [1, 1]} : vector<27x128xbf16> to vector<3x128xbf16>
    %82 = vector.extract_strided_slice %72 {offsets = [9, 0], sizes = [3, 128], strides = [1, 1]} : vector<27x128xbf16> to vector<3x128xbf16>
    %83 = vector.extract_strided_slice %72 {offsets = [10, 0], sizes = [3, 128], strides = [1, 1]} : vector<27x128xbf16> to vector<3x128xbf16>
    %84 = vector.extract_strided_slice %72 {offsets = [11, 0], sizes = [3, 128], strides = [1, 1]} : vector<27x128xbf16> to vector<3x128xbf16>
    %85 = vector.extract_strided_slice %72 {offsets = [12, 0], sizes = [3, 128], strides = [1, 1]} : vector<27x128xbf16> to vector<3x128xbf16>
    %86 = vector.extract_strided_slice %72 {offsets = [13, 0], sizes = [3, 128], strides = [1, 1]} : vector<27x128xbf16> to vector<3x128xbf16>
    %87 = vector.extract_strided_slice %72 {offsets = [14, 0], sizes = [3, 128], strides = [1, 1]} : vector<27x128xbf16> to vector<3x128xbf16>
    %88 = vector.extract_strided_slice %72 {offsets = [15, 0], sizes = [3, 128], strides = [1, 1]} : vector<27x128xbf16> to vector<3x128xbf16>
    %89 = vector.extract_strided_slice %72 {offsets = [16, 0], sizes = [3, 128], strides = [1, 1]} : vector<27x128xbf16> to vector<3x128xbf16>
    %90 = vector.extract_strided_slice %72 {offsets = [17, 0], sizes = [3, 128], strides = [1, 1]} : vector<27x128xbf16> to vector<3x128xbf16>
    %91 = vector.extract_strided_slice %72 {offsets = [18, 0], sizes = [3, 128], strides = [1, 1]} : vector<27x128xbf16> to vector<3x128xbf16>
    %92 = vector.extract_strided_slice %72 {offsets = [19, 0], sizes = [3, 128], strides = [1, 1]} : vector<27x128xbf16> to vector<3x128xbf16>
    %93 = vector.extract_strided_slice %72 {offsets = [20, 0], sizes = [3, 128], strides = [1, 1]} : vector<27x128xbf16> to vector<3x128xbf16>
    %94 = vector.extract_strided_slice %72 {offsets = [21, 0], sizes = [3, 128], strides = [1, 1]} : vector<27x128xbf16> to vector<3x128xbf16>
    %95 = vector.extract_strided_slice %72 {offsets = [22, 0], sizes = [3, 128], strides = [1, 1]} : vector<27x128xbf16> to vector<3x128xbf16>
    %96 = vector.extract_strided_slice %72 {offsets = [23, 0], sizes = [3, 128], strides = [1, 1]} : vector<27x128xbf16> to vector<3x128xbf16>
    %97 = vector.extract_strided_slice %72 {offsets = [24, 0], sizes = [3, 128], strides = [1, 1]} : vector<27x128xbf16> to vector<3x128xbf16>
    %98 = tpu.concatenate %73, %74, %75, %76, %77, %78, %79, %80, %81, %82, %83, %84, %85, %86, %87, %88 in 1 : vector<3x128xbf16>, vector<3x128xbf16>, vector<3x128xbf16>, vector<3x128xbf16>, vector<3x128xbf16>, vector<3x128xbf16>, vector<3x128xbf16>, vector<3x128xbf16>, vector<3x128xbf16>, vector<3x128xbf16>, vector<3x128xbf16>, vector<3x128xbf16>, vector<3x128xbf16>, vector<3x128xbf16>, vector<3x128xbf16>, vector<3x128xbf16> -> vector<3x2048xbf16>
    %99 = tpu.concatenate %89, %90, %91, %92, %93, %94, %95, %96, %97 in 1 : vector<3x128xbf16>, vector<3x128xbf16>, vector<3x128xbf16>, vector<3x128xbf16>, vector<3x128xbf16>, vector<3x128xbf16>, vector<3x128xbf16>, vector<3x128xbf16>, vector<3x128xbf16> -> vector<3x1152xbf16>
    %100 = tpu.concatenate %98, %99 in 1 : vector<3x2048xbf16>, vector<3x1152xbf16> -> vector<3x3200xbf16>
    %c0_13 = arith.constant 0 : index
    %c0_14 = arith.constant 0 : index
    %101 = vector.load %arg6[%c0_13, %c0_14] : memref<3200x128xbf16, #tpu.memory_space<vmem>>, vector<3200x128xbf16>
    %cst_15 = arith.constant dense<0.000000e+00> : vector<3x128xf32>
    %102 = tpu.matmul %100, %101, %cst_15 {dimension_numbers = #tpu.dot_dimension_numbers<[1], [0], [0], [1], [0, 0, 1, 1], [], []>} : vector<3x3200xbf16>, vector<3200x128xbf16>, vector<3x128xf32> -> vector<3x128xf32>
    %c0_16 = arith.constant 0 : index
    %c0_17 = arith.constant 0 : index
    %103 = vector.load %arg7[%c0_16, %c0_17] : memref<1x128xf32, #tpu.memory_space<vmem>>, vector<1x128xf32>
    %104 = vector.broadcast %103 : vector<1x128xf32> to vector<3x128xf32>
    %105 = arith.addf %102, %104 : vector<3x128xf32>
    %106 = vector.extract_strided_slice %105 {offsets = [0, 0], sizes = [1, 128], strides = [1, 1]} : vector<3x128xf32> to vector<1x128xf32>
    %107 = vector.extract_strided_slice %105 {offsets = [2, 0], sizes = [1, 128], strides = [1, 1]} : vector<3x128xf32> to vector<1x128xf32>
    %108 = tpu.concatenate %106, %107 in 0 : vector<1x128xf32>, vector<1x128xf32> -> vector<2x128xf32>
    %cst_18 = arith.constant 0.000000e+00 : f32
    %109 = vector.broadcast %cst_18 : f32 to vector<2x128xf32>
    %110 = arith.maximumf %108, %109 : vector<2x128xf32>
    %111 = vector.shape_cast %110 : vector<2x128xf32> to vector<1x2x128xf32>
    %c0_19 = arith.constant 0 : index
    %c0_20 = arith.constant 0 : index
    %c0_21 = arith.constant 0 : index
    %112 = vector.load %arg8[%c0_19, %c0_20, %c0_21] : memref<1x2x128xf32, #tpu.memory_space<vmem>>, vector<1x2x128xf32>
    tpu.vector_store %arg8[%c0_19, %c0_20, %c0_21], %111 {strides = array<i32>} : memref<1x2x128xf32, #tpu.memory_space<vmem>>, vector<1x2x128xf32>,
    return
  }
  func.func @transform_0(%arg0: i32) -> (i32, i32, i32) {
    %c0_i32 = arith.constant 0 : i32
    %c0_i32_0 = arith.constant 0 : i32
    %c0_i32_1 = arith.constant 0 : i32
    return %arg0, %c0_i32, %c0_i32_0 : i32, i32, i32
  }
  func.func @transform_1(%arg0: i32) -> (i32, i32) {
    %c0_i32 = arith.constant 0 : i32
    %c0_i32_0 = arith.constant 0 : i32
    %c0_i32_1 = arith.constant 0 : i32
    return %c0_i32, %c0_i32_0 : i32, i32
  }
  func.func @transform_2(%arg0: i32) -> (i32, i32) {
    %c0_i32 = arith.constant 0 : i32
    %c0_i32_0 = arith.constant 0 : i32
    %c0_i32_1 = arith.constant 0 : i32
    return %c0_i32, %c0_i32_0 : i32, i32
  }
  func.func @transform_3(%arg0: i32) -> (i32, i32) {
    %c0_i32 = arith.constant 0 : i32
    %c0_i32_0 = arith.constant 0 : i32
    %c0_i32_1 = arith.constant 0 : i32
    return %c0_i32, %c0_i32_0 : i32, i32
  }
  func.func @transform_4(%arg0: i32) -> (i32, i32) {
    %c0_i32 = arith.constant 0 : i32
    %c0_i32_0 = arith.constant 0 : i32
    %c0_i32_1 = arith.constant 0 : i32
    return %c0_i32, %c0_i32_0 : i32, i32
  }
  func.func @transform_5(%arg0: i32) -> (i32, i32) {
    %c0_i32 = arith.constant 0 : i32
    %c0_i32_0 = arith.constant 0 : i32
    %c0_i32_1 = arith.constant 0 : i32
    return %c0_i32, %c0_i32_0 : i32, i32
  }
  func.func @transform_6(%arg0: i32) -> (i32, i32) {
    %c0_i32 = arith.constant 0 : i32
    %c0_i32_0 = arith.constant 0 : i32
    %c0_i32_1 = arith.constant 0 : i32
    return %c0_i32, %c0_i32_0 : i32, i32
  }
  func.func @transform_7(%arg0: i32) -> (i32, i32, i32) {
    %c0_i32 = arith.constant 0 : i32
    %c0_i32_0 = arith.constant 0 : i32
    %c0_i32_1 = arith.constant 0 : i32
    return %arg0, %c0_i32, %c0_i32_0 : i32, i32, i32
  }
}

</mosaic_0001>

<llo_original>
// kernel: nopool_cnn_forward.1
$region0: #{nopool_cnn_forward.1}
  #allocation0 [shape = 'u32[]', space=smem, size = 0x4, offset = 0x4, fixed_abs, tag = 'smem constant byte address 0x4 - core index']
  #allocation1 [shape = 'u32[144,128]{1,0:T(1,128)}', space=vmem, size = 0x12000, scoped, tag = 'internal scratch']
  %s0 = inlined_call_operand.vmem [shape: bf16[2,180,256], index: 0, kind: input, shape index: {}]
  %s1 = inlined_call_operand.vmem [shape: bf16[256,128], index: 1, kind: input, shape index: {}]
  %s2 = inlined_call_operand.vmem [shape: f32[1,128], index: 2, kind: input, shape index: {}]
  %s3 = inlined_call_operand.vmem [shape: bf16[6400,128], index: 3, kind: input, shape index: {}]
  %s4 = inlined_call_operand.vmem [shape: f32[1,128], index: 4, kind: input, shape index: {}]
  %s5 = inlined_call_operand.vmem [shape: bf16[3200,128], index: 5, kind: input, shape index: {}]
  %s6 = inlined_call_operand.vmem [shape: f32[1,128], index: 6, kind: input, shape index: {}]
  %s7 = inlined_call_operand.vmem [shape: f32[2,2,128], index: 7, kind: output, shape index: {}]
  %s8 = sld [smem:[#allocation0]]
  $region61: #{nopool_cnn_forward.1} parent=0
    _
  %s10 = ssub.s32 1, %s8
  %s11 = scalar_select 0, %s10, %s8
  loop: start=0, step=1, limit=4
  $region2: #{nopool_cnn_forward.1} parent=0 // loop_pre_header
    _
  $region3: #{nopool_cnn_forward.1} parent=0 // loop_header
    %s13 = sphi 0, %s17
    %p14 = scmp.ge.s32.totalorder %s13, 4
    %s23 = sphi 0, %s25
    %s26 = sphi 0, %s23
    %s27 = sphi 0, %s26
    %s43 = sphi 0, %s27
    %s47 = sphi 0, %s47
    %s49 = sphi 0, %s47
    %s50 = sphi 0, %s49
    %s64 = sphi 0, %s50
    %s68 = sphi 0, %s68
    %s70 = sphi 0, %s68
    %s71 = sphi 0, %s70
    %s85 = sphi 0, %s71
    %s89 = sphi 0, %s89
    %s91 = sphi 0, %s89
    %s92 = sphi 0, %s91
    %s106 = sphi 0, %s92
    %s110 = sphi 0, %s110
    %s112 = sphi 0, %s110
    %s113 = sphi 0, %s112
    %s127 = sphi 0, %s113
    %s131 = sphi 0, %s131
    %s133 = sphi 0, %s131
    %s134 = sphi 0, %s133
    %s148 = sphi 0, %s134
    %s152 = sphi 0, %s152
    %s154 = sphi 0, %s152
    %s155 = sphi 0, %s154
    %s169 = sphi 0, %s155
    %s175 = sphi 0, %s177
    %s178 = sphi 0, %s175
    %s179 = sphi 0, %s178
    %s195 = sphi 0, %s179
  $region4: #{nopool_cnn_forward.1} parent=0 // loop_header_branch
    %16 = sbr.rel (%p14) target = $region8
  $region5: #{nopool_cnn_forward.1} parent=0 // loop_body
    %s18 = ssub.s32 %s13, 1
    %s19 = ssub.s32 %s13, 2
    %s20 = sadd.s32 %s13, 1
    %s21 = ssub.s32 %s13, %s20
    %p22 = scmp.eq.s32.totalorder %s21, 0
    %s24 = sadd.s32 %s23, 1
    %s25 = scalar_select %p22, %s23, %s24
    %p28 = pneg %p22
    %p29 = scmp.eq.s32.totalorder %s13, 1
    %p30 = por %p28, %p29
    %p31 = scmp.ne.s32.totalorder %s23, %s26
    %p32 = scmp.eq.s32.totalorder %s13, 0
    %p33 = por %p31, %p32
    %p34 = scmp.ne.s32.totalorder %s23, %s26
    %p35 = scmp.eq.s32.totalorder %s18, 1
    %p36 = por %p34, %p35
    %p37 = scmp.ne.s32.totalorder %s26, %s27
    %p38 = scmp.eq.s32.totalorder %s18, 0
    %p39 = por %p37, %p38
    %p40 = scmp.ne.s32.totalorder %s26, %s27
    %p41 = scmp.eq.s32.totalorder %s19, 1
    %p42 = por %p40, %p41
    %p44 = scmp.ne.s32.totalorder %s27, %s43
    %p45 = scmp.eq.s32.totalorder %s19, 0
    %p46 = por %p44, %p45
    %s48 = sadd.s32 %s47, 1
    %p51 = scmp.eq.s32.totalorder %s13, 1
    %p52 = scmp.ne.s32.totalorder %s47, %s49
    %p53 = scmp.eq.s32.totalorder %s13, 0
    %p54 = por %p52, %p53
    %p55 = scmp.ne.s32.totalorder %s47, %s49
    %p56 = scmp.eq.s32.totalorder %s18, 1
    %p57 = por %p55, %p56
    %p58 = scmp.ne.s32.totalorder %s49, %s50
    %p59 = scmp.eq.s32.totalorder %s18, 0
    %p60 = por %p58, %p59
    %p61 = scmp.ne.s32.totalorder %s49, %s50
    %p62 = scmp.eq.s32.totalorder %s19, 1
    %p63 = por %p61, %p62
    %p65 = scmp.ne.s32.totalorder %s50, %s64
    %p66 = scmp.eq.s32.totalorder %s19, 0
    %p67 = por %p65, %p66
    %s69 = sadd.s32 %s68, 1
    %p72 = scmp.eq.s32.totalorder %s13, 1
    %p73 = scmp.ne.s32.totalorder %s68, %s70
    %p74 = scmp.eq.s32.totalorder %s13, 0
    %p75 = por %p73, %p74
    %p76 = scmp.ne.s32.totalorder %s68, %s70
    %p77 = scmp.eq.s32.totalorder %s18, 1
    %p78 = por %p76, %p77
    %p79 = scmp.ne.s32.totalorder %s70, %s71
    %p80 = scmp.eq.s32.totalorder %s18, 0
    %p81 = por %p79, %p80
    %p82 = scmp.ne.s32.totalorder %s70, %s71
    %p83 = scmp.eq.s32.totalorder %s19, 1
    %p84 = por %p82, %p83
    %p86 = scmp.ne.s32.totalorder %s71, %s85
    %p87 = scmp.eq.s32.totalorder %s19, 0
    %p88 = por %p86, %p87
    %s90 = sadd.s32 %s89, 1
    %p93 = scmp.eq.s32.totalorder %s13, 1
    %p94 = scmp.ne.s32.totalorder %s89, %s91
    %p95 = scmp.eq.s32.totalorder %s13, 0
    %p96 = por %p94, %p95
    %p97 = scmp.ne.s32.totalorder %s89, %s91
    %p98 = scmp.eq.s32.totalorder %s18, 1
    %p99 = por %p97, %p98
    %p100 = scmp.ne.s32.totalorder %s91, %s92
    %p101 = scmp.eq.s32.totalorder %s18, 0
    %p102 = por %p100, %p101
    %p103 = scmp.ne.s32.totalorder %s91, %s92
    %p104 = scmp.eq.s32.totalorder %s19, 1
    %p105 = por %p103, %p104
    %p107 = scmp.ne.s32.totalorder %s92, %s106
    %p108 = scmp.eq.s32.totalorder %s19, 0
    %p109 = por %p107, %p108
    %s111 = sadd.s32 %s110, 1
    %p114 = scmp.eq.s32.totalorder %s13, 1
    %p115 = scmp.ne.s32.totalorder %s110, %s112
    %p116 = scmp.eq.s32.totalorder %s13, 0
    %p117 = por %p115, %p116
    %p118 = scmp.ne.s32.totalorder %s110, %s112
    %p119 = scmp.eq.s32.totalorder %s18, 1
    %p120 = por %p118, %p119
    %p121 = scmp.ne.s32.totalorder %s112, %s113
    %p122 = scmp.eq.s32.totalorder %s18, 0
    %p123 = por %p121, %p122
    %p124 = scmp.ne.s32.totalorder %s112, %s113
    %p125 = scmp.eq.s32.totalorder %s19, 1
    %p126 = por %p124, %p125
    %p128 = scmp.ne.s32.totalorder %s113, %s127
    %p129 = scmp.eq.s32.totalorder %s19, 0
    %p130 = por %p128, %p129
    %s132 = sadd.s32 %s131, 1
    %p135 = scmp.eq.s32.totalorder %s13, 1
    %p136 = scmp.ne.s32.totalorder %s131, %s133
    %p137 = scmp.eq.s32.totalorder %s13, 0
    %p138 = por %p136, %p137
    %p139 = scmp.ne.s32.totalorder %s131, %s133
    %p140 = scmp.eq.s32.totalorder %s18, 1
    %p141 = por %p139, %p140
    %p142 = scmp.ne.s32.totalorder %s133, %s134
    %p143 = scmp.eq.s32.totalorder %s18, 0
    %p144 = por %p142, %p143
    %p145 = scmp.ne.s32.totalorder %s133, %s134
    %p146 = scmp.eq.s32.totalorder %s19, 1
    %p147 = por %p145, %p146
    %p149 = scmp.ne.s32.totalorder %s134, %s148
    %p150 = scmp.eq.s32.totalorder %s19, 0
    %p151 = por %p149, %p150
    %s153 = sadd.s32 %s152, 1
    %p156 = scmp.eq.s32.totalorder %s13, 1
    %p157 = scmp.ne.s32.totalorder %s152, %s154
    %p158 = scmp.eq.s32.totalorder %s13, 0
    %p159 = por %p157, %p158
    %p160 = scmp.ne.s32.totalorder %s152, %s154
    %p161 = scmp.eq.s32.totalorder %s18, 1
    %p162 = por %p160, %p161
    %p163 = scmp.ne.s32.totalorder %s154, %s155
    %p164 = scmp.eq.s32.totalorder %s18, 0
    %p165 = por %p163, %p164
    %p166 = scmp.ne.s32.totalorder %s154, %s155
    %p167 = scmp.eq.s32.totalorder %s19, 1
    %p168 = por %p166, %p167
    %p170 = scmp.ne.s32.totalorder %s155, %s169
    %p171 = scmp.eq.s32.totalorder %s19, 0
    %p172 = por %p170, %p171
    %s173 = ssub.s32 %s13, %s20
    %p174 = scmp.eq.s32.totalorder %s173, 0
    %s176 = sadd.s32 %s175, 1
    %s177 = scalar_select %p174, %s175, %s176
    %p180 = pneg %p174
    %p181 = scmp.eq.s32.totalorder %s13, 1
    %p182 = por %p180, %p181
    %p183 = scmp.ne.s32.totalorder %s175, %s178
    %p184 = scmp.eq.s32.totalorder %s13, 0
    %p185 = por %p183, %p184
    %p186 = scmp.ne.s32.totalorder %s175, %s178
    %p187 = scmp.eq.s32.totalorder %s18, 1
    %p188 = por %p186, %p187
    %p189 = scmp.ne.s32.totalorder %s178, %s179
    %p190 = scmp.eq.s32.totalorder %s18, 0
    %p191 = por %p189, %p190
    %p192 = scmp.ne.s32.totalorder %s178, %s179
    %p193 = scmp.eq.s32.totalorder %s19, 1
    %p194 = por %p192, %p193
    %p196 = scmp.ne.s32.totalorder %s179, %s195
    %p197 = scmp.eq.s32.totalorder %s19, 0
    %p198 = por %p196, %p197
    %p199 = scmp.le.s32.totalorder 1, %s13
    %p200 = scmp.lt.s32.totalorder %s13, 3
    %p201 = pnand %p199, %p200
    %p202 = pneg %p201
    // Predicated region
    $region9: #{nopool_cnn_forward.1} parent=5 // pred_check
      _
    $region10: #{nopool_cnn_forward.1} parent=5 // pred_check_branch
      %204 = sbr.rel (%p201) target = $region12
    $region11: #{nopool_cnn_forward.1} parent=5 // pred_region
      %s205 = ssub.s32 %s13, 1
      // Predicated region
      $region13: #{nopool_cnn_forward.1} parent=11 // pred_check
        %p206 = pneg %p60
      $region14: #{nopool_cnn_forward.1} parent=11 // pred_check_branch
        %208 = sbr.rel (%p206) target = $region16
      $region15: #{nopool_cnn_forward.1} parent=11 // pred_region
        _
      $region16: #{nopool_cnn_forward.1} parent=11 // pred_fallthru
        _
      // Predicated region
      $region17: #{nopool_cnn_forward.1} parent=11 // pred_check
        %p209 = pneg %p81
      $region18: #{nopool_cnn_forward.1} parent=11 // pred_check_branch
        %211 = sbr.rel (%p209) target = $region20
      $region19: #{nopool_cnn_forward.1} parent=11 // pred_region
        _
      $region20: #{nopool_cnn_forward.1} parent=11 // pred_fallthru
        _
      // Predicated region
      $region21: #{nopool_cnn_forward.1} parent=11 // pred_check
        %p212 = pneg %p102
      $region22: #{nopool_cnn_forward.1} parent=11 // pred_check_branch
        %214 = sbr.rel (%p212) target = $region24
      $region23: #{nopool_cnn_forward.1} parent=11 // pred_region
        _
      $region24: #{nopool_cnn_forward.1} parent=11 // pred_fallthru
        _
      // Predicated region
      $region25: #{nopool_cnn_forward.1} parent=11 // pred_check
        %p215 = pneg %p123
      $region26: #{nopool_cnn_forward.1} parent=11 // pred_check_branch
        %217 = sbr.rel (%p215) target = $region28
      $region27: #{nopool_cnn_forward.1} parent=11 // pred_region
        _
      $region28: #{nopool_cnn_forward.1} parent=11 // pred_fallthru
        _
      // Predicated region
      $region29: #{nopool_cnn_forward.1} parent=11 // pred_check
        %p218 = pneg %p144
      $region30: #{nopool_cnn_forward.1} parent=11 // pred_check_branch
        %220 = sbr.rel (%p218) target = $region32
      $region31: #{nopool_cnn_forward.1} parent=11 // pred_region
        _
      $region32: #{nopool_cnn_forward.1} parent=11 // pred_fallthru
        _
      // Predicated region
      $region33: #{nopool_cnn_forward.1} parent=11 // pred_check
        %p221 = pneg %p165
      $region34: #{nopool_cnn_forward.1} parent=11 // pred_check_branch
        %223 = sbr.rel (%p221) target = $region36
      $region35: #{nopool_cnn_forward.1} parent=11 // pred_region
        _
      $region36: #{nopool_cnn_forward.1} parent=11 // pred_fallthru
        _
    $region12: #{nopool_cnn_forward.1} parent=5 // pred_fallthru
      _
    %p224 = scmp.lt.s32.totalorder %s13, 2
    // Predicated region
    $region37: #{nopool_cnn_forward.1} parent=5 // pred_check
      %p225 = pneg %p224
    $region38: #{nopool_cnn_forward.1} parent=5 // pred_check_branch
      %227 = sbr.rel (%p225) target = $region40
    $region39: #{nopool_cnn_forward.1} parent=5 // pred_region
      // Predicated region
      $region41: #{nopool_cnn_forward.1} parent=39 // pred_check
        %p228 = pneg %p33
      $region42: #{nopool_cnn_forward.1} parent=39 // pred_check_branch
        %230 = sbr.rel (%p228) target = $region44
      $region43: #{nopool_cnn_forward.1} parent=39 // pred_region
        %p231 = scmp.lt.s32.totalorder %s13, 1
        %s232 = scalar_select %p231, %s13, 1
        %s233 = smul.addr %s232, 46
        %s234 = smul.addr %s233, 4
        %s235 = scalar_lea.vmem %s0, %s234
      $region44: #{nopool_cnn_forward.1} parent=39 // pred_fallthru
        _
    $region40: #{nopool_cnn_forward.1} parent=5 // pred_fallthru
      _
    %p236 = scmp.le.s32.totalorder 1, %s13
    %p237 = scmp.lt.s32.totalorder %s13, 3
    %p238 = pnand %p236, %p237
    %p239 = pneg %p238
    // Predicated region
    $region45: #{nopool_cnn_forward.1} parent=5 // pred_check
      _
    $region46: #{nopool_cnn_forward.1} parent=5 // pred_check_branch
      %241 = sbr.rel (%p238) target = $region48
    $region47: #{nopool_cnn_forward.1} parent=5 // pred_region
      %s242 = ssub.s32 %s13, 1
      %p243 = scmp.lt.s32.totalorder %s18, 1
      %s244 = scalar_select %p243, %s18, 1
      %s245 = smul.addr %s244, 46
      %s246 = smul.addr %s245, 4
      %s247 = scalar_lea.vmem %s0, %s246
      %p248 = pneg %p39
      %p249 = pneg %p36
      %p250 = pneg %p60
      %p251 = pneg %p57
      %p252 = pneg %p81
      %p253 = pneg %p78
      %p254 = pneg %p102
      %p255 = pneg %p99
      %p256 = pneg %p123
      %p257 = pneg %p120
      %p258 = pneg %p144
      %p259 = pneg %p141
      %p260 = pneg %p165
      %p261 = pneg %p162
      %p262 = pneg %p191
      %p263 = pneg %p188
      %p264 = scmp.lt.s32.totalorder %s18, 1
      %s265 = scalar_select %p264, %s18, 1
      %s266 = smul.addr %s265, 2
      %s267 = scalar_lea.vmem %s7, %s266
      %p268 = scmp.lt.s32.totalorder %s18, 1
      %s269 = scalar_select %p268, %s18, 1
      %s270 = smul.addr %s269, 46
      %s271 = smul.addr %s270, 4
      %s272 = scalar_lea.vmem %s0, %s271
      %p273 = scmp.lt.s32.totalorder %s18, 1
      %s274 = scalar_select %p273, %s18, 1
      %s275 = smul.addr %s274, 2
      %s276 = scalar_lea.vmem %s7, %s275
      %v278 = vld [vmem:[%s272] sm:$0xff]
      %v279 = vld [vmem:[%s272 + $0x8] sm:$0xff]
      %v280 = vld [vmem:[%s272 + $0x10] sm:$0xff]
      %v281 = vld [vmem:[%s272 + $0x18] sm:$0xff]
      %v282 = vld [vmem:[%s272 + $0x20] sm:$0xff]
      %v283 = vld [vmem:[%s272 + $0x28] sm:$0xff]
      %v284 = vld [vmem:[%s272 + $0x30] sm:$0xff]
      %v285 = vld [vmem:[%s272 + $0x38] sm:$0xff]
      %v286 = vld [vmem:[%s272 + $0x40] sm:$0xff]
      %v287 = vld [vmem:[%s272 + $0x48] sm:$0xff]
      %v288 = vld [vmem:[%s272 + $0x50] sm:$0xff]
      %v289 = vld [vmem:[%s272 + $0x58] sm:$0xff]
      %v290 = vld [vmem:[%s272 + $0x60] sm:$0xff]
      %v291 = vld [vmem:[%s272 + $0x68] sm:$0xff]
      %v292 = vld [vmem:[%s272 + $0x70] sm:$0xff]
      %v293 = vld [vmem:[%s272 + $0x78] sm:$0xff]
      %v294 = vld [vmem:[%s272 + $0x80] sm:$0xff]
      %v295 = vld [vmem:[%s272 + $0x88] sm:$0xff]
      %v296 = vld [vmem:[%s272 + $0x90] sm:$0xff]
      %v297 = vld [vmem:[%s272 + $0x98] sm:$0xff]
      %v298 = vld [vmem:[%s272 + $0xa0] sm:$0xff]
      %v299 = vld [vmem:[%s272 + $0xa8] sm:$0xff]
      %v300 = vld [vmem:[%s272 + $0xb0] sm:$0x33]
      %v301 = vld [vmem:[%s1] sm:$0xf]
      %v302 = vld [vmem:[%s1 + $0x4] sm:$0xf]
      %v303 = vld [vmem:[%s1 + $0x8] sm:$0xf]
      %v304 = vld [vmem:[%s1 + $0xc] sm:$0xf]
      %v305 = vld [vmem:[%s1 + $0x10] sm:$0xf]
      %v306 = vld [vmem:[%s1 + $0x14] sm:$0xf]
      %v307 = vld [vmem:[%s1 + $0x18] sm:$0xf]
      %v308 = vld [vmem:[%s1 + $0x1c] sm:$0xf]
      %v309 = vld [vmem:[%s1 + $0x20] sm:$0xf]
      %v310 = vld [vmem:[%s1 + $0x24] sm:$0xf]
      %v311 = vld [vmem:[%s1 + $0x28] sm:$0xf]
      %v312 = vld [vmem:[%s1 + $0x2c] sm:$0xf]
      %v313 = vld [vmem:[%s1 + $0x30] sm:$0xf]
      %v314 = vld [vmem:[%s1 + $0x34] sm:$0xf]
      %v315 = vld [vmem:[%s1 + $0x38] sm:$0xf]
      %v316 = vld [vmem:[%s1 + $0x3c] sm:$0xf]
      %v317 = vld [vmem:[%s1 + $0x40] sm:$0xf]
      %v318 = vld [vmem:[%s1 + $0x44] sm:$0xf]
      %v319 = vld [vmem:[%s1 + $0x48] sm:$0xf]
      %v320 = vld [vmem:[%s1 + $0x4c] sm:$0xf]
      %v321 = vld [vmem:[%s1 + $0x50] sm:$0xf]
      %v322 = vld [vmem:[%s1 + $0x54] sm:$0xf]
      %v323 = vld [vmem:[%s1 + $0x58] sm:$0xf]
      %v324 = vld [vmem:[%s1 + $0x5c] sm:$0xf]
      %v325 = vld [vmem:[%s1 + $0x60] sm:$0xf]
      %v326 = vld [vmem:[%s1 + $0x64] sm:$0xf]
      %v327 = vld [vmem:[%s1 + $0x68] sm:$0xf]
      %v328 = vld [vmem:[%s1 + $0x6c] sm:$0xf]
      %v329 = vld [vmem:[%s1 + $0x70] sm:$0xf]
      %v330 = vld [vmem:[%s1 + $0x74] sm:$0xf]
      %v331 = vld [vmem:[%s1 + $0x78] sm:$0xf]
      %v332 = vld [vmem:[%s1 + $0x7c] sm:$0xf]
      %v333 = vld [vmem:[%s2] sm:$0x1]
      %v335 = vlaneseq
      %v336 = vshrl.u32 %v335, 7
      %v337 = vsub.s32 0, %v336
      %v338 = vrot.slane %v333, %v337
      %v363 = vunpack.c.l.b16 %v278
      %v364 = vunpack.c.h.b16 %v278
      %v365 = vunpack.c.l.b16 %v279
      %v366 = vunpack.c.h.b16 %v279
      %v367 = vunpack.c.l.b16 %v280
      %v368 = vunpack.c.h.b16 %v280
      %v369 = vunpack.c.l.b16 %v281
      %v370 = vunpack.c.h.b16 %v281
      %v371 = vunpack.c.l.b16 %v282
      %v372 = vunpack.c.h.b16 %v282
      %v373 = vunpack.c.l.b16 %v283
      %v374 = vunpack.c.h.b16 %v283
      %v375 = vunpack.c.l.b16 %v284
      %v376 = vunpack.c.h.b16 %v284
      %v377 = vunpack.c.l.b16 %v285
      %v378 = vunpack.c.h.b16 %v285
      %v379 = vunpack.c.l.b16 %v286
      %v380 = vunpack.c.h.b16 %v286
      %v381 = vunpack.c.l.b16 %v287
      %v382 = vunpack.c.h.b16 %v287
      %v383 = vunpack.c.l.b16 %v288
      %v384 = vunpack.c.h.b16 %v288
      %v385 = vunpack.c.l.b16 %v289
      %v386 = vunpack.c.h.b16 %v289
      %v387 = vunpack.c.l.b16 %v290
      %v388 = vunpack.c.h.b16 %v290
      %v389 = vunpack.c.l.b16 %v291
      %v390 = vunpack.c.h.b16 %v291
      %v391 = vunpack.c.l.b16 %v292
      %v392 = vunpack.c.h.b16 %v292
      %v393 = vunpack.c.l.b16 %v293
      %v394 = vunpack.c.h.b16 %v293
      %v395 = vunpack.c.l.b16 %v294
      %v396 = vunpack.c.h.b16 %v294
      %v397 = vunpack.c.l.b16 %v295
      %v398 = vunpack.c.h.b16 %v295
      %v399 = vunpack.c.l.b16 %v296
      %v400 = vunpack.c.h.b16 %v296
      %v401 = vunpack.c.l.b16 %v297
      %v402 = vunpack.c.h.b16 %v297
      %v403 = vunpack.c.l.b16 %v298
      %v404 = vunpack.c.h.b16 %v298
      %v405 = vunpack.c.l.b16 %v299
      %v406 = vunpack.c.h.b16 %v299
      %v407 = vunpack.c.l.b16 %v300
      %v408 = vunpack.c.h.b16 %v300
      %v409 = vpack.c.b16 %v365, %v363
      %v410 = vpack.c.b16 %v366, %v364
      %v411 = vpack.c.b16 %v369, %v367
      %v412 = vpack.c.b16 %v370, %v368
      %v413 = vpack.c.b16 %v373, %v371
      %v414 = vpack.c.b16 %v374, %v372
      %v415 = vpack.c.b16 %v377, %v375
      %v416 = vpack.c.b16 %v378, %v376
      %v417 = vpack.c.b16 %v381, %v379
      %v418 = vpack.c.b16 %v382, %v380
      %v419 = vpack.c.b16 %v385, %v383
      %v420 = vpack.c.b16 %v386, %v384
      %v421 = vpack.c.b16 %v389, %v387
      %v422 = vpack.c.b16 %v390, %v388
      %v423 = vpack.c.b16 %v393, %v391
      %v424 = vpack.c.b16 %v394, %v392
      %v425 = vpack.c.b16 %v397, %v395
      %v426 = vpack.c.b16 %v398, %v396
      %v427 = vpack.c.b16 %v401, %v399
      %v428 = vpack.c.b16 %v402, %v400
      %v429 = vpack.c.b16 %v405, %v403
      %v430 = vpack.c.b16 %v406, %v404
      %v431 = vpack.c.b16 %v407, %v407
      %v432 = vpack.c.b16 %v408, %v408
      %v489 = vunpack.c.l.b16 %v301
      %v490 = vunpack.c.l.b16 %v302
      %v491 = vunpack.c.l.b16 %v303
      %v492 = vunpack.c.l.b16 %v304
      %v493 = vunpack.c.l.b16 %v305
      %v494 = vunpack.c.l.b16 %v306
      %v495 = vunpack.c.l.b16 %v307
      %v496 = vunpack.c.l.b16 %v308
      %v497 = vunpack.c.l.b16 %v309
      %v498 = vunpack.c.l.b16 %v310
      %v499 = vunpack.c.l.b16 %v311
      %v500 = vunpack.c.l.b16 %v312
      %v501 = vunpack.c.l.b16 %v313
      %v502 = vunpack.c.l.b16 %v314
      %v503 = vunpack.c.l.b16 %v315
      %v504 = vunpack.c.l.b16 %v316
      %v505 = vunpack.c.l.b16 %v317
      %v506 = vunpack.c.l.b16 %v318
      %v507 = vunpack.c.l.b16 %v319
      %v508 = vunpack.c.l.b16 %v320
      %v509 = vunpack.c.l.b16 %v321
      %v510 = vunpack.c.l.b16 %v322
      %v511 = vunpack.c.l.b16 %v323
      %v512 = vunpack.c.l.b16 %v324
      %v513 = vunpack.c.l.b16 %v325
      %v514 = vunpack.c.l.b16 %v326
      %v515 = vunpack.c.l.b16 %v327
      %v516 = vunpack.c.l.b16 %v328
      %v517 = vunpack.c.l.b16 %v329
      %v518 = vunpack.c.l.b16 %v330
      %v519 = vunpack.c.l.b16 %v331
      %v520 = vunpack.c.l.b16 %v332
      %v521 = vpack.c.b16 %v490, %v489
      %v522 = vpack.c.b16 %v492, %v491
      %v523 = vpack.c.b16 %v494, %v493
      %v524 = vpack.c.b16 %v496, %v495
      %v525 = vpack.c.b16 %v498, %v497
      %v526 = vpack.c.b16 %v500, %v499
      %v527 = vpack.c.b16 %v502, %v501
      %v528 = vpack.c.b16 %v504, %v503
      %v529 = vpack.c.b16 %v506, %v505
      %v530 = vpack.c.b16 %v508, %v507
      %v531 = vpack.c.b16 %v510, %v509
      %v532 = vpack.c.b16 %v512, %v511
      %v533 = vpack.c.b16 %v514, %v513
      %v534 = vpack.c.b16 %v516, %v515
      %v535 = vpack.c.b16 %v518, %v517
      %v536 = vpack.c.b16 %v520, %v519
      %553 = vmatprep.subr.bf16.mxu0 0
      %554 = vmatpush1.bf16.msra.mxu0 %v521
      %555 = vmatprep.subr.bf16.mxu0 0
      %556 = vmatpush1.bf16.msra.mxu0 %v522
      %557 = vmatprep.subr.bf16.mxu0 0
      %558 = vmatpush1.bf16.msra.mxu0 %v523
      %559 = vmatprep.subr.bf16.mxu0 0
      %560 = vmatpush1.bf16.msra.mxu0 %v524
      %561 = vmatprep.subr.bf16.mxu0 0
      %562 = vmatpush1.bf16.msra.mxu0 %v525
      %563 = vmatprep.subr.bf16.mxu0 0
      %564 = vmatpush1.bf16.msra.mxu0 %v526
      %565 = vmatprep.subr.bf16.mxu0 0
      %566 = vmatpush1.bf16.msra.mxu0 %v527
      %567 = vmatprep.subr.bf16.mxu0 0
      %568 = vmatpush1.bf16.msra.mxu0 %v528
      %569 = vmatprep.subr.bf16.mxu0 0
      %570 = vmatpush1.bf16.msra.mxu0 %v529
      %571 = vmatprep.subr.bf16.mxu0 0
      %572 = vmatpush1.bf16.msra.mxu0 %v530
      %573 = vmatprep.subr.bf16.mxu0 0
      %574 = vmatpush1.bf16.msra.mxu0 %v531
      %575 = vmatprep.subr.bf16.mxu0 0
      %576 = vmatpush1.bf16.msra.mxu0 %v532
      %577 = vmatprep.subr.bf16.mxu0 0
      %578 = vmatpush1.bf16.msra.mxu0 %v533
      %579 = vmatprep.subr.bf16.mxu0 0
      %580 = vmatpush1.bf16.msra.mxu0 %v534
      %581 = vmatprep.subr.bf16.mxu0 0
      %582 = vmatpush1.bf16.msra.mxu0 %v535
      %583 = vmatprep.subr.bf16.mxu0 0
      %584 = vmatpush1.bf16.msra.mxu0 %v536
      %585 = vmatprep.mubr.bf16.mxu0 %v410
      %586 = vmatmul.mubr.bf16.gmra.mrb[0].mxu0 %v409
      %v587 = vpop.f32.mrb[0].mxu0
      %v588 = vadd.f32 %v338, %v587
      %v589 = vpop.f32.mrb[0].mxu0
      %v590 = vpop.f32.mrb[0].mxu0
      %v591 = vadd.f32 %v338, %v590
      %v592 = vpop.f32.mrb[0].mxu0
      %593 = vmatprep.mubr.bf16.mxu0 %v412
      %594 = vmatmul.mubr.bf16.gmra.mrb[0].mxu0 %v411
      %v595 = vpop.f32.mrb[0].mxu0
      %v596 = vadd.f32 %v338, %v595
      %v597 = vpop.f32.mrb[0].mxu0
      %v598 = vpop.f32.mrb[0].mxu0
      %v599 = vadd.f32 %v338, %v598
      %v600 = vpop.f32.mrb[0].mxu0
      %601 = vmatprep.mubr.bf16.mxu0 %v414
      %602 = vmatmul.mubr.bf16.gmra.mrb[0].mxu0 %v413
      %v603 = vpop.f32.mrb[0].mxu0
      %v604 = vadd.f32 %v338, %v603
      %v605 = vpop.f32.mrb[0].mxu0
      %v606 = vpop.f32.mrb[0].mxu0
      %v607 = vadd.f32 %v338, %v606
      %v608 = vpop.f32.mrb[0].mxu0
      %609 = vmatprep.mubr.bf16.mxu0 %v416
      %610 = vmatmul.mubr.bf16.gmra.mrb[0].mxu0 %v415
      %v611 = vpop.f32.mrb[0].mxu0
      %v612 = vadd.f32 %v338, %v611
      %v613 = vpop.f32.mrb[0].mxu0
      %v614 = vpop.f32.mrb[0].mxu0
      %v615 = vadd.f32 %v338, %v614
      %v616 = vpop.f32.mrb[0].mxu0
      %617 = vmatprep.mubr.bf16.mxu0 %v418
      %618 = vmatmul.mubr.bf16.gmra.mrb[0].mxu0 %v417
      %v619 = vpop.f32.mrb[0].mxu0
      %v620 = vadd.f32 %v338, %v619
      %v621 = vpop.f32.mrb[0].mxu0
      %v622 = vpop.f32.mrb[0].mxu0
      %v623 = vadd.f32 %v338, %v622
      %v624 = vpop.f32.mrb[0].mxu0
      %625 = vmatprep.mubr.bf16.mxu0 %v420
      %626 = vmatmul.mubr.bf16.gmra.mrb[0].mxu0 %v419
      %v627 = vpop.f32.mrb[0].mxu0
      %v628 = vadd.f32 %v338, %v627
      %v629 = vpop.f32.mrb[0].mxu0
      %v630 = vpop.f32.mrb[0].mxu0
      %v631 = vadd.f32 %v338, %v630
      %v632 = vpop.f32.mrb[0].mxu0
      %633 = vmatprep.mubr.bf16.mxu0 %v422
      %634 = vmatmul.mubr.bf16.gmra.mrb[0].mxu0 %v421
      %v635 = vpop.f32.mrb[0].mxu0
      %v636 = vadd.f32 %v338, %v635
      %v637 = vpop.f32.mrb[0].mxu0
      %v638 = vpop.f32.mrb[0].mxu0
      %v639 = vadd.f32 %v338, %v638
      %v640 = vpop.f32.mrb[0].mxu0
      %641 = vmatprep.mubr.bf16.mxu0 %v424
      %642 = vmatmul.mubr.bf16.gmra.mrb[0].mxu0 %v423
      %v643 = vpop.f32.mrb[0].mxu0
      %v644 = vadd.f32 %v338, %v643
      %v645 = vpop.f32.mrb[0].mxu0
      %v646 = vpop.f32.mrb[0].mxu0
      %v647 = vadd.f32 %v338, %v646
      %v648 = vpop.f32.mrb[0].mxu0
      %649 = vmatprep.mubr.bf16.mxu0 %v426
      %650 = vmatmul.mubr.bf16.gmra.mrb[0].mxu0 %v425
      %v651 = vpop.f32.mrb[0].mxu0
      %v652 = vadd.f32 %v338, %v651
      %v653 = vpop.f32.mrb[0].mxu0
      %v654 = vpop.f32.mrb[0].mxu0
      %v655 = vadd.f32 %v338, %v654
      %v656 = vpop.f32.mrb[0].mxu0
      %657 = vmatprep.mubr.bf16.mxu0 %v428
      %658 = vmatmul.mubr.bf16.gmra.mrb[0].mxu0 %v427
      %v659 = vpop.f32.mrb[0].mxu0
      %v660 = vadd.f32 %v338, %v659
      %v661 = vpop.f32.mrb[0].mxu0
      %v662 = vpop.f32.mrb[0].mxu0
      %v663 = vadd.f32 %v338, %v662
      %v664 = vpop.f32.mrb[0].mxu0
      %665 = vmatprep.mubr.bf16.mxu0 %v430
      %666 = vmatmul.mubr.bf16.gmra.mrb[0].mxu0 %v429
      %v667 = vpop.f32.mrb[0].mxu0
      %v668 = vadd.f32 %v338, %v667
      %v669 = vpop.f32.mrb[0].mxu0
      %v670 = vpop.f32.mrb[0].mxu0
      %v671 = vadd.f32 %v338, %v670
      %v672 = vpop.f32.mrb[0].mxu0
      %673 = vmatprep.mubr.bf16.mxu0 %v432
      %674 = vmatmul.mubr.bf16.gmra.mrb[0].mxu0 %v431
      %v675 = vpop.f32.mrb[0].mxu0
      %v676 = vadd.f32 %v338, %v675
      %v677 = vpop.f32.mrb[0].mxu0
      %v678 = vpop.f32.mrb[0].mxu0
      %v679 = vpop.f32.mrb[0].mxu0
      %680 = vdwg.mxu0
      %v681 = vmax.f32 %v588, 0.0
      %v682 = vmax.f32 %v591, 0.0
      %v683 = vmax.f32 %v596, 0.0
      %v684 = vmax.f32 %v599, 0.0
      %v685 = vmax.f32 %v604, 0.0
      %v686 = vmax.f32 %v607, 0.0
      %v687 = vmax.f32 %v612, 0.0
      %v688 = vmax.f32 %v615, 0.0
      %v689 = vmax.f32 %v620, 0.0
      %v690 = vmax.f32 %v623, 0.0
      %v691 = vmax.f32 %v628, 0.0
      %v692 = vmax.f32 %v631, 0.0
      %v693 = vmax.f32 %v636, 0.0
      %v694 = vmax.f32 %v639, 0.0
      %v695 = vmax.f32 %v644, 0.0
      %v696 = vmax.f32 %v647, 0.0
      %v697 = vmax.f32 %v652, 0.0
      %v698 = vmax.f32 %v655, 0.0
      %v699 = vmax.f32 %v660, 0.0
      %v700 = vmax.f32 %v663, 0.0
      %v701 = vmax.f32 %v668, 0.0
      %v702 = vmax.f32 %v671, 0.0
      %v703 = vmax.f32 %v676, 0.0
      %v704 = vpack.c.bf16 %v682, %v681
      %v705 = vpack.c.bf16 %v684, %v683
      %v706 = vpack.c.bf16 %v686, %v685
      %v707 = vpack.c.bf16 %v688, %v687
      %v708 = vpack.c.bf16 %v690, %v689
      %v709 = vpack.c.bf16 %v692, %v691
      %v710 = vpack.c.bf16 %v694, %v693
      %v711 = vpack.c.bf16 %v696, %v695
      %v712 = vpack.c.bf16 %v698, %v697
      %v713 = vpack.c.bf16 %v700, %v699
      %v714 = vpack.c.bf16 %v702, %v701
      %v715 = vpack.c.bf16 %v703, %v703
      %vm718 = vcmask 1045504
      %v719 = vrot.slane %v706, 2
      %v720 = vrot.slane %v707, 2
      %v721 = vsel %vm718, %v719, %v720
      %vm727 = vcmask 1043456
      %v728 = vrot.slane %v708, 4
      %v729 = vrot.slane %v709, 4
      %v730 = vsel %vm727, %v728, %v729
      %v731 = vrot.slane %v710, 4
      %v732 = vsel %vm727, %v729, %v731
      %vm737 = vcmask 1041408
      %v738 = vrot.slane %v710, 6
      %v739 = vrot.slane %v711, 6
      %v740 = vsel %vm737, %v738, %v739
      %v741 = vrot.slane %v712, 6
      %v742 = vsel %vm737, %v739, %v741
      %vm745 = vsmask.f32 7424
      %v747 = vshrl.u32 %v704, 16
      %v749 = vshll.u32 %v704, 16
      %v751 = vrot.slane %v749, 1
      %v752 = vor.u32 %v747, %v751
      %v754 = vshll.u32 %v705, 16
      %v756 = vrot.slane %v754, 1
      %v757 = vsel %vm745, %v752, %v756
      %v758 = vshrl.u32 %v705, 16
      %v760 = vor.u32 %v758, %v756
      %vm763 = vsmask.f32 5376
      %v765 = vshrl.u32 %v706, 16
      %v767 = vrot.slane %v765, 2
      %v768 = vshll.u32 %v706, 16
      %v770 = vrot.slane %v768, 3
      %v771 = vor.u32 %v767, %v770
      %v773 = vshrl.u32 %v707, 16
      %v775 = vrot.slane %v773, 2
      %v776 = vshll.u32 %v707, 16
      %v778 = vrot.slane %v776, 3
      %v779 = vor.u32 %v775, %v778
      %v780 = vsel %vm763, %v771, %v779
      %vm783 = vsmask.f32 3328
      %v785 = vshrl.u32 %v708, 16
      %v787 = vrot.slane %v785, 4
      %v788 = vshll.u32 %v708, 16
      %v790 = vrot.slane %v788, 5
      %v791 = vor.u32 %v787, %v790
      %v793 = vshrl.u32 %v709, 16
      %v795 = vrot.slane %v793, 4
      %v796 = vshll.u32 %v709, 16
      %v798 = vrot.slane %v796, 5
      %v799 = vor.u32 %v795, %v798
      %v800 = vsel %vm783, %v791, %v799
      %v802 = vshrl.u32 %v710, 16
      %v804 = vrot.slane %v802, 4
      %v805 = vshll.u32 %v710, 16
      %v807 = vrot.slane %v805, 5
      %v808 = vor.u32 %v804, %v807
      %v809 = vsel %vm783, %v799, %v808
      %vm812 = vsmask.f32 1280
      %v813 = vrot.slane %v802, 6
      %v814 = vrot.slane %v805, 7
      %v815 = vor.u32 %v813, %v814
      %v817 = vshrl.u32 %v711, 16
      %v819 = vrot.slane %v817, 6
      %v820 = vshll.u32 %v711, 16
      %v822 = vrot.slane %v820, 7
      %v823 = vor.u32 %v819, %v822
      %v824 = vsel %vm812, %v815, %v823
      %v826 = vshrl.u32 %v712, 16
      %v828 = vrot.slane %v826, 6
      %v829 = vshll.u32 %v712, 16
      %v831 = vrot.slane %v829, 7
      %v832 = vor.u32 %v828, %v831
      %v833 = vsel %vm812, %v823, %v832
      %v837 = vshrl.u32 %v713, 16
      %v839 = vshll.u32 %v713, 16
      %v841 = vrot.slane %v839, 1
      %v842 = vor.u32 %v837, %v841
      %v844 = vshll.u32 %v714, 16
      %v846 = vrot.slane %v844, 1
      %v847 = vsel %vm745, %v842, %v846
      %v848 = vshrl.u32 %v714, 16
      %v850 = vor.u32 %v848, %v846
      %vm855 = vcmask 1046528
      %v856 = vrot.slane %v704, 1
      %v857 = vrot.slane %v705, 1
      %v858 = vsel %vm855, %v856, %v857
      %vm861 = vcmask 1044480
      %v862 = vrot.slane %v706, 3
      %v863 = vrot.slane %v707, 3
      %v864 = vsel %vm861, %v862, %v863
      %v865 = vrot.slane %v708, 3
      %v866 = vsel %vm861, %v863, %v865
      %vm869 = vcmask 1042432
      %v870 = vrot.slane %v708, 5
      %v871 = vrot.slane %v709, 5
      %v872 = vsel %vm869, %v870, %v871
      %v873 = vrot.slane %v710, 5
      %v874 = vsel %vm869, %v871, %v873
      %vm877 = vcmask 1040384
      %v878 = vrot.slane %v710, 7
      %v879 = vrot.slane %v711, 7
      %v880 = vsel %vm877, %v878, %v879
      %v881 = vrot.slane %v712, 7
      %v882 = vsel %vm877, %v879, %v881
      %v887 = vrot.slane %v713, 1
      %v888 = vrot.slane %v714, 1
      %v889 = vsel %vm855, %v887, %v888
      %vm892 = vsmask.f32 6400
      %v893 = vrot.slane %v747, 1
      %v894 = vrot.slane %v749, 2
      %v895 = vor.u32 %v893, %v894
      %v896 = vrot.slane %v758, 1
      %v897 = vrot.slane %v754, 2
      %v898 = vor.u32 %v896, %v897
      %v899 = vsel %vm892, %v895, %v898
      %v902 = vrot.slane %v708, 2
      %v903 = vrot.slane %v709, 2
      %v904 = vsel %vm718, %v902, %v903
      %v905 = vrot.slane %v710, 2
      %v906 = vsel %vm718, %v903, %v905
      %v907 = vrot.slane %v711, 4
      %v908 = vsel %vm727, %v731, %v907
      %v909 = vrot.slane %v712, 4
      %v910 = vsel %vm727, %v907, %v909
      %v911 = vrot.slane %v713, 6
      %v912 = vrot.slane %v714, 6
      %v913 = vsel %vm737, %v911, %v912
      %v914 = vrot.slane %v747, 6
      %v915 = vrot.slane %v749, 7
      %v916 = vor.u32 %v914, %v915
      %v917 = vrot.slane %v758, 6
      %v918 = vrot.slane %v754, 7
      %v919 = vor.u32 %v917, %v918
      %v920 = vsel %vm812, %v916, %v919
      %v921 = vrot.slane %v768, 1
      %v922 = vor.u32 %v765, %v921
      %v923 = vrot.slane %v776, 1
      %v924 = vsel %vm745, %v922, %v923
      %v925 = vor.u32 %v773, %v923
      %v926 = vrot.slane %v788, 1
      %v927 = vsel %vm745, %v925, %v926
      %v928 = vor.u32 %v785, %v926
      %v929 = vrot.slane %v785, 2
      %v930 = vrot.slane %v788, 3
      %v931 = vor.u32 %v929, %v930
      %v932 = vrot.slane %v793, 2
      %v933 = vrot.slane %v796, 3
      %v934 = vor.u32 %v932, %v933
      %v935 = vsel %vm763, %v931, %v934
      %v936 = vrot.slane %v802, 2
      %v937 = vrot.slane %v805, 3
      %v938 = vor.u32 %v936, %v937
      %v939 = vsel %vm763, %v934, %v938
      %v940 = vrot.slane %v817, 4
      %v941 = vrot.slane %v820, 5
      %v942 = vor.u32 %v940, %v941
      %v943 = vrot.slane %v826, 4
      %v944 = vrot.slane %v829, 5
      %v945 = vor.u32 %v943, %v944
      %v946 = vsel %vm783, %v942, %v945
      %v947 = vrot.slane %v837, 6
      %v948 = vrot.slane %v839, 7
      %v949 = vor.u32 %v947, %v948
      %v950 = vrot.slane %v848, 6
      %v951 = vrot.slane %v844, 7
      %v952 = vor.u32 %v950, %v951
      %v953 = vsel %vm812, %v949, %v952
      %v954 = vrot.slane %v704, 7
      %v955 = vrot.slane %v705, 7
      %v956 = vsel %vm877, %v954, %v955
      %v957 = vrot.slane %v706, 1
      %v958 = vrot.slane %v707, 1
      %v959 = vsel %vm855, %v957, %v958
      %v960 = vrot.slane %v708, 1
      %v961 = vsel %vm855, %v958, %v960
      %v962 = vrot.slane %v709, 3
      %v963 = vsel %vm861, %v865, %v962
      %v964 = vrot.slane %v710, 3
      %v965 = vsel %vm861, %v962, %v964
      %v966 = vrot.slane %v711, 5
      %v967 = vrot.slane %v712, 5
      %v968 = vsel %vm869, %v966, %v967
      %v969 = vrot.slane %v713, 7
      %v970 = vrot.slane %v714, 7
      %v971 = vsel %vm877, %v969, %v970
      %vm972 = vsmask.f32 256
      %v973 = vrot.slane %v747, 7
      %v974 = vor.u32 %v973, %v749
      %v975 = vrot.slane %v758, 7
      %v976 = vor.u32 %v975, %v754
      %v977 = vsel %vm972, %v973, %v976
      %v978 = vsel %vm972, %v975, %v768
      %v979 = vrot.slane %v765, 1
      %v980 = vrot.slane %v768, 2
      %v981 = vor.u32 %v979, %v980
      %v982 = vrot.slane %v773, 1
      %v983 = vrot.slane %v776, 2
      %v984 = vor.u32 %v982, %v983
      %v985 = vsel %vm892, %v981, %v984
      %v986 = vrot.slane %v785, 1
      %v987 = vrot.slane %v788, 2
      %v988 = vor.u32 %v986, %v987
      %v989 = vsel %vm892, %v984, %v988
      %v990 = vrot.slane %v711, 2
      %v991 = vrot.slane %v712, 2
      %v992 = vsel %vm718, %v990, %v991
      %v994 = vrot.slane %v713, 4
      %v995 = vrot.slane %v714, 4
      %v996 = vsel %vm727, %v994, %v995
      %v997 = vrot.slane %v715, 4
      %v998 = vsel %vm727, %v995, %v997
      %v999 = vrot.slane %v747, 4
      %v1000 = vrot.slane %v749, 5
      %v1001 = vor.u32 %v999, %v1000
      %v1002 = vrot.slane %v758, 4
      %v1003 = vrot.slane %v754, 5
      %v1004 = vor.u32 %v1002, %v1003
      %v1005 = vsel %vm783, %v1001, %v1004
      %v1006 = vrot.slane %v765, 4
      %v1007 = vrot.slane %v768, 5
      %v1008 = vor.u32 %v1006, %v1007
      %v1009 = vsel %vm783, %v1004, %v1008
      %v1010 = vrot.slane %v765, 6
      %v1011 = vrot.slane %v768, 7
      %v1012 = vor.u32 %v1010, %v1011
      %v1013 = vrot.slane %v773, 6
      %v1014 = vrot.slane %v776, 7
      %v1015 = vor.u32 %v1013, %v1014
      %v1016 = vsel %vm812, %v1012, %v1015
      %v1017 = vrot.slane %v785, 6
      %v1018 = vrot.slane %v788, 7
      %v1019 = vor.u32 %v1017, %v1018
      %v1020 = vsel %vm812, %v1015, %v1019
      %v1021 = vrot.slane %v796, 1
      %v1022 = vsel %vm745, %v785, %v1021
      %v1023 = vor.u32 %v793, %v1021
      %v1024 = vrot.slane %v805, 1
      %v1025 = vsel %vm745, %v1023, %v1024
      %v1026 = vor.u32 %v802, %v1024
      %v1027 = vrot.slane %v817, 2
      %v1028 = vrot.slane %v820, 3
      %v1029 = vor.u32 %v1027, %v1028
      %v1030 = vrot.slane %v826, 2
      %v1031 = vrot.slane %v829, 3
      %v1032 = vor.u32 %v1030, %v1031
      %v1033 = vsel %vm763, %v1029, %v1032
      %v1034 = vrot.slane %v837, 4
      %v1035 = vrot.slane %v839, 5
      %v1036 = vor.u32 %v1034, %v1035
      %v1037 = vrot.slane %v848, 4
      %v1038 = vrot.slane %v844, 5
      %v1039 = vor.u32 %v1037, %v1038
      %v1040 = vsel %vm783, %v1036, %v1039
      %v1042 = vshrl.u32 %v715, 16
      %v1044 = vrot.slane %v1042, 4
      %v1045 = vshll.u32 %v715, 16
      %v1047 = vrot.slane %v1045, 5
      %v1048 = vor.u32 %v1044, %v1047
      %v1049 = vsel %vm783, %v1039, %v1048
      %v1050 = vrot.slane %v704, 5
      %v1051 = vrot.slane %v705, 5
      %v1052 = vsel %vm869, %v1050, %v1051
      %v1053 = vrot.slane %v706, 5
      %v1054 = vsel %vm869, %v1051, %v1053
      %v1055 = vrot.slane %v706, 7
      %v1056 = vrot.slane %v707, 7
      %v1057 = vsel %vm877, %v1055, %v1056
      %v1058 = vrot.slane %v708, 7
      %v1059 = vsel %vm877, %v1056, %v1058
      %v1060 = vrot.slane %v709, 1
      %v1061 = vrot.slane %v710, 1
      %v1062 = vsel %vm855, %v1060, %v1061
      %v1063 = vrot.slane %v711, 3
      %v1064 = vrot.slane %v712, 3
      %v1065 = vsel %vm861, %v1063, %v1064
      %v1066 = vrot.slane %v713, 5
      %v1067 = vrot.slane %v714, 5
      %v1068 = vsel %vm869, %v1066, %v1067
      %v1069 = vrot.slane %v715, 5
      %v1070 = vsel %vm869, %v1067, %v1069
      %vm1071 = vsmask.f32 2304
      %v1072 = vrot.slane %v747, 5
      %v1073 = vrot.slane %v749, 6
      %v1074 = vor.u32 %v1072, %v1073
      %v1075 = vrot.slane %v758, 5
      %v1076 = vrot.slane %v754, 6
      %v1077 = vor.u32 %v1075, %v1076
      %v1078 = vsel %vm1071, %v1074, %v1077
      %v1079 = vrot.slane %v765, 5
      %v1080 = vrot.slane %v768, 6
      %v1081 = vor.u32 %v1079, %v1080
      %v1082 = vsel %vm1071, %v1077, %v1081
      %v1083 = vrot.slane %v765, 7
      %v1084 = vor.u32 %v1083, %v768
      %v1085 = vrot.slane %v773, 7
      %v1086 = vor.u32 %v1085, %v776
      %v1087 = vsel %vm972, %v1083, %v1086
      %v1088 = vrot.slane %v785, 7
      %v1089 = vor.u32 %v1088, %v788
      %v1090 = vsel %vm972, %v1085, %v1089
      %v1091 = vrot.slane %v793, 1
      %v1092 = vrot.slane %v796, 2
      %v1093 = vor.u32 %v1091, %v1092
      %v1094 = vrot.slane %v802, 1
      %v1095 = vrot.slane %v805, 2
      %v1096 = vor.u32 %v1094, %v1095
      %v1097 = vsel %vm892, %v1093, %v1096
      %v1098 = vrot.slane %v713, 2
      %v1099 = vrot.slane %v714, 2
      %v1100 = vsel %vm718, %v1098, %v1099
      %v1101 = vrot.slane %v715, 2
      %v1102 = vsel %vm718, %v1099, %v1101
      %vm1103 = vsmask.f32 4352
      %v1104 = vrot.slane %v765, 3
      %v1105 = vrot.slane %v768, 4
      %v1106 = vor.u32 %v1104, %v1105
      %v1107 = vrot.slane %v773, 3
      %v1108 = vrot.slane %v776, 4
      %v1109 = vor.u32 %v1107, %v1108
      %v1110 = vsel %vm1103, %v1106, %v1109
      %v1112 = vshrl.u32 %v904, 16
      %v1114 = vrot.slane %v1112, 3
      %v1115 = vshll.u32 %v904, 16
      %v1117 = vrot.slane %v1115, 4
      %v1118 = vor.u32 %v1114, %v1117
      %v1120 = vshrl.u32 %v906, 16
      %v1122 = vrot.slane %v1120, 3
      %v1123 = vshll.u32 %v906, 16
      %v1125 = vrot.slane %v1123, 4
      %v1126 = vor.u32 %v1122, %v1125
      %v1127 = vsel %vm1103, %v1118, %v1126
      %v1129 = vshrl.u32 %v908, 16
      %v1131 = vrot.slane %v1129, 3
      %v1132 = vshll.u32 %v908, 16
      %v1134 = vrot.slane %v1132, 4
      %v1135 = vor.u32 %v1131, %v1134
      %v1137 = vshrl.u32 %v910, 16
      %v1139 = vrot.slane %v1137, 3
      %v1140 = vshll.u32 %v910, 16
      %v1142 = vrot.slane %v1140, 4
      %v1143 = vor.u32 %v1139, %v1142
      %v1144 = vsel %vm1103, %v1135, %v1143
      %v1146 = vshrl.u32 %v911, 16
      %v1148 = vrot.slane %v1146, 3
      %v1149 = vshll.u32 %v911, 16
      %v1151 = vrot.slane %v1149, 4
      %v1152 = vor.u32 %v1148, %v1151
      %v1154 = vshrl.u32 %v913, 16
      %v1156 = vrot.slane %v1154, 3
      %v1157 = vshll.u32 %v913, 16
      %v1159 = vrot.slane %v1157, 4
      %v1160 = vor.u32 %v1156, %v1159
      %v1161 = vsel %vm1103, %v1152, %v1160
      %v1163 = vshrl.u32 %v916, 16
      %v1165 = vrot.slane %v1163, 3
      %v1166 = vshll.u32 %v916, 16
      %v1168 = vrot.slane %v1166, 4
      %v1169 = vor.u32 %v1165, %v1168
      %v1171 = vshrl.u32 %v920, 16
      %v1173 = vrot.slane %v1171, 3
      %v1174 = vshll.u32 %v920, 16
      %v1176 = vrot.slane %v1174, 4
      %v1177 = vor.u32 %v1173, %v1176
      %v1178 = vsel %vm1103, %v1169, %v1177
      %v1180 = vshrl.u32 %v924, 16
      %v1182 = vrot.slane %v1180, 3
      %v1183 = vshll.u32 %v924, 16
      %v1185 = vrot.slane %v1183, 4
      %v1186 = vor.u32 %v1182, %v1185
      %v1188 = vshrl.u32 %v927, 16
      %v1190 = vrot.slane %v1188, 3
      %v1191 = vshll.u32 %v927, 16
      %v1193 = vrot.slane %v1191, 4
      %v1194 = vor.u32 %v1190, %v1193
      %v1195 = vsel %vm1103, %v1186, %v1194
      %v1197 = vshrl.u32 %v935, 16
      %v1199 = vrot.slane %v1197, 3
      %v1200 = vshll.u32 %v935, 16
      %v1202 = vrot.slane %v1200, 4
      %v1203 = vor.u32 %v1199, %v1202
      %v1205 = vshrl.u32 %v939, 16
      %v1207 = vrot.slane %v1205, 3
      %v1208 = vshll.u32 %v939, 16
      %v1210 = vrot.slane %v1208, 4
      %v1211 = vor.u32 %v1207, %v1210
      %v1212 = vsel %vm1103, %v1203, %v1211
      %v1214 = vshrl.u32 %v942, 16
      %v1216 = vrot.slane %v1214, 3
      %v1217 = vshll.u32 %v942, 16
      %v1219 = vrot.slane %v1217, 4
      %v1220 = vor.u32 %v1216, %v1219
      %v1222 = vshrl.u32 %v946, 16
      %v1224 = vrot.slane %v1222, 3
      %v1225 = vshll.u32 %v946, 16
      %v1227 = vrot.slane %v1225, 4
      %v1228 = vor.u32 %v1224, %v1227
      %v1229 = vsel %vm1103, %v1220, %v1228
      %v1231 = vshrl.u32 %v949, 16
      %v1233 = vrot.slane %v1231, 3
      %v1234 = vshll.u32 %v949, 16
      %v1236 = vrot.slane %v1234, 4
      %v1237 = vor.u32 %v1233, %v1236
      %v1239 = vshrl.u32 %v953, 16
      %v1241 = vrot.slane %v1239, 3
      %v1242 = vshll.u32 %v953, 16
      %v1244 = vrot.slane %v1242, 4
      %v1245 = vor.u32 %v1241, %v1244
      %v1246 = vsel %vm1103, %v1237, %v1245
      %v1248 = vshrl.u32 %v954, 16
      %v1250 = vrot.slane %v1248, 3
      %v1251 = vshll.u32 %v954, 16
      %v1253 = vrot.slane %v1251, 4
      %v1254 = vor.u32 %v1250, %v1253
      %v1256 = vshrl.u32 %v956, 16
      %v1258 = vrot.slane %v1256, 3
      %v1259 = vshll.u32 %v956, 16
      %v1261 = vrot.slane %v1259, 4
      %v1262 = vor.u32 %v1258, %v1261
      %v1263 = vsel %vm1103, %v1254, %v1262
      %v1265 = vshrl.u32 %v959, 16
      %v1267 = vrot.slane %v1265, 3
      %v1268 = vshll.u32 %v959, 16
      %v1270 = vrot.slane %v1268, 4
      %v1271 = vor.u32 %v1267, %v1270
      %v1273 = vshrl.u32 %v961, 16
      %v1275 = vrot.slane %v1273, 3
      %v1276 = vshll.u32 %v961, 16
      %v1278 = vrot.slane %v1276, 4
      %v1279 = vor.u32 %v1275, %v1278
      %v1280 = vsel %vm1103, %v1271, %v1279
      %v1282 = vshrl.u32 %v963, 16
      %v1284 = vrot.slane %v1282, 3
      %v1285 = vshll.u32 %v963, 16
      %v1287 = vrot.slane %v1285, 4
      %v1288 = vor.u32 %v1284, %v1287
      %v1290 = vshrl.u32 %v965, 16
      %v1292 = vrot.slane %v1290, 3
      %v1293 = vshll.u32 %v965, 16
      %v1295 = vrot.slane %v1293, 4
      %v1296 = vor.u32 %v1292, %v1295
      %v1297 = vsel %vm1103, %v1288, %v1296
      %v1299 = vshrl.u32 %v966, 16
      %v1301 = vrot.slane %v1299, 3
      %v1302 = vshll.u32 %v966, 16
      %v1304 = vrot.slane %v1302, 4
      %v1305 = vor.u32 %v1301, %v1304
      %v1307 = vshrl.u32 %v968, 16
      %v1309 = vrot.slane %v1307, 3
      %v1310 = vshll.u32 %v968, 16
      %v1312 = vrot.slane %v1310, 4
      %v1313 = vor.u32 %v1309, %v1312
      %v1314 = vsel %vm1103, %v1305, %v1313
      %v1316 = vshrl.u32 %v969, 16
      %v1318 = vrot.slane %v1316, 3
      %v1319 = vshll.u32 %v969, 16
      %v1321 = vrot.slane %v1319, 4
      %v1322 = vor.u32 %v1318, %v1321
      %v1324 = vshrl.u32 %v971, 16
      %v1326 = vrot.slane %v1324, 3
      %v1327 = vshll.u32 %v971, 16
      %v1329 = vrot.slane %v1327, 4
      %v1330 = vor.u32 %v1326, %v1329
      %v1331 = vsel %vm1103, %v1322, %v1330
      %v1333 = vshrl.u32 %v974, 16
      %v1335 = vrot.slane %v1333, 3
      %v1336 = vshll.u32 %v974, 16
      %v1338 = vrot.slane %v1336, 4
      %v1339 = vor.u32 %v1335, %v1338
      %v1341 = vshrl.u32 %v977, 16
      %v1343 = vrot.slane %v1341, 3
      %v1344 = vshll.u32 %v977, 16
      %v1346 = vrot.slane %v1344, 4
      %v1347 = vor.u32 %v1343, %v1346
      %v1348 = vsel %vm1103, %v1339, %v1347
      %v1350 = vshrl.u32 %v985, 16
      %v1352 = vrot.slane %v1350, 3
      %v1353 = vshll.u32 %v985, 16
      %v1355 = vrot.slane %v1353, 4
      %v1356 = vor.u32 %v1352, %v1355
      %v1358 = vshrl.u32 %v989, 16
      %v1360 = vrot.slane %v1358, 3
      %v1361 = vshll.u32 %v989, 16
      %v1363 = vrot.slane %v1361, 4
      %v1364 = vor.u32 %v1360, %v1363
      %v1365 = vsel %vm1103, %v1356, %v1364
      %v1366 = vrot.slane %v785, 3
      %v1367 = vrot.slane %v788, 4
      %v1368 = vor.u32 %v1366, %v1367
      %v1369 = vsel %vm1103, %v1109, %v1368
      %v1371 = vshrl.u32 %v905, 16
      %v1373 = vrot.slane %v1371, 3
      %v1374 = vshll.u32 %v905, 16
      %v1376 = vrot.slane %v1374, 4
      %v1377 = vor.u32 %v1373, %v1376
      %v1378 = vsel %vm1103, %v1126, %v1377
      %v1380 = vshrl.u32 %v909, 16
      %v1382 = vrot.slane %v1380, 3
      %v1383 = vshll.u32 %v909, 16
      %v1385 = vrot.slane %v1383, 4
      %v1386 = vor.u32 %v1382, %v1385
      %v1387 = vsel %vm1103, %v1143, %v1386
      %v1389 = vshrl.u32 %v912, 16
      %v1391 = vrot.slane %v1389, 3
      %v1392 = vshll.u32 %v912, 16
      %v1394 = vrot.slane %v1392, 4
      %v1395 = vor.u32 %v1391, %v1394
      %v1396 = vsel %vm1103, %v1160, %v1395
      %v1398 = vshrl.u32 %v919, 16
      %v1400 = vrot.slane %v1398, 3
      %v1401 = vshll.u32 %v919, 16
      %v1403 = vrot.slane %v1401, 4
      %v1404 = vor.u32 %v1400, %v1403
      %v1405 = vsel %vm1103, %v1177, %v1404
      %v1407 = vshrl.u32 %v928, 16
      %v1409 = vrot.slane %v1407, 3
      %v1410 = vshll.u32 %v928, 16
      %v1412 = vrot.slane %v1410, 4
      %v1413 = vor.u32 %v1409, %v1412
      %v1414 = vsel %vm1103, %v1194, %v1413
      %v1416 = vshrl.u32 %v938, 16
      %v1418 = vrot.slane %v1416, 3
      %v1419 = vshll.u32 %v938, 16
      %v1421 = vrot.slane %v1419, 4
      %v1422 = vor.u32 %v1418, %v1421
      %v1423 = vsel %vm1103, %v1211, %v1422
      %v1425 = vshrl.u32 %v945, 16
      %v1427 = vrot.slane %v1425, 3
      %v1428 = vshll.u32 %v945, 16
      %v1430 = vrot.slane %v1428, 4
      %v1431 = vor.u32 %v1427, %v1430
      %v1432 = vsel %vm1103, %v1228, %v1431
      %v1434 = vshrl.u32 %v952, 16
      %v1436 = vrot.slane %v1434, 3
      %v1437 = vshll.u32 %v952, 16
      %v1439 = vrot.slane %v1437, 4
      %v1440 = vor.u32 %v1436, %v1439
      %v1441 = vsel %vm1103, %v1245, %v1440
      %v1443 = vshrl.u32 %v955, 16
      %v1445 = vrot.slane %v1443, 3
      %v1446 = vshll.u32 %v955, 16
      %v1448 = vrot.slane %v1446, 4
      %v1449 = vor.u32 %v1445, %v1448
      %v1450 = vsel %vm1103, %v1262, %v1449
      %v1452 = vshrl.u32 %v960, 16
      %v1454 = vrot.slane %v1452, 3
      %v1455 = vshll.u32 %v960, 16
      %v1457 = vrot.slane %v1455, 4
      %v1458 = vor.u32 %v1454, %v1457
      %v1459 = vsel %vm1103, %v1279, %v1458
      %v1461 = vshrl.u32 %v964, 16
      %v1463 = vrot.slane %v1461, 3
      %v1464 = vshll.u32 %v964, 16
      %v1466 = vrot.slane %v1464, 4
      %v1467 = vor.u32 %v1463, %v1466
      %v1468 = vsel %vm1103, %v1296, %v1467
      %v1470 = vshrl.u32 %v967, 16
      %v1472 = vrot.slane %v1470, 3
      %v1473 = vshll.u32 %v967, 16
      %v1475 = vrot.slane %v1473, 4
      %v1476 = vor.u32 %v1472, %v1475
      %v1477 = vsel %vm1103, %v1313, %v1476
      %v1479 = vshrl.u32 %v970, 16
      %v1481 = vrot.slane %v1479, 3
      %v1482 = vshll.u32 %v970, 16
      %v1484 = vrot.slane %v1482, 4
      %v1485 = vor.u32 %v1481, %v1484
      %v1486 = vsel %vm1103, %v1330, %v1485
      %v1488 = vshrl.u32 %v978, 16
      %v1490 = vrot.slane %v1488, 3
      %v1491 = vshll.u32 %v978, 16
      %v1493 = vrot.slane %v1491, 4
      %v1494 = vor.u32 %v1490, %v1493
      %v1495 = vsel %vm1103, %v1347, %v1494
      %v1497 = vshrl.u32 %v988, 16
      %v1499 = vrot.slane %v1497, 3
      %v1500 = vshll.u32 %v988, 16
      %v1502 = vrot.slane %v1500, 4
      %v1503 = vor.u32 %v1499, %v1502
      %v1504 = vsel %vm1103, %v1364, %v1503
      %v1537 = vrot.slane %v709, 7
      %v1538 = vsel %vm877, %v1058, %v1537
      %v1539 = vrot.slane %v990, 7
      %v1540 = vrot.slane %v992, 7
      %v1541 = vsel %vm877, %v1539, %v1540
      %v1542 = vrot.slane %v994, 7
      %v1543 = vrot.slane %v996, 7
      %v1544 = vsel %vm877, %v1542, %v1543
      %v1545 = vrot.slane %v1001, 7
      %v1546 = vrot.slane %v1005, 7
      %v1547 = vsel %vm877, %v1545, %v1546
      %v1548 = vrot.slane %v1012, 7
      %v1549 = vrot.slane %v1016, 7
      %v1550 = vsel %vm877, %v1548, %v1549
      %v1551 = vrot.slane %v1022, 7
      %v1552 = vrot.slane %v1025, 7
      %v1553 = vsel %vm877, %v1551, %v1552
      %v1554 = vrot.slane %v1029, 7
      %v1555 = vrot.slane %v1033, 7
      %v1556 = vsel %vm877, %v1554, %v1555
      %v1557 = vrot.slane %v1036, 7
      %v1558 = vrot.slane %v1040, 7
      %v1559 = vsel %vm877, %v1557, %v1558
      %v1560 = vrot.slane %v1050, 7
      %v1561 = vrot.slane %v1052, 7
      %v1562 = vsel %vm877, %v1560, %v1561
      %v1563 = vrot.slane %v1055, 7
      %v1564 = vrot.slane %v1057, 7
      %v1565 = vsel %vm877, %v1563, %v1564
      %v1566 = vrot.slane %v1060, 7
      %v1567 = vrot.slane %v1062, 7
      %v1568 = vsel %vm877, %v1566, %v1567
      %v1569 = vrot.slane %v1063, 7
      %v1570 = vrot.slane %v1065, 7
      %v1571 = vsel %vm877, %v1569, %v1570
      %v1572 = vrot.slane %v1066, 7
      %v1573 = vrot.slane %v1068, 7
      %v1574 = vsel %vm877, %v1572, %v1573
      %v1575 = vrot.slane %v1074, 7
      %v1576 = vrot.slane %v1078, 7
      %v1577 = vsel %vm877, %v1575, %v1576
      %v1578 = vrot.slane %v1084, 7
      %v1579 = vrot.slane %v1087, 7
      %v1580 = vsel %vm877, %v1578, %v1579
      %v1581 = vrot.slane %v1093, 7
      %v1582 = vrot.slane %v1097, 7
      %v1583 = vsel %vm877, %v1581, %v1582
      %v1584 = vsel %vm877, %v1537, %v878
      %v1585 = vrot.slane %v991, 7
      %v1586 = vsel %vm877, %v1540, %v1585
      %v1587 = vrot.slane %v998, 7
      %v1588 = vsel %vm877, %v1543, %v1587
      %v1589 = vrot.slane %v1009, 7
      %v1590 = vsel %vm877, %v1546, %v1589
      %v1591 = vrot.slane %v1020, 7
      %v1592 = vsel %vm877, %v1549, %v1591
      %v1593 = vrot.slane %v1026, 7
      %v1594 = vsel %vm877, %v1552, %v1593
      %v1595 = vrot.slane %v1032, 7
      %v1596 = vsel %vm877, %v1555, %v1595
      %v1597 = vrot.slane %v1049, 7
      %v1598 = vsel %vm877, %v1558, %v1597
      %v1599 = vrot.slane %v1054, 7
      %v1600 = vsel %vm877, %v1561, %v1599
      %v1601 = vrot.slane %v1059, 7
      %v1602 = vsel %vm877, %v1564, %v1601
      %v1603 = vrot.slane %v1061, 7
      %v1604 = vsel %vm877, %v1567, %v1603
      %v1605 = vrot.slane %v1064, 7
      %v1606 = vsel %vm877, %v1570, %v1605
      %v1607 = vrot.slane %v1070, 7
      %v1608 = vsel %vm877, %v1573, %v1607
      %v1609 = vrot.slane %v1082, 7
      %v1610 = vsel %vm877, %v1576, %v1609
      %v1611 = vrot.slane %v1090, 7
      %v1612 = vsel %vm877, %v1579, %v1611
      %v1613 = vrot.slane %v1096, 7
      %v1614 = vsel %vm877, %v1582, %v1613
      %v1648 = vshrl.u32 %v1100, 16
      %v1650 = vrot.slane %v1648, 2
      %v1651 = vshll.u32 %v1100, 16
      %v1653 = vrot.slane %v1651, 3
      %v1654 = vor.u32 %v1650, %v1653
      %v1656 = vshrl.u32 %v1102, 16
      %v1658 = vrot.slane %v1656, 2
      %v1659 = vshll.u32 %v1102, 16
      %v1661 = vrot.slane %v1659, 3
      %v1662 = vor.u32 %v1658, %v1661
      %v1663 = vsel %vm763, %v1654, %v1662
      %v1668 = vld [vmem:[%s3] sm:$0xf]
      %v1669 = vld [vmem:[%s3 + $0x4] sm:$0xf]
      %v1670 = vld [vmem:[%s3 + $0x8] sm:$0xf]
      %v1671 = vld [vmem:[%s3 + $0xc] sm:$0xf]
      %v1672 = vld [vmem:[%s3 + $0x10] sm:$0xf]
      %v1673 = vld [vmem:[%s3 + $0x14] sm:$0xf]
      %v1674 = vld [vmem:[%s3 + $0x18] sm:$0xf]
      %v1675 = vld [vmem:[%s3 + $0x1c] sm:$0xf]
      %v1676 = vld [vmem:[%s3 + $0x20] sm:$0xf]
      %v1677 = vld [vmem:[%s3 + $0x24] sm:$0xf]
      %v1678 = vld [vmem:[%s3 + $0x28] sm:$0xf]
      %v1679 = vld [vmem:[%s3 + $0x2c] sm:$0xf]
      %v1680 = vld [vmem:[%s3 + $0x30] sm:$0xf]
      %v1681 = vld [vmem:[%s3 + $0x34] sm:$0xf]
      %v1682 = vld [vmem:[%s3 + $0x38] sm:$0xf]
      %v1683 = vld [vmem:[%s3 + $0x3c] sm:$0xf]
      %v1684 = vld [vmem:[%s3 + $0x40] sm:$0xf]
      %v1685 = vld [vmem:[%s3 + $0x44] sm:$0xf]
      %v1686 = vld [vmem:[%s3 + $0x48] sm:$0xf]
      %v1687 = vld [vmem:[%s3 + $0x4c] sm:$0xf]
      %v1688 = vld [vmem:[%s3 + $0x50] sm:$0xf]
      %v1689 = vld [vmem:[%s3 + $0x54] sm:$0xf]
      %v1690 = vld [vmem:[%s3 + $0x58] sm:$0xf]
      %v1691 = vld [vmem:[%s3 + $0x5c] sm:$0xf]
      %v1692 = vld [vmem:[%s3 + $0x60] sm:$0xf]
      %v1693 = vld [vmem:[%s3 + $0x64] sm:$0xf]
      %v1694 = vld [vmem:[%s3 + $0x68] sm:$0xf]
      %v1695 = vld [vmem:[%s3 + $0x6c] sm:$0xf]
      %v1696 = vld [vmem:[%s3 + $0x70] sm:$0xf]
      %v1697 = vld [vmem:[%s3 + $0x74] sm:$0xf]
      %v1698 = vld [vmem:[%s3 + $0x78] sm:$0xf]
      %v1699 = vld [vmem:[%s3 + $0x7c] sm:$0xf]
      %v1700 = vld [vmem:[%s3 + $0x80] sm:$0xf]
      %v1701 = vld [vmem:[%s3 + $0x84] sm:$0xf]
      %v1702 = vld [vmem:[%s3 + $0x88] sm:$0xf]
      %v1703 = vld [vmem:[%s3 + $0x8c] sm:$0xf]
      %v1704 = vld [vmem:[%s3 + $0x90] sm:$0xf]
      %v1705 = vld [vmem:[%s3 + $0x94] sm:$0xf]
      %v1706 = vld [vmem:[%s3 + $0x98] sm:$0xf]
      %v1707 = vld [vmem:[%s3 + $0x9c] sm:$0xf]
      %v1708 = vld [vmem:[%s3 + $0xa0] sm:$0xf]
      %v1709 = vld [vmem:[%s3 + $0xa4] sm:$0xf]
      %v1710 = vld [vmem:[%s3 + $0xa8] sm:$0xf]
      %v1711 = vld [vmem:[%s3 + $0xac] sm:$0xf]
      %v1712 = vld [vmem:[%s3 + $0xb0] sm:$0xf]
      %v1713 = vld [vmem:[%s3 + $0xb4] sm:$0xf]
      %v1714 = vld [vmem:[%s3 + $0xb8] sm:$0xf]
      %v1715 = vld [vmem:[%s3 + $0xbc] sm:$0xf]
      %v1716 = vld [vmem:[%s3 + $0xc0] sm:$0xf]
      %v1717 = vld [vmem:[%s3 + $0xc4] sm:$0xf]
      %v1718 = vld [vmem:[%s3 + $0xc8] sm:$0xf]
      %v1719 = vld [vmem:[%s3 + $0xcc] sm:$0xf]
      %v1720 = vld [vmem:[%s3 + $0xd0] sm:$0xf]
      %v1721 = vld [vmem:[%s3 + $0xd4] sm:$0xf]
      %v1722 = vld [vmem:[%s3 + $0xd8] sm:$0xf]
      %v1723 = vld [vmem:[%s3 + $0xdc] sm:$0xf]
      %v1724 = vld [vmem:[%s3 + $0xe0] sm:$0xf]
      %v1725 = vld [vmem:[%s3 + $0xe4] sm:$0xf]
      %v1726 = vld [vmem:[%s3 + $0xe8] sm:$0xf]
      %v1727 = vld [vmem:[%s3 + $0xec] sm:$0xf]
      %v1728 = vld [vmem:[%s3 + $0xf0] sm:$0xf]
      %v1729 = vld [vmem:[%s3 + $0xf4] sm:$0xf]
      %v1730 = vld [vmem:[%s3 + $0xf8] sm:$0xf]
      %v1731 = vld [vmem:[%s3 + $0xfc] sm:$0xf]
      %v1732 = vld [vmem:[%s3 + $0x100] sm:$0xf]
      %v1733 = vld [vmem:[%s3 + $0x104] sm:$0xf]
      %v1734 = vld [vmem:[%s3 + $0x108] sm:$0xf]
      %v1735 = vld [vmem:[%s3 + $0x10c] sm:$0xf]
      %v1736 = vld [vmem:[%s3 + $0x110] sm:$0xf]
      %v1737 = vld [vmem:[%s3 + $0x114] sm:$0xf]
      %v1738 = vld [vmem:[%s3 + $0x118] sm:$0xf]
      %v1739 = vld [vmem:[%s3 + $0x11c] sm:$0xf]
      %v1740 = vld [vmem:[%s3 + $0x120] sm:$0xf]
      %v1741 = vld [vmem:[%s3 + $0x124] sm:$0xf]
      %v1742 = vld [vmem:[%s3 + $0x128] sm:$0xf]
      %v1743 = vld [vmem:[%s3 + $0x12c] sm:$0xf]
      %v1744 = vld [vmem:[%s3 + $0x130] sm:$0xf]
      %v1745 = vld [vmem:[%s3 + $0x134] sm:$0xf]
      %v1746 = vld [vmem:[%s3 + $0x138] sm:$0xf]
      %v1747 = vld [vmem:[%s3 + $0x13c] sm:$0xf]
      %v1748 = vld [vmem:[%s3 + $0x140] sm:$0xf]
      %v1749 = vld [vmem:[%s3 + $0x144] sm:$0xf]
      %v1750 = vld [vmem:[%s3 + $0x148] sm:$0xf]
      %v1751 = vld [vmem:[%s3 + $0x14c] sm:$0xf]
      %v1752 = vld [vmem:[%s3 + $0x150] sm:$0xf]
      %v1753 = vld [vmem:[%s3 + $0x154] sm:$0xf]
      %v1754 = vld [vmem:[%s3 + $0x158] sm:$0xf]
      %v1755 = vld [vmem:[%s3 + $0x15c] sm:$0xf]
      %v1756 = vld [vmem:[%s3 + $0x160] sm:$0xf]
      %v1757 = vld [vmem:[%s3 + $0x164] sm:$0xf]
      %v1758 = vld [vmem:[%s3 + $0x168] sm:$0xf]
      %v1759 = vld [vmem:[%s3 + $0x16c] sm:$0xf]
      %v1760 = vld [vmem:[%s3 + $0x170] sm:$0xf]
      %v1761 = vld [vmem:[%s3 + $0x174] sm:$0xf]
      %v1762 = vld [vmem:[%s3 + $0x178] sm:$0xf]
      %v1763 = vld [vmem:[%s3 + $0x17c] sm:$0xf]
      %v1764 = vld [vmem:[%s3 + $0x180] sm:$0xf]
      %v1765 = vld [vmem:[%s3 + $0x184] sm:$0xf]
      %v1766 = vld [vmem:[%s3 + $0x188] sm:$0xf]
      %v1767 = vld [vmem:[%s3 + $0x18c] sm:$0xf]
      %v1768 = vld [vmem:[%s3 + $0x190] sm:$0xf]
      %v1769 = vld [vmem:[%s3 + $0x194] sm:$0xf]
      %v1770 = vld [vmem:[%s3 + $0x198] sm:$0xf]
      %v1771 = vld [vmem:[%s3 + $0x19c] sm:$0xf]
      %v1772 = vld [vmem:[%s3 + $0x1a0] sm:$0xf]
      %v1773 = vld [vmem:[%s3 + $0x1a4] sm:$0xf]
      %v1774 = vld [vmem:[%s3 + $0x1a8] sm:$0xf]
      %v1775 = vld [vmem:[%s3 + $0x1ac] sm:$0xf]
      %v1776 = vld [vmem:[%s3 + $0x1b0] sm:$0xf]
      %v1777 = vld [vmem:[%s3 + $0x1b4] sm:$0xf]
      %v1778 = vld [vmem:[%s3 + $0x1b8] sm:$0xf]
      %v1779 = vld [vmem:[%s3 + $0x1bc] sm:$0xf]
      %v1780 = vld [vmem:[%s3 + $0x1c0] sm:$0xf]
      %v1781 = vld [vmem:[%s3 + $0x1c4] sm:$0xf]
      %v1782 = vld [vmem:[%s3 + $0x1c8] sm:$0xf]
      %v1783 = vld [vmem:[%s3 + $0x1cc] sm:$0xf]
      %v1784 = vld [vmem:[%s3 + $0x1d0] sm:$0xf]
      %v1785 = vld [vmem:[%s3 + $0x1d4] sm:$0xf]
      %v1786 = vld [vmem:[%s3 + $0x1d8] sm:$0xf]
      %v1787 = vld [vmem:[%s3 + $0x1dc] sm:$0xf]
      %v1788 = vld [vmem:[%s3 + $0x1e0] sm:$0xf]
      %v1789 = vld [vmem:[%s3 + $0x1e4] sm:$0xf]
      %v1790 = vld [vmem:[%s3 + $0x1e8] sm:$0xf]
      %v1791 = vld [vmem:[%s3 + $0x1ec] sm:$0xf]
      %v1792 = vld [vmem:[%s3 + $0x1f0] sm:$0xf]
      %v1793 = vld [vmem:[%s3 + $0x1f4] sm:$0xf]
      %v1794 = vld [vmem:[%s3 + $0x1f8] sm:$0xf]
      %v1795 = vld [vmem:[%s3 + $0x1fc] sm:$0xf]
      %v1796 = vld [vmem:[%s3 + $0x200] sm:$0xf]
      %v1797 = vld [vmem:[%s3 + $0x204] sm:$0xf]
      %v1798 = vld [vmem:[%s3 + $0x208] sm:$0xf]
      %v1799 = vld [vmem:[%s3 + $0x20c] sm:$0xf]
      %v1800 = vld [vmem:[%s3 + $0x210] sm:$0xf]
      %v1801 = vld [vmem:[%s3 + $0x214] sm:$0xf]
      %v1802 = vld [vmem:[%s3 + $0x218] sm:$0xf]
      %v1803 = vld [vmem:[%s3 + $0x21c] sm:$0xf]
      %v1804 = vld [vmem:[%s3 + $0x220] sm:$0xf]
      %v1805 = vld [vmem:[%s3 + $0x224] sm:$0xf]
      %v1806 = vld [vmem:[%s3 + $0x228] sm:$0xf]
      %v1807 = vld [vmem:[%s3 + $0x22c] sm:$0xf]
      %v1808 = vld [vmem:[%s3 + $0x230] sm:$0xf]
      %v1809 = vld [vmem:[%s3 + $0x234] sm:$0xf]
      %v1810 = vld [vmem:[%s3 + $0x238] sm:$0xf]
      %v1811 = vld [vmem:[%s3 + $0x23c] sm:$0xf]
      %v1812 = vld [vmem:[%s3 + $0x240] sm:$0xf]
      %v1813 = vld [vmem:[%s3 + $0x244] sm:$0xf]
      %v1814 = vld [vmem:[%s3 + $0x248] sm:$0xf]
      %v1815 = vld [vmem:[%s3 + $0x24c] sm:$0xf]
      %v1816 = vld [vmem:[%s3 + $0x250] sm:$0xf]
      %v1817 = vld [vmem:[%s3 + $0x254] sm:$0xf]
      %v1818 = vld [vmem:[%s3 + $0x258] sm:$0xf]
      %v1819 = vld [vmem:[%s3 + $0x25c] sm:$0xf]
      %v1820 = vld [vmem:[%s3 + $0x260] sm:$0xf]
      %v1821 = vld [vmem:[%s3 + $0x264] sm:$0xf]
      %v1822 = vld [vmem:[%s3 + $0x268] sm:$0xf]
      %v1823 = vld [vmem:[%s3 + $0x26c] sm:$0xf]
      %v1824 = vld [vmem:[%s3 + $0x270] sm:$0xf]
      %v1825 = vld [vmem:[%s3 + $0x274] sm:$0xf]
      %v1826 = vld [vmem:[%s3 + $0x278] sm:$0xf]
      %v1827 = vld [vmem:[%s3 + $0x27c] sm:$0xf]
      %v1828 = vld [vmem:[%s3 + $0x280] sm:$0xf]
      %v1829 = vld [vmem:[%s3 + $0x284] sm:$0xf]
      %v1830 = vld [vmem:[%s3 + $0x288] sm:$0xf]
      %v1831 = vld [vmem:[%s3 + $0x28c] sm:$0xf]
      %v1832 = vld [vmem:[%s3 + $0x290] sm:$0xf]
      %v1833 = vld [vmem:[%s3 + $0x294] sm:$0xf]
      %v1834 = vld [vmem:[%s3 + $0x298] sm:$0xf]
      %v1835 = vld [vmem:[%s3 + $0x29c] sm:$0xf]
      %v1836 = vld [vmem:[%s3 + $0x2a0] sm:$0xf]
      %v1837 = vld [vmem:[%s3 + $0x2a4] sm:$0xf]
      %v1838 = vld [vmem:[%s3 + $0x2a8] sm:$0xf]
      %v1839 = vld [vmem:[%s3 + $0x2ac] sm:$0xf]
      %v1840 = vld [vmem:[%s3 + $0x2b0] sm:$0xf]
      %v1841 = vld [vmem:[%s3 + $0x2b4] sm:$0xf]
      %v1842 = vld [vmem:[%s3 + $0x2b8] sm:$0xf]
      %v1843 = vld [vmem:[%s3 + $0x2bc] sm:$0xf]
      %v1844 = vld [vmem:[%s3 + $0x2c0] sm:$0xf]
      %v1845 = vld [vmem:[%s3 + $0x2c4] sm:$0xf]
      %v1846 = vld [vmem:[%s3 + $0x2c8] sm:$0xf]
      %v1847 = vld [vmem:[%s3 + $0x2cc] sm:$0xf]
      %v1848 = vld [vmem:[%s3 + $0x2d0] sm:$0xf]
      %v1849 = vld [vmem:[%s3 + $0x2d4] sm:$0xf]
      %v1850 = vld [vmem:[%s3 + $0x2d8] sm:$0xf]
      %v1851 = vld [vmem:[%s3 + $0x2dc] sm:$0xf]
      %v1852 = vld [vmem:[%s3 + $0x2e0] sm:$0xf]
      %v1853 = vld [vmem:[%s3 + $0x2e4] sm:$0xf]
      %v1854 = vld [vmem:[%s3 + $0x2e8] sm:$0xf]
      %v1855 = vld [vmem:[%s3 + $0x2ec] sm:$0xf]
      %v1856 = vld [vmem:[%s3 + $0x2f0] sm:$0xf]
      %v1857 = vld [vmem:[%s3 + $0x2f4] sm:$0xf]
      %v1858 = vld [vmem:[%s3 + $0x2f8] sm:$0xf]
      %v1859 = vld [vmem:[%s3 + $0x2fc] sm:$0xf]
      %v1860 = vld [vmem:[%s3 + $0x300] sm:$0xf]
      %v1861 = vld [vmem:[%s3 + $0x304] sm:$0xf]
      %v1862 = vld [vmem:[%s3 + $0x308] sm:$0xf]
      %v1863 = vld [vmem:[%s3 + $0x30c] sm:$0xf]
      %v1864 = vld [vmem:[%s3 + $0x310] sm:$0xf]
      %v1865 = vld [vmem:[%s3 + $0x314] sm:$0xf]
      %v1866 = vld [vmem:[%s3 + $0x318] sm:$0xf]
      %v1867 = vld [vmem:[%s3 + $0x31c] sm:$0xf]
      %v1868 = vld [vmem:[%s3 + $0x320] sm:$0xf]
      %v1869 = vld [vmem:[%s3 + $0x324] sm:$0xf]
      %v1870 = vld [vmem:[%s3 + $0x328] sm:$0xf]
      %v1871 = vld [vmem:[%s3 + $0x32c] sm:$0xf]
      %v1872 = vld [vmem:[%s3 + $0x330] sm:$0xf]
      %v1873 = vld [vmem:[%s3 + $0x334] sm:$0xf]
      %v1874 = vld [vmem:[%s3 + $0x338] sm:$0xf]
      %v1875 = vld [vmem:[%s3 + $0x33c] sm:$0xf]
      %v1876 = vld [vmem:[%s3 + $0x340] sm:$0xf]
      %v1877 = vld [vmem:[%s3 + $0x344] sm:$0xf]
      %v1878 = vld [vmem:[%s3 + $0x348] sm:$0xf]
      %v1879 = vld [vmem:[%s3 + $0x34c] sm:$0xf]
      %v1880 = vld [vmem:[%s3 + $0x350] sm:$0xf]
      %v1881 = vld [vmem:[%s3 + $0x354] sm:$0xf]
      %v1882 = vld [vmem:[%s3 + $0x358] sm:$0xf]
      %v1883 = vld [vmem:[%s3 + $0x35c] sm:$0xf]
      %v1884 = vld [vmem:[%s3 + $0x360] sm:$0xf]
      %v1885 = vld [vmem:[%s3 + $0x364] sm:$0xf]
      %v1886 = vld [vmem:[%s3 + $0x368] sm:$0xf]
      %v1887 = vld [vmem:[%s3 + $0x36c] sm:$0xf]
      %v1888 = vld [vmem:[%s3 + $0x370] sm:$0xf]
      %v1889 = vld [vmem:[%s3 + $0x374] sm:$0xf]
      %v1890 = vld [vmem:[%s3 + $0x378] sm:$0xf]
      %v1891 = vld [vmem:[%s3 + $0x37c] sm:$0xf]
      %v1892 = vld [vmem:[%s3 + $0x380] sm:$0xf]
      %v1893 = vld [vmem:[%s3 + $0x384] sm:$0xf]
      %v1894 = vld [vmem:[%s3 + $0x388] sm:$0xf]
      %v1895 = vld [vmem:[%s3 + $0x38c] sm:$0xf]
      %v1896 = vld [vmem:[%s3 + $0x390] sm:$0xf]
      %v1897 = vld [vmem:[%s3 + $0x394] sm:$0xf]
      %v1898 = vld [vmem:[%s3 + $0x398] sm:$0xf]
      %v1899 = vld [vmem:[%s3 + $0x39c] sm:$0xf]
      %v1900 = vld [vmem:[%s3 + $0x3a0] sm:$0xf]
      %v1901 = vld [vmem:[%s3 + $0x3a4] sm:$0xf]
      %v1902 = vld [vmem:[%s3 + $0x3a8] sm:$0xf]
      %v1903 = vld [vmem:[%s3 + $0x3ac] sm:$0xf]
      %v1904 = vld [vmem:[%s3 + $0x3b0] sm:$0xf]
      %v1905 = vld [vmem:[%s3 + $0x3b4] sm:$0xf]
      %v1906 = vld [vmem:[%s3 + $0x3b8] sm:$0xf]
      %v1907 = vld [vmem:[%s3 + $0x3bc] sm:$0xf]
      %v1908 = vld [vmem:[%s3 + $0x3c0] sm:$0xf]
      %v1909 = vld [vmem:[%s3 + $0x3c4] sm:$0xf]
      %v1910 = vld [vmem:[%s3 + $0x3c8] sm:$0xf]
      %v1911 = vld [vmem:[%s3 + $0x3cc] sm:$0xf]
      %v1912 = vld [vmem:[%s3 + $0x3d0] sm:$0xf]
      %v1913 = vld [vmem:[%s3 + $0x3d4] sm:$0xf]
      %v1914 = vld [vmem:[%s3 + $0x3d8] sm:$0xf]
      %v1915 = vld [vmem:[%s3 + $0x3dc] sm:$0xf]
      %v1916 = vld [vmem:[%s3 + $0x3e0] sm:$0xf]
      %v1917 = vld [vmem:[%s3 + $0x3e4] sm:$0xf]
      %v1918 = vld [vmem:[%s3 + $0x3e8] sm:$0xf]
      %v1919 = vld [vmem:[%s3 + $0x3ec] sm:$0xf]
      %v1920 = vld [vmem:[%s3 + $0x3f0] sm:$0xf]
      %v1921 = vld [vmem:[%s3 + $0x3f4] sm:$0xf]
      %v1922 = vld [vmem:[%s3 + $0x3f8] sm:$0xf]
      %v1923 = vld [vmem:[%s3 + $0x3fc] sm:$0xf]
      %v1924 = vld [vmem:[%s3 + $0x400] sm:$0xf]
      %v1925 = vld [vmem:[%s3 + $0x404] sm:$0xf]
      %v1926 = vld [vmem:[%s3 + $0x408] sm:$0xf]
      %v1927 = vld [vmem:[%s3 + $0x40c] sm:$0xf]
      %v1928 = vld [vmem:[%s3 + $0x410] sm:$0xf]
      %v1929 = vld [vmem:[%s3 + $0x414] sm:$0xf]
      %v1930 = vld [vmem:[%s3 + $0x418] sm:$0xf]
      %v1931 = vld [vmem:[%s3 + $0x41c] sm:$0xf]
      %v1932 = vld [vmem:[%s3 + $0x420] sm:$0xf]
      %v1933 = vld [vmem:[%s3 + $0x424] sm:$0xf]
      %v1934 = vld [vmem:[%s3 + $0x428] sm:$0xf]
      %v1935 = vld [vmem:[%s3 + $0x42c] sm:$0xf]
      %v1936 = vld [vmem:[%s3 + $0x430] sm:$0xf]
      %v1937 = vld [vmem:[%s3 + $0x434] sm:$0xf]
      %v1938 = vld [vmem:[%s3 + $0x438] sm:$0xf]
      %v1939 = vld [vmem:[%s3 + $0x43c] sm:$0xf]
      %v1940 = vld [vmem:[%s3 + $0x440] sm:$0xf]
      %v1941 = vld [vmem:[%s3 + $0x444] sm:$0xf]
      %v1942 = vld [vmem:[%s3 + $0x448] sm:$0xf]
      %v1943 = vld [vmem:[%s3 + $0x44c] sm:$0xf]
      %v1944 = vld [vmem:[%s3 + $0x450] sm:$0xf]
      %v1945 = vld [vmem:[%s3 + $0x454] sm:$0xf]
      %v1946 = vld [vmem:[%s3 + $0x458] sm:$0xf]
      %v1947 = vld [vmem:[%s3 + $0x45c] sm:$0xf]
      %v1948 = vld [vmem:[%s3 + $0x460] sm:$0xf]
      %v1949 = vld [vmem:[%s3 + $0x464] sm:$0xf]
      %v1950 = vld [vmem:[%s3 + $0x468] sm:$0xf]
      %v1951 = vld [vmem:[%s3 + $0x46c] sm:$0xf]
      %v1952 = vld [vmem:[%s3 + $0x470] sm:$0xf]
      %v1953 = vld [vmem:[%s3 + $0x474] sm:$0xf]
      %v1954 = vld [vmem:[%s3 + $0x478] sm:$0xf]
      %v1955 = vld [vmem:[%s3 + $0x47c] sm:$0xf]
      %v1956 = vld [vmem:[%s3 + $0x480] sm:$0xf]
      %v1957 = vld [vmem:[%s3 + $0x484] sm:$0xf]
      %v1958 = vld [vmem:[%s3 + $0x488] sm:$0xf]
      %v1959 = vld [vmem:[%s3 + $0x48c] sm:$0xf]
      %v1960 = vld [vmem:[%s3 + $0x490] sm:$0xf]
      %v1961 = vld [vmem:[%s3 + $0x494] sm:$0xf]
      %v1962 = vld [vmem:[%s3 + $0x498] sm:$0xf]
      %v1963 = vld [vmem:[%s3 + $0x49c] sm:$0xf]
      %v1964 = vld [vmem:[%s3 + $0x4a0] sm:$0xf]
      %v1965 = vld [vmem:[%s3 + $0x4a4] sm:$0xf]
      %v1966 = vld [vmem:[%s3 + $0x4a8] sm:$0xf]
      %v1967 = vld [vmem:[%s3 + $0x4ac] sm:$0xf]
      %v1968 = vld [vmem:[%s3 + $0x4b0] sm:$0xf]
      %v1969 = vld [vmem:[%s3 + $0x4b4] sm:$0xf]
      %v1970 = vld [vmem:[%s3 + $0x4b8] sm:$0xf]
      %v1971 = vld [vmem:[%s3 + $0x4bc] sm:$0xf]
      %v1972 = vld [vmem:[%s3 + $0x4c0] sm:$0xf]
      %v1973 = vld [vmem:[%s3 + $0x4c4] sm:$0xf]
      %v1974 = vld [vmem:[%s3 + $0x4c8] sm:$0xf]
      %v1975 = vld [vmem:[%s3 + $0x4cc] sm:$0xf]
      %v1976 = vld [vmem:[%s3 + $0x4d0] sm:$0xf]
      %v1977 = vld [vmem:[%s3 + $0x4d4] sm:$0xf]
      %v1978 = vld [vmem:[%s3 + $0x4d8] sm:$0xf]
      %v1979 = vld [vmem:[%s3 + $0x4dc] sm:$0xf]
      %v1980 = vld [vmem:[%s3 + $0x4e0] sm:$0xf]
      %v1981 = vld [vmem:[%s3 + $0x4e4] sm:$0xf]
      %v1982 = vld [vmem:[%s3 + $0x4e8] sm:$0xf]
      %v1983 = vld [vmem:[%s3 + $0x4ec] sm:$0xf]
      %v1984 = vld [vmem:[%s3 + $0x4f0] sm:$0xf]
      %v1985 = vld [vmem:[%s3 + $0x4f4] sm:$0xf]
      %v1986 = vld [vmem:[%s3 + $0x4f8] sm:$0xf]
      %v1987 = vld [vmem:[%s3 + $0x4fc] sm:$0xf]
      %v1988 = vld [vmem:[%s3 + $0x500] sm:$0xf]
      %v1989 = vld [vmem:[%s3 + $0x504] sm:$0xf]
      %v1990 = vld [vmem:[%s3 + $0x508] sm:$0xf]
      %v1991 = vld [vmem:[%s3 + $0x50c] sm:$0xf]
      %v1992 = vld [vmem:[%s3 + $0x510] sm:$0xf]
      %v1993 = vld [vmem:[%s3 + $0x514] sm:$0xf]
      %v1994 = vld [vmem:[%s3 + $0x518] sm:$0xf]
      %v1995 = vld [vmem:[%s3 + $0x51c] sm:$0xf]
      %v1996 = vld [vmem:[%s3 + $0x520] sm:$0xf]
      %v1997 = vld [vmem:[%s3 + $0x524] sm:$0xf]
      %v1998 = vld [vmem:[%s3 + $0x528] sm:$0xf]
      %v1999 = vld [vmem:[%s3 + $0x52c] sm:$0xf]
      %v2000 = vld [vmem:[%s3 + $0x530] sm:$0xf]
      %v2001 = vld [vmem:[%s3 + $0x534] sm:$0xf]
      %v2002 = vld [vmem:[%s3 + $0x538] sm:$0xf]
      %v2003 = vld [vmem:[%s3 + $0x53c] sm:$0xf]
      %v2004 = vld [vmem:[%s3 + $0x540] sm:$0xf]
      %v2005 = vld [vmem:[%s3 + $0x544] sm:$0xf]
      %v2006 = vld [vmem:[%s3 + $0x548] sm:$0xf]
      %v2007 = vld [vmem:[%s3 + $0x54c] sm:$0xf]
      %v2008 = vld [vmem:[%s3 + $0x550] sm:$0xf]
      %v2009 = vld [vmem:[%s3 + $0x554] sm:$0xf]
      %v2010 = vld [vmem:[%s3 + $0x558] sm:$0xf]
      %v2011 = vld [vmem:[%s3 + $0x55c] sm:$0xf]
      %v2012 = vld [vmem:[%s3 + $0x560] sm:$0xf]
      %v2013 = vld [vmem:[%s3 + $0x564] sm:$0xf]
      %v2014 = vld [vmem:[%s3 + $0x568] sm:$0xf]
      %v2015 = vld [vmem:[%s3 + $0x56c] sm:$0xf]
      %v2016 = vld [vmem:[%s3 + $0x570] sm:$0xf]
      %v2017 = vld [vmem:[%s3 + $0x574] sm:$0xf]
      %v2018 = vld [vmem:[%s3 + $0x578] sm:$0xf]
      %v2019 = vld [vmem:[%s3 + $0x57c] sm:$0xf]
      %v2020 = vld [vmem:[%s3 + $0x580] sm:$0xf]
      %v2021 = vld [vmem:[%s3 + $0x584] sm:$0xf]
      %v2022 = vld [vmem:[%s3 + $0x588] sm:$0xf]
      %v2023 = vld [vmem:[%s3 + $0x58c] sm:$0xf]
      %v2024 = vld [vmem:[%s3 + $0x590] sm:$0xf]
      %v2025 = vld [vmem:[%s3 + $0x594] sm:$0xf]
      %v2026 = vld [vmem:[%s3 + $0x598] sm:$0xf]
      %v2027 = vld [vmem:[%s3 + $0x59c] sm:$0xf]
      %v2028 = vld [vmem:[%s3 + $0x5a0] sm:$0xf]
      %v2029 = vld [vmem:[%s3 + $0x5a4] sm:$0xf]
      %v2030 = vld [vmem:[%s3 + $0x5a8] sm:$0xf]
      %v2031 = vld [vmem:[%s3 + $0x5ac] sm:$0xf]
      %v2032 = vld [vmem:[%s3 + $0x5b0] sm:$0xf]
      %v2033 = vld [vmem:[%s3 + $0x5b4] sm:$0xf]
      %v2034 = vld [vmem:[%s3 + $0x5b8] sm:$0xf]
      %v2035 = vld [vmem:[%s3 + $0x5bc] sm:$0xf]
      %v2036 = vld [vmem:[%s3 + $0x5c0] sm:$0xf]
      %v2037 = vld [vmem:[%s3 + $0x5c4] sm:$0xf]
      %v2038 = vld [vmem:[%s3 + $0x5c8] sm:$0xf]
      %v2039 = vld [vmem:[%s3 + $0x5cc] sm:$0xf]
      %v2040 = vld [vmem:[%s3 + $0x5d0] sm:$0xf]
      %v2041 = vld [vmem:[%s3 + $0x5d4] sm:$0xf]
      %v2042 = vld [vmem:[%s3 + $0x5d8] sm:$0xf]
      %v2043 = vld [vmem:[%s3 + $0x5dc] sm:$0xf]
      %v2044 = vld [vmem:[%s3 + $0x5e0] sm:$0xf]
      %v2045 = vld [vmem:[%s3 + $0x5e4] sm:$0xf]
      %v2046 = vld [vmem:[%s3 + $0x5e8] sm:$0xf]
      %v2047 = vld [vmem:[%s3 + $0x5ec] sm:$0xf]
      %v2048 = vld [vmem:[%s3 + $0x5f0] sm:$0xf]
      %v2049 = vld [vmem:[%s3 + $0x5f4] sm:$0xf]
      %v2050 = vld [vmem:[%s3 + $0x5f8] sm:$0xf]
      %v2051 = vld [vmem:[%s3 + $0x5fc] sm:$0xf]
      %v2052 = vld [vmem:[%s3 + $0x600] sm:$0xf]
      %v2053 = vld [vmem:[%s3 + $0x604] sm:$0xf]
      %v2054 = vld [vmem:[%s3 + $0x608] sm:$0xf]
      %v2055 = vld [vmem:[%s3 + $0x60c] sm:$0xf]
      %v2056 = vld [vmem:[%s3 + $0x610] sm:$0xf]
      %v2057 = vld [vmem:[%s3 + $0x614] sm:$0xf]
      %v2058 = vld [vmem:[%s3 + $0x618] sm:$0xf]
      %v2059 = vld [vmem:[%s3 + $0x61c] sm:$0xf]
      %v2060 = vld [vmem:[%s3 + $0x620] sm:$0xf]
      %v2061 = vld [vmem:[%s3 + $0x624] sm:$0xf]
      %v2062 = vld [vmem:[%s3 + $0x628] sm:$0xf]
      %v2063 = vld [vmem:[%s3 + $0x62c] sm:$0xf]
      %v2064 = vld [vmem:[%s3 + $0x630] sm:$0xf]
      %v2065 = vld [vmem:[%s3 + $0x634] sm:$0xf]
      %v2066 = vld [vmem:[%s3 + $0x638] sm:$0xf]
      %v2067 = vld [vmem:[%s3 + $0x63c] sm:$0xf]
      %v2068 = vld [vmem:[%s3 + $0x640] sm:$0xf]
      %v2069 = vld [vmem:[%s3 + $0x644] sm:$0xf]
      %v2070 = vld [vmem:[%s3 + $0x648] sm:$0xf]
      %v2071 = vld [vmem:[%s3 + $0x64c] sm:$0xf]
      %v2072 = vld [vmem:[%s3 + $0x650] sm:$0xf]
      %v2073 = vld [vmem:[%s3 + $0x654] sm:$0xf]
      %v2074 = vld [vmem:[%s3 + $0x658] sm:$0xf]
      %v2075 = vld [vmem:[%s3 + $0x65c] sm:$0xf]
      %v2076 = vld [vmem:[%s3 + $0x660] sm:$0xf]
      %v2077 = vld [vmem:[%s3 + $0x664] sm:$0xf]
      %v2078 = vld [vmem:[%s3 + $0x668] sm:$0xf]
      %v2079 = vld [vmem:[%s3 + $0x66c] sm:$0xf]
      %v2080 = vld [vmem:[%s3 + $0x670] sm:$0xf]
      %v2081 = vld [vmem:[%s3 + $0x674] sm:$0xf]
      %v2082 = vld [vmem:[%s3 + $0x678] sm:$0xf]
      %v2083 = vld [vmem:[%s3 + $0x67c] sm:$0xf]
      %v2084 = vld [vmem:[%s3 + $0x680] sm:$0xf]
      %v2085 = vld [vmem:[%s3 + $0x684] sm:$0xf]
      %v2086 = vld [vmem:[%s3 + $0x688] sm:$0xf]
      %v2087 = vld [vmem:[%s3 + $0x68c] sm:$0xf]
      %v2088 = vld [vmem:[%s3 + $0x690] sm:$0xf]
      %v2089 = vld [vmem:[%s3 + $0x694] sm:$0xf]
      %v2090 = vld [vmem:[%s3 + $0x698] sm:$0xf]
      %v2091 = vld [vmem:[%s3 + $0x69c] sm:$0xf]
      %v2092 = vld [vmem:[%s3 + $0x6a0] sm:$0xf]
      %v2093 = vld [vmem:[%s3 + $0x6a4] sm:$0xf]
      %v2094 = vld [vmem:[%s3 + $0x6a8] sm:$0xf]
      %v2095 = vld [vmem:[%s3 + $0x6ac] sm:$0xf]
      %v2096 = vld [vmem:[%s3 + $0x6b0] sm:$0xf]
      %v2097 = vld [vmem:[%s3 + $0x6b4] sm:$0xf]
      %v2098 = vld [vmem:[%s3 + $0x6b8] sm:$0xf]
      %v2099 = vld [vmem:[%s3 + $0x6bc] sm:$0xf]
      %v2100 = vld [vmem:[%s3 + $0x6c0] sm:$0xf]
      %v2101 = vld [vmem:[%s3 + $0x6c4] sm:$0xf]
      %v2102 = vld [vmem:[%s3 + $0x6c8] sm:$0xf]
      %v2103 = vld [vmem:[%s3 + $0x6cc] sm:$0xf]
      %v2104 = vld [vmem:[%s3 + $0x6d0] sm:$0xf]
      %v2105 = vld [vmem:[%s3 + $0x6d4] sm:$0xf]
      %v2106 = vld [vmem:[%s3 + $0x6d8] sm:$0xf]
      %v2107 = vld [vmem:[%s3 + $0x6dc] sm:$0xf]
      %v2108 = vld [vmem:[%s3 + $0x6e0] sm:$0xf]
      %v2109 = vld [vmem:[%s3 + $0x6e4] sm:$0xf]
      %v2110 = vld [vmem:[%s3 + $0x6e8] sm:$0xf]
      %v2111 = vld [vmem:[%s3 + $0x6ec] sm:$0xf]
      %v2112 = vld [vmem:[%s3 + $0x6f0] sm:$0xf]
      %v2113 = vld [vmem:[%s3 + $0x6f4] sm:$0xf]
      %v2114 = vld [vmem:[%s3 + $0x6f8] sm:$0xf]
      %v2115 = vld [vmem:[%s3 + $0x6fc] sm:$0xf]
      %v2116 = vld [vmem:[%s3 + $0x700] sm:$0xf]
      %v2117 = vld [vmem:[%s3 + $0x704] sm:$0xf]
      %v2118 = vld [vmem:[%s3 + $0x708] sm:$0xf]
      %v2119 = vld [vmem:[%s3 + $0x70c] sm:$0xf]
      %v2120 = vld [vmem:[%s3 + $0x710] sm:$0xf]
      %v2121 = vld [vmem:[%s3 + $0x714] sm:$0xf]
      %v2122 = vld [vmem:[%s3 + $0x718] sm:$0xf]
      %v2123 = vld [vmem:[%s3 + $0x71c] sm:$0xf]
      %v2124 = vld [vmem:[%s3 + $0x720] sm:$0xf]
      %v2125 = vld [vmem:[%s3 + $0x724] sm:$0xf]
      %v2126 = vld [vmem:[%s3 + $0x728] sm:$0xf]
      %v2127 = vld [vmem:[%s3 + $0x72c] sm:$0xf]
      %v2128 = vld [vmem:[%s3 + $0x730] sm:$0xf]
      %v2129 = vld [vmem:[%s3 + $0x734] sm:$0xf]
      %v2130 = vld [vmem:[%s3 + $0x738] sm:$0xf]
      %v2131 = vld [vmem:[%s3 + $0x73c] sm:$0xf]
      %v2132 = vld [vmem:[%s3 + $0x740] sm:$0xf]
      %v2133 = vld [vmem:[%s3 + $0x744] sm:$0xf]
      %v2134 = vld [vmem:[%s3 + $0x748] sm:$0xf]
      %v2135 = vld [vmem:[%s3 + $0x74c] sm:$0xf]
      %v2136 = vld [vmem:[%s3 + $0x750] sm:$0xf]
      %v2137 = vld [vmem:[%s3 + $0x754] sm:$0xf]
      %v2138 = vld [vmem:[%s3 + $0x758] sm:$0xf]
      %v2139 = vld [vmem:[%s3 + $0x75c] sm:$0xf]
      %v2140 = vld [vmem:[%s3 + $0x760] sm:$0xf]
      %v2141 = vld [vmem:[%s3 + $0x764] sm:$0xf]
      %v2142 = vld [vmem:[%s3 + $0x768] sm:$0xf]
      %v2143 = vld [vmem:[%s3 + $0x76c] sm:$0xf]
      %v2144 = vld [vmem:[%s3 + $0x770] sm:$0xf]
      %v2145 = vld [vmem:[%s3 + $0x774] sm:$0xf]
      %v2146 = vld [vmem:[%s3 + $0x778] sm:$0xf]
      %v2147 = vld [vmem:[%s3 + $0x77c] sm:$0xf]
      %v2148 = vld [vmem:[%s3 + $0x780] sm:$0xf]
      %v2149 = vld [vmem:[%s3 + $0x784] sm:$0xf]
      %v2150 = vld [vmem:[%s3 + $0x788] sm:$0xf]
      %v2151 = vld [vmem:[%s3 + $0x78c] sm:$0xf]
      %v2152 = vld [vmem:[%s3 + $0x790] sm:$0xf]
      %v2153 = vld [vmem:[%s3 + $0x794] sm:$0xf]
      %v2154 = vld [vmem:[%s3 + $0x798] sm:$0xf]
      %v2155 = vld [vmem:[%s3 + $0x79c] sm:$0xf]
      %v2156 = vld [vmem:[%s3 + $0x7a0] sm:$0xf]
      %v2157 = vld [vmem:[%s3 + $0x7a4] sm:$0xf]
      %v2158 = vld [vmem:[%s3 + $0x7a8] sm:$0xf]
      %v2159 = vld [vmem:[%s3 + $0x7ac] sm:$0xf]
      %v2160 = vld [vmem:[%s3 + $0x7b0] sm:$0xf]
      %v2161 = vld [vmem:[%s3 + $0x7b4] sm:$0xf]
      %v2162 = vld [vmem:[%s3 + $0x7b8] sm:$0xf]
      %v2163 = vld [vmem:[%s3 + $0x7bc] sm:$0xf]
      %v2164 = vld [vmem:[%s3 + $0x7c0] sm:$0xf]
      %v2165 = vld [vmem:[%s3 + $0x7c4] sm:$0xf]
      %v2166 = vld [vmem:[%s3 + $0x7c8] sm:$0xf]
      %v2167 = vld [vmem:[%s3 + $0x7cc] sm:$0xf]
      %v2168 = vld [vmem:[%s3 + $0x7d0] sm:$0xf]
      %v2169 = vld [vmem:[%s3 + $0x7d4] sm:$0xf]
      %v2170 = vld [vmem:[%s3 + $0x7d8] sm:$0xf]
      %v2171 = vld [vmem:[%s3 + $0x7dc] sm:$0xf]
      %v2172 = vld [vmem:[%s3 + $0x7e0] sm:$0xf]
      %v2173 = vld [vmem:[%s3 + $0x7e4] sm:$0xf]
      %v2174 = vld [vmem:[%s3 + $0x7e8] sm:$0xf]
      %v2175 = vld [vmem:[%s3 + $0x7ec] sm:$0xf]
      %v2176 = vld [vmem:[%s3 + $0x7f0] sm:$0xf]
      %v2177 = vld [vmem:[%s3 + $0x7f4] sm:$0xf]
      %v2178 = vld [vmem:[%s3 + $0x7f8] sm:$0xf]
      %v2179 = vld [vmem:[%s3 + $0x7fc] sm:$0xf]
      %v2180 = vld [vmem:[%s3 + $0x800] sm:$0xf]
      %v2181 = vld [vmem:[%s3 + $0x804] sm:$0xf]
      %v2182 = vld [vmem:[%s3 + $0x808] sm:$0xf]
      %v2183 = vld [vmem:[%s3 + $0x80c] sm:$0xf]
      %v2184 = vld [vmem:[%s3 + $0x810] sm:$0xf]
      %v2185 = vld [vmem:[%s3 + $0x814] sm:$0xf]
      %v2186 = vld [vmem:[%s3 + $0x818] sm:$0xf]
      %v2187 = vld [vmem:[%s3 + $0x81c] sm:$0xf]
      %v2188 = vld [vmem:[%s3 + $0x820] sm:$0xf]
      %v2189 = vld [vmem:[%s3 + $0x824] sm:$0xf]
      %v2190 = vld [vmem:[%s3 + $0x828] sm:$0xf]
      %v2191 = vld [vmem:[%s3 + $0x82c] sm:$0xf]
      %v2192 = vld [vmem:[%s3 + $0x830] sm:$0xf]
      %v2193 = vld [vmem:[%s3 + $0x834] sm:$0xf]
      %v2194 = vld [vmem:[%s3 + $0x838] sm:$0xf]
      %v2195 = vld [vmem:[%s3 + $0x83c] sm:$0xf]
      %v2196 = vld [vmem:[%s3 + $0x840] sm:$0xf]
      %v2197 = vld [vmem:[%s3 + $0x844] sm:$0xf]
      %v2198 = vld [vmem:[%s3 + $0x848] sm:$0xf]
      %v2199 = vld [vmem:[%s3 + $0x84c] sm:$0xf]
      %v2200 = vld [vmem:[%s3 + $0x850] sm:$0xf]
      %v2201 = vld [vmem:[%s3 + $0x854] sm:$0xf]
      %v2202 = vld [vmem:[%s3 + $0x858] sm:$0xf]
      %v2203 = vld [vmem:[%s3 + $0x85c] sm:$0xf]
      %v2204 = vld [vmem:[%s3 + $0x860] sm:$0xf]
      %v2205 = vld [vmem:[%s3 + $0x864] sm:$0xf]
      %v2206 = vld [vmem:[%s3 + $0x868] sm:$0xf]
      %v2207 = vld [vmem:[%s3 + $0x86c] sm:$0xf]
      %v2208 = vld [vmem:[%s3 + $0x870] sm:$0xf]
      %v2209 = vld [vmem:[%s3 + $0x874] sm:$0xf]
      %v2210 = vld [vmem:[%s3 + $0x878] sm:$0xf]
      %v2211 = vld [vmem:[%s3 + $0x87c] sm:$0xf]
      %v2212 = vld [vmem:[%s3 + $0x880] sm:$0xf]
      %v2213 = vld [vmem:[%s3 + $0x884] sm:$0xf]
      %v2214 = vld [vmem:[%s3 + $0x888] sm:$0xf]
      %v2215 = vld [vmem:[%s3 + $0x88c] sm:$0xf]
      %v2216 = vld [vmem:[%s3 + $0x890] sm:$0xf]
      %v2217 = vld [vmem:[%s3 + $0x894] sm:$0xf]
      %v2218 = vld [vmem:[%s3 + $0x898] sm:$0xf]
      %v2219 = vld [vmem:[%s3 + $0x89c] sm:$0xf]
      %v2220 = vld [vmem:[%s3 + $0x8a0] sm:$0xf]
      %v2221 = vld [vmem:[%s3 + $0x8a4] sm:$0xf]
      %v2222 = vld [vmem:[%s3 + $0x8a8] sm:$0xf]
      %v2223 = vld [vmem:[%s3 + $0x8ac] sm:$0xf]
      %v2224 = vld [vmem:[%s3 + $0x8b0] sm:$0xf]
      %v2225 = vld [vmem:[%s3 + $0x8b4] sm:$0xf]
      %v2226 = vld [vmem:[%s3 + $0x8b8] sm:$0xf]
      %v2227 = vld [vmem:[%s3 + $0x8bc] sm:$0xf]
      %v2228 = vld [vmem:[%s3 + $0x8c0] sm:$0xf]
      %v2229 = vld [vmem:[%s3 + $0x8c4] sm:$0xf]
      %v2230 = vld [vmem:[%s3 + $0x8c8] sm:$0xf]
      %v2231 = vld [vmem:[%s3 + $0x8cc] sm:$0xf]
      %v2232 = vld [vmem:[%s3 + $0x8d0] sm:$0xf]
      %v2233 = vld [vmem:[%s3 + $0x8d4] sm:$0xf]
      %v2234 = vld [vmem:[%s3 + $0x8d8] sm:$0xf]
      %v2235 = vld [vmem:[%s3 + $0x8dc] sm:$0xf]
      %v2236 = vld [vmem:[%s3 + $0x8e0] sm:$0xf]
      %v2237 = vld [vmem:[%s3 + $0x8e4] sm:$0xf]
      %v2238 = vld [vmem:[%s3 + $0x8e8] sm:$0xf]
      %v2239 = vld [vmem:[%s3 + $0x8ec] sm:$0xf]
      %v2240 = vld [vmem:[%s3 + $0x8f0] sm:$0xf]
      %v2241 = vld [vmem:[%s3 + $0x8f4] sm:$0xf]
      %v2242 = vld [vmem:[%s3 + $0x8f8] sm:$0xf]
      %v2243 = vld [vmem:[%s3 + $0x8fc] sm:$0xf]
      %v2244 = vld [vmem:[%s3 + $0x900] sm:$0xf]
      %v2245 = vld [vmem:[%s3 + $0x904] sm:$0xf]
      %v2246 = vld [vmem:[%s3 + $0x908] sm:$0xf]
      %v2247 = vld [vmem:[%s3 + $0x90c] sm:$0xf]
      %v2248 = vld [vmem:[%s3 + $0x910] sm:$0xf]
      %v2249 = vld [vmem:[%s3 + $0x914] sm:$0xf]
      %v2250 = vld [vmem:[%s3 + $0x918] sm:$0xf]
      %v2251 = vld [vmem:[%s3 + $0x91c] sm:$0xf]
      %v2252 = vld [vmem:[%s3 + $0x920] sm:$0xf]
      %v2253 = vld [vmem:[%s3 + $0x924] sm:$0xf]
      %v2254 = vld [vmem:[%s3 + $0x928] sm:$0xf]
      %v2255 = vld [vmem:[%s3 + $0x92c] sm:$0xf]
      %v2256 = vld [vmem:[%s3 + $0x930] sm:$0xf]
      %v2257 = vld [vmem:[%s3 + $0x934] sm:$0xf]
      %v2258 = vld [vmem:[%s3 + $0x938] sm:$0xf]
      %v2259 = vld [vmem:[%s3 + $0x93c] sm:$0xf]
      %v2260 = vld [vmem:[%s3 + $0x940] sm:$0xf]
      %v2261 = vld [vmem:[%s3 + $0x944] sm:$0xf]
      %v2262 = vld [vmem:[%s3 + $0x948] sm:$0xf]
      %v2263 = vld [vmem:[%s3 + $0x94c] sm:$0xf]
      %v2264 = vld [vmem:[%s3 + $0x950] sm:$0xf]
      %v2265 = vld [vmem:[%s3 + $0x954] sm:$0xf]
      %v2266 = vld [vmem:[%s3 + $0x958] sm:$0xf]
      %v2267 = vld [vmem:[%s3 + $0x95c] sm:$0xf]
      %v2268 = vld [vmem:[%s3 + $0x960] sm:$0xf]
      %v2269 = vld [vmem:[%s3 + $0x964] sm:$0xf]
      %v2270 = vld [vmem:[%s3 + $0x968] sm:$0xf]
      %v2271 = vld [vmem:[%s3 + $0x96c] sm:$0xf]
      %v2272 = vld [vmem:[%s3 + $0x970] sm:$0xf]
      %v2273 = vld [vmem:[%s3 + $0x974] sm:$0xf]
      %v2274 = vld [vmem:[%s3 + $0x978] sm:$0xf]
      %v2275 = vld [vmem:[%s3 + $0x97c] sm:$0xf]
      %v2276 = vld [vmem:[%s3 + $0x980] sm:$0xf]
      %v2277 = vld [vmem:[%s3 + $0x984] sm:$0xf]
      %v2278 = vld [vmem:[%s3 + $0x988] sm:$0xf]
      %v2279 = vld [vmem:[%s3 + $0x98c] sm:$0xf]
      %v2280 = vld [vmem:[%s3 + $0x990] sm:$0xf]
      %v2281 = vld [vmem:[%s3 + $0x994] sm:$0xf]
      %v2282 = vld [vmem:[%s3 + $0x998] sm:$0xf]
      %v2283 = vld [vmem:[%s3 + $0x99c] sm:$0xf]
      %v2284 = vld [vmem:[%s3 + $0x9a0] sm:$0xf]
      %v2285 = vld [vmem:[%s3 + $0x9a4] sm:$0xf]
      %v2286 = vld [vmem:[%s3 + $0x9a8] sm:$0xf]
      %v2287 = vld [vmem:[%s3 + $0x9ac] sm:$0xf]
      %v2288 = vld [vmem:[%s3 + $0x9b0] sm:$0xf]
      %v2289 = vld [vmem:[%s3 + $0x9b4] sm:$0xf]
      %v2290 = vld [vmem:[%s3 + $0x9b8] sm:$0xf]
      %v2291 = vld [vmem:[%s3 + $0x9bc] sm:$0xf]
      %v2292 = vld [vmem:[%s3 + $0x9c0] sm:$0xf]
      %v2293 = vld [vmem:[%s3 + $0x9c4] sm:$0xf]
      %v2294 = vld [vmem:[%s3 + $0x9c8] sm:$0xf]
      %v2295 = vld [vmem:[%s3 + $0x9cc] sm:$0xf]
      %v2296 = vld [vmem:[%s3 + $0x9d0] sm:$0xf]
      %v2297 = vld [vmem:[%s3 + $0x9d4] sm:$0xf]
      %v2298 = vld [vmem:[%s3 + $0x9d8] sm:$0xf]
      %v2299 = vld [vmem:[%s3 + $0x9dc] sm:$0xf]
      %v2300 = vld [vmem:[%s3 + $0x9e0] sm:$0xf]
      %v2301 = vld [vmem:[%s3 + $0x9e4] sm:$0xf]
      %v2302 = vld [vmem:[%s3 + $0x9e8] sm:$0xf]
      %v2303 = vld [vmem:[%s3 + $0x9ec] sm:$0xf]
      %v2304 = vld [vmem:[%s3 + $0x9f0] sm:$0xf]
      %v2305 = vld [vmem:[%s3 + $0x9f4] sm:$0xf]
      %v2306 = vld [vmem:[%s3 + $0x9f8] sm:$0xf]
      %v2307 = vld [vmem:[%s3 + $0x9fc] sm:$0xf]
      %v2308 = vld [vmem:[%s3 + $0xa00] sm:$0xf]
      %v2309 = vld [vmem:[%s3 + $0xa04] sm:$0xf]
      %v2310 = vld [vmem:[%s3 + $0xa08] sm:$0xf]
      %v2311 = vld [vmem:[%s3 + $0xa0c] sm:$0xf]
      %v2312 = vld [vmem:[%s3 + $0xa10] sm:$0xf]
      %v2313 = vld [vmem:[%s3 + $0xa14] sm:$0xf]
      %v2314 = vld [vmem:[%s3 + $0xa18] sm:$0xf]
      %v2315 = vld [vmem:[%s3 + $0xa1c] sm:$0xf]
      %v2316 = vld [vmem:[%s3 + $0xa20] sm:$0xf]
      %v2317 = vld [vmem:[%s3 + $0xa24] sm:$0xf]
      %v2318 = vld [vmem:[%s3 + $0xa28] sm:$0xf]
      %v2319 = vld [vmem:[%s3 + $0xa2c] sm:$0xf]
      %v2320 = vld [vmem:[%s3 + $0xa30] sm:$0xf]
      %v2321 = vld [vmem:[%s3 + $0xa34] sm:$0xf]
      %v2322 = vld [vmem:[%s3 + $0xa38] sm:$0xf]
      %v2323 = vld [vmem:[%s3 + $0xa3c] sm:$0xf]
      %v2324 = vld [vmem:[%s3 + $0xa40] sm:$0xf]
      %v2325 = vld [vmem:[%s3 + $0xa44] sm:$0xf]
      %v2326 = vld [vmem:[%s3 + $0xa48] sm:$0xf]
      %v2327 = vld [vmem:[%s3 + $0xa4c] sm:$0xf]
      %v2328 = vld [vmem:[%s3 + $0xa50] sm:$0xf]
      %v2329 = vld [vmem:[%s3 + $0xa54] sm:$0xf]
      %v2330 = vld [vmem:[%s3 + $0xa58] sm:$0xf]
      %v2331 = vld [vmem:[%s3 + $0xa5c] sm:$0xf]
      %v2332 = vld [vmem:[%s3 + $0xa60] sm:$0xf]
      %v2333 = vld [vmem:[%s3 + $0xa64] sm:$0xf]
      %v2334 = vld [vmem:[%s3 + $0xa68] sm:$0xf]
      %v2335 = vld [vmem:[%s3 + $0xa6c] sm:$0xf]
      %v2336 = vld [vmem:[%s3 + $0xa70] sm:$0xf]
      %v2337 = vld [vmem:[%s3 + $0xa74] sm:$0xf]
      %v2338 = vld [vmem:[%s3 + $0xa78] sm:$0xf]
      %v2339 = vld [vmem:[%s3 + $0xa7c] sm:$0xf]
      %v2340 = vld [vmem:[%s3 + $0xa80] sm:$0xf]
      %v2341 = vld [vmem:[%s3 + $0xa84] sm:$0xf]
      %v2342 = vld [vmem:[%s3 + $0xa88] sm:$0xf]
      %v2343 = vld [vmem:[%s3 + $0xa8c] sm:$0xf]
      %v2344 = vld [vmem:[%s3 + $0xa90] sm:$0xf]
      %v2345 = vld [vmem:[%s3 + $0xa94] sm:$0xf]
      %v2346 = vld [vmem:[%s3 + $0xa98] sm:$0xf]
      %v2347 = vld [vmem:[%s3 + $0xa9c] sm:$0xf]
      %v2348 = vld [vmem:[%s3 + $0xaa0] sm:$0xf]
      %v2349 = vld [vmem:[%s3 + $0xaa4] sm:$0xf]
      %v2350 = vld [vmem:[%s3 + $0xaa8] sm:$0xf]
      %v2351 = vld [vmem:[%s3 + $0xaac] sm:$0xf]
      %v2352 = vld [vmem:[%s3 + $0xab0] sm:$0xf]
      %v2353 = vld [vmem:[%s3 + $0xab4] sm:$0xf]
      %v2354 = vld [vmem:[%s3 + $0xab8] sm:$0xf]
      %v2355 = vld [vmem:[%s3 + $0xabc] sm:$0xf]
      %v2356 = vld [vmem:[%s3 + $0xac0] sm:$0xf]
      %v2357 = vld [vmem:[%s3 + $0xac4] sm:$0xf]
      %v2358 = vld [vmem:[%s3 + $0xac8] sm:$0xf]
      %v2359 = vld [vmem:[%s3 + $0xacc] sm:$0xf]
      %v2360 = vld [vmem:[%s3 + $0xad0] sm:$0xf]
      %v2361 = vld [vmem:[%s3 + $0xad4] sm:$0xf]
      %v2362 = vld [vmem:[%s3 + $0xad8] sm:$0xf]
      %v2363 = vld [vmem:[%s3 + $0xadc] sm:$0xf]
      %v2364 = vld [vmem:[%s3 + $0xae0] sm:$0xf]
      %v2365 = vld [vmem:[%s3 + $0xae4] sm:$0xf]
      %v2366 = vld [vmem:[%s3 + $0xae8] sm:$0xf]
      %v2367 = vld [vmem:[%s3 + $0xaec] sm:$0xf]
      %v2368 = vld [vmem:[%s3 + $0xaf0] sm:$0xf]
      %v2369 = vld [vmem:[%s3 + $0xaf4] sm:$0xf]
      %v2370 = vld [vmem:[%s3 + $0xaf8] sm:$0xf]
      %v2371 = vld [vmem:[%s3 + $0xafc] sm:$0xf]
      %v2372 = vld [vmem:[%s3 + $0xb00] sm:$0xf]
      %v2373 = vld [vmem:[%s3 + $0xb04] sm:$0xf]
      %v2374 = vld [vmem:[%s3 + $0xb08] sm:$0xf]
      %v2375 = vld [vmem:[%s3 + $0xb0c] sm:$0xf]
      %v2376 = vld [vmem:[%s3 + $0xb10] sm:$0xf]
      %v2377 = vld [vmem:[%s3 + $0xb14] sm:$0xf]
      %v2378 = vld [vmem:[%s3 + $0xb18] sm:$0xf]
      %v2379 = vld [vmem:[%s3 + $0xb1c] sm:$0xf]
      %v2380 = vld [vmem:[%s3 + $0xb20] sm:$0xf]
      %v2381 = vld [vmem:[%s3 + $0xb24] sm:$0xf]
      %v2382 = vld [vmem:[%s3 + $0xb28] sm:$0xf]
      %v2383 = vld [vmem:[%s3 + $0xb2c] sm:$0xf]
      %v2384 = vld [vmem:[%s3 + $0xb30] sm:$0xf]
      %v2385 = vld [vmem:[%s3 + $0xb34] sm:$0xf]
      %v2386 = vld [vmem:[%s3 + $0xb38] sm:$0xf]
      %v2387 = vld [vmem:[%s3 + $0xb3c] sm:$0xf]
      %v2388 = vld [vmem:[%s3 + $0xb40] sm:$0xf]
      %v2389 = vld [vmem:[%s3 + $0xb44] sm:$0xf]
      %v2390 = vld [vmem:[%s3 + $0xb48] sm:$0xf]
      %v2391 = vld [vmem:[%s3 + $0xb4c] sm:$0xf]
      %v2392 = vld [vmem:[%s3 + $0xb50] sm:$0xf]
      %v2393 = vld [vmem:[%s3 + $0xb54] sm:$0xf]
      %v2394 = vld [vmem:[%s3 + $0xb58] sm:$0xf]
      %v2395 = vld [vmem:[%s3 + $0xb5c] sm:$0xf]
      %v2396 = vld [vmem:[%s3 + $0xb60] sm:$0xf]
      %v2397 = vld [vmem:[%s3 + $0xb64] sm:$0xf]
      %v2398 = vld [vmem:[%s3 + $0xb68] sm:$0xf]
      %v2399 = vld [vmem:[%s3 + $0xb6c] sm:$0xf]
      %v2400 = vld [vmem:[%s3 + $0xb70] sm:$0xf]
      %v2401 = vld [vmem:[%s3 + $0xb74] sm:$0xf]
      %v2402 = vld [vmem:[%s3 + $0xb78] sm:$0xf]
      %v2403 = vld [vmem:[%s3 + $0xb7c] sm:$0xf]
      %v2404 = vld [vmem:[%s3 + $0xb80] sm:$0xf]
      %v2405 = vld [vmem:[%s3 + $0xb84] sm:$0xf]
      %v2406 = vld [vmem:[%s3 + $0xb88] sm:$0xf]
      %v2407 = vld [vmem:[%s3 + $0xb8c] sm:$0xf]
      %v2408 = vld [vmem:[%s3 + $0xb90] sm:$0xf]
      %v2409 = vld [vmem:[%s3 + $0xb94] sm:$0xf]
      %v2410 = vld [vmem:[%s3 + $0xb98] sm:$0xf]
      %v2411 = vld [vmem:[%s3 + $0xb9c] sm:$0xf]
      %v2412 = vld [vmem:[%s3 + $0xba0] sm:$0xf]
      %v2413 = vld [vmem:[%s3 + $0xba4] sm:$0xf]
      %v2414 = vld [vmem:[%s3 + $0xba8] sm:$0xf]
      %v2415 = vld [vmem:[%s3 + $0xbac] sm:$0xf]
      %v2416 = vld [vmem:[%s3 + $0xbb0] sm:$0xf]
      %v2417 = vld [vmem:[%s3 + $0xbb4] sm:$0xf]
      %v2418 = vld [vmem:[%s3 + $0xbb8] sm:$0xf]
      %v2419 = vld [vmem:[%s3 + $0xbbc] sm:$0xf]
      %v2420 = vld [vmem:[%s3 + $0xbc0] sm:$0xf]
      %v2421 = vld [vmem:[%s3 + $0xbc4] sm:$0xf]
      %v2422 = vld [vmem:[%s3 + $0xbc8] sm:$0xf]
      %v2423 = vld [vmem:[%s3 + $0xbcc] sm:$0xf]
      %v2424 = vld [vmem:[%s3 + $0xbd0] sm:$0xf]
      %v2425 = vld [vmem:[%s3 + $0xbd4] sm:$0xf]
      %v2426 = vld [vmem:[%s3 + $0xbd8] sm:$0xf]
      %v2427 = vld [vmem:[%s3 + $0xbdc] sm:$0xf]
      %v2428 = vld [vmem:[%s3 + $0xbe0] sm:$0xf]
      %v2429 = vld [vmem:[%s3 + $0xbe4] sm:$0xf]
      %v2430 = vld [vmem:[%s3 + $0xbe8] sm:$0xf]
      %v2431 = vld [vmem:[%s3 + $0xbec] sm:$0xf]
      %v2432 = vld [vmem:[%s3 + $0xbf0] sm:$0xf]
      %v2433 = vld [vmem:[%s3 + $0xbf4] sm:$0xf]
      %v2434 = vld [vmem:[%s3 + $0xbf8] sm:$0xf]
      %v2435 = vld [vmem:[%s3 + $0xbfc] sm:$0xf]
      %v2436 = vld [vmem:[%s3 + $0xc00] sm:$0xf]
      %v2437 = vld [vmem:[%s3 + $0xc04] sm:$0xf]
      %v2438 = vld [vmem:[%s3 + $0xc08] sm:$0xf]
      %v2439 = vld [vmem:[%s3 + $0xc0c] sm:$0xf]
      %v2440 = vld [vmem:[%s3 + $0xc10] sm:$0xf]
      %v2441 = vld [vmem:[%s3 + $0xc14] sm:$0xf]
      %v2442 = vld [vmem:[%s3 + $0xc18] sm:$0xf]
      %v2443 = vld [vmem:[%s3 + $0xc1c] sm:$0xf]
      %v2444 = vld [vmem:[%s3 + $0xc20] sm:$0xf]
      %v2445 = vld [vmem:[%s3 + $0xc24] sm:$0xf]
      %v2446 = vld [vmem:[%s3 + $0xc28] sm:$0xf]
      %v2447 = vld [vmem:[%s3 + $0xc2c] sm:$0xf]
      %v2448 = vld [vmem:[%s3 + $0xc30] sm:$0xf]
      %v2449 = vld [vmem:[%s3 + $0xc34] sm:$0xf]
      %v2450 = vld [vmem:[%s3 + $0xc38] sm:$0xf]
      %v2451 = vld [vmem:[%s3 + $0xc3c] sm:$0xf]
      %v2452 = vld [vmem:[%s3 + $0xc40] sm:$0xf]
      %v2453 = vld [vmem:[%s3 + $0xc44] sm:$0xf]
      %v2454 = vld [vmem:[%s3 + $0xc48] sm:$0xf]
      %v2455 = vld [vmem:[%s3 + $0xc4c] sm:$0xf]
      %v2456 = vld [vmem:[%s3 + $0xc50] sm:$0xf]
      %v2457 = vld [vmem:[%s3 + $0xc54] sm:$0xf]
      %v2458 = vld [vmem:[%s3 + $0xc58] sm:$0xf]
      %v2459 = vld [vmem:[%s3 + $0xc5c] sm:$0xf]
      %v2460 = vld [vmem:[%s3 + $0xc60] sm:$0xf]
      %v2461 = vld [vmem:[%s3 + $0xc64] sm:$0xf]
      %v2462 = vld [vmem:[%s3 + $0xc68] sm:$0xf]
      %v2463 = vld [vmem:[%s3 + $0xc6c] sm:$0xf]
      %v2464 = vld [vmem:[%s3 + $0xc70] sm:$0xf]
      %v2465 = vld [vmem:[%s3 + $0xc74] sm:$0xf]
      %v2466 = vld [vmem:[%s3 + $0xc78] sm:$0xf]
      %v2467 = vld [vmem:[%s3 + $0xc7c] sm:$0xf]
      %v2468 = vld [vmem:[%s4] sm:$0x1]
      %v2470 = vlaneseq
      %v2471 = vshrl.u32 %v2470, 7
      %v2472 = vsub.s32 0, %v2471
      %v2473 = vrot.slane %v2468, %v2472
      %v3275 = vunpack.c.l.b16 %v1668
      %v3276 = vunpack.c.l.b16 %v1669
      %v3277 = vunpack.c.l.b16 %v1670
      %v3278 = vunpack.c.l.b16 %v1671
      %v3279 = vunpack.c.l.b16 %v1672
      %v3280 = vunpack.c.l.b16 %v1673
      %v3281 = vunpack.c.l.b16 %v1674
      %v3282 = vunpack.c.l.b16 %v1675
      %v3283 = vunpack.c.l.b16 %v1676
      %v3284 = vunpack.c.l.b16 %v1677
      %v3285 = vunpack.c.l.b16 %v1678
      %v3286 = vunpack.c.l.b16 %v1679
      %v3287 = vunpack.c.l.b16 %v1680
      %v3288 = vunpack.c.l.b16 %v1681
      %v3289 = vunpack.c.l.b16 %v1682
      %v3290 = vunpack.c.l.b16 %v1683
      %v3291 = vunpack.c.l.b16 %v1684
      %v3292 = vunpack.c.l.b16 %v1685
      %v3293 = vunpack.c.l.b16 %v1686
      %v3294 = vunpack.c.l.b16 %v1687
      %v3295 = vunpack.c.l.b16 %v1688
      %v3296 = vunpack.c.l.b16 %v1689
      %v3297 = vunpack.c.l.b16 %v1690
      %v3298 = vunpack.c.l.b16 %v1691
      %v3299 = vunpack.c.l.b16 %v1692
      %v3300 = vunpack.c.l.b16 %v1693
      %v3301 = vunpack.c.l.b16 %v1694
      %v3302 = vunpack.c.l.b16 %v1695
      %v3303 = vunpack.c.l.b16 %v1696
      %v3304 = vunpack.c.l.b16 %v1697
      %v3305 = vunpack.c.l.b16 %v1698
      %v3306 = vunpack.c.l.b16 %v1699
      %v3307 = vunpack.c.l.b16 %v1700
      %v3308 = vunpack.c.l.b16 %v1701
      %v3309 = vunpack.c.l.b16 %v1702
      %v3310 = vunpack.c.l.b16 %v1703
      %v3311 = vunpack.c.l.b16 %v1704
      %v3312 = vunpack.c.l.b16 %v1705
      %v3313 = vunpack.c.l.b16 %v1706
      %v3314 = vunpack.c.l.b16 %v1707
      %v3315 = vunpack.c.l.b16 %v1708
      %v3316 = vunpack.c.l.b16 %v1709
      %v3317 = vunpack.c.l.b16 %v1710
      %v3318 = vunpack.c.l.b16 %v1711
      %v3319 = vunpack.c.l.b16 %v1712
      %v3320 = vunpack.c.l.b16 %v1713
      %v3321 = vunpack.c.l.b16 %v1714
      %v3322 = vunpack.c.l.b16 %v1715
      %v3323 = vunpack.c.l.b16 %v1716
      %v3324 = vunpack.c.l.b16 %v1717
      %v3325 = vunpack.c.l.b16 %v1718
      %v3326 = vunpack.c.l.b16 %v1719
      %v3327 = vunpack.c.l.b16 %v1720
      %v3328 = vunpack.c.l.b16 %v1721
      %v3329 = vunpack.c.l.b16 %v1722
      %v3330 = vunpack.c.l.b16 %v1723
      %v3331 = vunpack.c.l.b16 %v1724
      %v3332 = vunpack.c.l.b16 %v1725
      %v3333 = vunpack.c.l.b16 %v1726
      %v3334 = vunpack.c.l.b16 %v1727
      %v3335 = vunpack.c.l.b16 %v1728
      %v3336 = vunpack.c.l.b16 %v1729
      %v3337 = vunpack.c.l.b16 %v1730
      %v3338 = vunpack.c.l.b16 %v1731
      %v3339 = vunpack.c.l.b16 %v1732
      %v3340 = vunpack.c.l.b16 %v1733
      %v3341 = vunpack.c.l.b16 %v1734
      %v3342 = vunpack.c.l.b16 %v1735
      %v3343 = vunpack.c.l.b16 %v1736
      %v3344 = vunpack.c.l.b16 %v1737
      %v3345 = vunpack.c.l.b16 %v1738
      %v3346 = vunpack.c.l.b16 %v1739
      %v3347 = vunpack.c.l.b16 %v1740
      %v3348 = vunpack.c.l.b16 %v1741
      %v3349 = vunpack.c.l.b16 %v1742
      %v3350 = vunpack.c.l.b16 %v1743
      %v3351 = vunpack.c.l.b16 %v1744
      %v3352 = vunpack.c.l.b16 %v1745
      %v3353 = vunpack.c.l.b16 %v1746
      %v3354 = vunpack.c.l.b16 %v1747
      %v3355 = vunpack.c.l.b16 %v1748
      %v3356 = vunpack.c.l.b16 %v1749
      %v3357 = vunpack.c.l.b16 %v1750
      %v3358 = vunpack.c.l.b16 %v1751
      %v3359 = vunpack.c.l.b16 %v1752
      %v3360 = vunpack.c.l.b16 %v1753
      %v3361 = vunpack.c.l.b16 %v1754
      %v3362 = vunpack.c.l.b16 %v1755
      %v3363 = vunpack.c.l.b16 %v1756
      %v3364 = vunpack.c.l.b16 %v1757
      %v3365 = vunpack.c.l.b16 %v1758
      %v3366 = vunpack.c.l.b16 %v1759
      %v3367 = vunpack.c.l.b16 %v1760
      %v3368 = vunpack.c.l.b16 %v1761
      %v3369 = vunpack.c.l.b16 %v1762
      %v3370 = vunpack.c.l.b16 %v1763
      %v3371 = vunpack.c.l.b16 %v1764
      %v3372 = vunpack.c.l.b16 %v1765
      %v3373 = vunpack.c.l.b16 %v1766
      %v3374 = vunpack.c.l.b16 %v1767
      %v3375 = vunpack.c.l.b16 %v1768
      %v3376 = vunpack.c.l.b16 %v1769
      %v3377 = vunpack.c.l.b16 %v1770
      %v3378 = vunpack.c.l.b16 %v1771
      %v3379 = vunpack.c.l.b16 %v1772
      %v3380 = vunpack.c.l.b16 %v1773
      %v3381 = vunpack.c.l.b16 %v1774
      %v3382 = vunpack.c.l.b16 %v1775
      %v3383 = vunpack.c.l.b16 %v1776
      %v3384 = vunpack.c.l.b16 %v1777
      %v3385 = vunpack.c.l.b16 %v1778
      %v3386 = vunpack.c.l.b16 %v1779
      %v3387 = vunpack.c.l.b16 %v1780
      %v3388 = vunpack.c.l.b16 %v1781
      %v3389 = vunpack.c.l.b16 %v1782
      %v3390 = vunpack.c.l.b16 %v1783
      %v3391 = vunpack.c.l.b16 %v1784
      %v3392 = vunpack.c.l.b16 %v1785
      %v3393 = vunpack.c.l.b16 %v1786
      %v3394 = vunpack.c.l.b16 %v1787
      %v3395 = vunpack.c.l.b16 %v1788
      %v3396 = vunpack.c.l.b16 %v1789
      %v3397 = vunpack.c.l.b16 %v1790
      %v3398 = vunpack.c.l.b16 %v1791
      %v3399 = vunpack.c.l.b16 %v1792
      %v3400 = vunpack.c.l.b16 %v1793
      %v3401 = vunpack.c.l.b16 %v1794
      %v3402 = vunpack.c.l.b16 %v1795
      %v3403 = vunpack.c.l.b16 %v1796
      %v3404 = vunpack.c.l.b16 %v1797
      %v3405 = vunpack.c.l.b16 %v1798
      %v3406 = vunpack.c.l.b16 %v1799
      %v3407 = vunpack.c.l.b16 %v1800
      %v3408 = vunpack.c.l.b16 %v1801
      %v3409 = vunpack.c.l.b16 %v1802
      %v3410 = vunpack.c.l.b16 %v1803
      %v3411 = vunpack.c.l.b16 %v1804
      %v3412 = vunpack.c.l.b16 %v1805
      %v3413 = vunpack.c.l.b16 %v1806
      %v3414 = vunpack.c.l.b16 %v1807
      %v3415 = vunpack.c.l.b16 %v1808
      %v3416 = vunpack.c.l.b16 %v1809
      %v3417 = vunpack.c.l.b16 %v1810
      %v3418 = vunpack.c.l.b16 %v1811
      %v3419 = vunpack.c.l.b16 %v1812
      %v3420 = vunpack.c.l.b16 %v1813
      %v3421 = vunpack.c.l.b16 %v1814
      %v3422 = vunpack.c.l.b16 %v1815
      %v3423 = vunpack.c.l.b16 %v1816
      %v3424 = vunpack.c.l.b16 %v1817
      %v3425 = vunpack.c.l.b16 %v1818
      %v3426 = vunpack.c.l.b16 %v1819
      %v3427 = vunpack.c.l.b16 %v1820
      %v3428 = vunpack.c.l.b16 %v1821
      %v3429 = vunpack.c.l.b16 %v1822
      %v3430 = vunpack.c.l.b16 %v1823
      %v3431 = vunpack.c.l.b16 %v1824
      %v3432 = vunpack.c.l.b16 %v1825
      %v3433 = vunpack.c.l.b16 %v1826
      %v3434 = vunpack.c.l.b16 %v1827
      %v3435 = vunpack.c.l.b16 %v1828
      %v3436 = vunpack.c.l.b16 %v1829
      %v3437 = vunpack.c.l.b16 %v1830
      %v3438 = vunpack.c.l.b16 %v1831
      %v3439 = vunpack.c.l.b16 %v1832
      %v3440 = vunpack.c.l.b16 %v1833
      %v3441 = vunpack.c.l.b16 %v1834
      %v3442 = vunpack.c.l.b16 %v1835
      %v3443 = vunpack.c.l.b16 %v1836
      %v3444 = vunpack.c.l.b16 %v1837
      %v3445 = vunpack.c.l.b16 %v1838
      %v3446 = vunpack.c.l.b16 %v1839
      %v3447 = vunpack.c.l.b16 %v1840
      %v3448 = vunpack.c.l.b16 %v1841
      %v3449 = vunpack.c.l.b16 %v1842
      %v3450 = vunpack.c.l.b16 %v1843
      %v3451 = vunpack.c.l.b16 %v1844
      %v3452 = vunpack.c.l.b16 %v1845
      %v3453 = vunpack.c.l.b16 %v1846
      %v3454 = vunpack.c.l.b16 %v1847
      %v3455 = vunpack.c.l.b16 %v1848
      %v3456 = vunpack.c.l.b16 %v1849
      %v3457 = vunpack.c.l.b16 %v1850
      %v3458 = vunpack.c.l.b16 %v1851
      %v3459 = vunpack.c.l.b16 %v1852
      %v3460 = vunpack.c.l.b16 %v1853
      %v3461 = vunpack.c.l.b16 %v1854
      %v3462 = vunpack.c.l.b16 %v1855
      %v3463 = vunpack.c.l.b16 %v1856
      %v3464 = vunpack.c.l.b16 %v1857
      %v3465 = vunpack.c.l.b16 %v1858
      %v3466 = vunpack.c.l.b16 %v1859
      %v3467 = vunpack.c.l.b16 %v1860
      %v3468 = vunpack.c.l.b16 %v1861
      %v3469 = vunpack.c.l.b16 %v1862
      %v3470 = vunpack.c.l.b16 %v1863
      %v3471 = vunpack.c.l.b16 %v1864
      %v3472 = vunpack.c.l.b16 %v1865
      %v3473 = vunpack.c.l.b16 %v1866
      %v3474 = vunpack.c.l.b16 %v1867
      %v3475 = vunpack.c.l.b16 %v1868
      %v3476 = vunpack.c.l.b16 %v1869
      %v3477 = vunpack.c.l.b16 %v1870
      %v3478 = vunpack.c.l.b16 %v1871
      %v3479 = vunpack.c.l.b16 %v1872
      %v3480 = vunpack.c.l.b16 %v1873
      %v3481 = vunpack.c.l.b16 %v1874
      %v3482 = vunpack.c.l.b16 %v1875
      %v3483 = vunpack.c.l.b16 %v1876
      %v3484 = vunpack.c.l.b16 %v1877
      %v3485 = vunpack.c.l.b16 %v1878
      %v3486 = vunpack.c.l.b16 %v1879
      %v3487 = vunpack.c.l.b16 %v1880
      %v3488 = vunpack.c.l.b16 %v1881
      %v3489 = vunpack.c.l.b16 %v1882
      %v3490 = vunpack.c.l.b16 %v1883
      %v3491 = vunpack.c.l.b16 %v1884
      %v3492 = vunpack.c.l.b16 %v1885
      %v3493 = vunpack.c.l.b16 %v1886
      %v3494 = vunpack.c.l.b16 %v1887
      %v3495 = vunpack.c.l.b16 %v1888
      %v3496 = vunpack.c.l.b16 %v1889
      %v3497 = vunpack.c.l.b16 %v1890
      %v3498 = vunpack.c.l.b16 %v1891
      %v3499 = vunpack.c.l.b16 %v1892
      %v3500 = vunpack.c.l.b16 %v1893
      %v3501 = vunpack.c.l.b16 %v1894
      %v3502 = vunpack.c.l.b16 %v1895
      %v3503 = vunpack.c.l.b16 %v1896
      %v3504 = vunpack.c.l.b16 %v1897
      %v3505 = vunpack.c.l.b16 %v1898
      %v3506 = vunpack.c.l.b16 %v1899
      %v3507 = vunpack.c.l.b16 %v1900
      %v3508 = vunpack.c.l.b16 %v1901
      %v3509 = vunpack.c.l.b16 %v1902
      %v3510 = vunpack.c.l.b16 %v1903
      %v3511 = vunpack.c.l.b16 %v1904
      %v3512 = vunpack.c.l.b16 %v1905
      %v3513 = vunpack.c.l.b16 %v1906
      %v3514 = vunpack.c.l.b16 %v1907
      %v3515 = vunpack.c.l.b16 %v1908
      %v3516 = vunpack.c.l.b16 %v1909
      %v3517 = vunpack.c.l.b16 %v1910
      %v3518 = vunpack.c.l.b16 %v1911
      %v3519 = vunpack.c.l.b16 %v1912
      %v3520 = vunpack.c.l.b16 %v1913
      %v3521 = vunpack.c.l.b16 %v1914
      %v3522 = vunpack.c.l.b16 %v1915
      %v3523 = vunpack.c.l.b16 %v1916
      %v3524 = vunpack.c.l.b16 %v1917
      %v3525 = vunpack.c.l.b16 %v1918
      %v3526 = vunpack.c.l.b16 %v1919
      %v3527 = vunpack.c.l.b16 %v1920
      %v3528 = vunpack.c.l.b16 %v1921
      %v3529 = vunpack.c.l.b16 %v1922
      %v3530 = vunpack.c.l.b16 %v1923
      %v3531 = vunpack.c.l.b16 %v1924
      %v3532 = vunpack.c.l.b16 %v1925
      %v3533 = vunpack.c.l.b16 %v1926
      %v3534 = vunpack.c.l.b16 %v1927
      %v3535 = vunpack.c.l.b16 %v1928
      %v3536 = vunpack.c.l.b16 %v1929
      %v3537 = vunpack.c.l.b16 %v1930
      %v3538 = vunpack.c.l.b16 %v1931
      %v3539 = vunpack.c.l.b16 %v1932
      %v3540 = vunpack.c.l.b16 %v1933
      %v3541 = vunpack.c.l.b16 %v1934
      %v3542 = vunpack.c.l.b16 %v1935
      %v3543 = vunpack.c.l.b16 %v1936
      %v3544 = vunpack.c.l.b16 %v1937
      %v3545 = vunpack.c.l.b16 %v1938
      %v3546 = vunpack.c.l.b16 %v1939
      %v3547 = vunpack.c.l.b16 %v1940
      %v3548 = vunpack.c.l.b16 %v1941
      %v3549 = vunpack.c.l.b16 %v1942
      %v3550 = vunpack.c.l.b16 %v1943
      %v3551 = vunpack.c.l.b16 %v1944
      %v3552 = vunpack.c.l.b16 %v1945
      %v3553 = vunpack.c.l.b16 %v1946
      %v3554 = vunpack.c.l.b16 %v1947
      %v3555 = vunpack.c.l.b16 %v1948
      %v3556 = vunpack.c.l.b16 %v1949
      %v3557 = vunpack.c.l.b16 %v1950
      %v3558 = vunpack.c.l.b16 %v1951
      %v3559 = vunpack.c.l.b16 %v1952
      %v3560 = vunpack.c.l.b16 %v1953
      %v3561 = vunpack.c.l.b16 %v1954
      %v3562 = vunpack.c.l.b16 %v1955
      %v3563 = vunpack.c.l.b16 %v1956
      %v3564 = vunpack.c.l.b16 %v1957
      %v3565 = vunpack.c.l.b16 %v1958
      %v3566 = vunpack.c.l.b16 %v1959
      %v3567 = vunpack.c.l.b16 %v1960
      %v3568 = vunpack.c.l.b16 %v1961
      %v3569 = vunpack.c.l.b16 %v1962
      %v3570 = vunpack.c.l.b16 %v1963
      %v3571 = vunpack.c.l.b16 %v1964
      %v3572 = vunpack.c.l.b16 %v1965
      %v3573 = vunpack.c.l.b16 %v1966
      %v3574 = vunpack.c.l.b16 %v1967
      %v3575 = vunpack.c.l.b16 %v1968
      %v3576 = vunpack.c.l.b16 %v1969
      %v3577 = vunpack.c.l.b16 %v1970
      %v3578 = vunpack.c.l.b16 %v1971
      %v3579 = vunpack.c.l.b16 %v1972
      %v3580 = vunpack.c.l.b16 %v1973
      %v3581 = vunpack.c.l.b16 %v1974
      %v3582 = vunpack.c.l.b16 %v1975
      %v3583 = vunpack.c.l.b16 %v1976
      %v3584 = vunpack.c.l.b16 %v1977
      %v3585 = vunpack.c.l.b16 %v1978
      %v3586 = vunpack.c.l.b16 %v1979
      %v3587 = vunpack.c.l.b16 %v1980
      %v3588 = vunpack.c.l.b16 %v1981
      %v3589 = vunpack.c.l.b16 %v1982
      %v3590 = vunpack.c.l.b16 %v1983
      %v3591 = vunpack.c.l.b16 %v1984
      %v3592 = vunpack.c.l.b16 %v1985
      %v3593 = vunpack.c.l.b16 %v1986
      %v3594 = vunpack.c.l.b16 %v1987
      %v3595 = vunpack.c.l.b16 %v1988
      %v3596 = vunpack.c.l.b16 %v1989
      %v3597 = vunpack.c.l.b16 %v1990
      %v3598 = vunpack.c.l.b16 %v1991
      %v3599 = vunpack.c.l.b16 %v1992
      %v3600 = vunpack.c.l.b16 %v1993
      %v3601 = vunpack.c.l.b16 %v1994
      %v3602 = vunpack.c.l.b16 %v1995
      %v3603 = vunpack.c.l.b16 %v1996
      %v3604 = vunpack.c.l.b16 %v1997
      %v3605 = vunpack.c.l.b16 %v1998
      %v3606 = vunpack.c.l.b16 %v1999
      %v3607 = vunpack.c.l.b16 %v2000
      %v3608 = vunpack.c.l.b16 %v2001
      %v3609 = vunpack.c.l.b16 %v2002
      %v3610 = vunpack.c.l.b16 %v2003
      %v3611 = vunpack.c.l.b16 %v2004
      %v3612 = vunpack.c.l.b16 %v2005
      %v3613 = vunpack.c.l.b16 %v2006
      %v3614 = vunpack.c.l.b16 %v2007
      %v3615 = vunpack.c.l.b16 %v2008
      %v3616 = vunpack.c.l.b16 %v2009
      %v3617 = vunpack.c.l.b16 %v2010
      %v3618 = vunpack.c.l.b16 %v2011
      %v3619 = vunpack.c.l.b16 %v2012
      %v3620 = vunpack.c.l.b16 %v2013
      %v3621 = vunpack.c.l.b16 %v2014
      %v3622 = vunpack.c.l.b16 %v2015
      %v3623 = vunpack.c.l.b16 %v2016
      %v3624 = vunpack.c.l.b16 %v2017
      %v3625 = vunpack.c.l.b16 %v2018
      %v3626 = vunpack.c.l.b16 %v2019
      %v3627 = vunpack.c.l.b16 %v2020
      %v3628 = vunpack.c.l.b16 %v2021
      %v3629 = vunpack.c.l.b16 %v2022
      %v3630 = vunpack.c.l.b16 %v2023
      %v3631 = vunpack.c.l.b16 %v2024
      %v3632 = vunpack.c.l.b16 %v2025
      %v3633 = vunpack.c.l.b16 %v2026
      %v3634 = vunpack.c.l.b16 %v2027
      %v3635 = vunpack.c.l.b16 %v2028
      %v3636 = vunpack.c.l.b16 %v2029
      %v3637 = vunpack.c.l.b16 %v2030
      %v3638 = vunpack.c.l.b16 %v2031
      %v3639 = vunpack.c.l.b16 %v2032
      %v3640 = vunpack.c.l.b16 %v2033
      %v3641 = vunpack.c.l.b16 %v2034
      %v3642 = vunpack.c.l.b16 %v2035
      %v3643 = vunpack.c.l.b16 %v2036
      %v3644 = vunpack.c.l.b16 %v2037
      %v3645 = vunpack.c.l.b16 %v2038
      %v3646 = vunpack.c.l.b16 %v2039
      %v3647 = vunpack.c.l.b16 %v2040
      %v3648 = vunpack.c.l.b16 %v2041
      %v3649 = vunpack.c.l.b16 %v2042
      %v3650 = vunpack.c.l.b16 %v2043
      %v3651 = vunpack.c.l.b16 %v2044
      %v3652 = vunpack.c.l.b16 %v2045
      %v3653 = vunpack.c.l.b16 %v2046
      %v3654 = vunpack.c.l.b16 %v2047
      %v3655 = vunpack.c.l.b16 %v2048
      %v3656 = vunpack.c.l.b16 %v2049
      %v3657 = vunpack.c.l.b16 %v2050
      %v3658 = vunpack.c.l.b16 %v2051
      %v3659 = vunpack.c.l.b16 %v2052
      %v3660 = vunpack.c.l.b16 %v2053
      %v3661 = vunpack.c.l.b16 %v2054
      %v3662 = vunpack.c.l.b16 %v2055
      %v3663 = vunpack.c.l.b16 %v2056
      %v3664 = vunpack.c.l.b16 %v2057
      %v3665 = vunpack.c.l.b16 %v2058
      %v3666 = vunpack.c.l.b16 %v2059
      %v3667 = vunpack.c.l.b16 %v2060
      %v3668 = vunpack.c.l.b16 %v2061
      %v3669 = vunpack.c.l.b16 %v2062
      %v3670 = vunpack.c.l.b16 %v2063
      %v3671 = vunpack.c.l.b16 %v2064
      %v3672 = vunpack.c.l.b16 %v2065
      %v3673 = vunpack.c.l.b16 %v2066
      %v3674 = vunpack.c.l.b16 %v2067
      %v3675 = vunpack.c.l.b16 %v2068
      %v3676 = vunpack.c.l.b16 %v2069
      %v3677 = vunpack.c.l.b16 %v2070
      %v3678 = vunpack.c.l.b16 %v2071
      %v3679 = vunpack.c.l.b16 %v2072
      %v3680 = vunpack.c.l.b16 %v2073
      %v3681 = vunpack.c.l.b16 %v2074
      %v3682 = vunpack.c.l.b16 %v2075
      %v3683 = vunpack.c.l.b16 %v2076
      %v3684 = vunpack.c.l.b16 %v2077
      %v3685 = vunpack.c.l.b16 %v2078
      %v3686 = vunpack.c.l.b16 %v2079
      %v3687 = vunpack.c.l.b16 %v2080
      %v3688 = vunpack.c.l.b16 %v2081
      %v3689 = vunpack.c.l.b16 %v2082
      %v3690 = vunpack.c.l.b16 %v2083
      %v3691 = vunpack.c.l.b16 %v2084
      %v3692 = vunpack.c.l.b16 %v2085
      %v3693 = vunpack.c.l.b16 %v2086
      %v3694 = vunpack.c.l.b16 %v2087
      %v3695 = vunpack.c.l.b16 %v2088
      %v3696 = vunpack.c.l.b16 %v2089
      %v3697 = vunpack.c.l.b16 %v2090
      %v3698 = vunpack.c.l.b16 %v2091
      %v3699 = vunpack.c.l.b16 %v2092
      %v3700 = vunpack.c.l.b16 %v2093
      %v3701 = vunpack.c.l.b16 %v2094
      %v3702 = vunpack.c.l.b16 %v2095
      %v3703 = vunpack.c.l.b16 %v2096
      %v3704 = vunpack.c.l.b16 %v2097
      %v3705 = vunpack.c.l.b16 %v2098
      %v3706 = vunpack.c.l.b16 %v2099
      %v3707 = vunpack.c.l.b16 %v2100
      %v3708 = vunpack.c.l.b16 %v2101
      %v3709 = vunpack.c.l.b16 %v2102
      %v3710 = vunpack.c.l.b16 %v2103
      %v3711 = vunpack.c.l.b16 %v2104
      %v3712 = vunpack.c.l.b16 %v2105
      %v3713 = vunpack.c.l.b16 %v2106
      %v3714 = vunpack.c.l.b16 %v2107
      %v3715 = vunpack.c.l.b16 %v2108
      %v3716 = vunpack.c.l.b16 %v2109
      %v3717 = vunpack.c.l.b16 %v2110
      %v3718 = vunpack.c.l.b16 %v2111
      %v3719 = vunpack.c.l.b16 %v2112
      %v3720 = vunpack.c.l.b16 %v2113
      %v3721 = vunpack.c.l.b16 %v2114
      %v3722 = vunpack.c.l.b16 %v2115
      %v3723 = vunpack.c.l.b16 %v2116
      %v3724 = vunpack.c.l.b16 %v2117
      %v3725 = vunpack.c.l.b16 %v2118
      %v3726 = vunpack.c.l.b16 %v2119
      %v3727 = vunpack.c.l.b16 %v2120
      %v3728 = vunpack.c.l.b16 %v2121
      %v3729 = vunpack.c.l.b16 %v2122
      %v3730 = vunpack.c.l.b16 %v2123
      %v3731 = vunpack.c.l.b16 %v2124
      %v3732 = vunpack.c.l.b16 %v2125
      %v3733 = vunpack.c.l.b16 %v2126
      %v3734 = vunpack.c.l.b16 %v2127
      %v3735 = vunpack.c.l.b16 %v2128
      %v3736 = vunpack.c.l.b16 %v2129
      %v3737 = vunpack.c.l.b16 %v2130
      %v3738 = vunpack.c.l.b16 %v2131
      %v3739 = vunpack.c.l.b16 %v2132
      %v3740 = vunpack.c.l.b16 %v2133
      %v3741 = vunpack.c.l.b16 %v2134
      %v3742 = vunpack.c.l.b16 %v2135
      %v3743 = vunpack.c.l.b16 %v2136
      %v3744 = vunpack.c.l.b16 %v2137
      %v3745 = vunpack.c.l.b16 %v2138
      %v3746 = vunpack.c.l.b16 %v2139
      %v3747 = vunpack.c.l.b16 %v2140
      %v3748 = vunpack.c.l.b16 %v2141
      %v3749 = vunpack.c.l.b16 %v2142
      %v3750 = vunpack.c.l.b16 %v2143
      %v3751 = vunpack.c.l.b16 %v2144
      %v3752 = vunpack.c.l.b16 %v2145
      %v3753 = vunpack.c.l.b16 %v2146
      %v3754 = vunpack.c.l.b16 %v2147
      %v3755 = vunpack.c.l.b16 %v2148
      %v3756 = vunpack.c.l.b16 %v2149
      %v3757 = vunpack.c.l.b16 %v2150
      %v3758 = vunpack.c.l.b16 %v2151
      %v3759 = vunpack.c.l.b16 %v2152
      %v3760 = vunpack.c.l.b16 %v2153
      %v3761 = vunpack.c.l.b16 %v2154
      %v3762 = vunpack.c.l.b16 %v2155
      %v3763 = vunpack.c.l.b16 %v2156
      %v3764 = vunpack.c.l.b16 %v2157
      %v3765 = vunpack.c.l.b16 %v2158
      %v3766 = vunpack.c.l.b16 %v2159
      %v3767 = vunpack.c.l.b16 %v2160
      %v3768 = vunpack.c.l.b16 %v2161
      %v3769 = vunpack.c.l.b16 %v2162
      %v3770 = vunpack.c.l.b16 %v2163
      %v3771 = vunpack.c.l.b16 %v2164
      %v3772 = vunpack.c.l.b16 %v2165
      %v3773 = vunpack.c.l.b16 %v2166
      %v3774 = vunpack.c.l.b16 %v2167
      %v3775 = vunpack.c.l.b16 %v2168
      %v3776 = vunpack.c.l.b16 %v2169
      %v3777 = vunpack.c.l.b16 %v2170
      %v3778 = vunpack.c.l.b16 %v2171
      %v3779 = vunpack.c.l.b16 %v2172
      %v3780 = vunpack.c.l.b16 %v2173
      %v3781 = vunpack.c.l.b16 %v2174
      %v3782 = vunpack.c.l.b16 %v2175
      %v3783 = vunpack.c.l.b16 %v2176
      %v3784 = vunpack.c.l.b16 %v2177
      %v3785 = vunpack.c.l.b16 %v2178
      %v3786 = vunpack.c.l.b16 %v2179
      %v3787 = vunpack.c.l.b16 %v2180
      %v3788 = vunpack.c.l.b16 %v2181
      %v3789 = vunpack.c.l.b16 %v2182
      %v3790 = vunpack.c.l.b16 %v2183
      %v3791 = vunpack.c.l.b16 %v2184
      %v3792 = vunpack.c.l.b16 %v2185
      %v3793 = vunpack.c.l.b16 %v2186
      %v3794 = vunpack.c.l.b16 %v2187
      %v3795 = vunpack.c.l.b16 %v2188
      %v3796 = vunpack.c.l.b16 %v2189
      %v3797 = vunpack.c.l.b16 %v2190
      %v3798 = vunpack.c.l.b16 %v2191
      %v3799 = vunpack.c.l.b16 %v2192
      %v3800 = vunpack.c.l.b16 %v2193
      %v3801 = vunpack.c.l.b16 %v2194
      %v3802 = vunpack.c.l.b16 %v2195
      %v3803 = vunpack.c.l.b16 %v2196
      %v3804 = vunpack.c.l.b16 %v2197
      %v3805 = vunpack.c.l.b16 %v2198
      %v3806 = vunpack.c.l.b16 %v2199
      %v3807 = vunpack.c.l.b16 %v2200
      %v3808 = vunpack.c.l.b16 %v2201
      %v3809 = vunpack.c.l.b16 %v2202
      %v3810 = vunpack.c.l.b16 %v2203
      %v3811 = vunpack.c.l.b16 %v2204
      %v3812 = vunpack.c.l.b16 %v2205
      %v3813 = vunpack.c.l.b16 %v2206
      %v3814 = vunpack.c.l.b16 %v2207
      %v3815 = vunpack.c.l.b16 %v2208
      %v3816 = vunpack.c.l.b16 %v2209
      %v3817 = vunpack.c.l.b16 %v2210
      %v3818 = vunpack.c.l.b16 %v2211
      %v3819 = vunpack.c.l.b16 %v2212
      %v3820 = vunpack.c.l.b16 %v2213
      %v3821 = vunpack.c.l.b16 %v2214
      %v3822 = vunpack.c.l.b16 %v2215
      %v3823 = vunpack.c.l.b16 %v2216
      %v3824 = vunpack.c.l.b16 %v2217
      %v3825 = vunpack.c.l.b16 %v2218
      %v3826 = vunpack.c.l.b16 %v2219
      %v3827 = vunpack.c.l.b16 %v2220
      %v3828 = vunpack.c.l.b16 %v2221
      %v3829 = vunpack.c.l.b16 %v2222
      %v3830 = vunpack.c.l.b16 %v2223
      %v3831 = vunpack.c.l.b16 %v2224
      %v3832 = vunpack.c.l.b16 %v2225
      %v3833 = vunpack.c.l.b16 %v2226
      %v3834 = vunpack.c.l.b16 %v2227
      %v3835 = vunpack.c.l.b16 %v2228
      %v3836 = vunpack.c.l.b16 %v2229
      %v3837 = vunpack.c.l.b16 %v2230
      %v3838 = vunpack.c.l.b16 %v2231
      %v3839 = vunpack.c.l.b16 %v2232
      %v3840 = vunpack.c.l.b16 %v2233
      %v3841 = vunpack.c.l.b16 %v2234
      %v3842 = vunpack.c.l.b16 %v2235
      %v3843 = vunpack.c.l.b16 %v2236
      %v3844 = vunpack.c.l.b16 %v2237
      %v3845 = vunpack.c.l.b16 %v2238
      %v3846 = vunpack.c.l.b16 %v2239
      %v3847 = vunpack.c.l.b16 %v2240
      %v3848 = vunpack.c.l.b16 %v2241
      %v3849 = vunpack.c.l.b16 %v2242
      %v3850 = vunpack.c.l.b16 %v2243
      %v3851 = vunpack.c.l.b16 %v2244
      %v3852 = vunpack.c.l.b16 %v2245
      %v3853 = vunpack.c.l.b16 %v2246
      %v3854 = vunpack.c.l.b16 %v2247
      %v3855 = vunpack.c.l.b16 %v2248
      %v3856 = vunpack.c.l.b16 %v2249
      %v3857 = vunpack.c.l.b16 %v2250
      %v3858 = vunpack.c.l.b16 %v2251
      %v3859 = vunpack.c.l.b16 %v2252
      %v3860 = vunpack.c.l.b16 %v2253
      %v3861 = vunpack.c.l.b16 %v2254
      %v3862 = vunpack.c.l.b16 %v2255
      %v3863 = vunpack.c.l.b16 %v2256
      %v3864 = vunpack.c.l.b16 %v2257
      %v3865 = vunpack.c.l.b16 %v2258
      %v3866 = vunpack.c.l.b16 %v2259
      %v3867 = vunpack.c.l.b16 %v2260
      %v3868 = vunpack.c.l.b16 %v2261
      %v3869 = vunpack.c.l.b16 %v2262
      %v3870 = vunpack.c.l.b16 %v2263
      %v3871 = vunpack.c.l.b16 %v2264
      %v3872 = vunpack.c.l.b16 %v2265
      %v3873 = vunpack.c.l.b16 %v2266
      %v3874 = vunpack.c.l.b16 %v2267
      %v3875 = vunpack.c.l.b16 %v2268
      %v3876 = vunpack.c.l.b16 %v2269
      %v3877 = vunpack.c.l.b16 %v2270
      %v3878 = vunpack.c.l.b16 %v2271
      %v3879 = vunpack.c.l.b16 %v2272
      %v3880 = vunpack.c.l.b16 %v2273
      %v3881 = vunpack.c.l.b16 %v2274
      %v3882 = vunpack.c.l.b16 %v2275
      %v3883 = vunpack.c.l.b16 %v2276
      %v3884 = vunpack.c.l.b16 %v2277
      %v3885 = vunpack.c.l.b16 %v2278
      %v3886 = vunpack.c.l.b16 %v2279
      %v3887 = vunpack.c.l.b16 %v2280
      %v3888 = vunpack.c.l.b16 %v2281
      %v3889 = vunpack.c.l.b16 %v2282
      %v3890 = vunpack.c.l.b16 %v2283
      %v3891 = vunpack.c.l.b16 %v2284
      %v3892 = vunpack.c.l.b16 %v2285
      %v3893 = vunpack.c.l.b16 %v2286
      %v3894 = vunpack.c.l.b16 %v2287
      %v3895 = vunpack.c.l.b16 %v2288
      %v3896 = vunpack.c.l.b16 %v2289
      %v3897 = vunpack.c.l.b16 %v2290
      %v3898 = vunpack.c.l.b16 %v2291
      %v3899 = vunpack.c.l.b16 %v2292
      %v3900 = vunpack.c.l.b16 %v2293
      %v3901 = vunpack.c.l.b16 %v2294
      %v3902 = vunpack.c.l.b16 %v2295
      %v3903 = vunpack.c.l.b16 %v2296
      %v3904 = vunpack.c.l.b16 %v2297
      %v3905 = vunpack.c.l.b16 %v2298
      %v3906 = vunpack.c.l.b16 %v2299
      %v3907 = vunpack.c.l.b16 %v2300
      %v3908 = vunpack.c.l.b16 %v2301
      %v3909 = vunpack.c.l.b16 %v2302
      %v3910 = vunpack.c.l.b16 %v2303
      %v3911 = vunpack.c.l.b16 %v2304
      %v3912 = vunpack.c.l.b16 %v2305
      %v3913 = vunpack.c.l.b16 %v2306
      %v3914 = vunpack.c.l.b16 %v2307
      %v3915 = vunpack.c.l.b16 %v2308
      %v3916 = vunpack.c.l.b16 %v2309
      %v3917 = vunpack.c.l.b16 %v2310
      %v3918 = vunpack.c.l.b16 %v2311
      %v3919 = vunpack.c.l.b16 %v2312
      %v3920 = vunpack.c.l.b16 %v2313
      %v3921 = vunpack.c.l.b16 %v2314
      %v3922 = vunpack.c.l.b16 %v2315
      %v3923 = vunpack.c.l.b16 %v2316
      %v3924 = vunpack.c.l.b16 %v2317
      %v3925 = vunpack.c.l.b16 %v2318
      %v3926 = vunpack.c.l.b16 %v2319
      %v3927 = vunpack.c.l.b16 %v2320
      %v3928 = vunpack.c.l.b16 %v2321
      %v3929 = vunpack.c.l.b16 %v2322
      %v3930 = vunpack.c.l.b16 %v2323
      %v3931 = vunpack.c.l.b16 %v2324
      %v3932 = vunpack.c.l.b16 %v2325
      %v3933 = vunpack.c.l.b16 %v2326
      %v3934 = vunpack.c.l.b16 %v2327
      %v3935 = vunpack.c.l.b16 %v2328
      %v3936 = vunpack.c.l.b16 %v2329
      %v3937 = vunpack.c.l.b16 %v2330
      %v3938 = vunpack.c.l.b16 %v2331
      %v3939 = vunpack.c.l.b16 %v2332
      %v3940 = vunpack.c.l.b16 %v2333
      %v3941 = vunpack.c.l.b16 %v2334
      %v3942 = vunpack.c.l.b16 %v2335
      %v3943 = vunpack.c.l.b16 %v2336
      %v3944 = vunpack.c.l.b16 %v2337
      %v3945 = vunpack.c.l.b16 %v2338
      %v3946 = vunpack.c.l.b16 %v2339
      %v3947 = vunpack.c.l.b16 %v2340
      %v3948 = vunpack.c.l.b16 %v2341
      %v3949 = vunpack.c.l.b16 %v2342
      %v3950 = vunpack.c.l.b16 %v2343
      %v3951 = vunpack.c.l.b16 %v2344
      %v3952 = vunpack.c.l.b16 %v2345
      %v3953 = vunpack.c.l.b16 %v2346
      %v3954 = vunpack.c.l.b16 %v2347
      %v3955 = vunpack.c.l.b16 %v2348
      %v3956 = vunpack.c.l.b16 %v2349
      %v3957 = vunpack.c.l.b16 %v2350
      %v3958 = vunpack.c.l.b16 %v2351
      %v3959 = vunpack.c.l.b16 %v2352
      %v3960 = vunpack.c.l.b16 %v2353
      %v3961 = vunpack.c.l.b16 %v2354
      %v3962 = vunpack.c.l.b16 %v2355
      %v3963 = vunpack.c.l.b16 %v2356
      %v3964 = vunpack.c.l.b16 %v2357
      %v3965 = vunpack.c.l.b16 %v2358
      %v3966 = vunpack.c.l.b16 %v2359
      %v3967 = vunpack.c.l.b16 %v2360
      %v3968 = vunpack.c.l.b16 %v2361
      %v3969 = vunpack.c.l.b16 %v2362
      %v3970 = vunpack.c.l.b16 %v2363
      %v3971 = vunpack.c.l.b16 %v2364
      %v3972 = vunpack.c.l.b16 %v2365
      %v3973 = vunpack.c.l.b16 %v2366
      %v3974 = vunpack.c.l.b16 %v2367
      %v3975 = vunpack.c.l.b16 %v2368
      %v3976 = vunpack.c.l.b16 %v2369
      %v3977 = vunpack.c.l.b16 %v2370
      %v3978 = vunpack.c.l.b16 %v2371
      %v3979 = vunpack.c.l.b16 %v2372
      %v3980 = vunpack.c.l.b16 %v2373
      %v3981 = vunpack.c.l.b16 %v2374
      %v3982 = vunpack.c.l.b16 %v2375
      %v3983 = vunpack.c.l.b16 %v2376
      %v3984 = vunpack.c.l.b16 %v2377
      %v3985 = vunpack.c.l.b16 %v2378
      %v3986 = vunpack.c.l.b16 %v2379
      %v3987 = vunpack.c.l.b16 %v2380
      %v3988 = vunpack.c.l.b16 %v2381
      %v3989 = vunpack.c.l.b16 %v2382
      %v3990 = vunpack.c.l.b16 %v2383
      %v3991 = vunpack.c.l.b16 %v2384
      %v3992 = vunpack.c.l.b16 %v2385
      %v3993 = vunpack.c.l.b16 %v2386
      %v3994 = vunpack.c.l.b16 %v2387
      %v3995 = vunpack.c.l.b16 %v2388
      %v3996 = vunpack.c.l.b16 %v2389
      %v3997 = vunpack.c.l.b16 %v2390
      %v3998 = vunpack.c.l.b16 %v2391
      %v3999 = vunpack.c.l.b16 %v2392
      %v4000 = vunpack.c.l.b16 %v2393
      %v4001 = vunpack.c.l.b16 %v2394
      %v4002 = vunpack.c.l.b16 %v2395
      %v4003 = vunpack.c.l.b16 %v2396
      %v4004 = vunpack.c.l.b16 %v2397
      %v4005 = vunpack.c.l.b16 %v2398
      %v4006 = vunpack.c.l.b16 %v2399
      %v4007 = vunpack.c.l.b16 %v2400
      %v4008 = vunpack.c.l.b16 %v2401
      %v4009 = vunpack.c.l.b16 %v2402
      %v4010 = vunpack.c.l.b16 %v2403
      %v4011 = vunpack.c.l.b16 %v2404
      %v4012 = vunpack.c.l.b16 %v2405
      %v4013 = vunpack.c.l.b16 %v2406
      %v4014 = vunpack.c.l.b16 %v2407
      %v4015 = vunpack.c.l.b16 %v2408
      %v4016 = vunpack.c.l.b16 %v2409
      %v4017 = vunpack.c.l.b16 %v2410
      %v4018 = vunpack.c.l.b16 %v2411
      %v4019 = vunpack.c.l.b16 %v2412
      %v4020 = vunpack.c.l.b16 %v2413
      %v4021 = vunpack.c.l.b16 %v2414
      %v4022 = vunpack.c.l.b16 %v2415
      %v4023 = vunpack.c.l.b16 %v2416
      %v4024 = vunpack.c.l.b16 %v2417
      %v4025 = vunpack.c.l.b16 %v2418
      %v4026 = vunpack.c.l.b16 %v2419
      %v4027 = vunpack.c.l.b16 %v2420
      %v4028 = vunpack.c.l.b16 %v2421
      %v4029 = vunpack.c.l.b16 %v2422
      %v4030 = vunpack.c.l.b16 %v2423
      %v4031 = vunpack.c.l.b16 %v2424
      %v4032 = vunpack.c.l.b16 %v2425
      %v4033 = vunpack.c.l.b16 %v2426
      %v4034 = vunpack.c.l.b16 %v2427
      %v4035 = vunpack.c.l.b16 %v2428
      %v4036 = vunpack.c.l.b16 %v2429
      %v4037 = vunpack.c.l.b16 %v2430
      %v4038 = vunpack.c.l.b16 %v2431
      %v4039 = vunpack.c.l.b16 %v2432
      %v4040 = vunpack.c.l.b16 %v2433
      %v4041 = vunpack.c.l.b16 %v2434
      %v4042 = vunpack.c.l.b16 %v2435
      %v4043 = vunpack.c.l.b16 %v2436
      %v4044 = vunpack.c.l.b16 %v2437
      %v4045 = vunpack.c.l.b16 %v2438
      %v4046 = vunpack.c.l.b16 %v2439
      %v4047 = vunpack.c.l.b16 %v2440
      %v4048 = vunpack.c.l.b16 %v2441
      %v4049 = vunpack.c.l.b16 %v2442
      %v4050 = vunpack.c.l.b16 %v2443
      %v4051 = vunpack.c.l.b16 %v2444
      %v4052 = vunpack.c.l.b16 %v2445
      %v4053 = vunpack.c.l.b16 %v2446
      %v4054 = vunpack.c.l.b16 %v2447
      %v4055 = vunpack.c.l.b16 %v2448
      %v4056 = vunpack.c.l.b16 %v2449
      %v4057 = vunpack.c.l.b16 %v2450
      %v4058 = vunpack.c.l.b16 %v2451
      %v4059 = vunpack.c.l.b16 %v2452
      %v4060 = vunpack.c.l.b16 %v2453
      %v4061 = vunpack.c.l.b16 %v2454
      %v4062 = vunpack.c.l.b16 %v2455
      %v4063 = vunpack.c.l.b16 %v2456
      %v4064 = vunpack.c.l.b16 %v2457
      %v4065 = vunpack.c.l.b16 %v2458
      %v4066 = vunpack.c.l.b16 %v2459
      %v4067 = vunpack.c.l.b16 %v2460
      %v4068 = vunpack.c.l.b16 %v2461
      %v4069 = vunpack.c.l.b16 %v2462
      %v4070 = vunpack.c.l.b16 %v2463
      %v4071 = vunpack.c.l.b16 %v2464
      %v4072 = vunpack.c.l.b16 %v2465
      %v4073 = vunpack.c.l.b16 %v2466
      %v4074 = vunpack.c.l.b16 %v2467
      %v4075 = vpack.c.b16 %v3276, %v3275
      %v4076 = vpack.c.b16 %v3278, %v3277
      %v4077 = vpack.c.b16 %v3280, %v3279
      %v4078 = vpack.c.b16 %v3282, %v3281
      %v4079 = vpack.c.b16 %v3284, %v3283
      %v4080 = vpack.c.b16 %v3286, %v3285
      %v4081 = vpack.c.b16 %v3288, %v3287
      %v4082 = vpack.c.b16 %v3290, %v3289
      %v4083 = vpack.c.b16 %v3292, %v3291
      %v4084 = vpack.c.b16 %v3294, %v3293
      %v4085 = vpack.c.b16 %v3296, %v3295
      %v4086 = vpack.c.b16 %v3298, %v3297
      %v4087 = vpack.c.b16 %v3300, %v3299
      %v4088 = vpack.c.b16 %v3302, %v3301
      %v4089 = vpack.c.b16 %v3304, %v3303
      %v4090 = vpack.c.b16 %v3306, %v3305
      %v4091 = vpack.c.b16 %v3308, %v3307
      %v4092 = vpack.c.b16 %v3310, %v3309
      %v4093 = vpack.c.b16 %v3312, %v3311
      %v4094 = vpack.c.b16 %v3314, %v3313
      %v4095 = vpack.c.b16 %v3316, %v3315
      %v4096 = vpack.c.b16 %v3318, %v3317
      %v4097 = vpack.c.b16 %v3320, %v3319
      %v4098 = vpack.c.b16 %v3322, %v3321
      %v4099 = vpack.c.b16 %v3324, %v3323
      %v4100 = vpack.c.b16 %v3326, %v3325
      %v4101 = vpack.c.b16 %v3328, %v3327
      %v4102 = vpack.c.b16 %v3330, %v3329
      %v4103 = vpack.c.b16 %v3332, %v3331
      %v4104 = vpack.c.b16 %v3334, %v3333
      %v4105 = vpack.c.b16 %v3336, %v3335
      %v4106 = vpack.c.b16 %v3338, %v3337
      %v4107 = vpack.c.b16 %v3340, %v3339
      %v4108 = vpack.c.b16 %v3342, %v3341
      %v4109 = vpack.c.b16 %v3344, %v3343
      %v4110 = vpack.c.b16 %v3346, %v3345
      %v4111 = vpack.c.b16 %v3348, %v3347
      %v4112 = vpack.c.b16 %v3350, %v3349
      %v4113 = vpack.c.b16 %v3352, %v3351
      %v4114 = vpack.c.b16 %v3354, %v3353
      %v4115 = vpack.c.b16 %v3356, %v3355
      %v4116 = vpack.c.b16 %v3358, %v3357
      %v4117 = vpack.c.b16 %v3360, %v3359
      %v4118 = vpack.c.b16 %v3362, %v3361
      %v4119 = vpack.c.b16 %v3364, %v3363
      %v4120 = vpack.c.b16 %v3366, %v3365
      %v4121 = vpack.c.b16 %v3368, %v3367
      %v4122 = vpack.c.b16 %v3370, %v3369
      %v4123 = vpack.c.b16 %v3372, %v3371
      %v4124 = vpack.c.b16 %v3374, %v3373
      %v4125 = vpack.c.b16 %v3376, %v3375
      %v4126 = vpack.c.b16 %v3378, %v3377
      %v4127 = vpack.c.b16 %v3380, %v3379
      %v4128 = vpack.c.b16 %v3382, %v3381
      %v4129 = vpack.c.b16 %v3384, %v3383
      %v4130 = vpack.c.b16 %v3386, %v3385
      %v4131 = vpack.c.b16 %v3388, %v3387
      %v4132 = vpack.c.b16 %v3390, %v3389
      %v4133 = vpack.c.b16 %v3392, %v3391
      %v4134 = vpack.c.b16 %v3394, %v3393
      %v4135 = vpack.c.b16 %v3396, %v3395
      %v4136 = vpack.c.b16 %v3398, %v3397
      %v4137 = vpack.c.b16 %v3400, %v3399
      %v4138 = vpack.c.b16 %v3402, %v3401
      %v4139 = vpack.c.b16 %v3404, %v3403
      %v4140 = vpack.c.b16 %v3406, %v3405
      %v4141 = vpack.c.b16 %v3408, %v3407
      %v4142 = vpack.c.b16 %v3410, %v3409
      %v4143 = vpack.c.b16 %v3412, %v3411
      %v4144 = vpack.c.b16 %v3414, %v3413
      %v4145 = vpack.c.b16 %v3416, %v3415
      %v4146 = vpack.c.b16 %v3418, %v3417
      %v4147 = vpack.c.b16 %v3420, %v3419
      %v4148 = vpack.c.b16 %v3422, %v3421
      %v4149 = vpack.c.b16 %v3424, %v3423
      %v4150 = vpack.c.b16 %v3426, %v3425
      %v4151 = vpack.c.b16 %v3428, %v3427
      %v4152 = vpack.c.b16 %v3430, %v3429
      %v4153 = vpack.c.b16 %v3432, %v3431
      %v4154 = vpack.c.b16 %v3434, %v3433
      %v4155 = vpack.c.b16 %v3436, %v3435
      %v4156 = vpack.c.b16 %v3438, %v3437
      %v4157 = vpack.c.b16 %v3440, %v3439
      %v4158 = vpack.c.b16 %v3442, %v3441
      %v4159 = vpack.c.b16 %v3444, %v3443
      %v4160 = vpack.c.b16 %v3446, %v3445
      %v4161 = vpack.c.b16 %v3448, %v3447
      %v4162 = vpack.c.b16 %v3450, %v3449
      %v4163 = vpack.c.b16 %v3452, %v3451
      %v4164 = vpack.c.b16 %v3454, %v3453
      %v4165 = vpack.c.b16 %v3456, %v3455
      %v4166 = vpack.c.b16 %v3458, %v3457
      %v4167 = vpack.c.b16 %v3460, %v3459
      %v4168 = vpack.c.b16 %v3462, %v3461
      %v4169 = vpack.c.b16 %v3464, %v3463
      %v4170 = vpack.c.b16 %v3466, %v3465
      %v4171 = vpack.c.b16 %v3468, %v3467
      %v4172 = vpack.c.b16 %v3470, %v3469
      %v4173 = vpack.c.b16 %v3472, %v3471
      %v4174 = vpack.c.b16 %v3474, %v3473
      %v4175 = vpack.c.b16 %v3476, %v3475
      %v4176 = vpack.c.b16 %v3478, %v3477
      %v4177 = vpack.c.b16 %v3480, %v3479
      %v4178 = vpack.c.b16 %v3482, %v3481
      %v4179 = vpack.c.b16 %v3484, %v3483
      %v4180 = vpack.c.b16 %v3486, %v3485
      %v4181 = vpack.c.b16 %v3488, %v3487
      %v4182 = vpack.c.b16 %v3490, %v3489
      %v4183 = vpack.c.b16 %v3492, %v3491
      %v4184 = vpack.c.b16 %v3494, %v3493
      %v4185 = vpack.c.b16 %v3496, %v3495
      %v4186 = vpack.c.b16 %v3498, %v3497
      %v4187 = vpack.c.b16 %v3500, %v3499
      %v4188 = vpack.c.b16 %v3502, %v3501
      %v4189 = vpack.c.b16 %v3504, %v3503
      %v4190 = vpack.c.b16 %v3506, %v3505
      %v4191 = vpack.c.b16 %v3508, %v3507
      %v4192 = vpack.c.b16 %v3510, %v3509
      %v4193 = vpack.c.b16 %v3512, %v3511
      %v4194 = vpack.c.b16 %v3514, %v3513
      %v4195 = vpack.c.b16 %v3516, %v3515
      %v4196 = vpack.c.b16 %v3518, %v3517
      %v4197 = vpack.c.b16 %v3520, %v3519
      %v4198 = vpack.c.b16 %v3522, %v3521
      %v4199 = vpack.c.b16 %v3524, %v3523
      %v4200 = vpack.c.b16 %v3526, %v3525
      %v4201 = vpack.c.b16 %v3528, %v3527
      %v4202 = vpack.c.b16 %v3530, %v3529
      %v4203 = vpack.c.b16 %v3532, %v3531
      %v4204 = vpack.c.b16 %v3534, %v3533
      %v4205 = vpack.c.b16 %v3536, %v3535
      %v4206 = vpack.c.b16 %v3538, %v3537
      %v4207 = vpack.c.b16 %v3540, %v3539
      %v4208 = vpack.c.b16 %v3542, %v3541
      %v4209 = vpack.c.b16 %v3544, %v3543
      %v4210 = vpack.c.b16 %v3546, %v3545
      %v4211 = vpack.c.b16 %v3548, %v3547
      %v4212 = vpack.c.b16 %v3550, %v3549
      %v4213 = vpack.c.b16 %v3552, %v3551
      %v4214 = vpack.c.b16 %v3554, %v3553
      %v4215 = vpack.c.b16 %v3556, %v3555
      %v4216 = vpack.c.b16 %v3558, %v3557
      %v4217 = vpack.c.b16 %v3560, %v3559
      %v4218 = vpack.c.b16 %v3562, %v3561
      %v4219 = vpack.c.b16 %v3564, %v3563
      %v4220 = vpack.c.b16 %v3566, %v3565
      %v4221 = vpack.c.b16 %v3568, %v3567
      %v4222 = vpack.c.b16 %v3570, %v3569
      %v4223 = vpack.c.b16 %v3572, %v3571
      %v4224 = vpack.c.b16 %v3574, %v3573
      %v4225 = vpack.c.b16 %v3576, %v3575
      %v4226 = vpack.c.b16 %v3578, %v3577
      %v4227 = vpack.c.b16 %v3580, %v3579
      %v4228 = vpack.c.b16 %v3582, %v3581
      %v4229 = vpack.c.b16 %v3584, %v3583
      %v4230 = vpack.c.b16 %v3586, %v3585
      %v4231 = vpack.c.b16 %v3588, %v3587
      %v4232 = vpack.c.b16 %v3590, %v3589
      %v4233 = vpack.c.b16 %v3592, %v3591
      %v4234 = vpack.c.b16 %v3594, %v3593
      %v4235 = vpack.c.b16 %v3596, %v3595
      %v4236 = vpack.c.b16 %v3598, %v3597
      %v4237 = vpack.c.b16 %v3600, %v3599
      %v4238 = vpack.c.b16 %v3602, %v3601
      %v4239 = vpack.c.b16 %v3604, %v3603
      %v4240 = vpack.c.b16 %v3606, %v3605
      %v4241 = vpack.c.b16 %v3608, %v3607
      %v4242 = vpack.c.b16 %v3610, %v3609
      %v4243 = vpack.c.b16 %v3612, %v3611
      %v4244 = vpack.c.b16 %v3614, %v3613
      %v4245 = vpack.c.b16 %v3616, %v3615
      %v4246 = vpack.c.b16 %v3618, %v3617
      %v4247 = vpack.c.b16 %v3620, %v3619
      %v4248 = vpack.c.b16 %v3622, %v3621
      %v4249 = vpack.c.b16 %v3624, %v3623
      %v4250 = vpack.c.b16 %v3626, %v3625
      %v4251 = vpack.c.b16 %v3628, %v3627
      %v4252 = vpack.c.b16 %v3630, %v3629
      %v4253 = vpack.c.b16 %v3632, %v3631
      %v4254 = vpack.c.b16 %v3634, %v3633
      %v4255 = vpack.c.b16 %v3636, %v3635
      %v4256 = vpack.c.b16 %v3638, %v3637
      %v4257 = vpack.c.b16 %v3640, %v3639
      %v4258 = vpack.c.b16 %v3642, %v3641
      %v4259 = vpack.c.b16 %v3644, %v3643
      %v4260 = vpack.c.b16 %v3646, %v3645
      %v4261 = vpack.c.b16 %v3648, %v3647
      %v4262 = vpack.c.b16 %v3650, %v3649
      %v4263 = vpack.c.b16 %v3652, %v3651
      %v4264 = vpack.c.b16 %v3654, %v3653
      %v4265 = vpack.c.b16 %v3656, %v3655
      %v4266 = vpack.c.b16 %v3658, %v3657
      %v4267 = vpack.c.b16 %v3660, %v3659
      %v4268 = vpack.c.b16 %v3662, %v3661
      %v4269 = vpack.c.b16 %v3664, %v3663
      %v4270 = vpack.c.b16 %v3666, %v3665
      %v4271 = vpack.c.b16 %v3668, %v3667
      %v4272 = vpack.c.b16 %v3670, %v3669
      %v4273 = vpack.c.b16 %v3672, %v3671
      %v4274 = vpack.c.b16 %v3674, %v3673
      %v4275 = vpack.c.b16 %v3676, %v3675
      %v4276 = vpack.c.b16 %v3678, %v3677
      %v4277 = vpack.c.b16 %v3680, %v3679
      %v4278 = vpack.c.b16 %v3682, %v3681
      %v4279 = vpack.c.b16 %v3684, %v3683
      %v4280 = vpack.c.b16 %v3686, %v3685
      %v4281 = vpack.c.b16 %v3688, %v3687
      %v4282 = vpack.c.b16 %v3690, %v3689
      %v4283 = vpack.c.b16 %v3692, %v3691
      %v4284 = vpack.c.b16 %v3694, %v3693
      %v4285 = vpack.c.b16 %v3696, %v3695
      %v4286 = vpack.c.b16 %v3698, %v3697
      %v4287 = vpack.c.b16 %v3700, %v3699
      %v4288 = vpack.c.b16 %v3702, %v3701
      %v4289 = vpack.c.b16 %v3704, %v3703
      %v4290 = vpack.c.b16 %v3706, %v3705
      %v4291 = vpack.c.b16 %v3708, %v3707
      %v4292 = vpack.c.b16 %v3710, %v3709
      %v4293 = vpack.c.b16 %v3712, %v3711
      %v4294 = vpack.c.b16 %v3714, %v3713
      %v4295 = vpack.c.b16 %v3716, %v3715
      %v4296 = vpack.c.b16 %v3718, %v3717
      %v4297 = vpack.c.b16 %v3720, %v3719
      %v4298 = vpack.c.b16 %v3722, %v3721
      %v4299 = vpack.c.b16 %v3724, %v3723
      %v4300 = vpack.c.b16 %v3726, %v3725
      %v4301 = vpack.c.b16 %v3728, %v3727
      %v4302 = vpack.c.b16 %v3730, %v3729
      %v4303 = vpack.c.b16 %v3732, %v3731
      %v4304 = vpack.c.b16 %v3734, %v3733
      %v4305 = vpack.c.b16 %v3736, %v3735
      %v4306 = vpack.c.b16 %v3738, %v3737
      %v4307 = vpack.c.b16 %v3740, %v3739
      %v4308 = vpack.c.b16 %v3742, %v3741
      %v4309 = vpack.c.b16 %v3744, %v3743
      %v4310 = vpack.c.b16 %v3746, %v3745
      %v4311 = vpack.c.b16 %v3748, %v3747
      %v4312 = vpack.c.b16 %v3750, %v3749
      %v4313 = vpack.c.b16 %v3752, %v3751
      %v4314 = vpack.c.b16 %v3754, %v3753
      %v4315 = vpack.c.b16 %v3756, %v3755
      %v4316 = vpack.c.b16 %v3758, %v3757
      %v4317 = vpack.c.b16 %v3760, %v3759
      %v4318 = vpack.c.b16 %v3762, %v3761
      %v4319 = vpack.c.b16 %v3764, %v3763
      %v4320 = vpack.c.b16 %v3766, %v3765
      %v4321 = vpack.c.b16 %v3768, %v3767
      %v4322 = vpack.c.b16 %v3770, %v3769
      %v4323 = vpack.c.b16 %v3772, %v3771
      %v4324 = vpack.c.b16 %v3774, %v3773
      %v4325 = vpack.c.b16 %v3776, %v3775
      %v4326 = vpack.c.b16 %v3778, %v3777
      %v4327 = vpack.c.b16 %v3780, %v3779
      %v4328 = vpack.c.b16 %v3782, %v3781
      %v4329 = vpack.c.b16 %v3784, %v3783
      %v4330 = vpack.c.b16 %v3786, %v3785
      %v4331 = vpack.c.b16 %v3788, %v3787
      %v4332 = vpack.c.b16 %v3790, %v3789
      %v4333 = vpack.c.b16 %v3792, %v3791
      %v4334 = vpack.c.b16 %v3794, %v3793
      %v4335 = vpack.c.b16 %v3796, %v3795
      %v4336 = vpack.c.b16 %v3798, %v3797
      %v4337 = vpack.c.b16 %v3800, %v3799
      %v4338 = vpack.c.b16 %v3802, %v3801
      %v4339 = vpack.c.b16 %v3804, %v3803
      %v4340 = vpack.c.b16 %v3806, %v3805
      %v4341 = vpack.c.b16 %v3808, %v3807
      %v4342 = vpack.c.b16 %v3810, %v3809
      %v4343 = vpack.c.b16 %v3812, %v3811
      %v4344 = vpack.c.b16 %v3814, %v3813
      %v4345 = vpack.c.b16 %v3816, %v3815
      %v4346 = vpack.c.b16 %v3818, %v3817
      %v4347 = vpack.c.b16 %v3820, %v3819
      %v4348 = vpack.c.b16 %v3822, %v3821
      %v4349 = vpack.c.b16 %v3824, %v3823
      %v4350 = vpack.c.b16 %v3826, %v3825
      %v4351 = vpack.c.b16 %v3828, %v3827
      %v4352 = vpack.c.b16 %v3830, %v3829
      %v4353 = vpack.c.b16 %v3832, %v3831
      %v4354 = vpack.c.b16 %v3834, %v3833
      %v4355 = vpack.c.b16 %v3836, %v3835
      %v4356 = vpack.c.b16 %v3838, %v3837
      %v4357 = vpack.c.b16 %v3840, %v3839
      %v4358 = vpack.c.b16 %v3842, %v3841
      %v4359 = vpack.c.b16 %v3844, %v3843
      %v4360 = vpack.c.b16 %v3846, %v3845
      %v4361 = vpack.c.b16 %v3848, %v3847
      %v4362 = vpack.c.b16 %v3850, %v3849
      %v4363 = vpack.c.b16 %v3852, %v3851
      %v4364 = vpack.c.b16 %v3854, %v3853
      %v4365 = vpack.c.b16 %v3856, %v3855
      %v4366 = vpack.c.b16 %v3858, %v3857
      %v4367 = vpack.c.b16 %v3860, %v3859
      %v4368 = vpack.c.b16 %v3862, %v3861
      %v4369 = vpack.c.b16 %v3864, %v3863
      %v4370 = vpack.c.b16 %v3866, %v3865
      %v4371 = vpack.c.b16 %v3868, %v3867
      %v4372 = vpack.c.b16 %v3870, %v3869
      %v4373 = vpack.c.b16 %v3872, %v3871
      %v4374 = vpack.c.b16 %v3874, %v3873
      %v4375 = vpack.c.b16 %v3876, %v3875
      %v4376 = vpack.c.b16 %v3878, %v3877
      %v4377 = vpack.c.b16 %v3880, %v3879
      %v4378 = vpack.c.b16 %v3882, %v3881
      %v4379 = vpack.c.b16 %v3884, %v3883
      %v4380 = vpack.c.b16 %v3886, %v3885
      %v4381 = vpack.c.b16 %v3888, %v3887
      %v4382 = vpack.c.b16 %v3890, %v3889
      %v4383 = vpack.c.b16 %v3892, %v3891
      %v4384 = vpack.c.b16 %v3894, %v3893
      %v4385 = vpack.c.b16 %v3896, %v3895
      %v4386 = vpack.c.b16 %v3898, %v3897
      %v4387 = vpack.c.b16 %v3900, %v3899
      %v4388 = vpack.c.b16 %v3902, %v3901
      %v4389 = vpack.c.b16 %v3904, %v3903
      %v4390 = vpack.c.b16 %v3906, %v3905
      %v4391 = vpack.c.b16 %v3908, %v3907
      %v4392 = vpack.c.b16 %v3910, %v3909
      %v4393 = vpack.c.b16 %v3912, %v3911
      %v4394 = vpack.c.b16 %v3914, %v3913
      %v4395 = vpack.c.b16 %v3916, %v3915
      %v4396 = vpack.c.b16 %v3918, %v3917
      %v4397 = vpack.c.b16 %v3920, %v3919
      %v4398 = vpack.c.b16 %v3922, %v3921
      %v4399 = vpack.c.b16 %v3924, %v3923
      %v4400 = vpack.c.b16 %v3926, %v3925
      %v4401 = vpack.c.b16 %v3928, %v3927
      %v4402 = vpack.c.b16 %v3930, %v3929
      %v4403 = vpack.c.b16 %v3932, %v3931
      %v4404 = vpack.c.b16 %v3934, %v3933
      %v4405 = vpack.c.b16 %v3936, %v3935
      %v4406 = vpack.c.b16 %v3938, %v3937
      %v4407 = vpack.c.b16 %v3940, %v3939
      %v4408 = vpack.c.b16 %v3942, %v3941
      %v4409 = vpack.c.b16 %v3944, %v3943
      %v4410 = vpack.c.b16 %v3946, %v3945
      %v4411 = vpack.c.b16 %v3948, %v3947
      %v4412 = vpack.c.b16 %v3950, %v3949
      %v4413 = vpack.c.b16 %v3952, %v3951
      %v4414 = vpack.c.b16 %v3954, %v3953
      %v4415 = vpack.c.b16 %v3956, %v3955
      %v4416 = vpack.c.b16 %v3958, %v3957
      %v4417 = vpack.c.b16 %v3960, %v3959
      %v4418 = vpack.c.b16 %v3962, %v3961
      %v4419 = vpack.c.b16 %v3964, %v3963
      %v4420 = vpack.c.b16 %v3966, %v3965
      %v4421 = vpack.c.b16 %v3968, %v3967
      %v4422 = vpack.c.b16 %v3970, %v3969
      %v4423 = vpack.c.b16 %v3972, %v3971
      %v4424 = vpack.c.b16 %v3974, %v3973
      %v4425 = vpack.c.b16 %v3976, %v3975
      %v4426 = vpack.c.b16 %v3978, %v3977
      %v4427 = vpack.c.b16 %v3980, %v3979
      %v4428 = vpack.c.b16 %v3982, %v3981
      %v4429 = vpack.c.b16 %v3984, %v3983
      %v4430 = vpack.c.b16 %v3986, %v3985
      %v4431 = vpack.c.b16 %v3988, %v3987
      %v4432 = vpack.c.b16 %v3990, %v3989
      %v4433 = vpack.c.b16 %v3992, %v3991
      %v4434 = vpack.c.b16 %v3994, %v3993
      %v4435 = vpack.c.b16 %v3996, %v3995
      %v4436 = vpack.c.b16 %v3998, %v3997
      %v4437 = vpack.c.b16 %v4000, %v3999
      %v4438 = vpack.c.b16 %v4002, %v4001
      %v4439 = vpack.c.b16 %v4004, %v4003
      %v4440 = vpack.c.b16 %v4006, %v4005
      %v4441 = vpack.c.b16 %v4008, %v4007
      %v4442 = vpack.c.b16 %v4010, %v4009
      %v4443 = vpack.c.b16 %v4012, %v4011
      %v4444 = vpack.c.b16 %v4014, %v4013
      %v4445 = vpack.c.b16 %v4016, %v4015
      %v4446 = vpack.c.b16 %v4018, %v4017
      %v4447 = vpack.c.b16 %v4020, %v4019
      %v4448 = vpack.c.b16 %v4022, %v4021
      %v4449 = vpack.c.b16 %v4024, %v4023
      %v4450 = vpack.c.b16 %v4026, %v4025
      %v4451 = vpack.c.b16 %v4028, %v4027
      %v4452 = vpack.c.b16 %v4030, %v4029
      %v4453 = vpack.c.b16 %v4032, %v4031
      %v4454 = vpack.c.b16 %v4034, %v4033
      %v4455 = vpack.c.b16 %v4036, %v4035
      %v4456 = vpack.c.b16 %v4038, %v4037
      %v4457 = vpack.c.b16 %v4040, %v4039
      %v4458 = vpack.c.b16 %v4042, %v4041
      %v4459 = vpack.c.b16 %v4044, %v4043
      %v4460 = vpack.c.b16 %v4046, %v4045
      %v4461 = vpack.c.b16 %v4048, %v4047
      %v4462 = vpack.c.b16 %v4050, %v4049
      %v4463 = vpack.c.b16 %v4052, %v4051
      %v4464 = vpack.c.b16 %v4054, %v4053
      %v4465 = vpack.c.b16 %v4056, %v4055
      %v4466 = vpack.c.b16 %v4058, %v4057
      %v4467 = vpack.c.b16 %v4060, %v4059
      %v4468 = vpack.c.b16 %v4062, %v4061
      %v4469 = vpack.c.b16 %v4064, %v4063
      %v4470 = vpack.c.b16 %v4066, %v4065
      %v4471 = vpack.c.b16 %v4068, %v4067
      %v4472 = vpack.c.b16 %v4070, %v4069
      %v4473 = vpack.c.b16 %v4072, %v4071
      %v4474 = vpack.c.b16 %v4074, %v4073
      %4875 = vmatprep.subr.bf16.mxu0 0
      %4876 = vmatpush1.bf16.msra.mxu0 %v4075
      %4877 = vmatprep.subr.bf16.mxu0 0
      %4878 = vmatpush1.bf16.msra.mxu0 %v4076
      %4879 = vmatprep.subr.bf16.mxu0 0
      %4880 = vmatpush1.bf16.msra.mxu0 %v4077
      %4881 = vmatprep.subr.bf16.mxu0 0
      %4882 = vmatpush1.bf16.msra.mxu0 %v4078
      %4883 = vmatprep.subr.bf16.mxu0 0
      %4884 = vmatpush1.bf16.msra.mxu0 %v4079
      %4885 = vmatprep.subr.bf16.mxu0 0
      %4886 = vmatpush1.bf16.msra.mxu0 %v4080
      %4887 = vmatprep.subr.bf16.mxu0 0
      %4888 = vmatpush1.bf16.msra.mxu0 %v4081
      %4889 = vmatprep.subr.bf16.mxu0 0
      %4890 = vmatpush1.bf16.msra.mxu0 %v4082
      %4891 = vmatprep.subr.bf16.mxu0 0
      %4892 = vmatpush1.bf16.msra.mxu0 %v4083
      %4893 = vmatprep.subr.bf16.mxu0 0
      %4894 = vmatpush1.bf16.msra.mxu0 %v4084
      %4895 = vmatprep.subr.bf16.mxu0 0
      %4896 = vmatpush1.bf16.msra.mxu0 %v4085
      %4897 = vmatprep.subr.bf16.mxu0 0
      %4898 = vmatpush1.bf16.msra.mxu0 %v4086
      %4899 = vmatprep.subr.bf16.mxu0 0
      %4900 = vmatpush1.bf16.msra.mxu0 %v4087
      %4901 = vmatprep.subr.bf16.mxu0 0
      %4902 = vmatpush1.bf16.msra.mxu0 %v4088
      %4903 = vmatprep.subr.bf16.mxu0 0
      %4904 = vmatpush1.bf16.msra.mxu0 %v4089
      %4905 = vmatprep.subr.bf16.mxu0 0
      %4906 = vmatpush1.bf16.msra.mxu0 %v4090
      %4907 = vmatprep.mubr.bf16.mxu0 %v721
      %4908 = vmatmul.mubr.bf16.gmra.mrb[0].mxu0 %v704
      %v4909 = vpop.f32.mrb[0].mxu0
      %v4910 = vadd.f32 %v2473, %v4909
      %v4911 = vpop.f32.mrb[0].mxu0
      %v4912 = vpop.f32.mrb[0].mxu0
      %v4913 = vadd.f32 %v2473, %v4912
      %v4914 = vpop.f32.mrb[0].mxu0
      %4915 = vmatprep.mubr.bf16.mxu0 %v720
      %4916 = vmatmul.mubr.bf16.gmra.mrb[0].mxu0 %v705
      %v4917 = vpop.f32.mrb[0].mxu0
      %v4918 = vadd.f32 %v2473, %v4917
      %v4919 = vpop.f32.mrb[0].mxu0
      %v4920 = vpop.f32.mrb[0].mxu0
      %v4921 = vadd.f32 %v2473, %v4920
      %v4922 = vpop.f32.mrb[0].mxu0
      %4923 = vdwg.mxu0
      %4924 = vmatprep.subr.bf16.mxu0 0
      %4925 = vmatpush1.bf16.msra.mxu0 %v4091
      %4926 = vmatprep.subr.bf16.mxu0 0
      %4927 = vmatpush1.bf16.msra.mxu0 %v4092
      %4928 = vmatprep.subr.bf16.mxu0 0
      %4929 = vmatpush1.bf16.msra.mxu0 %v4093
      %4930 = vmatprep.subr.bf16.mxu0 0
      %4931 = vmatpush1.bf16.msra.mxu0 %v4094
      %4932 = vmatprep.subr.bf16.mxu0 0
      %4933 = vmatpush1.bf16.msra.mxu0 %v4095
      %4934 = vmatprep.subr.bf16.mxu0 0
      %4935 = vmatpush1.bf16.msra.mxu0 %v4096
      %4936 = vmatprep.subr.bf16.mxu0 0
      %4937 = vmatpush1.bf16.msra.mxu0 %v4097
      %4938 = vmatprep.subr.bf16.mxu0 0
      %4939 = vmatpush1.bf16.msra.mxu0 %v4098
      %4940 = vmatprep.subr.bf16.mxu0 0
      %4941 = vmatpush1.bf16.msra.mxu0 %v4099
      %4942 = vmatprep.subr.bf16.mxu0 0
      %4943 = vmatpush1.bf16.msra.mxu0 %v4100
      %4944 = vmatprep.subr.bf16.mxu0 0
      %4945 = vmatpush1.bf16.msra.mxu0 %v4101
      %4946 = vmatprep.subr.bf16.mxu0 0
      %4947 = vmatpush1.bf16.msra.mxu0 %v4102
      %4948 = vmatprep.subr.bf16.mxu0 0
      %4949 = vmatpush1.bf16.msra.mxu0 %v4103
      %4950 = vmatprep.subr.bf16.mxu0 0
      %4951 = vmatpush1.bf16.msra.mxu0 %v4104
      %4952 = vmatprep.subr.bf16.mxu0 0
      %4953 = vmatpush1.bf16.msra.mxu0 %v4105
      %4954 = vmatprep.subr.bf16.mxu0 0
      %4955 = vmatpush1.bf16.msra.mxu0 %v4106
      %4956 = vmatprep.mubr.bf16.mxu0 %v740
      %4957 = vmatmul.mubr.bf16.gmra.mrb[0].mxu0 %v730
      %v4958 = vpop.f32.mrb[0].mxu0
      %v4959 = vadd.f32 %v4910, %v4958
      %v4960 = vpop.f32.mrb[0].mxu0
      %v4961 = vpop.f32.mrb[0].mxu0
      %v4962 = vadd.f32 %v4913, %v4961
      %v4963 = vpop.f32.mrb[0].mxu0
      %4964 = vmatprep.mubr.bf16.mxu0 %v742
      %4965 = vmatmul.mubr.bf16.gmra.mrb[0].mxu0 %v732
      %v4966 = vpop.f32.mrb[0].mxu0
      %v4967 = vadd.f32 %v4918, %v4966
      %v4968 = vpop.f32.mrb[0].mxu0
      %v4969 = vpop.f32.mrb[0].mxu0
      %v4970 = vadd.f32 %v4921, %v4969
      %v4971 = vpop.f32.mrb[0].mxu0
      %4972 = vdwg.mxu0
      %4973 = vmatprep.subr.bf16.mxu0 0
      %4974 = vmatpush1.bf16.msra.mxu0 %v4107
      %4975 = vmatprep.subr.bf16.mxu0 0
      %4976 = vmatpush1.bf16.msra.mxu0 %v4108
      %4977 = vmatprep.subr.bf16.mxu0 0
      %4978 = vmatpush1.bf16.msra.mxu0 %v4109
      %4979 = vmatprep.subr.bf16.mxu0 0
      %4980 = vmatpush1.bf16.msra.mxu0 %v4110
      %4981 = vmatprep.subr.bf16.mxu0 0
      %4982 = vmatpush1.bf16.msra.mxu0 %v4111
      %4983 = vmatprep.subr.bf16.mxu0 0
      %4984 = vmatpush1.bf16.msra.mxu0 %v4112
      %4985 = vmatprep.subr.bf16.mxu0 0
      %4986 = vmatpush1.bf16.msra.mxu0 %v4113
      %4987 = vmatprep.subr.bf16.mxu0 0
      %4988 = vmatpush1.bf16.msra.mxu0 %v4114
      %4989 = vmatprep.subr.bf16.mxu0 0
      %4990 = vmatpush1.bf16.msra.mxu0 %v4115
      %4991 = vmatprep.subr.bf16.mxu0 0
      %4992 = vmatpush1.bf16.msra.mxu0 %v4116
      %4993 = vmatprep.subr.bf16.mxu0 0
      %4994 = vmatpush1.bf16.msra.mxu0 %v4117
      %4995 = vmatprep.subr.bf16.mxu0 0
      %4996 = vmatpush1.bf16.msra.mxu0 %v4118
      %4997 = vmatprep.subr.bf16.mxu0 0
      %4998 = vmatpush1.bf16.msra.mxu0 %v4119
      %4999 = vmatprep.subr.bf16.mxu0 0
      %5000 = vmatpush1.bf16.msra.mxu0 %v4120
      %5001 = vmatprep.subr.bf16.mxu0 0
      %5002 = vmatpush1.bf16.msra.mxu0 %v4121
      %5003 = vmatprep.subr.bf16.mxu0 0
      %5004 = vmatpush1.bf16.msra.mxu0 %v4122
      %5005 = vmatprep.mubr.bf16.mxu0 %v757
      %5006 = vmatmul.mubr.bf16.gmra.mrb[0].mxu0 %v713
      %v5007 = vpop.f32.mrb[0].mxu0
      %v5008 = vadd.f32 %v4959, %v5007
      %v5009 = vpop.f32.mrb[0].mxu0
      %v5010 = vpop.f32.mrb[0].mxu0
      %v5011 = vadd.f32 %v4962, %v5010
      %v5012 = vpop.f32.mrb[0].mxu0
      %5013 = vmatprep.mubr.bf16.mxu0 %v760
      %5014 = vmatmul.mubr.bf16.gmra.mrb[0].mxu0 %v714
      %v5015 = vpop.f32.mrb[0].mxu0
      %v5016 = vadd.f32 %v4967, %v5015
      %v5017 = vpop.f32.mrb[0].mxu0
      %v5018 = vpop.f32.mrb[0].mxu0
      %v5019 = vadd.f32 %v4970, %v5018
      %v5020 = vpop.f32.mrb[0].mxu0
      %5021 = vdwg.mxu0
      %5022 = vmatprep.subr.bf16.mxu0 0
      %5023 = vmatpush1.bf16.msra.mxu0 %v4123
      %5024 = vmatprep.subr.bf16.mxu0 0
      %5025 = vmatpush1.bf16.msra.mxu0 %v4124
      %5026 = vmatprep.subr.bf16.mxu0 0
      %5027 = vmatpush1.bf16.msra.mxu0 %v4125
      %5028 = vmatprep.subr.bf16.mxu0 0
      %5029 = vmatpush1.bf16.msra.mxu0 %v4126
      %5030 = vmatprep.subr.bf16.mxu0 0
      %5031 = vmatpush1.bf16.msra.mxu0 %v4127
      %5032 = vmatprep.subr.bf16.mxu0 0
      %5033 = vmatpush1.bf16.msra.mxu0 %v4128
      %5034 = vmatprep.subr.bf16.mxu0 0
      %5035 = vmatpush1.bf16.msra.mxu0 %v4129
      %5036 = vmatprep.subr.bf16.mxu0 0
      %5037 = vmatpush1.bf16.msra.mxu0 %v4130
      %5038 = vmatprep.subr.bf16.mxu0 0
      %5039 = vmatpush1.bf16.msra.mxu0 %v4131
      %5040 = vmatprep.subr.bf16.mxu0 0
      %5041 = vmatpush1.bf16.msra.mxu0 %v4132
      %5042 = vmatprep.subr.bf16.mxu0 0
      %5043 = vmatpush1.bf16.msra.mxu0 %v4133
      %5044 = vmatprep.subr.bf16.mxu0 0
      %5045 = vmatpush1.bf16.msra.mxu0 %v4134
      %5046 = vmatprep.subr.bf16.mxu0 0
      %5047 = vmatpush1.bf16.msra.mxu0 %v4135
      %5048 = vmatprep.subr.bf16.mxu0 0
      %5049 = vmatpush1.bf16.msra.mxu0 %v4136
      %5050 = vmatprep.subr.bf16.mxu0 0
      %5051 = vmatpush1.bf16.msra.mxu0 %v4137
      %5052 = vmatprep.subr.bf16.mxu0 0
      %5053 = vmatpush1.bf16.msra.mxu0 %v4138
      %5054 = vmatprep.mubr.bf16.mxu0 %v800
      %5055 = vmatmul.mubr.bf16.gmra.mrb[0].mxu0 %v780
      %v5056 = vpop.f32.mrb[0].mxu0
      %v5057 = vadd.f32 %v5008, %v5056
      %v5058 = vpop.f32.mrb[0].mxu0
      %v5059 = vpop.f32.mrb[0].mxu0
      %v5060 = vadd.f32 %v5011, %v5059
      %v5061 = vpop.f32.mrb[0].mxu0
      %5062 = vmatprep.mubr.bf16.mxu0 %v809
      %5063 = vmatmul.mubr.bf16.gmra.mrb[0].mxu0 %v779
      %v5064 = vpop.f32.mrb[0].mxu0
      %v5065 = vadd.f32 %v5016, %v5064
      %v5066 = vpop.f32.mrb[0].mxu0
      %v5067 = vpop.f32.mrb[0].mxu0
      %v5068 = vadd.f32 %v5019, %v5067
      %v5069 = vpop.f32.mrb[0].mxu0
      %5070 = vdwg.mxu0
      %5071 = vmatprep.subr.bf16.mxu0 0
      %5072 = vmatpush1.bf16.msra.mxu0 %v4139
      %5073 = vmatprep.subr.bf16.mxu0 0
      %5074 = vmatpush1.bf16.msra.mxu0 %v4140
      %5075 = vmatprep.subr.bf16.mxu0 0
      %5076 = vmatpush1.bf16.msra.mxu0 %v4141
      %5077 = vmatprep.subr.bf16.mxu0 0
      %5078 = vmatpush1.bf16.msra.mxu0 %v4142
      %5079 = vmatprep.subr.bf16.mxu0 0
      %5080 = vmatpush1.bf16.msra.mxu0 %v4143
      %5081 = vmatprep.subr.bf16.mxu0 0
      %5082 = vmatpush1.bf16.msra.mxu0 %v4144
      %5083 = vmatprep.subr.bf16.mxu0 0
      %5084 = vmatpush1.bf16.msra.mxu0 %v4145
      %5085 = vmatprep.subr.bf16.mxu0 0
      %5086 = vmatpush1.bf16.msra.mxu0 %v4146
      %5087 = vmatprep.subr.bf16.mxu0 0
      %5088 = vmatpush1.bf16.msra.mxu0 %v4147
      %5089 = vmatprep.subr.bf16.mxu0 0
      %5090 = vmatpush1.bf16.msra.mxu0 %v4148
      %5091 = vmatprep.subr.bf16.mxu0 0
      %5092 = vmatpush1.bf16.msra.mxu0 %v4149
      %5093 = vmatprep.subr.bf16.mxu0 0
      %5094 = vmatpush1.bf16.msra.mxu0 %v4150
      %5095 = vmatprep.subr.bf16.mxu0 0
      %5096 = vmatpush1.bf16.msra.mxu0 %v4151
      %5097 = vmatprep.subr.bf16.mxu0 0
      %5098 = vmatpush1.bf16.msra.mxu0 %v4152
      %5099 = vmatprep.subr.bf16.mxu0 0
      %5100 = vmatpush1.bf16.msra.mxu0 %v4153
      %5101 = vmatprep.subr.bf16.mxu0 0
      %5102 = vmatpush1.bf16.msra.mxu0 %v4154
      %5103 = vmatprep.mubr.bf16.mxu0 %v847
      %5104 = vmatmul.mubr.bf16.gmra.mrb[0].mxu0 %v824
      %v5105 = vpop.f32.mrb[0].mxu0
      %v5106 = vadd.f32 %v5057, %v5105
      %v5107 = vpop.f32.mrb[0].mxu0
      %v5108 = vpop.f32.mrb[0].mxu0
      %v5109 = vadd.f32 %v5060, %v5108
      %v5110 = vpop.f32.mrb[0].mxu0
      %5111 = vmatprep.mubr.bf16.mxu0 %v850
      %5112 = vmatmul.mubr.bf16.gmra.mrb[0].mxu0 %v833
      %v5113 = vpop.f32.mrb[0].mxu0
      %v5114 = vadd.f32 %v5065, %v5113
      %v5115 = vpop.f32.mrb[0].mxu0
      %v5116 = vpop.f32.mrb[0].mxu0
      %v5117 = vadd.f32 %v5068, %v5116
      %v5118 = vpop.f32.mrb[0].mxu0
      %5119 = vdwg.mxu0
      %5120 = vmatprep.subr.bf16.mxu0 0
      %5121 = vmatpush1.bf16.msra.mxu0 %v4155
      %5122 = vmatprep.subr.bf16.mxu0 0
      %5123 = vmatpush1.bf16.msra.mxu0 %v4156
      %5124 = vmatprep.subr.bf16.mxu0 0
      %5125 = vmatpush1.bf16.msra.mxu0 %v4157
      %5126 = vmatprep.subr.bf16.mxu0 0
      %5127 = vmatpush1.bf16.msra.mxu0 %v4158
      %5128 = vmatprep.subr.bf16.mxu0 0
      %5129 = vmatpush1.bf16.msra.mxu0 %v4159
      %5130 = vmatprep.subr.bf16.mxu0 0
      %5131 = vmatpush1.bf16.msra.mxu0 %v4160
      %5132 = vmatprep.subr.bf16.mxu0 0
      %5133 = vmatpush1.bf16.msra.mxu0 %v4161
      %5134 = vmatprep.subr.bf16.mxu0 0
      %5135 = vmatpush1.bf16.msra.mxu0 %v4162
      %5136 = vmatprep.subr.bf16.mxu0 0
      %5137 = vmatpush1.bf16.msra.mxu0 %v4163
      %5138 = vmatprep.subr.bf16.mxu0 0
      %5139 = vmatpush1.bf16.msra.mxu0 %v4164
      %5140 = vmatprep.subr.bf16.mxu0 0
      %5141 = vmatpush1.bf16.msra.mxu0 %v4165
      %5142 = vmatprep.subr.bf16.mxu0 0
      %5143 = vmatpush1.bf16.msra.mxu0 %v4166
      %5144 = vmatprep.subr.bf16.mxu0 0
      %5145 = vmatpush1.bf16.msra.mxu0 %v4167
      %5146 = vmatprep.subr.bf16.mxu0 0
      %5147 = vmatpush1.bf16.msra.mxu0 %v4168
      %5148 = vmatprep.subr.bf16.mxu0 0
      %5149 = vmatpush1.bf16.msra.mxu0 %v4169
      %5150 = vmatprep.subr.bf16.mxu0 0
      %5151 = vmatpush1.bf16.msra.mxu0 %v4170
      %5152 = vmatprep.mubr.bf16.mxu0 %v864
      %5153 = vmatmul.mubr.bf16.gmra.mrb[0].mxu0 %v858
      %v5154 = vpop.f32.mrb[0].mxu0
      %v5155 = vadd.f32 %v5106, %v5154
      %v5156 = vpop.f32.mrb[0].mxu0
      %v5157 = vpop.f32.mrb[0].mxu0
      %v5158 = vadd.f32 %v5109, %v5157
      %v5159 = vpop.f32.mrb[0].mxu0
      %5160 = vmatprep.mubr.bf16.mxu0 %v866
      %5161 = vmatmul.mubr.bf16.gmra.mrb[0].mxu0 %v857
      %v5162 = vpop.f32.mrb[0].mxu0
      %v5163 = vadd.f32 %v5114, %v5162
      %v5164 = vpop.f32.mrb[0].mxu0
      %v5165 = vpop.f32.mrb[0].mxu0
      %v5166 = vadd.f32 %v5117, %v5165
      %v5167 = vpop.f32.mrb[0].mxu0
      %5168 = vdwg.mxu0
      %5169 = vmatprep.subr.bf16.mxu0 0
      %5170 = vmatpush1.bf16.msra.mxu0 %v4171
      %5171 = vmatprep.subr.bf16.mxu0 0
      %5172 = vmatpush1.bf16.msra.mxu0 %v4172
      %5173 = vmatprep.subr.bf16.mxu0 0
      %5174 = vmatpush1.bf16.msra.mxu0 %v4173
      %5175 = vmatprep.subr.bf16.mxu0 0
      %5176 = vmatpush1.bf16.msra.mxu0 %v4174
      %5177 = vmatprep.subr.bf16.mxu0 0
      %5178 = vmatpush1.bf16.msra.mxu0 %v4175
      %5179 = vmatprep.subr.bf16.mxu0 0
      %5180 = vmatpush1.bf16.msra.mxu0 %v4176
      %5181 = vmatprep.subr.bf16.mxu0 0
      %5182 = vmatpush1.bf16.msra.mxu0 %v4177
      %5183 = vmatprep.subr.bf16.mxu0 0
      %5184 = vmatpush1.bf16.msra.mxu0 %v4178
      %5185 = vmatprep.subr.bf16.mxu0 0
      %5186 = vmatpush1.bf16.msra.mxu0 %v4179
      %5187 = vmatprep.subr.bf16.mxu0 0
      %5188 = vmatpush1.bf16.msra.mxu0 %v4180
      %5189 = vmatprep.subr.bf16.mxu0 0
      %5190 = vmatpush1.bf16.msra.mxu0 %v4181
      %5191 = vmatprep.subr.bf16.mxu0 0
      %5192 = vmatpush1.bf16.msra.mxu0 %v4182
      %5193 = vmatprep.subr.bf16.mxu0 0
      %5194 = vmatpush1.bf16.msra.mxu0 %v4183
      %5195 = vmatprep.subr.bf16.mxu0 0
      %5196 = vmatpush1.bf16.msra.mxu0 %v4184
      %5197 = vmatprep.subr.bf16.mxu0 0
      %5198 = vmatpush1.bf16.msra.mxu0 %v4185
      %5199 = vmatprep.subr.bf16.mxu0 0
      %5200 = vmatpush1.bf16.msra.mxu0 %v4186
      %5201 = vmatprep.mubr.bf16.mxu0 %v880
      %5202 = vmatmul.mubr.bf16.gmra.mrb[0].mxu0 %v872
      %v5203 = vpop.f32.mrb[0].mxu0
      %v5204 = vadd.f32 %v5155, %v5203
      %v5205 = vpop.f32.mrb[0].mxu0
      %v5206 = vpop.f32.mrb[0].mxu0
      %v5207 = vadd.f32 %v5158, %v5206
      %v5208 = vpop.f32.mrb[0].mxu0
      %5209 = vmatprep.mubr.bf16.mxu0 %v882
      %5210 = vmatmul.mubr.bf16.gmra.mrb[0].mxu0 %v874
      %v5211 = vpop.f32.mrb[0].mxu0
      %v5212 = vadd.f32 %v5163, %v5211
      %v5213 = vpop.f32.mrb[0].mxu0
      %v5214 = vpop.f32.mrb[0].mxu0
      %v5215 = vadd.f32 %v5166, %v5214
      %v5216 = vpop.f32.mrb[0].mxu0
      %5217 = vdwg.mxu0
      %5218 = vmatprep.subr.bf16.mxu0 0
      %5219 = vmatpush1.bf16.msra.mxu0 %v4187
      %5220 = vmatprep.subr.bf16.mxu0 0
      %5221 = vmatpush1.bf16.msra.mxu0 %v4188
      %5222 = vmatprep.subr.bf16.mxu0 0
      %5223 = vmatpush1.bf16.msra.mxu0 %v4189
      %5224 = vmatprep.subr.bf16.mxu0 0
      %5225 = vmatpush1.bf16.msra.mxu0 %v4190
      %5226 = vmatprep.subr.bf16.mxu0 0
      %5227 = vmatpush1.bf16.msra.mxu0 %v4191
      %5228 = vmatprep.subr.bf16.mxu0 0
      %5229 = vmatpush1.bf16.msra.mxu0 %v4192
      %5230 = vmatprep.subr.bf16.mxu0 0
      %5231 = vmatpush1.bf16.msra.mxu0 %v4193
      %5232 = vmatprep.subr.bf16.mxu0 0
      %5233 = vmatpush1.bf16.msra.mxu0 %v4194
      %5234 = vmatprep.subr.bf16.mxu0 0
      %5235 = vmatpush1.bf16.msra.mxu0 %v4195
      %5236 = vmatprep.subr.bf16.mxu0 0
      %5237 = vmatpush1.bf16.msra.mxu0 %v4196
      %5238 = vmatprep.subr.bf16.mxu0 0
      %5239 = vmatpush1.bf16.msra.mxu0 %v4197
      %5240 = vmatprep.subr.bf16.mxu0 0
      %5241 = vmatpush1.bf16.msra.mxu0 %v4198
      %5242 = vmatprep.subr.bf16.mxu0 0
      %5243 = vmatpush1.bf16.msra.mxu0 %v4199
      %5244 = vmatprep.subr.bf16.mxu0 0
      %5245 = vmatpush1.bf16.msra.mxu0 %v4200
      %5246 = vmatprep.subr.bf16.mxu0 0
      %5247 = vmatpush1.bf16.msra.mxu0 %v4201
      %5248 = vmatprep.subr.bf16.mxu0 0
      %5249 = vmatpush1.bf16.msra.mxu0 %v4202
      %5250 = vmatprep.mubr.bf16.mxu0 %v899
      %5251 = vmatmul.mubr.bf16.gmra.mrb[0].mxu0 %v889
      %v5252 = vpop.f32.mrb[0].mxu0
      %v5253 = vadd.f32 %v5204, %v5252
      %v5254 = vpop.f32.mrb[0].mxu0
      %v5255 = vpop.f32.mrb[0].mxu0
      %v5256 = vadd.f32 %v5207, %v5255
      %v5257 = vpop.f32.mrb[0].mxu0
      %5258 = vmatprep.mubr.bf16.mxu0 %v898
      %5259 = vmatmul.mubr.bf16.gmra.mrb[0].mxu0 %v888
      %v5260 = vpop.f32.mrb[0].mxu0
      %v5261 = vadd.f32 %v5212, %v5260
      %v5262 = vpop.f32.mrb[0].mxu0
      %v5263 = vpop.f32.mrb[0].mxu0
      %v5264 = vadd.f32 %v5215, %v5263
      %v5265 = vpop.f32.mrb[0].mxu0
      %5266 = vdwg.mxu0
      %5267 = vmatprep.subr.bf16.mxu0 0
      %5268 = vmatpush1.bf16.msra.mxu0 %v4203
      %5269 = vmatprep.subr.bf16.mxu0 0
      %5270 = vmatpush1.bf16.msra.mxu0 %v4204
      %5271 = vmatprep.subr.bf16.mxu0 0
      %5272 = vmatpush1.bf16.msra.mxu0 %v4205
      %5273 = vmatprep.subr.bf16.mxu0 0
      %5274 = vmatpush1.bf16.msra.mxu0 %v4206
      %5275 = vmatprep.subr.bf16.mxu0 0
      %5276 = vmatpush1.bf16.msra.mxu0 %v4207
      %5277 = vmatprep.subr.bf16.mxu0 0
      %5278 = vmatpush1.bf16.msra.mxu0 %v4208
      %5279 = vmatprep.subr.bf16.mxu0 0
      %5280 = vmatpush1.bf16.msra.mxu0 %v4209
      %5281 = vmatprep.subr.bf16.mxu0 0
      %5282 = vmatpush1.bf16.msra.mxu0 %v4210
      %5283 = vmatprep.subr.bf16.mxu0 0
      %5284 = vmatpush1.bf16.msra.mxu0 %v4211
      %5285 = vmatprep.subr.bf16.mxu0 0
      %5286 = vmatpush1.bf16.msra.mxu0 %v4212
      %5287 = vmatprep.subr.bf16.mxu0 0
      %5288 = vmatpush1.bf16.msra.mxu0 %v4213
      %5289 = vmatprep.subr.bf16.mxu0 0
      %5290 = vmatpush1.bf16.msra.mxu0 %v4214
      %5291 = vmatprep.subr.bf16.mxu0 0
      %5292 = vmatpush1.bf16.msra.mxu0 %v4215
      %5293 = vmatprep.subr.bf16.mxu0 0
      %5294 = vmatpush1.bf16.msra.mxu0 %v4216
      %5295 = vmatprep.subr.bf16.mxu0 0
      %5296 = vmatpush1.bf16.msra.mxu0 %v4217
      %5297 = vmatprep.subr.bf16.mxu0 0
      %5298 = vmatpush1.bf16.msra.mxu0 %v4218
      %5299 = vmatprep.mubr.bf16.mxu0 %v1127
      %5300 = vmatmul.mubr.bf16.gmra.mrb[0].mxu0 %v1110
      %v5301 = vpop.f32.mrb[0].mxu0
      %v5302 = vadd.f32 %v5253, %v5301
      %v5303 = vpop.f32.mrb[0].mxu0
      %v5304 = vpop.f32.mrb[0].mxu0
      %v5305 = vadd.f32 %v5256, %v5304
      %v5306 = vpop.f32.mrb[0].mxu0
      %5307 = vmatprep.mubr.bf16.mxu0 %v1378
      %5308 = vmatmul.mubr.bf16.gmra.mrb[0].mxu0 %v1369
      %v5309 = vpop.f32.mrb[0].mxu0
      %v5310 = vadd.f32 %v5261, %v5309
      %v5311 = vpop.f32.mrb[0].mxu0
      %v5312 = vpop.f32.mrb[0].mxu0
      %v5313 = vadd.f32 %v5264, %v5312
      %v5314 = vpop.f32.mrb[0].mxu0
      %5315 = vdwg.mxu0
      %5316 = vmatprep.subr.bf16.mxu0 0
      %5317 = vmatpush1.bf16.msra.mxu0 %v4219
      %5318 = vmatprep.subr.bf16.mxu0 0
      %5319 = vmatpush1.bf16.msra.mxu0 %v4220
      %5320 = vmatprep.subr.bf16.mxu0 0
      %5321 = vmatpush1.bf16.msra.mxu0 %v4221
      %5322 = vmatprep.subr.bf16.mxu0 0
      %5323 = vmatpush1.bf16.msra.mxu0 %v4222
      %5324 = vmatprep.subr.bf16.mxu0 0
      %5325 = vmatpush1.bf16.msra.mxu0 %v4223
      %5326 = vmatprep.subr.bf16.mxu0 0
      %5327 = vmatpush1.bf16.msra.mxu0 %v4224
      %5328 = vmatprep.subr.bf16.mxu0 0
      %5329 = vmatpush1.bf16.msra.mxu0 %v4225
      %5330 = vmatprep.subr.bf16.mxu0 0
      %5331 = vmatpush1.bf16.msra.mxu0 %v4226
      %5332 = vmatprep.subr.bf16.mxu0 0
      %5333 = vmatpush1.bf16.msra.mxu0 %v4227
      %5334 = vmatprep.subr.bf16.mxu0 0
      %5335 = vmatpush1.bf16.msra.mxu0 %v4228
      %5336 = vmatprep.subr.bf16.mxu0 0
      %5337 = vmatpush1.bf16.msra.mxu0 %v4229
      %5338 = vmatprep.subr.bf16.mxu0 0
      %5339 = vmatpush1.bf16.msra.mxu0 %v4230
      %5340 = vmatprep.subr.bf16.mxu0 0
      %5341 = vmatpush1.bf16.msra.mxu0 %v4231
      %5342 = vmatprep.subr.bf16.mxu0 0
      %5343 = vmatpush1.bf16.msra.mxu0 %v4232
      %5344 = vmatprep.subr.bf16.mxu0 0
      %5345 = vmatpush1.bf16.msra.mxu0 %v4233
      %5346 = vmatprep.subr.bf16.mxu0 0
      %5347 = vmatpush1.bf16.msra.mxu0 %v4234
      %5348 = vmatprep.mubr.bf16.mxu0 %v1161
      %5349 = vmatmul.mubr.bf16.gmra.mrb[0].mxu0 %v1144
      %v5350 = vpop.f32.mrb[0].mxu0
      %v5351 = vadd.f32 %v5302, %v5350
      %v5352 = vpop.f32.mrb[0].mxu0
      %v5353 = vpop.f32.mrb[0].mxu0
      %v5354 = vadd.f32 %v5305, %v5353
      %v5355 = vpop.f32.mrb[0].mxu0
      %5356 = vmatprep.mubr.bf16.mxu0 %v1396
      %5357 = vmatmul.mubr.bf16.gmra.mrb[0].mxu0 %v1387
      %v5358 = vpop.f32.mrb[0].mxu0
      %v5359 = vadd.f32 %v5310, %v5358
      %v5360 = vpop.f32.mrb[0].mxu0
      %v5361 = vpop.f32.mrb[0].mxu0
      %v5362 = vadd.f32 %v5313, %v5361
      %v5363 = vpop.f32.mrb[0].mxu0
      %5364 = vdwg.mxu0
      %5365 = vmatprep.subr.bf16.mxu0 0
      %5366 = vmatpush1.bf16.msra.mxu0 %v4235
      %5367 = vmatprep.subr.bf16.mxu0 0
      %5368 = vmatpush1.bf16.msra.mxu0 %v4236
      %5369 = vmatprep.subr.bf16.mxu0 0
      %5370 = vmatpush1.bf16.msra.mxu0 %v4237
      %5371 = vmatprep.subr.bf16.mxu0 0
      %5372 = vmatpush1.bf16.msra.mxu0 %v4238
      %5373 = vmatprep.subr.bf16.mxu0 0
      %5374 = vmatpush1.bf16.msra.mxu0 %v4239
      %5375 = vmatprep.subr.bf16.mxu0 0
      %5376 = vmatpush1.bf16.msra.mxu0 %v4240
      %5377 = vmatprep.subr.bf16.mxu0 0
      %5378 = vmatpush1.bf16.msra.mxu0 %v4241
      %5379 = vmatprep.subr.bf16.mxu0 0
      %5380 = vmatpush1.bf16.msra.mxu0 %v4242
      %5381 = vmatprep.subr.bf16.mxu0 0
      %5382 = vmatpush1.bf16.msra.mxu0 %v4243
      %5383 = vmatprep.subr.bf16.mxu0 0
      %5384 = vmatpush1.bf16.msra.mxu0 %v4244
      %5385 = vmatprep.subr.bf16.mxu0 0
      %5386 = vmatpush1.bf16.msra.mxu0 %v4245
      %5387 = vmatprep.subr.bf16.mxu0 0
      %5388 = vmatpush1.bf16.msra.mxu0 %v4246
      %5389 = vmatprep.subr.bf16.mxu0 0
      %5390 = vmatpush1.bf16.msra.mxu0 %v4247
      %5391 = vmatprep.subr.bf16.mxu0 0
      %5392 = vmatpush1.bf16.msra.mxu0 %v4248
      %5393 = vmatprep.subr.bf16.mxu0 0
      %5394 = vmatpush1.bf16.msra.mxu0 %v4249
      %5395 = vmatprep.subr.bf16.mxu0 0
      %5396 = vmatpush1.bf16.msra.mxu0 %v4250
      %5397 = vmatprep.mubr.bf16.mxu0 %v1195
      %5398 = vmatmul.mubr.bf16.gmra.mrb[0].mxu0 %v1178
      %v5399 = vpop.f32.mrb[0].mxu0
      %v5400 = vadd.f32 %v5351, %v5399
      %v5401 = vpop.f32.mrb[0].mxu0
      %v5402 = vpop.f32.mrb[0].mxu0
      %v5403 = vadd.f32 %v5354, %v5402
      %v5404 = vpop.f32.mrb[0].mxu0
      %5405 = vmatprep.mubr.bf16.mxu0 %v1414
      %5406 = vmatmul.mubr.bf16.gmra.mrb[0].mxu0 %v1405
      %v5407 = vpop.f32.mrb[0].mxu0
      %v5408 = vadd.f32 %v5359, %v5407
      %v5409 = vpop.f32.mrb[0].mxu0
      %v5410 = vpop.f32.mrb[0].mxu0
      %v5411 = vadd.f32 %v5362, %v5410
      %v5412 = vpop.f32.mrb[0].mxu0
      %5413 = vdwg.mxu0
      %5414 = vmatprep.subr.bf16.mxu0 0
      %5415 = vmatpush1.bf16.msra.mxu0 %v4251
      %5416 = vmatprep.subr.bf16.mxu0 0
      %5417 = vmatpush1.bf16.msra.mxu0 %v4252
      %5418 = vmatprep.subr.bf16.mxu0 0
      %5419 = vmatpush1.bf16.msra.mxu0 %v4253
      %5420 = vmatprep.subr.bf16.mxu0 0
      %5421 = vmatpush1.bf16.msra.mxu0 %v4254
      %5422 = vmatprep.subr.bf16.mxu0 0
      %5423 = vmatpush1.bf16.msra.mxu0 %v4255
      %5424 = vmatprep.subr.bf16.mxu0 0
      %5425 = vmatpush1.bf16.msra.mxu0 %v4256
      %5426 = vmatprep.subr.bf16.mxu0 0
      %5427 = vmatpush1.bf16.msra.mxu0 %v4257
      %5428 = vmatprep.subr.bf16.mxu0 0
      %5429 = vmatpush1.bf16.msra.mxu0 %v4258
      %5430 = vmatprep.subr.bf16.mxu0 0
      %5431 = vmatpush1.bf16.msra.mxu0 %v4259
      %5432 = vmatprep.subr.bf16.mxu0 0
      %5433 = vmatpush1.bf16.msra.mxu0 %v4260
      %5434 = vmatprep.subr.bf16.mxu0 0
      %5435 = vmatpush1.bf16.msra.mxu0 %v4261
      %5436 = vmatprep.subr.bf16.mxu0 0
      %5437 = vmatpush1.bf16.msra.mxu0 %v4262
      %5438 = vmatprep.subr.bf16.mxu0 0
      %5439 = vmatpush1.bf16.msra.mxu0 %v4263
      %5440 = vmatprep.subr.bf16.mxu0 0
      %5441 = vmatpush1.bf16.msra.mxu0 %v4264
      %5442 = vmatprep.subr.bf16.mxu0 0
      %5443 = vmatpush1.bf16.msra.mxu0 %v4265
      %5444 = vmatprep.subr.bf16.mxu0 0
      %5445 = vmatpush1.bf16.msra.mxu0 %v4266
      %5446 = vmatprep.mubr.bf16.mxu0 %v1229
      %5447 = vmatmul.mubr.bf16.gmra.mrb[0].mxu0 %v1212
      %v5448 = vpop.f32.mrb[0].mxu0
      %v5449 = vadd.f32 %v5400, %v5448
      %v5450 = vpop.f32.mrb[0].mxu0
      %v5451 = vpop.f32.mrb[0].mxu0
      %v5452 = vadd.f32 %v5403, %v5451
      %v5453 = vpop.f32.mrb[0].mxu0
      %5454 = vmatprep.mubr.bf16.mxu0 %v1432
      %5455 = vmatmul.mubr.bf16.gmra.mrb[0].mxu0 %v1423
      %v5456 = vpop.f32.mrb[0].mxu0
      %v5457 = vadd.f32 %v5408, %v5456
      %v5458 = vpop.f32.mrb[0].mxu0
      %v5459 = vpop.f32.mrb[0].mxu0
      %v5460 = vadd.f32 %v5411, %v5459
      %v5461 = vpop.f32.mrb[0].mxu0
      %5462 = vdwg.mxu0
      %5463 = vmatprep.subr.bf16.mxu0 0
      %5464 = vmatpush1.bf16.msra.mxu0 %v4267
      %5465 = vmatprep.subr.bf16.mxu0 0
      %5466 = vmatpush1.bf16.msra.mxu0 %v4268
      %5467 = vmatprep.subr.bf16.mxu0 0
      %5468 = vmatpush1.bf16.msra.mxu0 %v4269
      %5469 = vmatprep.subr.bf16.mxu0 0
      %5470 = vmatpush1.bf16.msra.mxu0 %v4270
      %5471 = vmatprep.subr.bf16.mxu0 0
      %5472 = vmatpush1.bf16.msra.mxu0 %v4271
      %5473 = vmatprep.subr.bf16.mxu0 0
      %5474 = vmatpush1.bf16.msra.mxu0 %v4272
      %5475 = vmatprep.subr.bf16.mxu0 0
      %5476 = vmatpush1.bf16.msra.mxu0 %v4273
      %5477 = vmatprep.subr.bf16.mxu0 0
      %5478 = vmatpush1.bf16.msra.mxu0 %v4274
      %5479 = vmatprep.subr.bf16.mxu0 0
      %5480 = vmatpush1.bf16.msra.mxu0 %v4275
      %5481 = vmatprep.subr.bf16.mxu0 0
      %5482 = vmatpush1.bf16.msra.mxu0 %v4276
      %5483 = vmatprep.subr.bf16.mxu0 0
      %5484 = vmatpush1.bf16.msra.mxu0 %v4277
      %5485 = vmatprep.subr.bf16.mxu0 0
      %5486 = vmatpush1.bf16.msra.mxu0 %v4278
      %5487 = vmatprep.subr.bf16.mxu0 0
      %5488 = vmatpush1.bf16.msra.mxu0 %v4279
      %5489 = vmatprep.subr.bf16.mxu0 0
      %5490 = vmatpush1.bf16.msra.mxu0 %v4280
      %5491 = vmatprep.subr.bf16.mxu0 0
      %5492 = vmatpush1.bf16.msra.mxu0 %v4281
      %5493 = vmatprep.subr.bf16.mxu0 0
      %5494 = vmatpush1.bf16.msra.mxu0 %v4282
      %5495 = vmatprep.mubr.bf16.mxu0 %v1263
      %5496 = vmatmul.mubr.bf16.gmra.mrb[0].mxu0 %v1246
      %v5497 = vpop.f32.mrb[0].mxu0
      %v5498 = vadd.f32 %v5449, %v5497
      %v5499 = vpop.f32.mrb[0].mxu0
      %v5500 = vpop.f32.mrb[0].mxu0
      %v5501 = vadd.f32 %v5452, %v5500
      %v5502 = vpop.f32.mrb[0].mxu0
      %5503 = vmatprep.mubr.bf16.mxu0 %v1450
      %5504 = vmatmul.mubr.bf16.gmra.mrb[0].mxu0 %v1441
      %v5505 = vpop.f32.mrb[0].mxu0
      %v5506 = vadd.f32 %v5457, %v5505
      %v5507 = vpop.f32.mrb[0].mxu0
      %v5508 = vpop.f32.mrb[0].mxu0
      %v5509 = vadd.f32 %v5460, %v5508
      %v5510 = vpop.f32.mrb[0].mxu0
      %5511 = vdwg.mxu0
      %5512 = vmatprep.subr.bf16.mxu0 0
      %5513 = vmatpush1.bf16.msra.mxu0 %v4283
      %5514 = vmatprep.subr.bf16.mxu0 0
      %5515 = vmatpush1.bf16.msra.mxu0 %v4284
      %5516 = vmatprep.subr.bf16.mxu0 0
      %5517 = vmatpush1.bf16.msra.mxu0 %v4285
      %5518 = vmatprep.subr.bf16.mxu0 0
      %5519 = vmatpush1.bf16.msra.mxu0 %v4286
      %5520 = vmatprep.subr.bf16.mxu0 0
      %5521 = vmatpush1.bf16.msra.mxu0 %v4287
      %5522 = vmatprep.subr.bf16.mxu0 0
      %5523 = vmatpush1.bf16.msra.mxu0 %v4288
      %5524 = vmatprep.subr.bf16.mxu0 0
      %5525 = vmatpush1.bf16.msra.mxu0 %v4289
      %5526 = vmatprep.subr.bf16.mxu0 0
      %5527 = vmatpush1.bf16.msra.mxu0 %v4290
      %5528 = vmatprep.subr.bf16.mxu0 0
      %5529 = vmatpush1.bf16.msra.mxu0 %v4291
      %5530 = vmatprep.subr.bf16.mxu0 0
      %5531 = vmatpush1.bf16.msra.mxu0 %v4292
      %5532 = vmatprep.subr.bf16.mxu0 0
      %5533 = vmatpush1.bf16.msra.mxu0 %v4293
      %5534 = vmatprep.subr.bf16.mxu0 0
      %5535 = vmatpush1.bf16.msra.mxu0 %v4294
      %5536 = vmatprep.subr.bf16.mxu0 0
      %5537 = vmatpush1.bf16.msra.mxu0 %v4295
      %5538 = vmatprep.subr.bf16.mxu0 0
      %5539 = vmatpush1.bf16.msra.mxu0 %v4296
      %5540 = vmatprep.subr.bf16.mxu0 0
      %5541 = vmatpush1.bf16.msra.mxu0 %v4297
      %5542 = vmatprep.subr.bf16.mxu0 0
      %5543 = vmatpush1.bf16.msra.mxu0 %v4298
      %5544 = vmatprep.mubr.bf16.mxu0 %v1297
      %5545 = vmatmul.mubr.bf16.gmra.mrb[0].mxu0 %v1280
      %v5546 = vpop.f32.mrb[0].mxu0
      %v5547 = vadd.f32 %v5498, %v5546
      %v5548 = vpop.f32.mrb[0].mxu0
      %v5549 = vpop.f32.mrb[0].mxu0
      %v5550 = vadd.f32 %v5501, %v5549
      %v5551 = vpop.f32.mrb[0].mxu0
      %5552 = vmatprep.mubr.bf16.mxu0 %v1468
      %5553 = vmatmul.mubr.bf16.gmra.mrb[0].mxu0 %v1459
      %v5554 = vpop.f32.mrb[0].mxu0
      %v5555 = vadd.f32 %v5506, %v5554
      %v5556 = vpop.f32.mrb[0].mxu0
      %v5557 = vpop.f32.mrb[0].mxu0
      %v5558 = vadd.f32 %v5509, %v5557
      %v5559 = vpop.f32.mrb[0].mxu0
      %5560 = vdwg.mxu0
      %5561 = vmatprep.subr.bf16.mxu0 0
      %5562 = vmatpush1.bf16.msra.mxu0 %v4299
      %5563 = vmatprep.subr.bf16.mxu0 0
      %5564 = vmatpush1.bf16.msra.mxu0 %v4300
      %5565 = vmatprep.subr.bf16.mxu0 0
      %5566 = vmatpush1.bf16.msra.mxu0 %v4301
      %5567 = vmatprep.subr.bf16.mxu0 0
      %5568 = vmatpush1.bf16.msra.mxu0 %v4302
      %5569 = vmatprep.subr.bf16.mxu0 0
      %5570 = vmatpush1.bf16.msra.mxu0 %v4303
      %5571 = vmatprep.subr.bf16.mxu0 0
      %5572 = vmatpush1.bf16.msra.mxu0 %v4304
      %5573 = vmatprep.subr.bf16.mxu0 0
      %5574 = vmatpush1.bf16.msra.mxu0 %v4305
      %5575 = vmatprep.subr.bf16.mxu0 0
      %5576 = vmatpush1.bf16.msra.mxu0 %v4306
      %5577 = vmatprep.subr.bf16.mxu0 0
      %5578 = vmatpush1.bf16.msra.mxu0 %v4307
      %5579 = vmatprep.subr.bf16.mxu0 0
      %5580 = vmatpush1.bf16.msra.mxu0 %v4308
      %5581 = vmatprep.subr.bf16.mxu0 0
      %5582 = vmatpush1.bf16.msra.mxu0 %v4309
      %5583 = vmatprep.subr.bf16.mxu0 0
      %5584 = vmatpush1.bf16.msra.mxu0 %v4310
      %5585 = vmatprep.subr.bf16.mxu0 0
      %5586 = vmatpush1.bf16.msra.mxu0 %v4311
      %5587 = vmatprep.subr.bf16.mxu0 0
      %5588 = vmatpush1.bf16.msra.mxu0 %v4312
      %5589 = vmatprep.subr.bf16.mxu0 0
      %5590 = vmatpush1.bf16.msra.mxu0 %v4313
      %5591 = vmatprep.subr.bf16.mxu0 0
      %5592 = vmatpush1.bf16.msra.mxu0 %v4314
      %5593 = vmatprep.mubr.bf16.mxu0 %v1331
      %5594 = vmatmul.mubr.bf16.gmra.mrb[0].mxu0 %v1314
      %v5595 = vpop.f32.mrb[0].mxu0
      %v5596 = vadd.f32 %v5547, %v5595
      %v5597 = vpop.f32.mrb[0].mxu0
      %v5598 = vpop.f32.mrb[0].mxu0
      %v5599 = vadd.f32 %v5550, %v5598
      %v5600 = vpop.f32.mrb[0].mxu0
      %5601 = vmatprep.mubr.bf16.mxu0 %v1486
      %5602 = vmatmul.mubr.bf16.gmra.mrb[0].mxu0 %v1477
      %v5603 = vpop.f32.mrb[0].mxu0
      %v5604 = vadd.f32 %v5555, %v5603
      %v5605 = vpop.f32.mrb[0].mxu0
      %v5606 = vpop.f32.mrb[0].mxu0
      %v5607 = vadd.f32 %v5558, %v5606
      %v5608 = vpop.f32.mrb[0].mxu0
      %5609 = vdwg.mxu0
      %5610 = vmatprep.subr.bf16.mxu0 0
      %5611 = vmatpush1.bf16.msra.mxu0 %v4315
      %5612 = vmatprep.subr.bf16.mxu0 0
      %5613 = vmatpush1.bf16.msra.mxu0 %v4316
      %5614 = vmatprep.subr.bf16.mxu0 0
      %5615 = vmatpush1.bf16.msra.mxu0 %v4317
      %5616 = vmatprep.subr.bf16.mxu0 0
      %5617 = vmatpush1.bf16.msra.mxu0 %v4318
      %5618 = vmatprep.subr.bf16.mxu0 0
      %5619 = vmatpush1.bf16.msra.mxu0 %v4319
      %5620 = vmatprep.subr.bf16.mxu0 0
      %5621 = vmatpush1.bf16.msra.mxu0 %v4320
      %5622 = vmatprep.subr.bf16.mxu0 0
      %5623 = vmatpush1.bf16.msra.mxu0 %v4321
      %5624 = vmatprep.subr.bf16.mxu0 0
      %5625 = vmatpush1.bf16.msra.mxu0 %v4322
      %5626 = vmatprep.subr.bf16.mxu0 0
      %5627 = vmatpush1.bf16.msra.mxu0 %v4323
      %5628 = vmatprep.subr.bf16.mxu0 0
      %5629 = vmatpush1.bf16.msra.mxu0 %v4324
      %5630 = vmatprep.subr.bf16.mxu0 0
      %5631 = vmatpush1.bf16.msra.mxu0 %v4325
      %5632 = vmatprep.subr.bf16.mxu0 0
      %5633 = vmatpush1.bf16.msra.mxu0 %v4326
      %5634 = vmatprep.subr.bf16.mxu0 0
      %5635 = vmatpush1.bf16.msra.mxu0 %v4327
      %5636 = vmatprep.subr.bf16.mxu0 0
      %5637 = vmatpush1.bf16.msra.mxu0 %v4328
      %5638 = vmatprep.subr.bf16.mxu0 0
      %5639 = vmatpush1.bf16.msra.mxu0 %v4329
      %5640 = vmatprep.subr.bf16.mxu0 0
      %5641 = vmatpush1.bf16.msra.mxu0 %v4330
      %5642 = vmatprep.mubr.bf16.mxu0 %v1365
      %5643 = vmatmul.mubr.bf16.gmra.mrb[0].mxu0 %v1348
      %v5644 = vpop.f32.mrb[0].mxu0
      %v5645 = vadd.f32 %v5596, %v5644
      %v5646 = vpop.f32.mrb[0].mxu0
      %v5647 = vpop.f32.mrb[0].mxu0
      %v5648 = vadd.f32 %v5599, %v5647
      %v5649 = vpop.f32.mrb[0].mxu0
      %5650 = vmatprep.mubr.bf16.mxu0 %v1504
      %5651 = vmatmul.mubr.bf16.gmra.mrb[0].mxu0 %v1495
      %v5652 = vpop.f32.mrb[0].mxu0
      %v5653 = vadd.f32 %v5604, %v5652
      %v5654 = vpop.f32.mrb[0].mxu0
      %v5655 = vpop.f32.mrb[0].mxu0
      %v5656 = vadd.f32 %v5607, %v5655
      %v5657 = vpop.f32.mrb[0].mxu0
      %5658 = vdwg.mxu0
      %5659 = vmatprep.subr.bf16.mxu0 0
      %5660 = vmatpush1.bf16.msra.mxu0 %v4331
      %5661 = vmatprep.subr.bf16.mxu0 0
      %5662 = vmatpush1.bf16.msra.mxu0 %v4332
      %5663 = vmatprep.subr.bf16.mxu0 0
      %5664 = vmatpush1.bf16.msra.mxu0 %v4333
      %5665 = vmatprep.subr.bf16.mxu0 0
      %5666 = vmatpush1.bf16.msra.mxu0 %v4334
      %5667 = vmatprep.subr.bf16.mxu0 0
      %5668 = vmatpush1.bf16.msra.mxu0 %v4335
      %5669 = vmatprep.subr.bf16.mxu0 0
      %5670 = vmatpush1.bf16.msra.mxu0 %v4336
      %5671 = vmatprep.subr.bf16.mxu0 0
      %5672 = vmatpush1.bf16.msra.mxu0 %v4337
      %5673 = vmatprep.subr.bf16.mxu0 0
      %5674 = vmatpush1.bf16.msra.mxu0 %v4338
      %5675 = vmatprep.subr.bf16.mxu0 0
      %5676 = vmatpush1.bf16.msra.mxu0 %v4339
      %5677 = vmatprep.subr.bf16.mxu0 0
      %5678 = vmatpush1.bf16.msra.mxu0 %v4340
      %5679 = vmatprep.subr.bf16.mxu0 0
      %5680 = vmatpush1.bf16.msra.mxu0 %v4341
      %5681 = vmatprep.subr.bf16.mxu0 0
      %5682 = vmatpush1.bf16.msra.mxu0 %v4342
      %5683 = vmatprep.subr.bf16.mxu0 0
      %5684 = vmatpush1.bf16.msra.mxu0 %v4343
      %5685 = vmatprep.subr.bf16.mxu0 0
      %5686 = vmatpush1.bf16.msra.mxu0 %v4344
      %5687 = vmatprep.subr.bf16.mxu0 0
      %5688 = vmatpush1.bf16.msra.mxu0 %v4345
      %5689 = vmatprep.subr.bf16.mxu0 0
      %5690 = vmatpush1.bf16.msra.mxu0 %v4346
      %5691 = vmatprep.mubr.bf16.mxu0 %v1541
      %5692 = vmatmul.mubr.bf16.gmra.mrb[0].mxu0 %v1538
      %v5693 = vpop.f32.mrb[0].mxu0
      %v5694 = vadd.f32 %v5645, %v5693
      %v5695 = vpop.f32.mrb[0].mxu0
      %v5696 = vpop.f32.mrb[0].mxu0
      %v5697 = vadd.f32 %v5648, %v5696
      %v5698 = vpop.f32.mrb[0].mxu0
      %5699 = vmatprep.mubr.bf16.mxu0 %v1586
      %5700 = vmatmul.mubr.bf16.gmra.mrb[0].mxu0 %v1584
      %v5701 = vpop.f32.mrb[0].mxu0
      %v5702 = vadd.f32 %v5653, %v5701
      %v5703 = vpop.f32.mrb[0].mxu0
      %v5704 = vpop.f32.mrb[0].mxu0
      %v5705 = vadd.f32 %v5656, %v5704
      %v5706 = vpop.f32.mrb[0].mxu0
      %5707 = vdwg.mxu0
      %5708 = vmatprep.subr.bf16.mxu0 0
      %5709 = vmatpush1.bf16.msra.mxu0 %v4347
      %5710 = vmatprep.subr.bf16.mxu0 0
      %5711 = vmatpush1.bf16.msra.mxu0 %v4348
      %5712 = vmatprep.subr.bf16.mxu0 0
      %5713 = vmatpush1.bf16.msra.mxu0 %v4349
      %5714 = vmatprep.subr.bf16.mxu0 0
      %5715 = vmatpush1.bf16.msra.mxu0 %v4350
      %5716 = vmatprep.subr.bf16.mxu0 0
      %5717 = vmatpush1.bf16.msra.mxu0 %v4351
      %5718 = vmatprep.subr.bf16.mxu0 0
      %5719 = vmatpush1.bf16.msra.mxu0 %v4352
      %5720 = vmatprep.subr.bf16.mxu0 0
      %5721 = vmatpush1.bf16.msra.mxu0 %v4353
      %5722 = vmatprep.subr.bf16.mxu0 0
      %5723 = vmatpush1.bf16.msra.mxu0 %v4354
      %5724 = vmatprep.subr.bf16.mxu0 0
      %5725 = vmatpush1.bf16.msra.mxu0 %v4355
      %5726 = vmatprep.subr.bf16.mxu0 0
      %5727 = vmatpush1.bf16.msra.mxu0 %v4356
      %5728 = vmatprep.subr.bf16.mxu0 0
      %5729 = vmatpush1.bf16.msra.mxu0 %v4357
      %5730 = vmatprep.subr.bf16.mxu0 0
      %5731 = vmatpush1.bf16.msra.mxu0 %v4358
      %5732 = vmatprep.subr.bf16.mxu0 0
      %5733 = vmatpush1.bf16.msra.mxu0 %v4359
      %5734 = vmatprep.subr.bf16.mxu0 0
      %5735 = vmatpush1.bf16.msra.mxu0 %v4360
      %5736 = vmatprep.subr.bf16.mxu0 0
      %5737 = vmatpush1.bf16.msra.mxu0 %v4361
      %5738 = vmatprep.subr.bf16.mxu0 0
      %5739 = vmatpush1.bf16.msra.mxu0 %v4362
      %5740 = vmatprep.mubr.bf16.mxu0 %v1547
      %5741 = vmatmul.mubr.bf16.gmra.mrb[0].mxu0 %v1544
      %v5742 = vpop.f32.mrb[0].mxu0
      %v5743 = vadd.f32 %v5694, %v5742
      %v5744 = vpop.f32.mrb[0].mxu0
      %v5745 = vpop.f32.mrb[0].mxu0
      %v5746 = vadd.f32 %v5697, %v5745
      %v5747 = vpop.f32.mrb[0].mxu0
      %5748 = vmatprep.mubr.bf16.mxu0 %v1590
      %5749 = vmatmul.mubr.bf16.gmra.mrb[0].mxu0 %v1588
      %v5750 = vpop.f32.mrb[0].mxu0
      %v5751 = vadd.f32 %v5702, %v5750
      %v5752 = vpop.f32.mrb[0].mxu0
      %v5753 = vpop.f32.mrb[0].mxu0
      %v5754 = vadd.f32 %v5705, %v5753
      %v5755 = vpop.f32.mrb[0].mxu0
      %5756 = vdwg.mxu0
      %5757 = vmatprep.subr.bf16.mxu0 0
      %5758 = vmatpush1.bf16.msra.mxu0 %v4363
      %5759 = vmatprep.subr.bf16.mxu0 0
      %5760 = vmatpush1.bf16.msra.mxu0 %v4364
      %5761 = vmatprep.subr.bf16.mxu0 0
      %5762 = vmatpush1.bf16.msra.mxu0 %v4365
      %5763 = vmatprep.subr.bf16.mxu0 0
      %5764 = vmatpush1.bf16.msra.mxu0 %v4366
      %5765 = vmatprep.subr.bf16.mxu0 0
      %5766 = vmatpush1.bf16.msra.mxu0 %v4367
      %5767 = vmatprep.subr.bf16.mxu0 0
      %5768 = vmatpush1.bf16.msra.mxu0 %v4368
      %5769 = vmatprep.subr.bf16.mxu0 0
      %5770 = vmatpush1.bf16.msra.mxu0 %v4369
      %5771 = vmatprep.subr.bf16.mxu0 0
      %5772 = vmatpush1.bf16.msra.mxu0 %v4370
      %5773 = vmatprep.subr.bf16.mxu0 0
      %5774 = vmatpush1.bf16.msra.mxu0 %v4371
      %5775 = vmatprep.subr.bf16.mxu0 0
      %5776 = vmatpush1.bf16.msra.mxu0 %v4372
      %5777 = vmatprep.subr.bf16.mxu0 0
      %5778 = vmatpush1.bf16.msra.mxu0 %v4373
      %5779 = vmatprep.subr.bf16.mxu0 0
      %5780 = vmatpush1.bf16.msra.mxu0 %v4374
      %5781 = vmatprep.subr.bf16.mxu0 0
      %5782 = vmatpush1.bf16.msra.mxu0 %v4375
      %5783 = vmatprep.subr.bf16.mxu0 0
      %5784 = vmatpush1.bf16.msra.mxu0 %v4376
      %5785 = vmatprep.subr.bf16.mxu0 0
      %5786 = vmatpush1.bf16.msra.mxu0 %v4377
      %5787 = vmatprep.subr.bf16.mxu0 0
      %5788 = vmatpush1.bf16.msra.mxu0 %v4378
      %5789 = vmatprep.mubr.bf16.mxu0 %v1553
      %5790 = vmatmul.mubr.bf16.gmra.mrb[0].mxu0 %v1550
      %v5791 = vpop.f32.mrb[0].mxu0
      %v5792 = vadd.f32 %v5743, %v5791
      %v5793 = vpop.f32.mrb[0].mxu0
      %v5794 = vpop.f32.mrb[0].mxu0
      %v5795 = vadd.f32 %v5746, %v5794
      %v5796 = vpop.f32.mrb[0].mxu0
      %5797 = vmatprep.mubr.bf16.mxu0 %v1594
      %5798 = vmatmul.mubr.bf16.gmra.mrb[0].mxu0 %v1592
      %v5799 = vpop.f32.mrb[0].mxu0
      %v5800 = vadd.f32 %v5751, %v5799
      %v5801 = vpop.f32.mrb[0].mxu0
      %v5802 = vpop.f32.mrb[0].mxu0
      %v5803 = vadd.f32 %v5754, %v5802
      %v5804 = vpop.f32.mrb[0].mxu0
      %5805 = vdwg.mxu0
      %5806 = vmatprep.subr.bf16.mxu0 0
      %5807 = vmatpush1.bf16.msra.mxu0 %v4379
      %5808 = vmatprep.subr.bf16.mxu0 0
      %5809 = vmatpush1.bf16.msra.mxu0 %v4380
      %5810 = vmatprep.subr.bf16.mxu0 0
      %5811 = vmatpush1.bf16.msra.mxu0 %v4381
      %5812 = vmatprep.subr.bf16.mxu0 0
      %5813 = vmatpush1.bf16.msra.mxu0 %v4382
      %5814 = vmatprep.subr.bf16.mxu0 0
      %5815 = vmatpush1.bf16.msra.mxu0 %v4383
      %5816 = vmatprep.subr.bf16.mxu0 0
      %5817 = vmatpush1.bf16.msra.mxu0 %v4384
      %5818 = vmatprep.subr.bf16.mxu0 0
      %5819 = vmatpush1.bf16.msra.mxu0 %v4385
      %5820 = vmatprep.subr.bf16.mxu0 0
      %5821 = vmatpush1.bf16.msra.mxu0 %v4386
      %5822 = vmatprep.subr.bf16.mxu0 0
      %5823 = vmatpush1.bf16.msra.mxu0 %v4387
      %5824 = vmatprep.subr.bf16.mxu0 0
      %5825 = vmatpush1.bf16.msra.mxu0 %v4388
      %5826 = vmatprep.subr.bf16.mxu0 0
      %5827 = vmatpush1.bf16.msra.mxu0 %v4389
      %5828 = vmatprep.subr.bf16.mxu0 0
      %5829 = vmatpush1.bf16.msra.mxu0 %v4390
      %5830 = vmatprep.subr.bf16.mxu0 0
      %5831 = vmatpush1.bf16.msra.mxu0 %v4391
      %5832 = vmatprep.subr.bf16.mxu0 0
      %5833 = vmatpush1.bf16.msra.mxu0 %v4392
      %5834 = vmatprep.subr.bf16.mxu0 0
      %5835 = vmatpush1.bf16.msra.mxu0 %v4393
      %5836 = vmatprep.subr.bf16.mxu0 0
      %5837 = vmatpush1.bf16.msra.mxu0 %v4394
      %5838 = vmatprep.mubr.bf16.mxu0 %v1559
      %5839 = vmatmul.mubr.bf16.gmra.mrb[0].mxu0 %v1556
      %v5840 = vpop.f32.mrb[0].mxu0
      %v5841 = vadd.f32 %v5792, %v5840
      %v5842 = vpop.f32.mrb[0].mxu0
      %v5843 = vpop.f32.mrb[0].mxu0
      %v5844 = vadd.f32 %v5795, %v5843
      %v5845 = vpop.f32.mrb[0].mxu0
      %5846 = vmatprep.mubr.bf16.mxu0 %v1598
      %5847 = vmatmul.mubr.bf16.gmra.mrb[0].mxu0 %v1596
      %v5848 = vpop.f32.mrb[0].mxu0
      %v5849 = vadd.f32 %v5800, %v5848
      %v5850 = vpop.f32.mrb[0].mxu0
      %v5851 = vpop.f32.mrb[0].mxu0
      %v5852 = vadd.f32 %v5803, %v5851
      %v5853 = vpop.f32.mrb[0].mxu0
      %5854 = vdwg.mxu0
      %5855 = vmatprep.subr.bf16.mxu0 0
      %5856 = vmatpush1.bf16.msra.mxu0 %v4395
      %5857 = vmatprep.subr.bf16.mxu0 0
      %5858 = vmatpush1.bf16.msra.mxu0 %v4396
      %5859 = vmatprep.subr.bf16.mxu0 0
      %5860 = vmatpush1.bf16.msra.mxu0 %v4397
      %5861 = vmatprep.subr.bf16.mxu0 0
      %5862 = vmatpush1.bf16.msra.mxu0 %v4398
      %5863 = vmatprep.subr.bf16.mxu0 0
      %5864 = vmatpush1.bf16.msra.mxu0 %v4399
      %5865 = vmatprep.subr.bf16.mxu0 0
      %5866 = vmatpush1.bf16.msra.mxu0 %v4400
      %5867 = vmatprep.subr.bf16.mxu0 0
      %5868 = vmatpush1.bf16.msra.mxu0 %v4401
      %5869 = vmatprep.subr.bf16.mxu0 0
      %5870 = vmatpush1.bf16.msra.mxu0 %v4402
      %5871 = vmatprep.subr.bf16.mxu0 0
      %5872 = vmatpush1.bf16.msra.mxu0 %v4403
      %5873 = vmatprep.subr.bf16.mxu0 0
      %5874 = vmatpush1.bf16.msra.mxu0 %v4404
      %5875 = vmatprep.subr.bf16.mxu0 0
      %5876 = vmatpush1.bf16.msra.mxu0 %v4405
      %5877 = vmatprep.subr.bf16.mxu0 0
      %5878 = vmatpush1.bf16.msra.mxu0 %v4406
      %5879 = vmatprep.subr.bf16.mxu0 0
      %5880 = vmatpush1.bf16.msra.mxu0 %v4407
      %5881 = vmatprep.subr.bf16.mxu0 0
      %5882 = vmatpush1.bf16.msra.mxu0 %v4408
      %5883 = vmatprep.subr.bf16.mxu0 0
      %5884 = vmatpush1.bf16.msra.mxu0 %v4409
      %5885 = vmatprep.subr.bf16.mxu0 0
      %5886 = vmatpush1.bf16.msra.mxu0 %v4410
      %5887 = vmatprep.mubr.bf16.mxu0 %v1565
      %5888 = vmatmul.mubr.bf16.gmra.mrb[0].mxu0 %v1562
      %v5889 = vpop.f32.mrb[0].mxu0
      %v5890 = vadd.f32 %v5841, %v5889
      %v5891 = vpop.f32.mrb[0].mxu0
      %v5892 = vpop.f32.mrb[0].mxu0
      %v5893 = vadd.f32 %v5844, %v5892
      %v5894 = vpop.f32.mrb[0].mxu0
      %5895 = vmatprep.mubr.bf16.mxu0 %v1602
      %5896 = vmatmul.mubr.bf16.gmra.mrb[0].mxu0 %v1600
      %v5897 = vpop.f32.mrb[0].mxu0
      %v5898 = vadd.f32 %v5849, %v5897
      %v5899 = vpop.f32.mrb[0].mxu0
      %v5900 = vpop.f32.mrb[0].mxu0
      %v5901 = vadd.f32 %v5852, %v5900
      %v5902 = vpop.f32.mrb[0].mxu0
      %5903 = vdwg.mxu0
      %5904 = vmatprep.subr.bf16.mxu0 0
      %5905 = vmatpush1.bf16.msra.mxu0 %v4411
      %5906 = vmatprep.subr.bf16.mxu0 0
      %5907 = vmatpush1.bf16.msra.mxu0 %v4412
      %5908 = vmatprep.subr.bf16.mxu0 0
      %5909 = vmatpush1.bf16.msra.mxu0 %v4413
      %5910 = vmatprep.subr.bf16.mxu0 0
      %5911 = vmatpush1.bf16.msra.mxu0 %v4414
      %5912 = vmatprep.subr.bf16.mxu0 0
      %5913 = vmatpush1.bf16.msra.mxu0 %v4415
      %5914 = vmatprep.subr.bf16.mxu0 0
      %5915 = vmatpush1.bf16.msra.mxu0 %v4416
      %5916 = vmatprep.subr.bf16.mxu0 0
      %5917 = vmatpush1.bf16.msra.mxu0 %v4417
      %5918 = vmatprep.subr.bf16.mxu0 0
      %5919 = vmatpush1.bf16.msra.mxu0 %v4418
      %5920 = vmatprep.subr.bf16.mxu0 0
      %5921 = vmatpush1.bf16.msra.mxu0 %v4419
      %5922 = vmatprep.subr.bf16.mxu0 0
      %5923 = vmatpush1.bf16.msra.mxu0 %v4420
      %5924 = vmatprep.subr.bf16.mxu0 0
      %5925 = vmatpush1.bf16.msra.mxu0 %v4421
      %5926 = vmatprep.subr.bf16.mxu0 0
      %5927 = vmatpush1.bf16.msra.mxu0 %v4422
      %5928 = vmatprep.subr.bf16.mxu0 0
      %5929 = vmatpush1.bf16.msra.mxu0 %v4423
      %5930 = vmatprep.subr.bf16.mxu0 0
      %5931 = vmatpush1.bf16.msra.mxu0 %v4424
      %5932 = vmatprep.subr.bf16.mxu0 0
      %5933 = vmatpush1.bf16.msra.mxu0 %v4425
      %5934 = vmatprep.subr.bf16.mxu0 0
      %5935 = vmatpush1.bf16.msra.mxu0 %v4426
      %5936 = vmatprep.mubr.bf16.mxu0 %v1571
      %5937 = vmatmul.mubr.bf16.gmra.mrb[0].mxu0 %v1568
      %v5938 = vpop.f32.mrb[0].mxu0
      %v5939 = vadd.f32 %v5890, %v5938
      %v5940 = vpop.f32.mrb[0].mxu0
      %v5941 = vpop.f32.mrb[0].mxu0
      %v5942 = vadd.f32 %v5893, %v5941
      %v5943 = vpop.f32.mrb[0].mxu0
      %5944 = vmatprep.mubr.bf16.mxu0 %v1606
      %5945 = vmatmul.mubr.bf16.gmra.mrb[0].mxu0 %v1604
      %v5946 = vpop.f32.mrb[0].mxu0
      %v5947 = vadd.f32 %v5898, %v5946
      %v5948 = vpop.f32.mrb[0].mxu0
      %v5949 = vpop.f32.mrb[0].mxu0
      %v5950 = vadd.f32 %v5901, %v5949
      %v5951 = vpop.f32.mrb[0].mxu0
      %5952 = vdwg.mxu0
      %5953 = vmatprep.subr.bf16.mxu0 0
      %5954 = vmatpush1.bf16.msra.mxu0 %v4427
      %5955 = vmatprep.subr.bf16.mxu0 0
      %5956 = vmatpush1.bf16.msra.mxu0 %v4428
      %5957 = vmatprep.subr.bf16.mxu0 0
      %5958 = vmatpush1.bf16.msra.mxu0 %v4429
      %5959 = vmatprep.subr.bf16.mxu0 0
      %5960 = vmatpush1.bf16.msra.mxu0 %v4430
      %5961 = vmatprep.subr.bf16.mxu0 0
      %5962 = vmatpush1.bf16.msra.mxu0 %v4431
      %5963 = vmatprep.subr.bf16.mxu0 0
      %5964 = vmatpush1.bf16.msra.mxu0 %v4432
      %5965 = vmatprep.subr.bf16.mxu0 0
      %5966 = vmatpush1.bf16.msra.mxu0 %v4433
      %5967 = vmatprep.subr.bf16.mxu0 0
      %5968 = vmatpush1.bf16.msra.mxu0 %v4434
      %5969 = vmatprep.subr.bf16.mxu0 0
      %5970 = vmatpush1.bf16.msra.mxu0 %v4435
      %5971 = vmatprep.subr.bf16.mxu0 0
      %5972 = vmatpush1.bf16.msra.mxu0 %v4436
      %5973 = vmatprep.subr.bf16.mxu0 0
      %5974 = vmatpush1.bf16.msra.mxu0 %v4437
      %5975 = vmatprep.subr.bf16.mxu0 0
      %5976 = vmatpush1.bf16.msra.mxu0 %v4438
      %5977 = vmatprep.subr.bf16.mxu0 0
      %5978 = vmatpush1.bf16.msra.mxu0 %v4439
      %5979 = vmatprep.subr.bf16.mxu0 0
      %5980 = vmatpush1.bf16.msra.mxu0 %v4440
      %5981 = vmatprep.subr.bf16.mxu0 0
      %5982 = vmatpush1.bf16.msra.mxu0 %v4441
      %5983 = vmatprep.subr.bf16.mxu0 0
      %5984 = vmatpush1.bf16.msra.mxu0 %v4442
      %5985 = vmatprep.mubr.bf16.mxu0 %v1577
      %5986 = vmatmul.mubr.bf16.gmra.mrb[0].mxu0 %v1574
      %v5987 = vpop.f32.mrb[0].mxu0
      %v5988 = vadd.f32 %v5939, %v5987
      %v5989 = vpop.f32.mrb[0].mxu0
      %v5990 = vpop.f32.mrb[0].mxu0
      %v5991 = vadd.f32 %v5942, %v5990
      %v5992 = vpop.f32.mrb[0].mxu0
      %5993 = vmatprep.mubr.bf16.mxu0 %v1610
      %5994 = vmatmul.mubr.bf16.gmra.mrb[0].mxu0 %v1608
      %v5995 = vpop.f32.mrb[0].mxu0
      %v5996 = vadd.f32 %v5947, %v5995
      %v5997 = vpop.f32.mrb[0].mxu0
      %v5998 = vpop.f32.mrb[0].mxu0
      %v5999 = vadd.f32 %v5950, %v5998
      %v6000 = vpop.f32.mrb[0].mxu0
      %6001 = vdwg.mxu0
      %6002 = vmatprep.subr.bf16.mxu0 0
      %6003 = vmatpush1.bf16.msra.mxu0 %v4443
      %6004 = vmatprep.subr.bf16.mxu0 0
      %6005 = vmatpush1.bf16.msra.mxu0 %v4444
      %6006 = vmatprep.subr.bf16.mxu0 0
      %6007 = vmatpush1.bf16.msra.mxu0 %v4445
      %6008 = vmatprep.subr.bf16.mxu0 0
      %6009 = vmatpush1.bf16.msra.mxu0 %v4446
      %6010 = vmatprep.subr.bf16.mxu0 0
      %6011 = vmatpush1.bf16.msra.mxu0 %v4447
      %6012 = vmatprep.subr.bf16.mxu0 0
      %6013 = vmatpush1.bf16.msra.mxu0 %v4448
      %6014 = vmatprep.subr.bf16.mxu0 0
      %6015 = vmatpush1.bf16.msra.mxu0 %v4449
      %6016 = vmatprep.subr.bf16.mxu0 0
      %6017 = vmatpush1.bf16.msra.mxu0 %v4450
      %6018 = vmatprep.subr.bf16.mxu0 0
      %6019 = vmatpush1.bf16.msra.mxu0 %v4451
      %6020 = vmatprep.subr.bf16.mxu0 0
      %6021 = vmatpush1.bf16.msra.mxu0 %v4452
      %6022 = vmatprep.subr.bf16.mxu0 0
      %6023 = vmatpush1.bf16.msra.mxu0 %v4453
      %6024 = vmatprep.subr.bf16.mxu0 0
      %6025 = vmatpush1.bf16.msra.mxu0 %v4454
      %6026 = vmatprep.subr.bf16.mxu0 0
      %6027 = vmatpush1.bf16.msra.mxu0 %v4455
      %6028 = vmatprep.subr.bf16.mxu0 0
      %6029 = vmatpush1.bf16.msra.mxu0 %v4456
      %6030 = vmatprep.subr.bf16.mxu0 0
      %6031 = vmatpush1.bf16.msra.mxu0 %v4457
      %6032 = vmatprep.subr.bf16.mxu0 0
      %6033 = vmatpush1.bf16.msra.mxu0 %v4458
      %6034 = vmatprep.mubr.bf16.mxu0 %v1583
      %6035 = vmatmul.mubr.bf16.gmra.mrb[0].mxu0 %v1580
      %v6036 = vpop.f32.mrb[0].mxu0
      %v6037 = vadd.f32 %v5988, %v6036
      %v6038 = vpop.f32.mrb[0].mxu0
      %v6039 = vpop.f32.mrb[0].mxu0
      %v6040 = vadd.f32 %v5991, %v6039
      %v6041 = vpop.f32.mrb[0].mxu0
      %6042 = vmatprep.mubr.bf16.mxu0 %v1614
      %6043 = vmatmul.mubr.bf16.gmra.mrb[0].mxu0 %v1612
      %v6044 = vpop.f32.mrb[0].mxu0
      %v6045 = vadd.f32 %v5996, %v6044
      %v6046 = vpop.f32.mrb[0].mxu0
      %v6047 = vpop.f32.mrb[0].mxu0
      %v6048 = vadd.f32 %v5999, %v6047
      %v6049 = vpop.f32.mrb[0].mxu0
      %6050 = vdwg.mxu0
      %6051 = vmatprep.subr.bf16.mxu0 0
      %6052 = vmatpush1.bf16.msra.mxu0 %v4459
      %6053 = vmatprep.subr.bf16.mxu0 0
      %6054 = vmatpush1.bf16.msra.mxu0 %v4460
      %6055 = vmatprep.subr.bf16.mxu0 0
      %6056 = vmatpush1.bf16.msra.mxu0 %v4461
      %6057 = vmatprep.subr.bf16.mxu0 0
      %6058 = vmatpush1.bf16.msra.mxu0 %v4462
      %6059 = vmatprep.subr.bf16.mxu0 0
      %6060 = vmatpush1.bf16.msra.mxu0 %v4463
      %6061 = vmatprep.subr.bf16.mxu0 0
      %6062 = vmatpush1.bf16.msra.mxu0 %v4464
      %6063 = vmatprep.subr.bf16.mxu0 0
      %6064 = vmatpush1.bf16.msra.mxu0 %v4465
      %6065 = vmatprep.subr.bf16.mxu0 0
      %6066 = vmatpush1.bf16.msra.mxu0 %v4466
      %6067 = vmatprep.subr.bf16.mxu0 0
      %6068 = vmatpush1.bf16.msra.mxu0 %v4467
      %6069 = vmatprep.subr.bf16.mxu0 0
      %6070 = vmatpush1.bf16.msra.mxu0 %v4468
      %6071 = vmatprep.subr.bf16.mxu0 0
      %6072 = vmatpush1.bf16.msra.mxu0 %v4469
      %6073 = vmatprep.subr.bf16.mxu0 0
      %6074 = vmatpush1.bf16.msra.mxu0 %v4470
      %6075 = vmatprep.subr.bf16.mxu0 0
      %6076 = vmatpush1.bf16.msra.mxu0 %v4471
      %6077 = vmatprep.subr.bf16.mxu0 0
      %6078 = vmatpush1.bf16.msra.mxu0 %v4472
      %6079 = vmatprep.subr.bf16.mxu0 0
      %6080 = vmatpush1.bf16.msra.mxu0 %v4473
      %6081 = vmatprep.subr.bf16.mxu0 0
      %6082 = vmatpush1.bf16.msra.mxu0 %v4474
      %6083 = vmatprep.mubr.bf16.mxu0 %v1663
      %6084 = vmatmul.mubr.bf16.gmra.mrb[0].mxu0 %v1033
      %v6085 = vpop.f32.mrb[0].mxu0
      %v6086 = vadd.f32 %v6037, %v6085
      %v6087 = vpop.f32.mrb[0].mxu0
      %v6088 = vpop.f32.mrb[0].mxu0
      %v6089 = vadd.f32 %v6040, %v6088
      %v6090 = vpop.f32.mrb[0].mxu0
      %6091 = vmatprep.mubr.bf16.mxu0 %v1662
      %6092 = vmatmul.mubr.bf16.gmra.mrb[0].mxu0 %v1032
      %v6093 = vpop.f32.mrb[0].mxu0
      %v6094 = vadd.f32 %v6045, %v6093
      %v6095 = vpop.f32.mrb[0].mxu0
      %v6096 = vpop.f32.mrb[0].mxu0
      %v6097 = vadd.f32 %v6048, %v6096
      %v6098 = vpop.f32.mrb[0].mxu0
      %6099 = vdwg.mxu0
      %v6100 = vmax.f32 %v6086, 0.0
      %v6101 = vmax.f32 %v6089, 0.0
      %v6102 = vmax.f32 %v6094, 0.0
      %v6103 = vmax.f32 %v6097, 0.0
      %v6104 = vpack.c.bf16 %v6101, %v6100
      %v6105 = vpack.c.bf16 %v6103, %v6102
      %v6107 = vshrl.u32 %v6104, 16
      %v6109 = vshll.u32 %v6104, 16
      %v6111 = vrot.slane %v6109, 1
      %v6112 = vor.u32 %v6107, %v6111
      %v6115 = vrot.slane %v6104, 1
      %v6117 = vrot.slane %v6107, 1
      %v6118 = vrot.slane %v6109, 2
      %v6119 = vor.u32 %v6117, %v6118
      %v6121 = vrot.slane %v6104, 2
      %v6123 = vrot.slane %v6107, 2
      %v6124 = vrot.slane %v6109, 3
      %v6125 = vor.u32 %v6123, %v6124
      %v6127 = vrot.slane %v6104, 3
      %v6129 = vrot.slane %v6107, 3
      %v6130 = vrot.slane %v6109, 4
      %v6131 = vor.u32 %v6129, %v6130
      %v6133 = vrot.slane %v6104, 4
      %v6135 = vrot.slane %v6107, 4
      %v6136 = vrot.slane %v6109, 5
      %v6137 = vor.u32 %v6135, %v6136
      %v6139 = vrot.slane %v6104, 5
      %v6141 = vrot.slane %v6107, 5
      %v6142 = vrot.slane %v6109, 6
      %v6143 = vor.u32 %v6141, %v6142
      %v6145 = vrot.slane %v6104, 6
      %v6147 = vrot.slane %v6107, 6
      %v6148 = vrot.slane %v6109, 7
      %v6149 = vor.u32 %v6147, %v6148
      %v6152 = vrot.slane %v6104, 7
      %v6153 = vrot.slane %v6105, 7
      %v6154 = vsel %vm877, %v6152, %v6153
      %v6156 = vrot.slane %v6107, 7
      %v6158 = vshrl.u32 %v6105, 16
      %v6160 = vrot.slane %v6158, 7
      %v6161 = vshll.u32 %v6105, 16
      %v6163 = vor.u32 %v6160, %v6161
      %v6164 = vsel %vm972, %v6156, %v6163
      %v6166 = vrot.slane %v6161, 1
      %v6167 = vor.u32 %v6158, %v6166
      %v6169 = vrot.slane %v6105, 1
      %v6171 = vrot.slane %v6158, 1
      %v6172 = vrot.slane %v6161, 2
      %v6173 = vor.u32 %v6171, %v6172
      %v6175 = vrot.slane %v6105, 2
      %v6177 = vrot.slane %v6158, 2
      %v6178 = vrot.slane %v6161, 3
      %v6179 = vor.u32 %v6177, %v6178
      %v6181 = vrot.slane %v6105, 3
      %v6183 = vrot.slane %v6158, 3
      %v6184 = vrot.slane %v6161, 4
      %v6185 = vor.u32 %v6183, %v6184
      %v6187 = vrot.slane %v6105, 4
      %v6189 = vld [vmem:[%s5] sm:$0xf]
      %v6190 = vld [vmem:[%s5 + $0x4] sm:$0xf]
      %v6191 = vld [vmem:[%s5 + $0x8] sm:$0xf]
      %v6192 = vld [vmem:[%s5 + $0xc] sm:$0xf]
      %v6193 = vld [vmem:[%s5 + $0x10] sm:$0xf]
      %v6194 = vld [vmem:[%s5 + $0x14] sm:$0xf]
      %v6195 = vld [vmem:[%s5 + $0x18] sm:$0xf]
      %v6196 = vld [vmem:[%s5 + $0x1c] sm:$0xf]
      %v6197 = vld [vmem:[%s5 + $0x20] sm:$0xf]
      %v6198 = vld [vmem:[%s5 + $0x24] sm:$0xf]
      %v6199 = vld [vmem:[%s5 + $0x28] sm:$0xf]
      %v6200 = vld [vmem:[%s5 + $0x2c] sm:$0xf]
      %v6201 = vld [vmem:[%s5 + $0x30] sm:$0xf]
      %v6202 = vld [vmem:[%s5 + $0x34] sm:$0xf]
      %v6203 = vld [vmem:[%s5 + $0x38] sm:$0xf]
      %v6204 = vld [vmem:[%s5 + $0x3c] sm:$0xf]
      %v6205 = vld [vmem:[%s5 + $0x40] sm:$0xf]
      %v6206 = vld [vmem:[%s5 + $0x44] sm:$0xf]
      %v6207 = vld [vmem:[%s5 + $0x48] sm:$0xf]
      %v6208 = vld [vmem:[%s5 + $0x4c] sm:$0xf]
      %v6209 = vld [vmem:[%s5 + $0x50] sm:$0xf]
      %v6210 = vld [vmem:[%s5 + $0x54] sm:$0xf]
      %v6211 = vld [vmem:[%s5 + $0x58] sm:$0xf]
      %v6212 = vld [vmem:[%s5 + $0x5c] sm:$0xf]
      %v6213 = vld [vmem:[%s5 + $0x60] sm:$0xf]
      %v6214 = vld [vmem:[%s5 + $0x64] sm:$0xf]
      %v6215 = vld [vmem:[%s5 + $0x68] sm:$0xf]
      %v6216 = vld [vmem:[%s5 + $0x6c] sm:$0xf]
      %v6217 = vld [vmem:[%s5 + $0x70] sm:$0xf]
      %v6218 = vld [vmem:[%s5 + $0x74] sm:$0xf]
      %v6219 = vld [vmem:[%s5 + $0x78] sm:$0xf]
      %v6220 = vld [vmem:[%s5 + $0x7c] sm:$0xf]
      %v6221 = vld [vmem:[%s5 + $0x80] sm:$0xf]
      %v6222 = vld [vmem:[%s5 + $0x84] sm:$0xf]
      %v6223 = vld [vmem:[%s5 + $0x88] sm:$0xf]
      %v6224 = vld [vmem:[%s5 + $0x8c] sm:$0xf]
      %v6225 = vld [vmem:[%s5 + $0x90] sm:$0xf]
      %v6226 = vld [vmem:[%s5 + $0x94] sm:$0xf]
      %v6227 = vld [vmem:[%s5 + $0x98] sm:$0xf]
      %v6228 = vld [vmem:[%s5 + $0x9c] sm:$0xf]
      %v6229 = vld [vmem:[%s5 + $0xa0] sm:$0xf]
      %v6230 = vld [vmem:[%s5 + $0xa4] sm:$0xf]
      %v6231 = vld [vmem:[%s5 + $0xa8] sm:$0xf]
      %v6232 = vld [vmem:[%s5 + $0xac] sm:$0xf]
      %v6233 = vld [vmem:[%s5 + $0xb0] sm:$0xf]
      %v6234 = vld [vmem:[%s5 + $0xb4] sm:$0xf]
      %v6235 = vld [vmem:[%s5 + $0xb8] sm:$0xf]
      %v6236 = vld [vmem:[%s5 + $0xbc] sm:$0xf]
      %v6237 = vld [vmem:[%s5 + $0xc0] sm:$0xf]
      %v6238 = vld [vmem:[%s5 + $0xc4] sm:$0xf]
      %v6239 = vld [vmem:[%s5 + $0xc8] sm:$0xf]
      %v6240 = vld [vmem:[%s5 + $0xcc] sm:$0xf]
      %v6241 = vld [vmem:[%s5 + $0xd0] sm:$0xf]
      %v6242 = vld [vmem:[%s5 + $0xd4] sm:$0xf]
      %v6243 = vld [vmem:[%s5 + $0xd8] sm:$0xf]
      %v6244 = vld [vmem:[%s5 + $0xdc] sm:$0xf]
      %v6245 = vld [vmem:[%s5 + $0xe0] sm:$0xf]
      %v6246 = vld [vmem:[%s5 + $0xe4] sm:$0xf]
      %v6247 = vld [vmem:[%s5 + $0xe8] sm:$0xf]
      %v6248 = vld [vmem:[%s5 + $0xec] sm:$0xf]
      %v6249 = vld [vmem:[%s5 + $0xf0] sm:$0xf]
      %v6250 = vld [vmem:[%s5 + $0xf4] sm:$0xf]
      %v6251 = vld [vmem:[%s5 + $0xf8] sm:$0xf]
      %v6252 = vld [vmem:[%s5 + $0xfc] sm:$0xf]
      %v6253 = vld [vmem:[%s5 + $0x100] sm:$0xf]
      %v6254 = vld [vmem:[%s5 + $0x104] sm:$0xf]
      %v6255 = vld [vmem:[%s5 + $0x108] sm:$0xf]
      %v6256 = vld [vmem:[%s5 + $0x10c] sm:$0xf]
      %v6257 = vld [vmem:[%s5 + $0x110] sm:$0xf]
      %v6258 = vld [vmem:[%s5 + $0x114] sm:$0xf]
      %v6259 = vld [vmem:[%s5 + $0x118] sm:$0xf]
      %v6260 = vld [vmem:[%s5 + $0x11c] sm:$0xf]
      %v6261 = vld [vmem:[%s5 + $0x120] sm:$0xf]
      %v6262 = vld [vmem:[%s5 + $0x124] sm:$0xf]
      %v6263 = vld [vmem:[%s5 + $0x128] sm:$0xf]
      %v6264 = vld [vmem:[%s5 + $0x12c] sm:$0xf]
      %v6265 = vld [vmem:[%s5 + $0x130] sm:$0xf]
      %v6266 = vld [vmem:[%s5 + $0x134] sm:$0xf]
      %v6267 = vld [vmem:[%s5 + $0x138] sm:$0xf]
      %v6268 = vld [vmem:[%s5 + $0x13c] sm:$0xf]
      %v6269 = vld [vmem:[%s5 + $0x140] sm:$0xf]
      %v6270 = vld [vmem:[%s5 + $0x144] sm:$0xf]
      %v6271 = vld [vmem:[%s5 + $0x148] sm:$0xf]
      %v6272 = vld [vmem:[%s5 + $0x14c] sm:$0xf]
      %v6273 = vld [vmem:[%s5 + $0x150] sm:$0xf]
      %v6274 = vld [vmem:[%s5 + $0x154] sm:$0xf]
      %v6275 = vld [vmem:[%s5 + $0x158] sm:$0xf]
      %v6276 = vld [vmem:[%s5 + $0x15c] sm:$0xf]
      %v6277 = vld [vmem:[%s5 + $0x160] sm:$0xf]
      %v6278 = vld [vmem:[%s5 + $0x164] sm:$0xf]
      %v6279 = vld [vmem:[%s5 + $0x168] sm:$0xf]
      %v6280 = vld [vmem:[%s5 + $0x16c] sm:$0xf]
      %v6281 = vld [vmem:[%s5 + $0x170] sm:$0xf]
      %v6282 = vld [vmem:[%s5 + $0x174] sm:$0xf]
      %v6283 = vld [vmem:[%s5 + $0x178] sm:$0xf]
      %v6284 = vld [vmem:[%s5 + $0x17c] sm:$0xf]
      %v6285 = vld [vmem:[%s5 + $0x180] sm:$0xf]
      %v6286 = vld [vmem:[%s5 + $0x184] sm:$0xf]
      %v6287 = vld [vmem:[%s5 + $0x188] sm:$0xf]
      %v6288 = vld [vmem:[%s5 + $0x18c] sm:$0xf]
      %v6289 = vld [vmem:[%s5 + $0x190] sm:$0xf]
      %v6290 = vld [vmem:[%s5 + $0x194] sm:$0xf]
      %v6291 = vld [vmem:[%s5 + $0x198] sm:$0xf]
      %v6292 = vld [vmem:[%s5 + $0x19c] sm:$0xf]
      %v6293 = vld [vmem:[%s5 + $0x1a0] sm:$0xf]
      %v6294 = vld [vmem:[%s5 + $0x1a4] sm:$0xf]
      %v6295 = vld [vmem:[%s5 + $0x1a8] sm:$0xf]
      %v6296 = vld [vmem:[%s5 + $0x1ac] sm:$0xf]
      %v6297 = vld [vmem:[%s5 + $0x1b0] sm:$0xf]
      %v6298 = vld [vmem:[%s5 + $0x1b4] sm:$0xf]
      %v6299 = vld [vmem:[%s5 + $0x1b8] sm:$0xf]
      %v6300 = vld [vmem:[%s5 + $0x1bc] sm:$0xf]
      %v6301 = vld [vmem:[%s5 + $0x1c0] sm:$0xf]
      %v6302 = vld [vmem:[%s5 + $0x1c4] sm:$0xf]
      %v6303 = vld [vmem:[%s5 + $0x1c8] sm:$0xf]
      %v6304 = vld [vmem:[%s5 + $0x1cc] sm:$0xf]
      %v6305 = vld [vmem:[%s5 + $0x1d0] sm:$0xf]
      %v6306 = vld [vmem:[%s5 + $0x1d4] sm:$0xf]
      %v6307 = vld [vmem:[%s5 + $0x1d8] sm:$0xf]
      %v6308 = vld [vmem:[%s5 + $0x1dc] sm:$0xf]
      %v6309 = vld [vmem:[%s5 + $0x1e0] sm:$0xf]
      %v6310 = vld [vmem:[%s5 + $0x1e4] sm:$0xf]
      %v6311 = vld [vmem:[%s5 + $0x1e8] sm:$0xf]
      %v6312 = vld [vmem:[%s5 + $0x1ec] sm:$0xf]
      %v6313 = vld [vmem:[%s5 + $0x1f0] sm:$0xf]
      %v6314 = vld [vmem:[%s5 + $0x1f4] sm:$0xf]
      %v6315 = vld [vmem:[%s5 + $0x1f8] sm:$0xf]
      %v6316 = vld [vmem:[%s5 + $0x1fc] sm:$0xf]
      %v6317 = vld [vmem:[%s5 + $0x200] sm:$0xf]
      %v6318 = vld [vmem:[%s5 + $0x204] sm:$0xf]
      %v6319 = vld [vmem:[%s5 + $0x208] sm:$0xf]
      %v6320 = vld [vmem:[%s5 + $0x20c] sm:$0xf]
      %v6321 = vld [vmem:[%s5 + $0x210] sm:$0xf]
      %v6322 = vld [vmem:[%s5 + $0x214] sm:$0xf]
      %v6323 = vld [vmem:[%s5 + $0x218] sm:$0xf]
      %v6324 = vld [vmem:[%s5 + $0x21c] sm:$0xf]
      %v6325 = vld [vmem:[%s5 + $0x220] sm:$0xf]
      %v6326 = vld [vmem:[%s5 + $0x224] sm:$0xf]
      %v6327 = vld [vmem:[%s5 + $0x228] sm:$0xf]
      %v6328 = vld [vmem:[%s5 + $0x22c] sm:$0xf]
      %v6329 = vld [vmem:[%s5 + $0x230] sm:$0xf]
      %v6330 = vld [vmem:[%s5 + $0x234] sm:$0xf]
      %v6331 = vld [vmem:[%s5 + $0x238] sm:$0xf]
      %v6332 = vld [vmem:[%s5 + $0x23c] sm:$0xf]
      %v6333 = vld [vmem:[%s5 + $0x240] sm:$0xf]
      %v6334 = vld [vmem:[%s5 + $0x244] sm:$0xf]
      %v6335 = vld [vmem:[%s5 + $0x248] sm:$0xf]
      %v6336 = vld [vmem:[%s5 + $0x24c] sm:$0xf]
      %v6337 = vld [vmem:[%s5 + $0x250] sm:$0xf]
      %v6338 = vld [vmem:[%s5 + $0x254] sm:$0xf]
      %v6339 = vld [vmem:[%s5 + $0x258] sm:$0xf]
      %v6340 = vld [vmem:[%s5 + $0x25c] sm:$0xf]
      %v6341 = vld [vmem:[%s5 + $0x260] sm:$0xf]
      %v6342 = vld [vmem:[%s5 + $0x264] sm:$0xf]
      %v6343 = vld [vmem:[%s5 + $0x268] sm:$0xf]
      %v6344 = vld [vmem:[%s5 + $0x26c] sm:$0xf]
      %v6345 = vld [vmem:[%s5 + $0x270] sm:$0xf]
      %v6346 = vld [vmem:[%s5 + $0x274] sm:$0xf]
      %v6347 = vld [vmem:[%s5 + $0x278] sm:$0xf]
      %v6348 = vld [vmem:[%s5 + $0x27c] sm:$0xf]
      %v6349 = vld [vmem:[%s5 + $0x280] sm:$0xf]
      %v6350 = vld [vmem:[%s5 + $0x284] sm:$0xf]
      %v6351 = vld [vmem:[%s5 + $0x288] sm:$0xf]
      %v6352 = vld [vmem:[%s5 + $0x28c] sm:$0xf]
      %v6353 = vld [vmem:[%s5 + $0x290] sm:$0xf]
      %v6354 = vld [vmem:[%s5 + $0x294] sm:$0xf]
      %v6355 = vld [vmem:[%s5 + $0x298] sm:$0xf]
      %v6356 = vld [vmem:[%s5 + $0x29c] sm:$0xf]
      %v6357 = vld [vmem:[%s5 + $0x2a0] sm:$0xf]
      %v6358 = vld [vmem:[%s5 + $0x2a4] sm:$0xf]
      %v6359 = vld [vmem:[%s5 + $0x2a8] sm:$0xf]
      %v6360 = vld [vmem:[%s5 + $0x2ac] sm:$0xf]
      %v6361 = vld [vmem:[%s5 + $0x2b0] sm:$0xf]
      %v6362 = vld [vmem:[%s5 + $0x2b4] sm:$0xf]
      %v6363 = vld [vmem:[%s5 + $0x2b8] sm:$0xf]
      %v6364 = vld [vmem:[%s5 + $0x2bc] sm:$0xf]
      %v6365 = vld [vmem:[%s5 + $0x2c0] sm:$0xf]
      %v6366 = vld [vmem:[%s5 + $0x2c4] sm:$0xf]
      %v6367 = vld [vmem:[%s5 + $0x2c8] sm:$0xf]
      %v6368 = vld [vmem:[%s5 + $0x2cc] sm:$0xf]
      %v6369 = vld [vmem:[%s5 + $0x2d0] sm:$0xf]
      %v6370 = vld [vmem:[%s5 + $0x2d4] sm:$0xf]
      %v6371 = vld [vmem:[%s5 + $0x2d8] sm:$0xf]
      %v6372 = vld [vmem:[%s5 + $0x2dc] sm:$0xf]
      %v6373 = vld [vmem:[%s5 + $0x2e0] sm:$0xf]
      %v6374 = vld [vmem:[%s5 + $0x2e4] sm:$0xf]
      %v6375 = vld [vmem:[%s5 + $0x2e8] sm:$0xf]
      %v6376 = vld [vmem:[%s5 + $0x2ec] sm:$0xf]
      %v6377 = vld [vmem:[%s5 + $0x2f0] sm:$0xf]
      %v6378 = vld [vmem:[%s5 + $0x2f4] sm:$0xf]
      %v6379 = vld [vmem:[%s5 + $0x2f8] sm:$0xf]
      %v6380 = vld [vmem:[%s5 + $0x2fc] sm:$0xf]
      %v6381 = vld [vmem:[%s5 + $0x300] sm:$0xf]
      %v6382 = vld [vmem:[%s5 + $0x304] sm:$0xf]
      %v6383 = vld [vmem:[%s5 + $0x308] sm:$0xf]
      %v6384 = vld [vmem:[%s5 + $0x30c] sm:$0xf]
      %v6385 = vld [vmem:[%s5 + $0x310] sm:$0xf]
      %v6386 = vld [vmem:[%s5 + $0x314] sm:$0xf]
      %v6387 = vld [vmem:[%s5 + $0x318] sm:$0xf]
      %v6388 = vld [vmem:[%s5 + $0x31c] sm:$0xf]
      %v6389 = vld [vmem:[%s5 + $0x320] sm:$0xf]
      %v6390 = vld [vmem:[%s5 + $0x324] sm:$0xf]
      %v6391 = vld [vmem:[%s5 + $0x328] sm:$0xf]
      %v6392 = vld [vmem:[%s5 + $0x32c] sm:$0xf]
      %v6393 = vld [vmem:[%s5 + $0x330] sm:$0xf]
      %v6394 = vld [vmem:[%s5 + $0x334] sm:$0xf]
      %v6395 = vld [vmem:[%s5 + $0x338] sm:$0xf]
      %v6396 = vld [vmem:[%s5 + $0x33c] sm:$0xf]
      %v6397 = vld [vmem:[%s5 + $0x340] sm:$0xf]
      %v6398 = vld [vmem:[%s5 + $0x344] sm:$0xf]
      %v6399 = vld [vmem:[%s5 + $0x348] sm:$0xf]
      %v6400 = vld [vmem:[%s5 + $0x34c] sm:$0xf]
      %v6401 = vld [vmem:[%s5 + $0x350] sm:$0xf]
      %v6402 = vld [vmem:[%s5 + $0x354] sm:$0xf]
      %v6403 = vld [vmem:[%s5 + $0x358] sm:$0xf]
      %v6404 = vld [vmem:[%s5 + $0x35c] sm:$0xf]
      %v6405 = vld [vmem:[%s5 + $0x360] sm:$0xf]
      %v6406 = vld [vmem:[%s5 + $0x364] sm:$0xf]
      %v6407 = vld [vmem:[%s5 + $0x368] sm:$0xf]
      %v6408 = vld [vmem:[%s5 + $0x36c] sm:$0xf]
      %v6409 = vld [vmem:[%s5 + $0x370] sm:$0xf]
      %v6410 = vld [vmem:[%s5 + $0x374] sm:$0xf]
      %v6411 = vld [vmem:[%s5 + $0x378] sm:$0xf]
      %v6412 = vld [vmem:[%s5 + $0x37c] sm:$0xf]
      %v6413 = vld [vmem:[%s5 + $0x380] sm:$0xf]
      %v6414 = vld [vmem:[%s5 + $0x384] sm:$0xf]
      %v6415 = vld [vmem:[%s5 + $0x388] sm:$0xf]
      %v6416 = vld [vmem:[%s5 + $0x38c] sm:$0xf]
      %v6417 = vld [vmem:[%s5 + $0x390] sm:$0xf]
      %v6418 = vld [vmem:[%s5 + $0x394] sm:$0xf]
      %v6419 = vld [vmem:[%s5 + $0x398] sm:$0xf]
      %v6420 = vld [vmem:[%s5 + $0x39c] sm:$0xf]
      %v6421 = vld [vmem:[%s5 + $0x3a0] sm:$0xf]
      %v6422 = vld [vmem:[%s5 + $0x3a4] sm:$0xf]
      %v6423 = vld [vmem:[%s5 + $0x3a8] sm:$0xf]
      %v6424 = vld [vmem:[%s5 + $0x3ac] sm:$0xf]
      %v6425 = vld [vmem:[%s5 + $0x3b0] sm:$0xf]
      %v6426 = vld [vmem:[%s5 + $0x3b4] sm:$0xf]
      %v6427 = vld [vmem:[%s5 + $0x3b8] sm:$0xf]
      %v6428 = vld [vmem:[%s5 + $0x3bc] sm:$0xf]
      %v6429 = vld [vmem:[%s5 + $0x3c0] sm:$0xf]
      %v6430 = vld [vmem:[%s5 + $0x3c4] sm:$0xf]
      %v6431 = vld [vmem:[%s5 + $0x3c8] sm:$0xf]
      %v6432 = vld [vmem:[%s5 + $0x3cc] sm:$0xf]
      %v6433 = vld [vmem:[%s5 + $0x3d0] sm:$0xf]
      %v6434 = vld [vmem:[%s5 + $0x3d4] sm:$0xf]
      %v6435 = vld [vmem:[%s5 + $0x3d8] sm:$0xf]
      %v6436 = vld [vmem:[%s5 + $0x3dc] sm:$0xf]
      %v6437 = vld [vmem:[%s5 + $0x3e0] sm:$0xf]
      %v6438 = vld [vmem:[%s5 + $0x3e4] sm:$0xf]
      %v6439 = vld [vmem:[%s5 + $0x3e8] sm:$0xf]
      %v6440 = vld [vmem:[%s5 + $0x3ec] sm:$0xf]
      %v6441 = vld [vmem:[%s5 + $0x3f0] sm:$0xf]
      %v6442 = vld [vmem:[%s5 + $0x3f4] sm:$0xf]
      %v6443 = vld [vmem:[%s5 + $0x3f8] sm:$0xf]
      %v6444 = vld [vmem:[%s5 + $0x3fc] sm:$0xf]
      %v6445 = vld [vmem:[%s5 + $0x400] sm:$0xf]
      %v6446 = vld [vmem:[%s5 + $0x404] sm:$0xf]
      %v6447 = vld [vmem:[%s5 + $0x408] sm:$0xf]
      %v6448 = vld [vmem:[%s5 + $0x40c] sm:$0xf]
      %v6449 = vld [vmem:[%s5 + $0x410] sm:$0xf]
      %v6450 = vld [vmem:[%s5 + $0x414] sm:$0xf]
      %v6451 = vld [vmem:[%s5 + $0x418] sm:$0xf]
      %v6452 = vld [vmem:[%s5 + $0x41c] sm:$0xf]
      %v6453 = vld [vmem:[%s5 + $0x420] sm:$0xf]
      %v6454 = vld [vmem:[%s5 + $0x424] sm:$0xf]
      %v6455 = vld [vmem:[%s5 + $0x428] sm:$0xf]
      %v6456 = vld [vmem:[%s5 + $0x42c] sm:$0xf]
      %v6457 = vld [vmem:[%s5 + $0x430] sm:$0xf]
      %v6458 = vld [vmem:[%s5 + $0x434] sm:$0xf]
      %v6459 = vld [vmem:[%s5 + $0x438] sm:$0xf]
      %v6460 = vld [vmem:[%s5 + $0x43c] sm:$0xf]
      %v6461 = vld [vmem:[%s5 + $0x440] sm:$0xf]
      %v6462 = vld [vmem:[%s5 + $0x444] sm:$0xf]
      %v6463 = vld [vmem:[%s5 + $0x448] sm:$0xf]
      %v6464 = vld [vmem:[%s5 + $0x44c] sm:$0xf]
      %v6465 = vld [vmem:[%s5 + $0x450] sm:$0xf]
      %v6466 = vld [vmem:[%s5 + $0x454] sm:$0xf]
      %v6467 = vld [vmem:[%s5 + $0x458] sm:$0xf]
      %v6468 = vld [vmem:[%s5 + $0x45c] sm:$0xf]
      %v6469 = vld [vmem:[%s5 + $0x460] sm:$0xf]
      %v6470 = vld [vmem:[%s5 + $0x464] sm:$0xf]
      %v6471 = vld [vmem:[%s5 + $0x468] sm:$0xf]
      %v6472 = vld [vmem:[%s5 + $0x46c] sm:$0xf]
      %v6473 = vld [vmem:[%s5 + $0x470] sm:$0xf]
      %v6474 = vld [vmem:[%s5 + $0x474] sm:$0xf]
      %v6475 = vld [vmem:[%s5 + $0x478] sm:$0xf]
      %v6476 = vld [vmem:[%s5 + $0x47c] sm:$0xf]
      %v6477 = vld [vmem:[%s5 + $0x480] sm:$0xf]
      %v6478 = vld [vmem:[%s5 + $0x484] sm:$0xf]
      %v6479 = vld [vmem:[%s5 + $0x488] sm:$0xf]
      %v6480 = vld [vmem:[%s5 + $0x48c] sm:$0xf]
      %v6481 = vld [vmem:[%s5 + $0x490] sm:$0xf]
      %v6482 = vld [vmem:[%s5 + $0x494] sm:$0xf]
      %v6483 = vld [vmem:[%s5 + $0x498] sm:$0xf]
      %v6484 = vld [vmem:[%s5 + $0x49c] sm:$0xf]
      %v6485 = vld [vmem:[%s5 + $0x4a0] sm:$0xf]
      %v6486 = vld [vmem:[%s5 + $0x4a4] sm:$0xf]
      %v6487 = vld [vmem:[%s5 + $0x4a8] sm:$0xf]
      %v6488 = vld [vmem:[%s5 + $0x4ac] sm:$0xf]
      %v6489 = vld [vmem:[%s5 + $0x4b0] sm:$0xf]
      %v6490 = vld [vmem:[%s5 + $0x4b4] sm:$0xf]
      %v6491 = vld [vmem:[%s5 + $0x4b8] sm:$0xf]
      %v6492 = vld [vmem:[%s5 + $0x4bc] sm:$0xf]
      %v6493 = vld [vmem:[%s5 + $0x4c0] sm:$0xf]
      %v6494 = vld [vmem:[%s5 + $0x4c4] sm:$0xf]
      %v6495 = vld [vmem:[%s5 + $0x4c8] sm:$0xf]
      %v6496 = vld [vmem:[%s5 + $0x4cc] sm:$0xf]
      %v6497 = vld [vmem:[%s5 + $0x4d0] sm:$0xf]
      %v6498 = vld [vmem:[%s5 + $0x4d4] sm:$0xf]
      %v6499 = vld [vmem:[%s5 + $0x4d8] sm:$0xf]
      %v6500 = vld [vmem:[%s5 + $0x4dc] sm:$0xf]
      %v6501 = vld [vmem:[%s5 + $0x4e0] sm:$0xf]
      %v6502 = vld [vmem:[%s5 + $0x4e4] sm:$0xf]
      %v6503 = vld [vmem:[%s5 + $0x4e8] sm:$0xf]
      %v6504 = vld [vmem:[%s5 + $0x4ec] sm:$0xf]
      %v6505 = vld [vmem:[%s5 + $0x4f0] sm:$0xf]
      %v6506 = vld [vmem:[%s5 + $0x4f4] sm:$0xf]
      %v6507 = vld [vmem:[%s5 + $0x4f8] sm:$0xf]
      %v6508 = vld [vmem:[%s5 + $0x4fc] sm:$0xf]
      %v6509 = vld [vmem:[%s5 + $0x500] sm:$0xf]
      %v6510 = vld [vmem:[%s5 + $0x504] sm:$0xf]
      %v6511 = vld [vmem:[%s5 + $0x508] sm:$0xf]
      %v6512 = vld [vmem:[%s5 + $0x50c] sm:$0xf]
      %v6513 = vld [vmem:[%s5 + $0x510] sm:$0xf]
      %v6514 = vld [vmem:[%s5 + $0x514] sm:$0xf]
      %v6515 = vld [vmem:[%s5 + $0x518] sm:$0xf]
      %v6516 = vld [vmem:[%s5 + $0x51c] sm:$0xf]
      %v6517 = vld [vmem:[%s5 + $0x520] sm:$0xf]
      %v6518 = vld [vmem:[%s5 + $0x524] sm:$0xf]
      %v6519 = vld [vmem:[%s5 + $0x528] sm:$0xf]
      %v6520 = vld [vmem:[%s5 + $0x52c] sm:$0xf]
      %v6521 = vld [vmem:[%s5 + $0x530] sm:$0xf]
      %v6522 = vld [vmem:[%s5 + $0x534] sm:$0xf]
      %v6523 = vld [vmem:[%s5 + $0x538] sm:$0xf]
      %v6524 = vld [vmem:[%s5 + $0x53c] sm:$0xf]
      %v6525 = vld [vmem:[%s5 + $0x540] sm:$0xf]
      %v6526 = vld [vmem:[%s5 + $0x544] sm:$0xf]
      %v6527 = vld [vmem:[%s5 + $0x548] sm:$0xf]
      %v6528 = vld [vmem:[%s5 + $0x54c] sm:$0xf]
      %v6529 = vld [vmem:[%s5 + $0x550] sm:$0xf]
      %v6530 = vld [vmem:[%s5 + $0x554] sm:$0xf]
      %v6531 = vld [vmem:[%s5 + $0x558] sm:$0xf]
      %v6532 = vld [vmem:[%s5 + $0x55c] sm:$0xf]
      %v6533 = vld [vmem:[%s5 + $0x560] sm:$0xf]
      %v6534 = vld [vmem:[%s5 + $0x564] sm:$0xf]
      %v6535 = vld [vmem:[%s5 + $0x568] sm:$0xf]
      %v6536 = vld [vmem:[%s5 + $0x56c] sm:$0xf]
      %v6537 = vld [vmem:[%s5 + $0x570] sm:$0xf]
      %v6538 = vld [vmem:[%s5 + $0x574] sm:$0xf]
      %v6539 = vld [vmem:[%s5 + $0x578] sm:$0xf]
      %v6540 = vld [vmem:[%s5 + $0x57c] sm:$0xf]
      %v6541 = vld [vmem:[%s5 + $0x580] sm:$0xf]
      %v6542 = vld [vmem:[%s5 + $0x584] sm:$0xf]
      %v6543 = vld [vmem:[%s5 + $0x588] sm:$0xf]
      %v6544 = vld [vmem:[%s5 + $0x58c] sm:$0xf]
      %v6545 = vld [vmem:[%s5 + $0x590] sm:$0xf]
      %v6546 = vld [vmem:[%s5 + $0x594] sm:$0xf]
      %v6547 = vld [vmem:[%s5 + $0x598] sm:$0xf]
      %v6548 = vld [vmem:[%s5 + $0x59c] sm:$0xf]
      %v6549 = vld [vmem:[%s5 + $0x5a0] sm:$0xf]
      %v6550 = vld [vmem:[%s5 + $0x5a4] sm:$0xf]
      %v6551 = vld [vmem:[%s5 + $0x5a8] sm:$0xf]
      %v6552 = vld [vmem:[%s5 + $0x5ac] sm:$0xf]
      %v6553 = vld [vmem:[%s5 + $0x5b0] sm:$0xf]
      %v6554 = vld [vmem:[%s5 + $0x5b4] sm:$0xf]
      %v6555 = vld [vmem:[%s5 + $0x5b8] sm:$0xf]
      %v6556 = vld [vmem:[%s5 + $0x5bc] sm:$0xf]
      %v6557 = vld [vmem:[%s5 + $0x5c0] sm:$0xf]
      %v6558 = vld [vmem:[%s5 + $0x5c4] sm:$0xf]
      %v6559 = vld [vmem:[%s5 + $0x5c8] sm:$0xf]
      %v6560 = vld [vmem:[%s5 + $0x5cc] sm:$0xf]
      %v6561 = vld [vmem:[%s5 + $0x5d0] sm:$0xf]
      %v6562 = vld [vmem:[%s5 + $0x5d4] sm:$0xf]
      %v6563 = vld [vmem:[%s5 + $0x5d8] sm:$0xf]
      %v6564 = vld [vmem:[%s5 + $0x5dc] sm:$0xf]
      %v6565 = vld [vmem:[%s5 + $0x5e0] sm:$0xf]
      %v6566 = vld [vmem:[%s5 + $0x5e4] sm:$0xf]
      %v6567 = vld [vmem:[%s5 + $0x5e8] sm:$0xf]
      %v6568 = vld [vmem:[%s5 + $0x5ec] sm:$0xf]
      %v6569 = vld [vmem:[%s5 + $0x5f0] sm:$0xf]
      %v6570 = vld [vmem:[%s5 + $0x5f4] sm:$0xf]
      %v6571 = vld [vmem:[%s5 + $0x5f8] sm:$0xf]
      %v6572 = vld [vmem:[%s5 + $0x5fc] sm:$0xf]
      %v6573 = vld [vmem:[%s5 + $0x600] sm:$0xf]
      %v6574 = vld [vmem:[%s5 + $0x604] sm:$0xf]
      %v6575 = vld [vmem:[%s5 + $0x608] sm:$0xf]
      %v6576 = vld [vmem:[%s5 + $0x60c] sm:$0xf]
      %v6577 = vld [vmem:[%s5 + $0x610] sm:$0xf]
      %v6578 = vld [vmem:[%s5 + $0x614] sm:$0xf]
      %v6579 = vld [vmem:[%s5 + $0x618] sm:$0xf]
      %v6580 = vld [vmem:[%s5 + $0x61c] sm:$0xf]
      %v6581 = vld [vmem:[%s5 + $0x620] sm:$0xf]
      %v6582 = vld [vmem:[%s5 + $0x624] sm:$0xf]
      %v6583 = vld [vmem:[%s5 + $0x628] sm:$0xf]
      %v6584 = vld [vmem:[%s5 + $0x62c] sm:$0xf]
      %v6585 = vld [vmem:[%s5 + $0x630] sm:$0xf]
      %v6586 = vld [vmem:[%s5 + $0x634] sm:$0xf]
      %v6587 = vld [vmem:[%s5 + $0x638] sm:$0xf]
      %v6588 = vld [vmem:[%s5 + $0x63c] sm:$0xf]
      %v6589 = vld [vmem:[%s6] sm:$0x1]
      %v6591 = vlaneseq
      %v6592 = vshrl.u32 %v6591, 7
      %v6593 = vsub.s32 0, %v6592
      %v6594 = vrot.slane %v6589, %v6593
      %v6996 = vunpack.c.l.b16 %v6189
      %v6997 = vunpack.c.l.b16 %v6190
      %v6998 = vunpack.c.l.b16 %v6191
      %v6999 = vunpack.c.l.b16 %v6192
      %v7000 = vunpack.c.l.b16 %v6193
      %v7001 = vunpack.c.l.b16 %v6194
      %v7002 = vunpack.c.l.b16 %v6195
      %v7003 = vunpack.c.l.b16 %v6196
      %v7004 = vunpack.c.l.b16 %v6197
      %v7005 = vunpack.c.l.b16 %v6198
      %v7006 = vunpack.c.l.b16 %v6199
      %v7007 = vunpack.c.l.b16 %v6200
      %v7008 = vunpack.c.l.b16 %v6201
      %v7009 = vunpack.c.l.b16 %v6202
      %v7010 = vunpack.c.l.b16 %v6203
      %v7011 = vunpack.c.l.b16 %v6204
      %v7012 = vunpack.c.l.b16 %v6205
      %v7013 = vunpack.c.l.b16 %v6206
      %v7014 = vunpack.c.l.b16 %v6207
      %v7015 = vunpack.c.l.b16 %v6208
      %v7016 = vunpack.c.l.b16 %v6209
      %v7017 = vunpack.c.l.b16 %v6210
      %v7018 = vunpack.c.l.b16 %v6211
      %v7019 = vunpack.c.l.b16 %v6212
      %v7020 = vunpack.c.l.b16 %v6213
      %v7021 = vunpack.c.l.b16 %v6214
      %v7022 = vunpack.c.l.b16 %v6215
      %v7023 = vunpack.c.l.b16 %v6216
      %v7024 = vunpack.c.l.b16 %v6217
      %v7025 = vunpack.c.l.b16 %v6218
      %v7026 = vunpack.c.l.b16 %v6219
      %v7027 = vunpack.c.l.b16 %v6220
      %v7028 = vunpack.c.l.b16 %v6221
      %v7029 = vunpack.c.l.b16 %v6222
      %v7030 = vunpack.c.l.b16 %v6223
      %v7031 = vunpack.c.l.b16 %v6224
      %v7032 = vunpack.c.l.b16 %v6225
      %v7033 = vunpack.c.l.b16 %v6226
      %v7034 = vunpack.c.l.b16 %v6227
      %v7035 = vunpack.c.l.b16 %v6228
      %v7036 = vunpack.c.l.b16 %v6229
      %v7037 = vunpack.c.l.b16 %v6230
      %v7038 = vunpack.c.l.b16 %v6231
      %v7039 = vunpack.c.l.b16 %v6232
      %v7040 = vunpack.c.l.b16 %v6233
      %v7041 = vunpack.c.l.b16 %v6234
      %v7042 = vunpack.c.l.b16 %v6235
      %v7043 = vunpack.c.l.b16 %v6236
      %v7044 = vunpack.c.l.b16 %v6237
      %v7045 = vunpack.c.l.b16 %v6238
      %v7046 = vunpack.c.l.b16 %v6239
      %v7047 = vunpack.c.l.b16 %v6240
      %v7048 = vunpack.c.l.b16 %v6241
      %v7049 = vunpack.c.l.b16 %v6242
      %v7050 = vunpack.c.l.b16 %v6243
      %v7051 = vunpack.c.l.b16 %v6244
      %v7052 = vunpack.c.l.b16 %v6245
      %v7053 = vunpack.c.l.b16 %v6246
      %v7054 = vunpack.c.l.b16 %v6247
      %v7055 = vunpack.c.l.b16 %v6248
      %v7056 = vunpack.c.l.b16 %v6249
      %v7057 = vunpack.c.l.b16 %v6250
      %v7058 = vunpack.c.l.b16 %v6251
      %v7059 = vunpack.c.l.b16 %v6252
      %v7060 = vunpack.c.l.b16 %v6253
      %v7061 = vunpack.c.l.b16 %v6254
      %v7062 = vunpack.c.l.b16 %v6255
      %v7063 = vunpack.c.l.b16 %v6256
      %v7064 = vunpack.c.l.b16 %v6257
      %v7065 = vunpack.c.l.b16 %v6258
      %v7066 = vunpack.c.l.b16 %v6259
      %v7067 = vunpack.c.l.b16 %v6260
      %v7068 = vunpack.c.l.b16 %v6261
      %v7069 = vunpack.c.l.b16 %v6262
      %v7070 = vunpack.c.l.b16 %v6263
      %v7071 = vunpack.c.l.b16 %v6264
      %v7072 = vunpack.c.l.b16 %v6265
      %v7073 = vunpack.c.l.b16 %v6266
      %v7074 = vunpack.c.l.b16 %v6267
      %v7075 = vunpack.c.l.b16 %v6268
      %v7076 = vunpack.c.l.b16 %v6269
      %v7077 = vunpack.c.l.b16 %v6270
      %v7078 = vunpack.c.l.b16 %v6271
      %v7079 = vunpack.c.l.b16 %v6272
      %v7080 = vunpack.c.l.b16 %v6273
      %v7081 = vunpack.c.l.b16 %v6274
      %v7082 = vunpack.c.l.b16 %v6275
      %v7083 = vunpack.c.l.b16 %v6276
      %v7084 = vunpack.c.l.b16 %v6277
      %v7085 = vunpack.c.l.b16 %v6278
      %v7086 = vunpack.c.l.b16 %v6279
      %v7087 = vunpack.c.l.b16 %v6280
      %v7088 = vunpack.c.l.b16 %v6281
      %v7089 = vunpack.c.l.b16 %v6282
      %v7090 = vunpack.c.l.b16 %v6283
      %v7091 = vunpack.c.l.b16 %v6284
      %v7092 = vunpack.c.l.b16 %v6285
      %v7093 = vunpack.c.l.b16 %v6286
      %v7094 = vunpack.c.l.b16 %v6287
      %v7095 = vunpack.c.l.b16 %v6288
      %v7096 = vunpack.c.l.b16 %v6289
      %v7097 = vunpack.c.l.b16 %v6290
      %v7098 = vunpack.c.l.b16 %v6291
      %v7099 = vunpack.c.l.b16 %v6292
      %v7100 = vunpack.c.l.b16 %v6293
      %v7101 = vunpack.c.l.b16 %v6294
      %v7102 = vunpack.c.l.b16 %v6295
      %v7103 = vunpack.c.l.b16 %v6296
      %v7104 = vunpack.c.l.b16 %v6297
      %v7105 = vunpack.c.l.b16 %v6298
      %v7106 = vunpack.c.l.b16 %v6299
      %v7107 = vunpack.c.l.b16 %v6300
      %v7108 = vunpack.c.l.b16 %v6301
      %v7109 = vunpack.c.l.b16 %v6302
      %v7110 = vunpack.c.l.b16 %v6303
      %v7111 = vunpack.c.l.b16 %v6304
      %v7112 = vunpack.c.l.b16 %v6305
      %v7113 = vunpack.c.l.b16 %v6306
      %v7114 = vunpack.c.l.b16 %v6307
      %v7115 = vunpack.c.l.b16 %v6308
      %v7116 = vunpack.c.l.b16 %v6309
      %v7117 = vunpack.c.l.b16 %v6310
      %v7118 = vunpack.c.l.b16 %v6311
      %v7119 = vunpack.c.l.b16 %v6312
      %v7120 = vunpack.c.l.b16 %v6313
      %v7121 = vunpack.c.l.b16 %v6314
      %v7122 = vunpack.c.l.b16 %v6315
      %v7123 = vunpack.c.l.b16 %v6316
      %v7124 = vunpack.c.l.b16 %v6317
      %v7125 = vunpack.c.l.b16 %v6318
      %v7126 = vunpack.c.l.b16 %v6319
      %v7127 = vunpack.c.l.b16 %v6320
      %v7128 = vunpack.c.l.b16 %v6321
      %v7129 = vunpack.c.l.b16 %v6322
      %v7130 = vunpack.c.l.b16 %v6323
      %v7131 = vunpack.c.l.b16 %v6324
      %v7132 = vunpack.c.l.b16 %v6325
      %v7133 = vunpack.c.l.b16 %v6326
      %v7134 = vunpack.c.l.b16 %v6327
      %v7135 = vunpack.c.l.b16 %v6328
      %v7136 = vunpack.c.l.b16 %v6329
      %v7137 = vunpack.c.l.b16 %v6330
      %v7138 = vunpack.c.l.b16 %v6331
      %v7139 = vunpack.c.l.b16 %v6332
      %v7140 = vunpack.c.l.b16 %v6333
      %v7141 = vunpack.c.l.b16 %v6334
      %v7142 = vunpack.c.l.b16 %v6335
      %v7143 = vunpack.c.l.b16 %v6336
      %v7144 = vunpack.c.l.b16 %v6337
      %v7145 = vunpack.c.l.b16 %v6338
      %v7146 = vunpack.c.l.b16 %v6339
      %v7147 = vunpack.c.l.b16 %v6340
      %v7148 = vunpack.c.l.b16 %v6341
      %v7149 = vunpack.c.l.b16 %v6342
      %v7150 = vunpack.c.l.b16 %v6343
      %v7151 = vunpack.c.l.b16 %v6344
      %v7152 = vunpack.c.l.b16 %v6345
      %v7153 = vunpack.c.l.b16 %v6346
      %v7154 = vunpack.c.l.b16 %v6347
      %v7155 = vunpack.c.l.b16 %v6348
      %v7156 = vunpack.c.l.b16 %v6349
      %v7157 = vunpack.c.l.b16 %v6350
      %v7158 = vunpack.c.l.b16 %v6351
      %v7159 = vunpack.c.l.b16 %v6352
      %v7160 = vunpack.c.l.b16 %v6353
      %v7161 = vunpack.c.l.b16 %v6354
      %v7162 = vunpack.c.l.b16 %v6355
      %v7163 = vunpack.c.l.b16 %v6356
      %v7164 = vunpack.c.l.b16 %v6357
      %v7165 = vunpack.c.l.b16 %v6358
      %v7166 = vunpack.c.l.b16 %v6359
      %v7167 = vunpack.c.l.b16 %v6360
      %v7168 = vunpack.c.l.b16 %v6361
      %v7169 = vunpack.c.l.b16 %v6362
      %v7170 = vunpack.c.l.b16 %v6363
      %v7171 = vunpack.c.l.b16 %v6364
      %v7172 = vunpack.c.l.b16 %v6365
      %v7173 = vunpack.c.l.b16 %v6366
      %v7174 = vunpack.c.l.b16 %v6367
      %v7175 = vunpack.c.l.b16 %v6368
      %v7176 = vunpack.c.l.b16 %v6369
      %v7177 = vunpack.c.l.b16 %v6370
      %v7178 = vunpack.c.l.b16 %v6371
      %v7179 = vunpack.c.l.b16 %v6372
      %v7180 = vunpack.c.l.b16 %v6373
      %v7181 = vunpack.c.l.b16 %v6374
      %v7182 = vunpack.c.l.b16 %v6375
      %v7183 = vunpack.c.l.b16 %v6376
      %v7184 = vunpack.c.l.b16 %v6377
      %v7185 = vunpack.c.l.b16 %v6378
      %v7186 = vunpack.c.l.b16 %v6379
      %v7187 = vunpack.c.l.b16 %v6380
      %v7188 = vunpack.c.l.b16 %v6381
      %v7189 = vunpack.c.l.b16 %v6382
      %v7190 = vunpack.c.l.b16 %v6383
      %v7191 = vunpack.c.l.b16 %v6384
      %v7192 = vunpack.c.l.b16 %v6385
      %v7193 = vunpack.c.l.b16 %v6386
      %v7194 = vunpack.c.l.b16 %v6387
      %v7195 = vunpack.c.l.b16 %v6388
      %v7196 = vunpack.c.l.b16 %v6389
      %v7197 = vunpack.c.l.b16 %v6390
      %v7198 = vunpack.c.l.b16 %v6391
      %v7199 = vunpack.c.l.b16 %v6392
      %v7200 = vunpack.c.l.b16 %v6393
      %v7201 = vunpack.c.l.b16 %v6394
      %v7202 = vunpack.c.l.b16 %v6395
      %v7203 = vunpack.c.l.b16 %v6396
      %v7204 = vunpack.c.l.b16 %v6397
      %v7205 = vunpack.c.l.b16 %v6398
      %v7206 = vunpack.c.l.b16 %v6399
      %v7207 = vunpack.c.l.b16 %v6400
      %v7208 = vunpack.c.l.b16 %v6401
      %v7209 = vunpack.c.l.b16 %v6402
      %v7210 = vunpack.c.l.b16 %v6403
      %v7211 = vunpack.c.l.b16 %v6404
      %v7212 = vunpack.c.l.b16 %v6405
      %v7213 = vunpack.c.l.b16 %v6406
      %v7214 = vunpack.c.l.b16 %v6407
      %v7215 = vunpack.c.l.b16 %v6408
      %v7216 = vunpack.c.l.b16 %v6409
      %v7217 = vunpack.c.l.b16 %v6410
      %v7218 = vunpack.c.l.b16 %v6411
      %v7219 = vunpack.c.l.b16 %v6412
      %v7220 = vunpack.c.l.b16 %v6413
      %v7221 = vunpack.c.l.b16 %v6414
      %v7222 = vunpack.c.l.b16 %v6415
      %v7223 = vunpack.c.l.b16 %v6416
      %v7224 = vunpack.c.l.b16 %v6417
      %v7225 = vunpack.c.l.b16 %v6418
      %v7226 = vunpack.c.l.b16 %v6419
      %v7227 = vunpack.c.l.b16 %v6420
      %v7228 = vunpack.c.l.b16 %v6421
      %v7229 = vunpack.c.l.b16 %v6422
      %v7230 = vunpack.c.l.b16 %v6423
      %v7231 = vunpack.c.l.b16 %v6424
      %v7232 = vunpack.c.l.b16 %v6425
      %v7233 = vunpack.c.l.b16 %v6426
      %v7234 = vunpack.c.l.b16 %v6427
      %v7235 = vunpack.c.l.b16 %v6428
      %v7236 = vunpack.c.l.b16 %v6429
      %v7237 = vunpack.c.l.b16 %v6430
      %v7238 = vunpack.c.l.b16 %v6431
      %v7239 = vunpack.c.l.b16 %v6432
      %v7240 = vunpack.c.l.b16 %v6433
      %v7241 = vunpack.c.l.b16 %v6434
      %v7242 = vunpack.c.l.b16 %v6435
      %v7243 = vunpack.c.l.b16 %v6436
      %v7244 = vunpack.c.l.b16 %v6437
      %v7245 = vunpack.c.l.b16 %v6438
      %v7246 = vunpack.c.l.b16 %v6439
      %v7247 = vunpack.c.l.b16 %v6440
      %v7248 = vunpack.c.l.b16 %v6441
      %v7249 = vunpack.c.l.b16 %v6442
      %v7250 = vunpack.c.l.b16 %v6443
      %v7251 = vunpack.c.l.b16 %v6444
      %v7252 = vunpack.c.l.b16 %v6445
      %v7253 = vunpack.c.l.b16 %v6446
      %v7254 = vunpack.c.l.b16 %v6447
      %v7255 = vunpack.c.l.b16 %v6448
      %v7256 = vunpack.c.l.b16 %v6449
      %v7257 = vunpack.c.l.b16 %v6450
      %v7258 = vunpack.c.l.b16 %v6451
      %v7259 = vunpack.c.l.b16 %v6452
      %v7260 = vunpack.c.l.b16 %v6453
      %v7261 = vunpack.c.l.b16 %v6454
      %v7262 = vunpack.c.l.b16 %v6455
      %v7263 = vunpack.c.l.b16 %v6456
      %v7264 = vunpack.c.l.b16 %v6457
      %v7265 = vunpack.c.l.b16 %v6458
      %v7266 = vunpack.c.l.b16 %v6459
      %v7267 = vunpack.c.l.b16 %v6460
      %v7268 = vunpack.c.l.b16 %v6461
      %v7269 = vunpack.c.l.b16 %v6462
      %v7270 = vunpack.c.l.b16 %v6463
      %v7271 = vunpack.c.l.b16 %v6464
      %v7272 = vunpack.c.l.b16 %v6465
      %v7273 = vunpack.c.l.b16 %v6466
      %v7274 = vunpack.c.l.b16 %v6467
      %v7275 = vunpack.c.l.b16 %v6468
      %v7276 = vunpack.c.l.b16 %v6469
      %v7277 = vunpack.c.l.b16 %v6470
      %v7278 = vunpack.c.l.b16 %v6471
      %v7279 = vunpack.c.l.b16 %v6472
      %v7280 = vunpack.c.l.b16 %v6473
      %v7281 = vunpack.c.l.b16 %v6474
      %v7282 = vunpack.c.l.b16 %v6475
      %v7283 = vunpack.c.l.b16 %v6476
      %v7284 = vunpack.c.l.b16 %v6477
      %v7285 = vunpack.c.l.b16 %v6478
      %v7286 = vunpack.c.l.b16 %v6479
      %v7287 = vunpack.c.l.b16 %v6480
      %v7288 = vunpack.c.l.b16 %v6481
      %v7289 = vunpack.c.l.b16 %v6482
      %v7290 = vunpack.c.l.b16 %v6483
      %v7291 = vunpack.c.l.b16 %v6484
      %v7292 = vunpack.c.l.b16 %v6485
      %v7293 = vunpack.c.l.b16 %v6486
      %v7294 = vunpack.c.l.b16 %v6487
      %v7295 = vunpack.c.l.b16 %v6488
      %v7296 = vunpack.c.l.b16 %v6489
      %v7297 = vunpack.c.l.b16 %v6490
      %v7298 = vunpack.c.l.b16 %v6491
      %v7299 = vunpack.c.l.b16 %v6492
      %v7300 = vunpack.c.l.b16 %v6493
      %v7301 = vunpack.c.l.b16 %v6494
      %v7302 = vunpack.c.l.b16 %v6495
      %v7303 = vunpack.c.l.b16 %v6496
      %v7304 = vunpack.c.l.b16 %v6497
      %v7305 = vunpack.c.l.b16 %v6498
      %v7306 = vunpack.c.l.b16 %v6499
      %v7307 = vunpack.c.l.b16 %v6500
      %v7308 = vunpack.c.l.b16 %v6501
      %v7309 = vunpack.c.l.b16 %v6502
      %v7310 = vunpack.c.l.b16 %v6503
      %v7311 = vunpack.c.l.b16 %v6504
      %v7312 = vunpack.c.l.b16 %v6505
      %v7313 = vunpack.c.l.b16 %v6506
      %v7314 = vunpack.c.l.b16 %v6507
      %v7315 = vunpack.c.l.b16 %v6508
      %v7316 = vunpack.c.l.b16 %v6509
      %v7317 = vunpack.c.l.b16 %v6510
      %v7318 = vunpack.c.l.b16 %v6511
      %v7319 = vunpack.c.l.b16 %v6512
      %v7320 = vunpack.c.l.b16 %v6513
      %v7321 = vunpack.c.l.b16 %v6514
      %v7322 = vunpack.c.l.b16 %v6515
      %v7323 = vunpack.c.l.b16 %v6516
      %v7324 = vunpack.c.l.b16 %v6517
      %v7325 = vunpack.c.l.b16 %v6518
      %v7326 = vunpack.c.l.b16 %v6519
      %v7327 = vunpack.c.l.b16 %v6520
      %v7328 = vunpack.c.l.b16 %v6521
      %v7329 = vunpack.c.l.b16 %v6522
      %v7330 = vunpack.c.l.b16 %v6523
      %v7331 = vunpack.c.l.b16 %v6524
      %v7332 = vunpack.c.l.b16 %v6525
      %v7333 = vunpack.c.l.b16 %v6526
      %v7334 = vunpack.c.l.b16 %v6527
      %v7335 = vunpack.c.l.b16 %v6528
      %v7336 = vunpack.c.l.b16 %v6529
      %v7337 = vunpack.c.l.b16 %v6530
      %v7338 = vunpack.c.l.b16 %v6531
      %v7339 = vunpack.c.l.b16 %v6532
      %v7340 = vunpack.c.l.b16 %v6533
      %v7341 = vunpack.c.l.b16 %v6534
      %v7342 = vunpack.c.l.b16 %v6535
      %v7343 = vunpack.c.l.b16 %v6536
      %v7344 = vunpack.c.l.b16 %v6537
      %v7345 = vunpack.c.l.b16 %v6538
      %v7346 = vunpack.c.l.b16 %v6539
      %v7347 = vunpack.c.l.b16 %v6540
      %v7348 = vunpack.c.l.b16 %v6541
      %v7349 = vunpack.c.l.b16 %v6542
      %v7350 = vunpack.c.l.b16 %v6543
      %v7351 = vunpack.c.l.b16 %v6544
      %v7352 = vunpack.c.l.b16 %v6545
      %v7353 = vunpack.c.l.b16 %v6546
      %v7354 = vunpack.c.l.b16 %v6547
      %v7355 = vunpack.c.l.b16 %v6548
      %v7356 = vunpack.c.l.b16 %v6549
      %v7357 = vunpack.c.l.b16 %v6550
      %v7358 = vunpack.c.l.b16 %v6551
      %v7359 = vunpack.c.l.b16 %v6552
      %v7360 = vunpack.c.l.b16 %v6553
      %v7361 = vunpack.c.l.b16 %v6554
      %v7362 = vunpack.c.l.b16 %v6555
      %v7363 = vunpack.c.l.b16 %v6556
      %v7364 = vunpack.c.l.b16 %v6557
      %v7365 = vunpack.c.l.b16 %v6558
      %v7366 = vunpack.c.l.b16 %v6559
      %v7367 = vunpack.c.l.b16 %v6560
      %v7368 = vunpack.c.l.b16 %v6561
      %v7369 = vunpack.c.l.b16 %v6562
      %v7370 = vunpack.c.l.b16 %v6563
      %v7371 = vunpack.c.l.b16 %v6564
      %v7372 = vunpack.c.l.b16 %v6565
      %v7373 = vunpack.c.l.b16 %v6566
      %v7374 = vunpack.c.l.b16 %v6567
      %v7375 = vunpack.c.l.b16 %v6568
      %v7376 = vunpack.c.l.b16 %v6569
      %v7377 = vunpack.c.l.b16 %v6570
      %v7378 = vunpack.c.l.b16 %v6571
      %v7379 = vunpack.c.l.b16 %v6572
      %v7380 = vunpack.c.l.b16 %v6573
      %v7381 = vunpack.c.l.b16 %v6574
      %v7382 = vunpack.c.l.b16 %v6575
      %v7383 = vunpack.c.l.b16 %v6576
      %v7384 = vunpack.c.l.b16 %v6577
      %v7385 = vunpack.c.l.b16 %v6578
      %v7386 = vunpack.c.l.b16 %v6579
      %v7387 = vunpack.c.l.b16 %v6580
      %v7388 = vunpack.c.l.b16 %v6581
      %v7389 = vunpack.c.l.b16 %v6582
      %v7390 = vunpack.c.l.b16 %v6583
      %v7391 = vunpack.c.l.b16 %v6584
      %v7392 = vunpack.c.l.b16 %v6585
      %v7393 = vunpack.c.l.b16 %v6586
      %v7394 = vunpack.c.l.b16 %v6587
      %v7395 = vunpack.c.l.b16 %v6588
      %v7396 = vpack.c.b16 %v6997, %v6996
      %v7397 = vpack.c.b16 %v6999, %v6998
      %v7398 = vpack.c.b16 %v7001, %v7000
      %v7399 = vpack.c.b16 %v7003, %v7002
      %v7400 = vpack.c.b16 %v7005, %v7004
      %v7401 = vpack.c.b16 %v7007, %v7006
      %v7402 = vpack.c.b16 %v7009, %v7008
      %v7403 = vpack.c.b16 %v7011, %v7010
      %v7404 = vpack.c.b16 %v7013, %v7012
      %v7405 = vpack.c.b16 %v7015, %v7014
      %v7406 = vpack.c.b16 %v7017, %v7016
      %v7407 = vpack.c.b16 %v7019, %v7018
      %v7408 = vpack.c.b16 %v7021, %v7020
      %v7409 = vpack.c.b16 %v7023, %v7022
      %v7410 = vpack.c.b16 %v7025, %v7024
      %v7411 = vpack.c.b16 %v7027, %v7026
      %v7412 = vpack.c.b16 %v7029, %v7028
      %v7413 = vpack.c.b16 %v7031, %v7030
      %v7414 = vpack.c.b16 %v7033, %v7032
      %v7415 = vpack.c.b16 %v7035, %v7034
      %v7416 = vpack.c.b16 %v7037, %v7036
      %v7417 = vpack.c.b16 %v7039, %v7038
      %v7418 = vpack.c.b16 %v7041, %v7040
      %v7419 = vpack.c.b16 %v7043, %v7042
      %v7420 = vpack.c.b16 %v7045, %v7044
      %v7421 = vpack.c.b16 %v7047, %v7046
      %v7422 = vpack.c.b16 %v7049, %v7048
      %v7423 = vpack.c.b16 %v7051, %v7050
      %v7424 = vpack.c.b16 %v7053, %v7052
      %v7425 = vpack.c.b16 %v7055, %v7054
      %v7426 = vpack.c.b16 %v7057, %v7056
      %v7427 = vpack.c.b16 %v7059, %v7058
      %v7428 = vpack.c.b16 %v7061, %v7060
      %v7429 = vpack.c.b16 %v7063, %v7062
      %v7430 = vpack.c.b16 %v7065, %v7064
      %v7431 = vpack.c.b16 %v7067, %v7066
      %v7432 = vpack.c.b16 %v7069, %v7068
      %v7433 = vpack.c.b16 %v7071, %v7070
      %v7434 = vpack.c.b16 %v7073, %v7072
      %v7435 = vpack.c.b16 %v7075, %v7074
      %v7436 = vpack.c.b16 %v7077, %v7076
      %v7437 = vpack.c.b16 %v7079, %v7078
      %v7438 = vpack.c.b16 %v7081, %v7080
      %v7439 = vpack.c.b16 %v7083, %v7082
      %v7440 = vpack.c.b16 %v7085, %v7084
      %v7441 = vpack.c.b16 %v7087, %v7086
      %v7442 = vpack.c.b16 %v7089, %v7088
      %v7443 = vpack.c.b16 %v7091, %v7090
      %v7444 = vpack.c.b16 %v7093, %v7092
      %v7445 = vpack.c.b16 %v7095, %v7094
      %v7446 = vpack.c.b16 %v7097, %v7096
      %v7447 = vpack.c.b16 %v7099, %v7098
      %v7448 = vpack.c.b16 %v7101, %v7100
      %v7449 = vpack.c.b16 %v7103, %v7102
      %v7450 = vpack.c.b16 %v7105, %v7104
      %v7451 = vpack.c.b16 %v7107, %v7106
      %v7452 = vpack.c.b16 %v7109, %v7108
      %v7453 = vpack.c.b16 %v7111, %v7110
      %v7454 = vpack.c.b16 %v7113, %v7112
      %v7455 = vpack.c.b16 %v7115, %v7114
      %v7456 = vpack.c.b16 %v7117, %v7116
      %v7457 = vpack.c.b16 %v7119, %v7118
      %v7458 = vpack.c.b16 %v7121, %v7120
      %v7459 = vpack.c.b16 %v7123, %v7122
      %v7460 = vpack.c.b16 %v7125, %v7124
      %v7461 = vpack.c.b16 %v7127, %v7126
      %v7462 = vpack.c.b16 %v7129, %v7128
      %v7463 = vpack.c.b16 %v7131, %v7130
      %v7464 = vpack.c.b16 %v7133, %v7132
      %v7465 = vpack.c.b16 %v7135, %v7134
      %v7466 = vpack.c.b16 %v7137, %v7136
      %v7467 = vpack.c.b16 %v7139, %v7138
      %v7468 = vpack.c.b16 %v7141, %v7140
      %v7469 = vpack.c.b16 %v7143, %v7142
      %v7470 = vpack.c.b16 %v7145, %v7144
      %v7471 = vpack.c.b16 %v7147, %v7146
      %v7472 = vpack.c.b16 %v7149, %v7148
      %v7473 = vpack.c.b16 %v7151, %v7150
      %v7474 = vpack.c.b16 %v7153, %v7152
      %v7475 = vpack.c.b16 %v7155, %v7154
      %v7476 = vpack.c.b16 %v7157, %v7156
      %v7477 = vpack.c.b16 %v7159, %v7158
      %v7478 = vpack.c.b16 %v7161, %v7160
      %v7479 = vpack.c.b16 %v7163, %v7162
      %v7480 = vpack.c.b16 %v7165, %v7164
      %v7481 = vpack.c.b16 %v7167, %v7166
      %v7482 = vpack.c.b16 %v7169, %v7168
      %v7483 = vpack.c.b16 %v7171, %v7170
      %v7484 = vpack.c.b16 %v7173, %v7172
      %v7485 = vpack.c.b16 %v7175, %v7174
      %v7486 = vpack.c.b16 %v7177, %v7176
      %v7487 = vpack.c.b16 %v7179, %v7178
      %v7488 = vpack.c.b16 %v7181, %v7180
      %v7489 = vpack.c.b16 %v7183, %v7182
      %v7490 = vpack.c.b16 %v7185, %v7184
      %v7491 = vpack.c.b16 %v7187, %v7186
      %v7492 = vpack.c.b16 %v7189, %v7188
      %v7493 = vpack.c.b16 %v7191, %v7190
      %v7494 = vpack.c.b16 %v7193, %v7192
      %v7495 = vpack.c.b16 %v7195, %v7194
      %v7496 = vpack.c.b16 %v7197, %v7196
      %v7497 = vpack.c.b16 %v7199, %v7198
      %v7498 = vpack.c.b16 %v7201, %v7200
      %v7499 = vpack.c.b16 %v7203, %v7202
      %v7500 = vpack.c.b16 %v7205, %v7204
      %v7501 = vpack.c.b16 %v7207, %v7206
      %v7502 = vpack.c.b16 %v7209, %v7208
      %v7503 = vpack.c.b16 %v7211, %v7210
      %v7504 = vpack.c.b16 %v7213, %v7212
      %v7505 = vpack.c.b16 %v7215, %v7214
      %v7506 = vpack.c.b16 %v7217, %v7216
      %v7507 = vpack.c.b16 %v7219, %v7218
      %v7508 = vpack.c.b16 %v7221, %v7220
      %v7509 = vpack.c.b16 %v7223, %v7222
      %v7510 = vpack.c.b16 %v7225, %v7224
      %v7511 = vpack.c.b16 %v7227, %v7226
      %v7512 = vpack.c.b16 %v7229, %v7228
      %v7513 = vpack.c.b16 %v7231, %v7230
      %v7514 = vpack.c.b16 %v7233, %v7232
      %v7515 = vpack.c.b16 %v7235, %v7234
      %v7516 = vpack.c.b16 %v7237, %v7236
      %v7517 = vpack.c.b16 %v7239, %v7238
      %v7518 = vpack.c.b16 %v7241, %v7240
      %v7519 = vpack.c.b16 %v7243, %v7242
      %v7520 = vpack.c.b16 %v7245, %v7244
      %v7521 = vpack.c.b16 %v7247, %v7246
      %v7522 = vpack.c.b16 %v7249, %v7248
      %v7523 = vpack.c.b16 %v7251, %v7250
      %v7524 = vpack.c.b16 %v7253, %v7252
      %v7525 = vpack.c.b16 %v7255, %v7254
      %v7526 = vpack.c.b16 %v7257, %v7256
      %v7527 = vpack.c.b16 %v7259, %v7258
      %v7528 = vpack.c.b16 %v7261, %v7260
      %v7529 = vpack.c.b16 %v7263, %v7262
      %v7530 = vpack.c.b16 %v7265, %v7264
      %v7531 = vpack.c.b16 %v7267, %v7266
      %v7532 = vpack.c.b16 %v7269, %v7268
      %v7533 = vpack.c.b16 %v7271, %v7270
      %v7534 = vpack.c.b16 %v7273, %v7272
      %v7535 = vpack.c.b16 %v7275, %v7274
      %v7536 = vpack.c.b16 %v7277, %v7276
      %v7537 = vpack.c.b16 %v7279, %v7278
      %v7538 = vpack.c.b16 %v7281, %v7280
      %v7539 = vpack.c.b16 %v7283, %v7282
      %v7540 = vpack.c.b16 %v7285, %v7284
      %v7541 = vpack.c.b16 %v7287, %v7286
      %v7542 = vpack.c.b16 %v7289, %v7288
      %v7543 = vpack.c.b16 %v7291, %v7290
      %v7544 = vpack.c.b16 %v7293, %v7292
      %v7545 = vpack.c.b16 %v7295, %v7294
      %v7546 = vpack.c.b16 %v7297, %v7296
      %v7547 = vpack.c.b16 %v7299, %v7298
      %v7548 = vpack.c.b16 %v7301, %v7300
      %v7549 = vpack.c.b16 %v7303, %v7302
      %v7550 = vpack.c.b16 %v7305, %v7304
      %v7551 = vpack.c.b16 %v7307, %v7306
      %v7552 = vpack.c.b16 %v7309, %v7308
      %v7553 = vpack.c.b16 %v7311, %v7310
      %v7554 = vpack.c.b16 %v7313, %v7312
      %v7555 = vpack.c.b16 %v7315, %v7314
      %v7556 = vpack.c.b16 %v7317, %v7316
      %v7557 = vpack.c.b16 %v7319, %v7318
      %v7558 = vpack.c.b16 %v7321, %v7320
      %v7559 = vpack.c.b16 %v7323, %v7322
      %v7560 = vpack.c.b16 %v7325, %v7324
      %v7561 = vpack.c.b16 %v7327, %v7326
      %v7562 = vpack.c.b16 %v7329, %v7328
      %v7563 = vpack.c.b16 %v7331, %v7330
      %v7564 = vpack.c.b16 %v7333, %v7332
      %v7565 = vpack.c.b16 %v7335, %v7334
      %v7566 = vpack.c.b16 %v7337, %v7336
      %v7567 = vpack.c.b16 %v7339, %v7338
      %v7568 = vpack.c.b16 %v7341, %v7340
      %v7569 = vpack.c.b16 %v7343, %v7342
      %v7570 = vpack.c.b16 %v7345, %v7344
      %v7571 = vpack.c.b16 %v7347, %v7346
      %v7572 = vpack.c.b16 %v7349, %v7348
      %v7573 = vpack.c.b16 %v7351, %v7350
      %v7574 = vpack.c.b16 %v7353, %v7352
      %v7575 = vpack.c.b16 %v7355, %v7354
      %v7576 = vpack.c.b16 %v7357, %v7356
      %v7577 = vpack.c.b16 %v7359, %v7358
      %v7578 = vpack.c.b16 %v7361, %v7360
      %v7579 = vpack.c.b16 %v7363, %v7362
      %v7580 = vpack.c.b16 %v7365, %v7364
      %v7581 = vpack.c.b16 %v7367, %v7366
      %v7582 = vpack.c.b16 %v7369, %v7368
      %v7583 = vpack.c.b16 %v7371, %v7370
      %v7584 = vpack.c.b16 %v7373, %v7372
      %v7585 = vpack.c.b16 %v7375, %v7374
      %v7586 = vpack.c.b16 %v7377, %v7376
      %v7587 = vpack.c.b16 %v7379, %v7378
      %v7588 = vpack.c.b16 %v7381, %v7380
      %v7589 = vpack.c.b16 %v7383, %v7382
      %v7590 = vpack.c.b16 %v7385, %v7384
      %v7591 = vpack.c.b16 %v7387, %v7386
      %v7592 = vpack.c.b16 %v7389, %v7388
      %v7593 = vpack.c.b16 %v7391, %v7390
      %v7594 = vpack.c.b16 %v7393, %v7392
      %v7595 = vpack.c.b16 %v7395, %v7394
      %7796 = vmatprep.subr.bf16.mxu0 0
      %7797 = vmatpush1.bf16.msra.mxu0 %v7396
      %7798 = vmatprep.subr.bf16.mxu0 0
      %7799 = vmatpush1.bf16.msra.mxu0 %v7397
      %7800 = vmatprep.subr.bf16.mxu0 0
      %7801 = vmatpush1.bf16.msra.mxu0 %v7398
      %7802 = vmatprep.subr.bf16.mxu0 0
      %7803 = vmatpush1.bf16.msra.mxu0 %v7399
      %7804 = vmatprep.subr.bf16.mxu0 0
      %7805 = vmatpush1.bf16.msra.mxu0 %v7400
      %7806 = vmatprep.subr.bf16.mxu0 0
      %7807 = vmatpush1.bf16.msra.mxu0 %v7401
      %7808 = vmatprep.subr.bf16.mxu0 0
      %7809 = vmatpush1.bf16.msra.mxu0 %v7402
      %7810 = vmatprep.subr.bf16.mxu0 0
      %7811 = vmatpush1.bf16.msra.mxu0 %v7403
      %7812 = vmatprep.subr.bf16.mxu0 0
      %7813 = vmatpush1.bf16.msra.mxu0 %v7404
      %7814 = vmatprep.subr.bf16.mxu0 0
      %7815 = vmatpush1.bf16.msra.mxu0 %v7405
      %7816 = vmatprep.subr.bf16.mxu0 0
      %7817 = vmatpush1.bf16.msra.mxu0 %v7406
      %7818 = vmatprep.subr.bf16.mxu0 0
      %7819 = vmatpush1.bf16.msra.mxu0 %v7407
      %7820 = vmatprep.subr.bf16.mxu0 0
      %7821 = vmatpush1.bf16.msra.mxu0 %v7408
      %7822 = vmatprep.subr.bf16.mxu0 0
      %7823 = vmatpush1.bf16.msra.mxu0 %v7409
      %7824 = vmatprep.subr.bf16.mxu0 0
      %7825 = vmatpush1.bf16.msra.mxu0 %v7410
      %7826 = vmatprep.subr.bf16.mxu0 0
      %7827 = vmatpush1.bf16.msra.mxu0 %v7411
      %7828 = vmatprep.mubr.bf16.mxu0 %v6112
      %7829 = vmatmul.mubr.bf16.gmra.mrb[0].mxu0 %v6104
      %v7830 = vpop.f32.mrb[0].mxu0
      %v7831 = vadd.f32 %v6594, %v7830
      %v7832 = vpop.f32.mrb[0].mxu0
      %v7833 = vpop.f32.mrb[0].mxu0
      %v7834 = vpop.f32.mrb[0].mxu0
      %7835 = vdwg.mxu0
      %7836 = vmatprep.subr.bf16.mxu0 0
      %7837 = vmatpush1.bf16.msra.mxu0 %v7412
      %7838 = vmatprep.subr.bf16.mxu0 0
      %7839 = vmatpush1.bf16.msra.mxu0 %v7413
      %7840 = vmatprep.subr.bf16.mxu0 0
      %7841 = vmatpush1.bf16.msra.mxu0 %v7414
      %7842 = vmatprep.subr.bf16.mxu0 0
      %7843 = vmatpush1.bf16.msra.mxu0 %v7415
      %7844 = vmatprep.subr.bf16.mxu0 0
      %7845 = vmatpush1.bf16.msra.mxu0 %v7416
      %7846 = vmatprep.subr.bf16.mxu0 0
      %7847 = vmatpush1.bf16.msra.mxu0 %v7417
      %7848 = vmatprep.subr.bf16.mxu0 0
      %7849 = vmatpush1.bf16.msra.mxu0 %v7418
      %7850 = vmatprep.subr.bf16.mxu0 0
      %7851 = vmatpush1.bf16.msra.mxu0 %v7419
      %7852 = vmatprep.subr.bf16.mxu0 0
      %7853 = vmatpush1.bf16.msra.mxu0 %v7420
      %7854 = vmatprep.subr.bf16.mxu0 0
      %7855 = vmatpush1.bf16.msra.mxu0 %v7421
      %7856 = vmatprep.subr.bf16.mxu0 0
      %7857 = vmatpush1.bf16.msra.mxu0 %v7422
      %7858 = vmatprep.subr.bf16.mxu0 0
      %7859 = vmatpush1.bf16.msra.mxu0 %v7423
      %7860 = vmatprep.subr.bf16.mxu0 0
      %7861 = vmatpush1.bf16.msra.mxu0 %v7424
      %7862 = vmatprep.subr.bf16.mxu0 0
      %7863 = vmatpush1.bf16.msra.mxu0 %v7425
      %7864 = vmatprep.subr.bf16.mxu0 0
      %7865 = vmatpush1.bf16.msra.mxu0 %v7426
      %7866 = vmatprep.subr.bf16.mxu0 0
      %7867 = vmatpush1.bf16.msra.mxu0 %v7427
      %7868 = vmatprep.mubr.bf16.mxu0 %v6119
      %7869 = vmatmul.mubr.bf16.gmra.mrb[0].mxu0 %v6115
      %v7870 = vpop.f32.mrb[0].mxu0
      %v7871 = vadd.f32 %v7831, %v7870
      %v7872 = vpop.f32.mrb[0].mxu0
      %v7873 = vpop.f32.mrb[0].mxu0
      %v7874 = vpop.f32.mrb[0].mxu0
      %7875 = vdwg.mxu0
      %7876 = vmatprep.subr.bf16.mxu0 0
      %7877 = vmatpush1.bf16.msra.mxu0 %v7428
      %7878 = vmatprep.subr.bf16.mxu0 0
      %7879 = vmatpush1.bf16.msra.mxu0 %v7429
      %7880 = vmatprep.subr.bf16.mxu0 0
      %7881 = vmatpush1.bf16.msra.mxu0 %v7430
      %7882 = vmatprep.subr.bf16.mxu0 0
      %7883 = vmatpush1.bf16.msra.mxu0 %v7431
      %7884 = vmatprep.subr.bf16.mxu0 0
      %7885 = vmatpush1.bf16.msra.mxu0 %v7432
      %7886 = vmatprep.subr.bf16.mxu0 0
      %7887 = vmatpush1.bf16.msra.mxu0 %v7433
      %7888 = vmatprep.subr.bf16.mxu0 0
      %7889 = vmatpush1.bf16.msra.mxu0 %v7434
      %7890 = vmatprep.subr.bf16.mxu0 0
      %7891 = vmatpush1.bf16.msra.mxu0 %v7435
      %7892 = vmatprep.subr.bf16.mxu0 0
      %7893 = vmatpush1.bf16.msra.mxu0 %v7436
      %7894 = vmatprep.subr.bf16.mxu0 0
      %7895 = vmatpush1.bf16.msra.mxu0 %v7437
      %7896 = vmatprep.subr.bf16.mxu0 0
      %7897 = vmatpush1.bf16.msra.mxu0 %v7438
      %7898 = vmatprep.subr.bf16.mxu0 0
      %7899 = vmatpush1.bf16.msra.mxu0 %v7439
      %7900 = vmatprep.subr.bf16.mxu0 0
      %7901 = vmatpush1.bf16.msra.mxu0 %v7440
      %7902 = vmatprep.subr.bf16.mxu0 0
      %7903 = vmatpush1.bf16.msra.mxu0 %v7441
      %7904 = vmatprep.subr.bf16.mxu0 0
      %7905 = vmatpush1.bf16.msra.mxu0 %v7442
      %7906 = vmatprep.subr.bf16.mxu0 0
      %7907 = vmatpush1.bf16.msra.mxu0 %v7443
      %7908 = vmatprep.mubr.bf16.mxu0 %v6125
      %7909 = vmatmul.mubr.bf16.gmra.mrb[0].mxu0 %v6121
      %v7910 = vpop.f32.mrb[0].mxu0
      %v7911 = vadd.f32 %v7871, %v7910
      %v7912 = vpop.f32.mrb[0].mxu0
      %v7913 = vpop.f32.mrb[0].mxu0
      %v7914 = vpop.f32.mrb[0].mxu0
      %7915 = vdwg.mxu0
      %7916 = vmatprep.subr.bf16.mxu0 0
      %7917 = vmatpush1.bf16.msra.mxu0 %v7444
      %7918 = vmatprep.subr.bf16.mxu0 0
      %7919 = vmatpush1.bf16.msra.mxu0 %v7445
      %7920 = vmatprep.subr.bf16.mxu0 0
      %7921 = vmatpush1.bf16.msra.mxu0 %v7446
      %7922 = vmatprep.subr.bf16.mxu0 0
      %7923 = vmatpush1.bf16.msra.mxu0 %v7447
      %7924 = vmatprep.subr.bf16.mxu0 0
      %7925 = vmatpush1.bf16.msra.mxu0 %v7448
      %7926 = vmatprep.subr.bf16.mxu0 0
      %7927 = vmatpush1.bf16.msra.mxu0 %v7449
      %7928 = vmatprep.subr.bf16.mxu0 0
      %7929 = vmatpush1.bf16.msra.mxu0 %v7450
      %7930 = vmatprep.subr.bf16.mxu0 0
      %7931 = vmatpush1.bf16.msra.mxu0 %v7451
      %7932 = vmatprep.subr.bf16.mxu0 0
      %7933 = vmatpush1.bf16.msra.mxu0 %v7452
      %7934 = vmatprep.subr.bf16.mxu0 0
      %7935 = vmatpush1.bf16.msra.mxu0 %v7453
      %7936 = vmatprep.subr.bf16.mxu0 0
      %7937 = vmatpush1.bf16.msra.mxu0 %v7454
      %7938 = vmatprep.subr.bf16.mxu0 0
      %7939 = vmatpush1.bf16.msra.mxu0 %v7455
      %7940 = vmatprep.subr.bf16.mxu0 0
      %7941 = vmatpush1.bf16.msra.mxu0 %v7456
      %7942 = vmatprep.subr.bf16.mxu0 0
      %7943 = vmatpush1.bf16.msra.mxu0 %v7457
      %7944 = vmatprep.subr.bf16.mxu0 0
      %7945 = vmatpush1.bf16.msra.mxu0 %v7458
      %7946 = vmatprep.subr.bf16.mxu0 0
      %7947 = vmatpush1.bf16.msra.mxu0 %v7459
      %7948 = vmatprep.mubr.bf16.mxu0 %v6131
      %7949 = vmatmul.mubr.bf16.gmra.mrb[0].mxu0 %v6127
      %v7950 = vpop.f32.mrb[0].mxu0
      %v7951 = vadd.f32 %v7911, %v7950
      %v7952 = vpop.f32.mrb[0].mxu0
      %v7953 = vpop.f32.mrb[0].mxu0
      %v7954 = vpop.f32.mrb[0].mxu0
      %7955 = vdwg.mxu0
      %7956 = vmatprep.subr.bf16.mxu0 0
      %7957 = vmatpush1.bf16.msra.mxu0 %v7460
      %7958 = vmatprep.subr.bf16.mxu0 0
      %7959 = vmatpush1.bf16.msra.mxu0 %v7461
      %7960 = vmatprep.subr.bf16.mxu0 0
      %7961 = vmatpush1.bf16.msra.mxu0 %v7462
      %7962 = vmatprep.subr.bf16.mxu0 0
      %7963 = vmatpush1.bf16.msra.mxu0 %v7463
      %7964 = vmatprep.subr.bf16.mxu0 0
      %7965 = vmatpush1.bf16.msra.mxu0 %v7464
      %7966 = vmatprep.subr.bf16.mxu0 0
      %7967 = vmatpush1.bf16.msra.mxu0 %v7465
      %7968 = vmatprep.subr.bf16.mxu0 0
      %7969 = vmatpush1.bf16.msra.mxu0 %v7466
      %7970 = vmatprep.subr.bf16.mxu0 0
      %7971 = vmatpush1.bf16.msra.mxu0 %v7467
      %7972 = vmatprep.subr.bf16.mxu0 0
      %7973 = vmatpush1.bf16.msra.mxu0 %v7468
      %7974 = vmatprep.subr.bf16.mxu0 0
      %7975 = vmatpush1.bf16.msra.mxu0 %v7469
      %7976 = vmatprep.subr.bf16.mxu0 0
      %7977 = vmatpush1.bf16.msra.mxu0 %v7470
      %7978 = vmatprep.subr.bf16.mxu0 0
      %7979 = vmatpush1.bf16.msra.mxu0 %v7471
      %7980 = vmatprep.subr.bf16.mxu0 0
      %7981 = vmatpush1.bf16.msra.mxu0 %v7472
      %7982 = vmatprep.subr.bf16.mxu0 0
      %7983 = vmatpush1.bf16.msra.mxu0 %v7473
      %7984 = vmatprep.subr.bf16.mxu0 0
      %7985 = vmatpush1.bf16.msra.mxu0 %v7474
      %7986 = vmatprep.subr.bf16.mxu0 0
      %7987 = vmatpush1.bf16.msra.mxu0 %v7475
      %7988 = vmatprep.mubr.bf16.mxu0 %v6137
      %7989 = vmatmul.mubr.bf16.gmra.mrb[0].mxu0 %v6133
      %v7990 = vpop.f32.mrb[0].mxu0
      %v7991 = vadd.f32 %v7951, %v7990
      %v7992 = vpop.f32.mrb[0].mxu0
      %v7993 = vpop.f32.mrb[0].mxu0
      %v7994 = vpop.f32.mrb[0].mxu0
      %7995 = vdwg.mxu0
      %7996 = vmatprep.subr.bf16.mxu0 0
      %7997 = vmatpush1.bf16.msra.mxu0 %v7476
      %7998 = vmatprep.subr.bf16.mxu0 0
      %7999 = vmatpush1.bf16.msra.mxu0 %v7477
      %8000 = vmatprep.subr.bf16.mxu0 0
      %8001 = vmatpush1.bf16.msra.mxu0 %v7478
      %8002 = vmatprep.subr.bf16.mxu0 0
      %8003 = vmatpush1.bf16.msra.mxu0 %v7479
      %8004 = vmatprep.subr.bf16.mxu0 0
      %8005 = vmatpush1.bf16.msra.mxu0 %v7480
      %8006 = vmatprep.subr.bf16.mxu0 0
      %8007 = vmatpush1.bf16.msra.mxu0 %v7481
      %8008 = vmatprep.subr.bf16.mxu0 0
      %8009 = vmatpush1.bf16.msra.mxu0 %v7482
      %8010 = vmatprep.subr.bf16.mxu0 0
      %8011 = vmatpush1.bf16.msra.mxu0 %v7483
      %8012 = vmatprep.subr.bf16.mxu0 0
      %8013 = vmatpush1.bf16.msra.mxu0 %v7484
      %8014 = vmatprep.subr.bf16.mxu0 0
      %8015 = vmatpush1.bf16.msra.mxu0 %v7485
      %8016 = vmatprep.subr.bf16.mxu0 0
      %8017 = vmatpush1.bf16.msra.mxu0 %v7486
      %8018 = vmatprep.subr.bf16.mxu0 0
      %8019 = vmatpush1.bf16.msra.mxu0 %v7487
      %8020 = vmatprep.subr.bf16.mxu0 0
      %8021 = vmatpush1.bf16.msra.mxu0 %v7488
      %8022 = vmatprep.subr.bf16.mxu0 0
      %8023 = vmatpush1.bf16.msra.mxu0 %v7489
      %8024 = vmatprep.subr.bf16.mxu0 0
      %8025 = vmatpush1.bf16.msra.mxu0 %v7490
      %8026 = vmatprep.subr.bf16.mxu0 0
      %8027 = vmatpush1.bf16.msra.mxu0 %v7491
      %8028 = vmatprep.mubr.bf16.mxu0 %v6143
      %8029 = vmatmul.mubr.bf16.gmra.mrb[0].mxu0 %v6139
      %v8030 = vpop.f32.mrb[0].mxu0
      %v8031 = vadd.f32 %v7991, %v8030
      %v8032 = vpop.f32.mrb[0].mxu0
      %v8033 = vpop.f32.mrb[0].mxu0
      %v8034 = vpop.f32.mrb[0].mxu0
      %8035 = vdwg.mxu0
      %8036 = vmatprep.subr.bf16.mxu0 0
      %8037 = vmatpush1.bf16.msra.mxu0 %v7492
      %8038 = vmatprep.subr.bf16.mxu0 0
      %8039 = vmatpush1.bf16.msra.mxu0 %v7493
      %8040 = vmatprep.subr.bf16.mxu0 0
      %8041 = vmatpush1.bf16.msra.mxu0 %v7494
      %8042 = vmatprep.subr.bf16.mxu0 0
      %8043 = vmatpush1.bf16.msra.mxu0 %v7495
      %8044 = vmatprep.subr.bf16.mxu0 0
      %8045 = vmatpush1.bf16.msra.mxu0 %v7496
      %8046 = vmatprep.subr.bf16.mxu0 0
      %8047 = vmatpush1.bf16.msra.mxu0 %v7497
      %8048 = vmatprep.subr.bf16.mxu0 0
      %8049 = vmatpush1.bf16.msra.mxu0 %v7498
      %8050 = vmatprep.subr.bf16.mxu0 0
      %8051 = vmatpush1.bf16.msra.mxu0 %v7499
      %8052 = vmatprep.subr.bf16.mxu0 0
      %8053 = vmatpush1.bf16.msra.mxu0 %v7500
      %8054 = vmatprep.subr.bf16.mxu0 0
      %8055 = vmatpush1.bf16.msra.mxu0 %v7501
      %8056 = vmatprep.subr.bf16.mxu0 0
      %8057 = vmatpush1.bf16.msra.mxu0 %v7502
      %8058 = vmatprep.subr.bf16.mxu0 0
      %8059 = vmatpush1.bf16.msra.mxu0 %v7503
      %8060 = vmatprep.subr.bf16.mxu0 0
      %8061 = vmatpush1.bf16.msra.mxu0 %v7504
      %8062 = vmatprep.subr.bf16.mxu0 0
      %8063 = vmatpush1.bf16.msra.mxu0 %v7505
      %8064 = vmatprep.subr.bf16.mxu0 0
      %8065 = vmatpush1.bf16.msra.mxu0 %v7506
      %8066 = vmatprep.subr.bf16.mxu0 0
      %8067 = vmatpush1.bf16.msra.mxu0 %v7507
      %8068 = vmatprep.mubr.bf16.mxu0 %v6149
      %8069 = vmatmul.mubr.bf16.gmra.mrb[0].mxu0 %v6145
      %v8070 = vpop.f32.mrb[0].mxu0
      %v8071 = vadd.f32 %v8031, %v8070
      %v8072 = vpop.f32.mrb[0].mxu0
      %v8073 = vpop.f32.mrb[0].mxu0
      %v8074 = vpop.f32.mrb[0].mxu0
      %8075 = vdwg.mxu0
      %8076 = vmatprep.subr.bf16.mxu0 0
      %8077 = vmatpush1.bf16.msra.mxu0 %v7508
      %8078 = vmatprep.subr.bf16.mxu0 0
      %8079 = vmatpush1.bf16.msra.mxu0 %v7509
      %8080 = vmatprep.subr.bf16.mxu0 0
      %8081 = vmatpush1.bf16.msra.mxu0 %v7510
      %8082 = vmatprep.subr.bf16.mxu0 0
      %8083 = vmatpush1.bf16.msra.mxu0 %v7511
      %8084 = vmatprep.subr.bf16.mxu0 0
      %8085 = vmatpush1.bf16.msra.mxu0 %v7512
      %8086 = vmatprep.subr.bf16.mxu0 0
      %8087 = vmatpush1.bf16.msra.mxu0 %v7513
      %8088 = vmatprep.subr.bf16.mxu0 0
      %8089 = vmatpush1.bf16.msra.mxu0 %v7514
      %8090 = vmatprep.subr.bf16.mxu0 0
      %8091 = vmatpush1.bf16.msra.mxu0 %v7515
      %8092 = vmatprep.subr.bf16.mxu0 0
      %8093 = vmatpush1.bf16.msra.mxu0 %v7516
      %8094 = vmatprep.subr.bf16.mxu0 0
      %8095 = vmatpush1.bf16.msra.mxu0 %v7517
      %8096 = vmatprep.subr.bf16.mxu0 0
      %8097 = vmatpush1.bf16.msra.mxu0 %v7518
      %8098 = vmatprep.subr.bf16.mxu0 0
      %8099 = vmatpush1.bf16.msra.mxu0 %v7519
      %8100 = vmatprep.subr.bf16.mxu0 0
      %8101 = vmatpush1.bf16.msra.mxu0 %v7520
      %8102 = vmatprep.subr.bf16.mxu0 0
      %8103 = vmatpush1.bf16.msra.mxu0 %v7521
      %8104 = vmatprep.subr.bf16.mxu0 0
      %8105 = vmatpush1.bf16.msra.mxu0 %v7522
      %8106 = vmatprep.subr.bf16.mxu0 0
      %8107 = vmatpush1.bf16.msra.mxu0 %v7523
      %8108 = vmatprep.mubr.bf16.mxu0 %v6164
      %8109 = vmatmul.mubr.bf16.gmra.mrb[0].mxu0 %v6154
      %v8110 = vpop.f32.mrb[0].mxu0
      %v8111 = vadd.f32 %v8071, %v8110
      %v8112 = vpop.f32.mrb[0].mxu0
      %v8113 = vpop.f32.mrb[0].mxu0
      %v8114 = vpop.f32.mrb[0].mxu0
      %8115 = vdwg.mxu0
      %8116 = vmatprep.subr.bf16.mxu0 0
      %8117 = vmatpush1.bf16.msra.mxu0 %v7524
      %8118 = vmatprep.subr.bf16.mxu0 0
      %8119 = vmatpush1.bf16.msra.mxu0 %v7525
      %8120 = vmatprep.subr.bf16.mxu0 0
      %8121 = vmatpush1.bf16.msra.mxu0 %v7526
      %8122 = vmatprep.subr.bf16.mxu0 0
      %8123 = vmatpush1.bf16.msra.mxu0 %v7527
      %8124 = vmatprep.subr.bf16.mxu0 0
      %8125 = vmatpush1.bf16.msra.mxu0 %v7528
      %8126 = vmatprep.subr.bf16.mxu0 0
      %8127 = vmatpush1.bf16.msra.mxu0 %v7529
      %8128 = vmatprep.subr.bf16.mxu0 0
      %8129 = vmatpush1.bf16.msra.mxu0 %v7530
      %8130 = vmatprep.subr.bf16.mxu0 0
      %8131 = vmatpush1.bf16.msra.mxu0 %v7531
      %8132 = vmatprep.subr.bf16.mxu0 0
      %8133 = vmatpush1.bf16.msra.mxu0 %v7532
      %8134 = vmatprep.subr.bf16.mxu0 0
      %8135 = vmatpush1.bf16.msra.mxu0 %v7533
      %8136 = vmatprep.subr.bf16.mxu0 0
      %8137 = vmatpush1.bf16.msra.mxu0 %v7534
      %8138 = vmatprep.subr.bf16.mxu0 0
      %8139 = vmatpush1.bf16.msra.mxu0 %v7535
      %8140 = vmatprep.subr.bf16.mxu0 0
      %8141 = vmatpush1.bf16.msra.mxu0 %v7536
      %8142 = vmatprep.subr.bf16.mxu0 0
      %8143 = vmatpush1.bf16.msra.mxu0 %v7537
      %8144 = vmatprep.subr.bf16.mxu0 0
      %8145 = vmatpush1.bf16.msra.mxu0 %v7538
      %8146 = vmatprep.subr.bf16.mxu0 0
      %8147 = vmatpush1.bf16.msra.mxu0 %v7539
      %8148 = vmatprep.mubr.bf16.mxu0 %v6167
      %8149 = vmatmul.mubr.bf16.gmra.mrb[0].mxu0 %v6105
      %v8150 = vpop.f32.mrb[0].mxu0
      %v8151 = vadd.f32 %v8111, %v8150
      %v8152 = vpop.f32.mrb[0].mxu0
      %v8153 = vpop.f32.mrb[0].mxu0
      %v8154 = vpop.f32.mrb[0].mxu0
      %8155 = vdwg.mxu0
      %8156 = vmatprep.subr.bf16.mxu0 0
      %8157 = vmatpush1.bf16.msra.mxu0 %v7540
      %8158 = vmatprep.subr.bf16.mxu0 0
      %8159 = vmatpush1.bf16.msra.mxu0 %v7541
      %8160 = vmatprep.subr.bf16.mxu0 0
      %8161 = vmatpush1.bf16.msra.mxu0 %v7542
      %8162 = vmatprep.subr.bf16.mxu0 0
      %8163 = vmatpush1.bf16.msra.mxu0 %v7543
      %8164 = vmatprep.subr.bf16.mxu0 0
      %8165 = vmatpush1.bf16.msra.mxu0 %v7544
      %8166 = vmatprep.subr.bf16.mxu0 0
      %8167 = vmatpush1.bf16.msra.mxu0 %v7545
      %8168 = vmatprep.subr.bf16.mxu0 0
      %8169 = vmatpush1.bf16.msra.mxu0 %v7546
      %8170 = vmatprep.subr.bf16.mxu0 0
      %8171 = vmatpush1.bf16.msra.mxu0 %v7547
      %8172 = vmatprep.subr.bf16.mxu0 0
      %8173 = vmatpush1.bf16.msra.mxu0 %v7548
      %8174 = vmatprep.subr.bf16.mxu0 0
      %8175 = vmatpush1.bf16.msra.mxu0 %v7549
      %8176 = vmatprep.subr.bf16.mxu0 0
      %8177 = vmatpush1.bf16.msra.mxu0 %v7550
      %8178 = vmatprep.subr.bf16.mxu0 0
      %8179 = vmatpush1.bf16.msra.mxu0 %v7551
      %8180 = vmatprep.subr.bf16.mxu0 0
      %8181 = vmatpush1.bf16.msra.mxu0 %v7552
      %8182 = vmatprep.subr.bf16.mxu0 0
      %8183 = vmatpush1.bf16.msra.mxu0 %v7553
      %8184 = vmatprep.subr.bf16.mxu0 0
      %8185 = vmatpush1.bf16.msra.mxu0 %v7554
      %8186 = vmatprep.subr.bf16.mxu0 0
      %8187 = vmatpush1.bf16.msra.mxu0 %v7555
      %8188 = vmatprep.mubr.bf16.mxu0 %v6173
      %8189 = vmatmul.mubr.bf16.gmra.mrb[0].mxu0 %v6169
      %v8190 = vpop.f32.mrb[0].mxu0
      %v8191 = vadd.f32 %v8151, %v8190
      %v8192 = vpop.f32.mrb[0].mxu0
      %v8193 = vpop.f32.mrb[0].mxu0
      %v8194 = vpop.f32.mrb[0].mxu0
      %8195 = vdwg.mxu0
      %8196 = vmatprep.subr.bf16.mxu0 0
      %8197 = vmatpush1.bf16.msra.mxu0 %v7556
      %8198 = vmatprep.subr.bf16.mxu0 0
      %8199 = vmatpush1.bf16.msra.mxu0 %v7557
      %8200 = vmatprep.subr.bf16.mxu0 0
      %8201 = vmatpush1.bf16.msra.mxu0 %v7558
      %8202 = vmatprep.subr.bf16.mxu0 0
      %8203 = vmatpush1.bf16.msra.mxu0 %v7559
      %8204 = vmatprep.subr.bf16.mxu0 0
      %8205 = vmatpush1.bf16.msra.mxu0 %v7560
      %8206 = vmatprep.subr.bf16.mxu0 0
      %8207 = vmatpush1.bf16.msra.mxu0 %v7561
      %8208 = vmatprep.subr.bf16.mxu0 0
      %8209 = vmatpush1.bf16.msra.mxu0 %v7562
      %8210 = vmatprep.subr.bf16.mxu0 0
      %8211 = vmatpush1.bf16.msra.mxu0 %v7563
      %8212 = vmatprep.subr.bf16.mxu0 0
      %8213 = vmatpush1.bf16.msra.mxu0 %v7564
      %8214 = vmatprep.subr.bf16.mxu0 0
      %8215 = vmatpush1.bf16.msra.mxu0 %v7565
      %8216 = vmatprep.subr.bf16.mxu0 0
      %8217 = vmatpush1.bf16.msra.mxu0 %v7566
      %8218 = vmatprep.subr.bf16.mxu0 0
      %8219 = vmatpush1.bf16.msra.mxu0 %v7567
      %8220 = vmatprep.subr.bf16.mxu0 0
      %8221 = vmatpush1.bf16.msra.mxu0 %v7568
      %8222 = vmatprep.subr.bf16.mxu0 0
      %8223 = vmatpush1.bf16.msra.mxu0 %v7569
      %8224 = vmatprep.subr.bf16.mxu0 0
      %8225 = vmatpush1.bf16.msra.mxu0 %v7570
      %8226 = vmatprep.subr.bf16.mxu0 0
      %8227 = vmatpush1.bf16.msra.mxu0 %v7571
      %8228 = vmatprep.mubr.bf16.mxu0 %v6179
      %8229 = vmatmul.mubr.bf16.gmra.mrb[0].mxu0 %v6175
      %v8230 = vpop.f32.mrb[0].mxu0
      %v8231 = vadd.f32 %v8191, %v8230
      %v8232 = vpop.f32.mrb[0].mxu0
      %v8233 = vpop.f32.mrb[0].mxu0
      %v8234 = vpop.f32.mrb[0].mxu0
      %8235 = vdwg.mxu0
      %8236 = vmatprep.subr.bf16.mxu0 0
      %8237 = vmatpush1.bf16.msra.mxu0 %v7572
      %8238 = vmatprep.subr.bf16.mxu0 0
      %8239 = vmatpush1.bf16.msra.mxu0 %v7573
      %8240 = vmatprep.subr.bf16.mxu0 0
      %8241 = vmatpush1.bf16.msra.mxu0 %v7574
      %8242 = vmatprep.subr.bf16.mxu0 0
      %8243 = vmatpush1.bf16.msra.mxu0 %v7575
      %8244 = vmatprep.subr.bf16.mxu0 0
      %8245 = vmatpush1.bf16.msra.mxu0 %v7576
      %8246 = vmatprep.subr.bf16.mxu0 0
      %8247 = vmatpush1.bf16.msra.mxu0 %v7577
      %8248 = vmatprep.subr.bf16.mxu0 0
      %8249 = vmatpush1.bf16.msra.mxu0 %v7578
      %8250 = vmatprep.subr.bf16.mxu0 0
      %8251 = vmatpush1.bf16.msra.mxu0 %v7579
      %8252 = vmatprep.subr.bf16.mxu0 0
      %8253 = vmatpush1.bf16.msra.mxu0 %v7580
      %8254 = vmatprep.subr.bf16.mxu0 0
      %8255 = vmatpush1.bf16.msra.mxu0 %v7581
      %8256 = vmatprep.subr.bf16.mxu0 0
      %8257 = vmatpush1.bf16.msra.mxu0 %v7582
      %8258 = vmatprep.subr.bf16.mxu0 0
      %8259 = vmatpush1.bf16.msra.mxu0 %v7583
      %8260 = vmatprep.subr.bf16.mxu0 0
      %8261 = vmatpush1.bf16.msra.mxu0 %v7584
      %8262 = vmatprep.subr.bf16.mxu0 0
      %8263 = vmatpush1.bf16.msra.mxu0 %v7585
      %8264 = vmatprep.subr.bf16.mxu0 0
      %8265 = vmatpush1.bf16.msra.mxu0 %v7586
      %8266 = vmatprep.subr.bf16.mxu0 0
      %8267 = vmatpush1.bf16.msra.mxu0 %v7587
      %8268 = vmatprep.mubr.bf16.mxu0 %v6185
      %8269 = vmatmul.mubr.bf16.gmra.mrb[0].mxu0 %v6181
      %v8270 = vpop.f32.mrb[0].mxu0
      %v8271 = vadd.f32 %v8231, %v8270
      %v8272 = vpop.f32.mrb[0].mxu0
      %v8273 = vpop.f32.mrb[0].mxu0
      %v8274 = vpop.f32.mrb[0].mxu0
      %8275 = vdwg.mxu0
      %8276 = vmatprep.subr.bf16.mxu0 0
      %8277 = vmatpush1.bf16.msra.mxu0 %v7588
      %8278 = vmatprep.subr.bf16.mxu0 0
      %8279 = vmatpush1.bf16.msra.mxu0 %v7589
      %8280 = vmatprep.subr.bf16.mxu0 0
      %8281 = vmatpush1.bf16.msra.mxu0 %v7590
      %8282 = vmatprep.subr.bf16.mxu0 0
      %8283 = vmatpush1.bf16.msra.mxu0 %v7591
      %8284 = vmatprep.subr.bf16.mxu0 0
      %8285 = vmatpush1.bf16.msra.mxu0 %v7592
      %8286 = vmatprep.subr.bf16.mxu0 0
      %8287 = vmatpush1.bf16.msra.mxu0 %v7593
      %8288 = vmatprep.subr.bf16.mxu0 0
      %8289 = vmatpush1.bf16.msra.mxu0 %v7594
      %8290 = vmatprep.subr.bf16.mxu0 0
      %8291 = vmatpush1.bf16.msra.mxu0 %v7595
      %8292 = vmatprep.subr.bf16.mxu0 0
      %8293 = vmatpush1.bf16.msra.mxu0 0
      %8294 = vmatprep.subr.bf16.mxu0 0
      %8295 = vmatpush1.bf16.msra.mxu0 0
      %8296 = vmatprep.subr.bf16.mxu0 0
      %8297 = vmatpush1.bf16.msra.mxu0 0
      %8298 = vmatprep.subr.bf16.mxu0 0
      %8299 = vmatpush1.bf16.msra.mxu0 0
      %8300 = vmatprep.subr.bf16.mxu0 0
      %8301 = vmatpush1.bf16.msra.mxu0 0
      %8302 = vmatprep.subr.bf16.mxu0 0
      %8303 = vmatpush1.bf16.msra.mxu0 0
      %8304 = vmatprep.subr.bf16.mxu0 0
      %8305 = vmatpush1.bf16.msra.mxu0 0
      %8306 = vmatprep.subr.bf16.mxu0 0
      %8307 = vmatpush1.bf16.msra.mxu0 0
      %8308 = vmatprep.mubr.bf16.mxu0 0
      %8309 = vmatmul.mubr.bf16.gmra.mrb[0].mxu0 %v6187
      %v8310 = vpop.f32.mrb[0].mxu0
      %v8311 = vadd.f32 %v8271, %v8310
      %v8312 = vpop.f32.mrb[0].mxu0
      %v8313 = vpop.f32.mrb[0].mxu0
      %v8314 = vpop.f32.mrb[0].mxu0
      %8315 = vdwg.mxu0
      %v8317 = vrot.slane %v8311, 1
      %vm8319 = vcmask 1040384
      %v8320 = vsel %vm8319, %v8311, %v8317
      %v8321 = vmax.f32 %v8320, 0.0
      %8322 = vst [vmem:[%s276] sm:$0x3] %v8321
      %p8323 = scmp.lt.s32.totalorder %s18, 1
      %s8324 = scalar_select %p8323, %s18, 1
      %s8325 = smul.addr %s8324, 2
      %s8326 = scalar_lea.vmem %s7, %s8325
      // Predicated region
      $region49: #{nopool_cnn_forward.1} parent=47 // pred_check
        %p8327 = pneg %p188
      $region50: #{nopool_cnn_forward.1} parent=47 // pred_check_branch
        %8329 = sbr.rel (%p8327) target = $region52
      $region51: #{nopool_cnn_forward.1} parent=47 // pred_region
        _
      $region52: #{nopool_cnn_forward.1} parent=47 // pred_fallthru
        _
    $region48: #{nopool_cnn_forward.1} parent=5 // pred_fallthru
      _
    %p8330 = scmp.le.s32.totalorder 2, %s13
    // Predicated region
    $region53: #{nopool_cnn_forward.1} parent=5 // pred_check
      %p8331 = pneg %p8330
    $region54: #{nopool_cnn_forward.1} parent=5 // pred_check_branch
      %8333 = sbr.rel (%p8331) target = $region56
    $region55: #{nopool_cnn_forward.1} parent=5 // pred_region
      %s8334 = ssub.s32 %s13, 2
      // Predicated region
      $region57: #{nopool_cnn_forward.1} parent=55 // pred_check
        %p8335 = pneg %p194
      $region58: #{nopool_cnn_forward.1} parent=55 // pred_check_branch
        %8337 = sbr.rel (%p8335) target = $region60
      $region59: #{nopool_cnn_forward.1} parent=55 // pred_region
        %p8338 = scmp.lt.s32.totalorder %s19, 1
        %s8339 = scalar_select %p8338, %s19, 1
        %s8340 = smul.addr %s8339, 2
        %s8341 = scalar_lea.vmem %s7, %s8340
      $region60: #{nopool_cnn_forward.1} parent=55 // pred_fallthru
        _
    $region56: #{nopool_cnn_forward.1} parent=5 // pred_fallthru
      _
  $region6: #{nopool_cnn_forward.1} parent=0 // loop_footer
    %s17 = sadd.s32 1, %s13
  $region7: #{nopool_cnn_forward.1} parent=0 // loop_footer_branch
    %12 = sbr.rel target = $region3
  $region8: #{nopool_cnn_forward.1} parent=0 // loop_exit
    _

</llo_original>
